<compile_context>
chip_gen: v7x
topology: tpu7x:2x2x1
jax: 0.10.0
libtpu: 0.0.40
codegen_flags: <defaults>
</compile_context>

<pallas_src>
import functools

import numpy as np

import jax
import jax.numpy as jnp
from jax.experimental import pallas as pl
from jax.experimental.pallas import tpu as pltpu


_COMPILER_PARAMS = pltpu.CompilerParams(
    dimension_semantics=("parallel",),
    vmem_limit_bytes=32 * 1024 * 1024,
)


# ----------------------------------------------------------------------------
# Pallas kernels
# ----------------------------------------------------------------------------
def _conv_stage_kernel(*refs, bt, h_conv, kh, pool):
    """Fused conv(+bias)+ReLU(+2x2 maxpool) for `bt` images of one batch tile.

    refs (pool=True):  x(bt,H,W*Cin) bf16, we(kh,W*Cin,L) bf16, wo(kh,W*Cin,L) bf16,
                       b(1,L) f32, out(bt,Hout,L) bf16
    refs (pool=False): x, w, b, out  (same shapes, single weight)
    L = Wout_or_pooled * Cout (lane-dense, channel-minor).
    """
    if pool:
        x_ref, we_ref, wo_ref, b_ref, o_ref = refs
    else:
        x_ref, we_ref, b_ref, o_ref = refs
        wo_ref = None

    lout = we_ref.shape[-1]
    h_out = h_conv // 2 if pool else h_conv
    bias = b_ref[...]  # (1, L) f32, broadcasts over rows

    if pool:
        # 0/1 selection matrices picking even / odd conv rows (vertical pool).
        # Built once (hoisted out of the image loop); tiny MXU cost, lowering-safe.
        r = jax.lax.broadcasted_iota(jnp.int32, (h_out, h_conv), 0)
        c = jax.lax.broadcasted_iota(jnp.int32, (h_out, h_conv), 1)
        sel_top = (c == 2 * r).astype(jnp.float32)
        sel_bot = (c == 2 * r + 1).astype(jnp.float32)

    for img in range(bt):
        xi = x_ref[img]                                   # (H, W*Cin) bf16
        acc_e = jnp.zeros((h_conv, lout), jnp.float32)
        acc_o = jnp.zeros((h_conv, lout), jnp.float32) if pool else None
        for dy in range(kh):
            a = xi[dy:dy + h_conv, :]                     # shifted row window
            acc_e = acc_e + jnp.dot(a, we_ref[dy],
                                    preferred_element_type=jnp.float32)
            if pool:
                acc_o = acc_o + jnp.dot(a, wo_ref[dy],
                                        preferred_element_type=jnp.float32)
        y = jnp.maximum(acc_e + bias, 0.0)                # bias + ReLU (f32)
        if pool:
            # horizontal (x) pool: even-x vs odd-x accumulators, element-wise max
            y = jnp.maximum(y, jnp.maximum(acc_o + bias, 0.0))
            # vertical (y) pool: max of adjacent conv rows via selection matmuls
            y = jnp.maximum(
                jnp.dot(sel_top, y, preferred_element_type=jnp.float32),
                jnp.dot(sel_bot, y, preferred_element_type=jnp.float32))
        o_ref[img] = y.astype(o_ref.dtype)


def _fc_head_kernel(cnn_ref, act_ref, w1c_ref, w1a_ref, b1_ref, w2_ref, b2_ref,
                    o_ref):
    """Fused concat + fc1 + ReLU + fc2.

    concat([cnn, a]) @ W1 == cnn @ W1c + a @ W1a ; fc2 is an element-wise
    multiply + lane reduction (avoids a 1-column MXU matmul / masked store).
    """
    h = jnp.dot(cnn_ref[...], w1c_ref[...], preferred_element_type=jnp.float32)
    h = h + jnp.dot(act_ref[...], w1a_ref[...], preferred_element_type=jnp.float32)
    h = jnp.maximum(h + b1_ref[...], 0.0)                           # fc1 + ReLU
    q = jnp.sum(h * w2_ref[...], axis=-1, keepdims=True) + b2_ref[...]  # fc2
    o_ref[...] = q.astype(o_ref.dtype)


# ----------------------------------------------------------------------------
# pallas_call wrappers (batch-tiled grids, "parallel" for megacore)
# ----------------------------------------------------------------------------
def _pick_batch_tile(batch):
    """Largest image count per grid step (<=8) that divides the batch."""
    for cand in (8, 4, 2):
        if cand < batch and batch % cand == 0:
            return cand
    return batch


def _pick_fc_tile(batch):
    for cand in (64, 32, 16, 8):
        if cand < batch and batch % cand == 0:
            return cand
    return batch


def _conv_stage_call(x, we, wo, bias, *, batch, kh, pool, h_conv, h_out, lout):
    """x: (batch, H, W*Cin) bf16 -> (batch, Hout, L) bf16."""
    _, h_in, wc = x.shape
    bt = _pick_batch_tile(batch)
    kernel = functools.partial(_conv_stage_kernel, bt=bt, h_conv=h_conv,
                               kh=kh, pool=pool)
    in_specs = [pl.BlockSpec((bt, h_in, wc), lambda i: (i, 0, 0)),
                pl.BlockSpec(we.shape, lambda i: (0, 0, 0))]
    inputs = [x, we]
    if pool:
        in_specs.append(pl.BlockSpec(wo.shape, lambda i: (0, 0, 0)))
        inputs.append(wo)
    in_specs.append(pl.BlockSpec(bias.shape, lambda i: (0, 0)))
    inputs.append(bias)
    return pl.pallas_call(
        kernel,
        out_shape=jax.ShapeDtypeStruct((batch, h_out, lout), jnp.bfloat16),
        grid=(batch // bt,),
        in_specs=in_specs,
        out_specs=pl.BlockSpec((bt, h_out, lout), lambda i: (i, 0, 0)),
        compiler_params=_COMPILER_PARAMS,
    )(*inputs)


def _fc_head_call(cnn, act, w1c, w1a, b1, w2, b2, *, batch):
    d1 = cnn.shape[-1]
    na = act.shape[-1]
    bt = _pick_fc_tile(batch)
    return pl.pallas_call(
        _fc_head_kernel,
        out_shape=jax.ShapeDtypeStruct((batch, 1), jnp.float32),
        grid=(batch // bt,),
        in_specs=[
            pl.BlockSpec((bt, d1), lambda i: (i, 0)),
            pl.BlockSpec((bt, na), lambda i: (i, 0)),
            pl.BlockSpec(w1c.shape, lambda i: (0, 0)),
            pl.BlockSpec(w1a.shape, lambda i: (0, 0)),
            pl.BlockSpec(b1.shape, lambda i: (0, 0)),
            pl.BlockSpec(w2.shape, lambda i: (0, 0)),
            pl.BlockSpec(b2.shape, lambda i: (0, 0)),
        ],
        out_specs=pl.BlockSpec((bt, 1), lambda i: (i, 0)),
        compiler_params=_COMPILER_PARAMS,
    )(cnn, act, w1c, w1a, b1, w2, b2)


# ----------------------------------------------------------------------------
# Parameter construction (mirrors the PyTorch module's init distributions)
# ----------------------------------------------------------------------------
def _band_weights(w_oihw, w_in, pool):
    """Row-banded conv weights.

    band[dy][(x+dx)*Cin + ci, xo*Cout + co] = w[co, ci, dy, dx]  so that
    conv_row(y) = sum_dy input_row(y+dy) @ band[dy].
    When `pool`, the columns are split by output-x parity (even / odd), which
    turns the horizontal 2x1 max-pool into an element-wise max.
    """
    cout, cin, kh, kw = w_oihw.shape
    w_out = w_in - kw + 1
    band = np.zeros((kh, w_in, cin, w_out, cout), np.float32)
    for dy in range(kh):
        for dx in range(kw):
            blk = w_oihw[:, :, dy, dx].T                  # (cin, cout)
            for x in range(w_out):
                band[dy, x + dx, :, x, :] = blk
    band = band.reshape(kh, w_in * cin, w_out * cout)
    if not pool:
        return band, None, w_out
    wp = w_out // 2
    band = band[:, :, : wp * 2 * cout].reshape(kh, w_in * cin, wp, 2, cout)
    we = band[:, :, :, 0, :].reshape(kh, w_in * cin, wp * cout)
    wo = band[:, :, :, 1, :].reshape(kh, w_in * cin, wp * cout)
    return we, wo, wp


def build_critic(key, nb_states, nb_actions, init_w=3e-5):
    """Returns (params, forward) where forward(params, x_nchw, a) -> (B, 1)."""
    c_in, h0, w0 = nb_states
    keys = jax.random.split(key, 10)

    def fanin_init(k, shape, fanin=None):
        fanin = fanin or shape[0]
        v = 1.0 / np.sqrt(float(fanin))
        return jax.random.uniform(k, shape, jnp.float32, minval=-v, maxval=v)

    conv_cfg = [(5, 5, c_in, 32, True),    # conv1 + pool1
                (5, 5, 32, 32, True),      # conv2 + pool2
                (4, 4, 32, 32, False)]     # conv3 (no pool)

    params = {}
    stage_meta = []
    h, w = h0, w0
    for s, (kh, kw, cin, cout, pool) in enumerate(conv_cfg):
        # PyTorch weight layout (Cout, Cin, kh, kw); fanin_init uses size[0]=Cout.
        w_oihw = np.asarray(fanin_init(keys[2 * s], (cout, cin, kh, kw)))
        bb = 1.0 / np.sqrt(float(cin * kh * kw))          # default torch bias init
        bias = np.asarray(jax.random.uniform(keys[2 * s + 1], (cout,),
                                             jnp.float32, minval=-bb, maxval=bb))
        h_conv = h - kh + 1
        we, wo, w_cols = _band_weights(w_oihw, w, pool)
        lout = w_cols * cout
        params[f"c{s}_we"] = jnp.asarray(we, jnp.bfloat16)
        if pool:
            params[f"c{s}_wo"] = jnp.asarray(wo, jnp.bfloat16)
        params[f"c{s}_b"] = jnp.asarray(np.tile(bias, w_cols).reshape(1, lout),
                                        jnp.float32)
        h_out = h_conv // 2 if pool else h_conv
        stage_meta.append(dict(idx=s, kh=kh, pool=pool, h_conv=h_conv,
                               h_out=h_out, lout=lout))
        h, w = h_out, w_cols

    h3, w3, c3 = h, w, 32
    cnn_dims = c3 * h3 * w3

    # --- FC head ----------------------------------------------------------
    fc1_in = cnn_dims + nb_actions
    fc1_w = np.asarray(fanin_init(keys[6], (512, fc1_in)))     # fanin = 512
    fb = 1.0 / np.sqrt(float(fc1_in))
    fc1_b = jax.random.uniform(keys[7], (512,), jnp.float32, minval=-fb, maxval=fb)
    # Fold torch's NCHW view(batch,-1) flatten into the fc1 weight rows: our CNN
    # feature vector is NHWC-flat (h, w, c); torch's is NCHW-flat (c, h, w).
    w_cnn = fc1_w[:, :cnn_dims].reshape(512, c3, h3, w3)
    w_cnn = np.transpose(w_cnn, (0, 2, 3, 1)).reshape(512, cnn_dims)
    params["w1c"] = jnp.asarray(w_cnn.T, jnp.bfloat16)          # (cnn_dims, 512)
    params["w1a"] = jnp.asarray(fc1_w[:, cnn_dims:].T, jnp.bfloat16)  # (na, 512)
    params["b1"] = jnp.asarray(fc1_b, jnp.float32).reshape(1, 512)
    params["w2"] = jax.random.uniform(keys[8], (1, 512), jnp.float32,
                                      minval=-init_w, maxval=init_w)
    params["b2"] = jax.random.uniform(keys[9], (1, 1), jnp.float32,
                                      minval=-init_w, maxval=init_w)

    def forward(p, x_nchw, a):
        batch = x_nchw.shape[0]
        # NCHW -> channels-minor (B, H, W*C), cast once to bf16.
        x = jnp.transpose(x_nchw, (0, 2, 3, 1)).reshape(batch, h0, w0 * c_in)
        x = x.astype(jnp.bfloat16)
        for m in stage_meta:
            s = m["idx"]
            x = _conv_stage_call(
                x, p[f"c{s}_we"], p.get(f"c{s}_wo"), p[f"c{s}_b"],
                batch=batch, kh=m["kh"], pool=m["pool"],
                h_conv=m["h_conv"], h_out=m["h_out"], lout=m["lout"])
        cnn = x.reshape(batch, cnn_dims)        # per-image (h, w, c) flatten
        return _fc_head_call(cnn, a.astype(jnp.bfloat16),
                             p["w1c"], p["w1a"], p["b1"], p["w2"], p["b2"],
                             batch=batch)

    return params, forward


# ----------------------------------------------------------------------------
if __name__ == "__main__":
    key = jax.random.PRNGKey(0)
    k_params, k_x, k_a = jax.random.split(key, 3)

    # (C, H, W): 28 -conv5-> 24 -pool-> 12 -conv5-> 8 -pool-> 4 -conv4-> 1
    nb_states = (4, 28, 28)
    nb_actions = 4
    batch = 2

    params, forward = build_critic(k_params, nb_states, nb_actions, init_w=3e-5)

    x = jax.random.uniform(k_x, (batch,) + nb_states, jnp.float32)
    a = jax.random.uniform(k_a, (batch, nb_actions), jnp.float32)

    q = jax.jit(forward)(params, x, a)
    q = jax.block_until_ready(q)
    assert q.shape == (batch, 1), q.shape
    assert bool(jnp.all(jnp.isfinite(q)))
    print("KERNEL_OK")
</pallas_src>

<mosaic_0001>
module attributes {stable_mosaic.version = 11 : i64} {
  func.func @_conv_stage_kernel(%arg0: i32, %arg1: memref<2x28x112xbf16, #tpu.memory_space<vmem>>, %arg2: memref<5x112x384xbf16, #tpu.memory_space<vmem>>, %arg3: memref<5x112x384xbf16, #tpu.memory_space<vmem>>, %arg4: memref<1x384xf32, #tpu.memory_space<vmem>>, %arg5: memref<2x12x384xbf16, #tpu.memory_space<vmem>>) attributes {dimension_semantics = [#tpu.dimension_semantics<parallel>], iteration_bounds = array<i64: 1>, scalar_prefetch = 0 : i64, scratch_operands = 0 : i64, tpu.core_type = #tpu.core_type<tc>, window_params = [{transform_indices = @transform_0, window_bounds = array<i64: 2, 28, 112>}, {pipeline_mode = #tpu.pipeline_mode<synchronous>, transform_indices = @transform_1, window_bounds = array<i64: 5, 112, 384>}, {pipeline_mode = #tpu.pipeline_mode<synchronous>, transform_indices = @transform_2, window_bounds = array<i64: 5, 112, 384>}, {pipeline_mode = #tpu.pipeline_mode<synchronous>, transform_indices = @transform_3, window_bounds = array<i64: 1, 384>}, {transform_indices = @transform_4, window_bounds = array<i64: 2, 12, 384>}]} {
    %c0 = arith.constant 0 : index
    %c0_0 = arith.constant 0 : index
    %0 = vector.load %arg4[%c0, %c0_0] : memref<1x384xf32, #tpu.memory_space<vmem>>, vector<1x384xf32>
    %1 = tpu.iota {dimensions = array<i32: 0>} : vector<12x24xi32>
    %2 = tpu.iota {dimensions = array<i32: 1>} : vector<12x24xi32>
    %c2_i32 = arith.constant 2 : i32
    %3 = vector.broadcast %c2_i32 : i32 to vector<12x24xi32>
    %4 = arith.muli %3, %1 : vector<12x24xi32>
    %5 = arith.cmpi eq, %2, %4 : vector<12x24xi32>
    %6 = arith.extui %5 : vector<12x24xi1> to vector<12x24xi32>
    %7 = arith.sitofp %6 : vector<12x24xi32> to vector<12x24xf32>
    %c2_i32_1 = arith.constant 2 : i32
    %8 = vector.broadcast %c2_i32_1 : i32 to vector<12x24xi32>
    %9 = arith.muli %8, %1 : vector<12x24xi32>
    %c1_i32 = arith.constant 1 : i32
    %10 = vector.broadcast %c1_i32 : i32 to vector<12x24xi32>
    %11 = arith.addi %9, %10 : vector<12x24xi32>
    %12 = arith.cmpi eq, %2, %11 : vector<12x24xi32>
    %13 = arith.extui %12 : vector<12x24xi1> to vector<12x24xi32>
    %14 = arith.sitofp %13 : vector<12x24xi32> to vector<12x24xf32>
    %c0_2 = arith.constant 0 : index
    %c0_3 = arith.constant 0 : index
    %c0_4 = arith.constant 0 : index
    %15 = vector.load %arg1[%c0_2, %c0_3, %c0_4] : memref<2x28x112xbf16, #tpu.memory_space<vmem>>, vector<1x28x112xbf16>
    %16 = vector.shape_cast %15 : vector<1x28x112xbf16> to vector<28x112xbf16>
    %cst = arith.constant 0.000000e+00 : f32
    %17 = vector.broadcast %cst : f32 to vector<24x384xf32>
    %cst_5 = arith.constant 0.000000e+00 : f32
    %18 = vector.broadcast %cst_5 : f32 to vector<24x384xf32>
    %19 = vector.extract_strided_slice %16 {offsets = [0, 0], sizes = [24, 112], strides = [1, 1]} : vector<28x112xbf16> to vector<24x112xbf16>
    %c0_6 = arith.constant 0 : index
    %c0_7 = arith.constant 0 : index
    %c0_8 = arith.constant 0 : index
    %20 = vector.load %arg2[%c0_6, %c0_7, %c0_8] : memref<5x112x384xbf16, #tpu.memory_space<vmem>>, vector<1x112x384xbf16>
    %21 = vector.shape_cast %20 : vector<1x112x384xbf16> to vector<112x384xbf16>
    %cst_9 = arith.constant dense<0.000000e+00> : vector<24x384xf32>
    %22 = tpu.matmul %19, %21, %cst_9 {dimension_numbers = #tpu.dot_dimension_numbers<[1], [0], [0], [1], [0, 0, 1, 1], [], []>} : vector<24x112xbf16>, vector<112x384xbf16>, vector<24x384xf32> -> vector<24x384xf32>
    %23 = arith.addf %17, %22 : vector<24x384xf32>
    %c0_10 = arith.constant 0 : index
    %c0_11 = arith.constant 0 : index
    %c0_12 = arith.constant 0 : index
    %24 = vector.load %arg3[%c0_10, %c0_11, %c0_12] : memref<5x112x384xbf16, #tpu.memory_space<vmem>>, vector<1x112x384xbf16>
    %25 = vector.shape_cast %24 : vector<1x112x384xbf16> to vector<112x384xbf16>
    %cst_13 = arith.constant dense<0.000000e+00> : vector<24x384xf32>
    %26 = tpu.matmul %19, %25, %cst_13 {dimension_numbers = #tpu.dot_dimension_numbers<[1], [0], [0], [1], [0, 0, 1, 1], [], []>} : vector<24x112xbf16>, vector<112x384xbf16>, vector<24x384xf32> -> vector<24x384xf32>
    %27 = arith.addf %18, %26 : vector<24x384xf32>
    %28 = vector.extract_strided_slice %16 {offsets = [1, 0], sizes = [24, 112], strides = [1, 1]} : vector<28x112xbf16> to vector<24x112xbf16>
    %c1 = arith.constant 1 : index
    %c0_14 = arith.constant 0 : index
    %c0_15 = arith.constant 0 : index
    %29 = vector.load %arg2[%c1, %c0_14, %c0_15] : memref<5x112x384xbf16, #tpu.memory_space<vmem>>, vector<1x112x384xbf16>
    %30 = vector.shape_cast %29 : vector<1x112x384xbf16> to vector<112x384xbf16>
    %cst_16 = arith.constant dense<0.000000e+00> : vector<24x384xf32>
    %31 = tpu.matmul %28, %30, %cst_16 {dimension_numbers = #tpu.dot_dimension_numbers<[1], [0], [0], [1], [0, 0, 1, 1], [], []>} : vector<24x112xbf16>, vector<112x384xbf16>, vector<24x384xf32> -> vector<24x384xf32>
    %32 = arith.addf %23, %31 : vector<24x384xf32>
    %c1_17 = arith.constant 1 : index
    %c0_18 = arith.constant 0 : index
    %c0_19 = arith.constant 0 : index
    %33 = vector.load %arg3[%c1_17, %c0_18, %c0_19] : memref<5x112x384xbf16, #tpu.memory_space<vmem>>, vector<1x112x384xbf16>
    %34 = vector.shape_cast %33 : vector<1x112x384xbf16> to vector<112x384xbf16>
    %cst_20 = arith.constant dense<0.000000e+00> : vector<24x384xf32>
    %35 = tpu.matmul %28, %34, %cst_20 {dimension_numbers = #tpu.dot_dimension_numbers<[1], [0], [0], [1], [0, 0, 1, 1], [], []>} : vector<24x112xbf16>, vector<112x384xbf16>, vector<24x384xf32> -> vector<24x384xf32>
    %36 = arith.addf %27, %35 : vector<24x384xf32>
    %37 = vector.extract_strided_slice %16 {offsets = [2, 0], sizes = [24, 112], strides = [1, 1]} : vector<28x112xbf16> to vector<24x112xbf16>
    %c2 = arith.constant 2 : index
    %c0_21 = arith.constant 0 : index
    %c0_22 = arith.constant 0 : index
    %38 = vector.load %arg2[%c2, %c0_21, %c0_22] : memref<5x112x384xbf16, #tpu.memory_space<vmem>>, vector<1x112x384xbf16>
    %39 = vector.shape_cast %38 : vector<1x112x384xbf16> to vector<112x384xbf16>
    %cst_23 = arith.constant dense<0.000000e+00> : vector<24x384xf32>
    %40 = tpu.matmul %37, %39, %cst_23 {dimension_numbers = #tpu.dot_dimension_numbers<[1], [0], [0], [1], [0, 0, 1, 1], [], []>} : vector<24x112xbf16>, vector<112x384xbf16>, vector<24x384xf32> -> vector<24x384xf32>
    %41 = arith.addf %32, %40 : vector<24x384xf32>
    %c2_24 = arith.constant 2 : index
    %c0_25 = arith.constant 0 : index
    %c0_26 = arith.constant 0 : index
    %42 = vector.load %arg3[%c2_24, %c0_25, %c0_26] : memref<5x112x384xbf16, #tpu.memory_space<vmem>>, vector<1x112x384xbf16>
    %43 = vector.shape_cast %42 : vector<1x112x384xbf16> to vector<112x384xbf16>
    %cst_27 = arith.constant dense<0.000000e+00> : vector<24x384xf32>
    %44 = tpu.matmul %37, %43, %cst_27 {dimension_numbers = #tpu.dot_dimension_numbers<[1], [0], [0], [1], [0, 0, 1, 1], [], []>} : vector<24x112xbf16>, vector<112x384xbf16>, vector<24x384xf32> -> vector<24x384xf32>
    %45 = arith.addf %36, %44 : vector<24x384xf32>
    %46 = vector.extract_strided_slice %16 {offsets = [3, 0], sizes = [24, 112], strides = [1, 1]} : vector<28x112xbf16> to vector<24x112xbf16>
    %c3 = arith.constant 3 : index
    %c0_28 = arith.constant 0 : index
    %c0_29 = arith.constant 0 : index
    %47 = vector.load %arg2[%c3, %c0_28, %c0_29] : memref<5x112x384xbf16, #tpu.memory_space<vmem>>, vector<1x112x384xbf16>
    %48 = vector.shape_cast %47 : vector<1x112x384xbf16> to vector<112x384xbf16>
    %cst_30 = arith.constant dense<0.000000e+00> : vector<24x384xf32>
    %49 = tpu.matmul %46, %48, %cst_30 {dimension_numbers = #tpu.dot_dimension_numbers<[1], [0], [0], [1], [0, 0, 1, 1], [], []>} : vector<24x112xbf16>, vector<112x384xbf16>, vector<24x384xf32> -> vector<24x384xf32>
    %50 = arith.addf %41, %49 : vector<24x384xf32>
    %c3_31 = arith.constant 3 : index
    %c0_32 = arith.constant 0 : index
    %c0_33 = arith.constant 0 : index
    %51 = vector.load %arg3[%c3_31, %c0_32, %c0_33] : memref<5x112x384xbf16, #tpu.memory_space<vmem>>, vector<1x112x384xbf16>
    %52 = vector.shape_cast %51 : vector<1x112x384xbf16> to vector<112x384xbf16>
    %cst_34 = arith.constant dense<0.000000e+00> : vector<24x384xf32>
    %53 = tpu.matmul %46, %52, %cst_34 {dimension_numbers = #tpu.dot_dimension_numbers<[1], [0], [0], [1], [0, 0, 1, 1], [], []>} : vector<24x112xbf16>, vector<112x384xbf16>, vector<24x384xf32> -> vector<24x384xf32>
    %54 = arith.addf %45, %53 : vector<24x384xf32>
    %55 = vector.extract_strided_slice %16 {offsets = [4, 0], sizes = [24, 112], strides = [1, 1]} : vector<28x112xbf16> to vector<24x112xbf16>
    %c4 = arith.constant 4 : index
    %c0_35 = arith.constant 0 : index
    %c0_36 = arith.constant 0 : index
    %56 = vector.load %arg2[%c4, %c0_35, %c0_36] : memref<5x112x384xbf16, #tpu.memory_space<vmem>>, vector<1x112x384xbf16>
    %57 = vector.shape_cast %56 : vector<1x112x384xbf16> to vector<112x384xbf16>
    %cst_37 = arith.constant dense<0.000000e+00> : vector<24x384xf32>
    %58 = tpu.matmul %55, %57, %cst_37 {dimension_numbers = #tpu.dot_dimension_numbers<[1], [0], [0], [1], [0, 0, 1, 1], [], []>} : vector<24x112xbf16>, vector<112x384xbf16>, vector<24x384xf32> -> vector<24x384xf32>
    %59 = arith.addf %50, %58 : vector<24x384xf32>
    %c4_38 = arith.constant 4 : index
    %c0_39 = arith.constant 0 : index
    %c0_40 = arith.constant 0 : index
    %60 = vector.load %arg3[%c4_38, %c0_39, %c0_40] : memref<5x112x384xbf16, #tpu.memory_space<vmem>>, vector<1x112x384xbf16>
    %61 = vector.shape_cast %60 : vector<1x112x384xbf16> to vector<112x384xbf16>
    %cst_41 = arith.constant dense<0.000000e+00> : vector<24x384xf32>
    %62 = tpu.matmul %55, %61, %cst_41 {dimension_numbers = #tpu.dot_dimension_numbers<[1], [0], [0], [1], [0, 0, 1, 1], [], []>} : vector<24x112xbf16>, vector<112x384xbf16>, vector<24x384xf32> -> vector<24x384xf32>
    %63 = arith.addf %54, %62 : vector<24x384xf32>
    %64 = vector.broadcast %0 : vector<1x384xf32> to vector<24x384xf32>
    %65 = arith.addf %59, %64 : vector<24x384xf32>
    %cst_42 = arith.constant 0.000000e+00 : f32
    %66 = vector.broadcast %cst_42 : f32 to vector<24x384xf32>
    %67 = arith.maximumf %65, %66 : vector<24x384xf32>
    %68 = vector.broadcast %0 : vector<1x384xf32> to vector<24x384xf32>
    %69 = arith.addf %63, %68 : vector<24x384xf32>
    %cst_43 = arith.constant 0.000000e+00 : f32
    %70 = vector.broadcast %cst_43 : f32 to vector<24x384xf32>
    %71 = arith.maximumf %69, %70 : vector<24x384xf32>
    %72 = arith.maximumf %67, %71 : vector<24x384xf32>
    %cst_44 = arith.constant dense<0.000000e+00> : vector<12x384xf32>
    %73 = tpu.matmul %7, %72, %cst_44 {dimension_numbers = #tpu.dot_dimension_numbers<[1], [0], [0], [1], [0, 0, 1, 1], [], []>} : vector<12x24xf32>, vector<24x384xf32>, vector<12x384xf32> -> vector<12x384xf32>
    %cst_45 = arith.constant dense<0.000000e+00> : vector<12x384xf32>
    %74 = tpu.matmul %14, %72, %cst_45 {dimension_numbers = #tpu.dot_dimension_numbers<[1], [0], [0], [1], [0, 0, 1, 1], [], []>} : vector<12x24xf32>, vector<24x384xf32>, vector<12x384xf32> -> vector<12x384xf32>
    %75 = arith.maximumf %73, %74 : vector<12x384xf32>
    %76 = arith.truncf %75 : vector<12x384xf32> to vector<12x384xbf16>
    %c0_46 = arith.constant 0 : index
    %c0_47 = arith.constant 0 : index
    %c0_48 = arith.constant 0 : index
    %77 = vector.load %arg5[%c0_46, %c0_47, %c0_48] : memref<2x12x384xbf16, #tpu.memory_space<vmem>>, vector<1x12x384xbf16>
    %78 = vector.shape_cast %77 : vector<1x12x384xbf16> to vector<12x384xbf16>
    %79 = vector.shape_cast %76 : vector<12x384xbf16> to vector<1x12x384xbf16>
    tpu.vector_store %arg5[%c0_46, %c0_47, %c0_48], %79 {strides = array<i32>} : memref<2x12x384xbf16, #tpu.memory_space<vmem>>, vector<1x12x384xbf16>,
    %c1_49 = arith.constant 1 : index
    %c0_50 = arith.constant 0 : index
    %c0_51 = arith.constant 0 : index
    %80 = vector.load %arg1[%c1_49, %c0_50, %c0_51] : memref<2x28x112xbf16, #tpu.memory_space<vmem>>, vector<1x28x112xbf16>
    %81 = vector.shape_cast %80 : vector<1x28x112xbf16> to vector<28x112xbf16>
    %cst_52 = arith.constant 0.000000e+00 : f32
    %82 = vector.broadcast %cst_52 : f32 to vector<24x384xf32>
    %cst_53 = arith.constant 0.000000e+00 : f32
    %83 = vector.broadcast %cst_53 : f32 to vector<24x384xf32>
    %84 = vector.extract_strided_slice %81 {offsets = [0, 0], sizes = [24, 112], strides = [1, 1]} : vector<28x112xbf16> to vector<24x112xbf16>
    %c0_54 = arith.constant 0 : index
    %c0_55 = arith.constant 0 : index
    %c0_56 = arith.constant 0 : index
    %85 = vector.load %arg2[%c0_54, %c0_55, %c0_56] : memref<5x112x384xbf16, #tpu.memory_space<vmem>>, vector<1x112x384xbf16>
    %86 = vector.shape_cast %85 : vector<1x112x384xbf16> to vector<112x384xbf16>
    %cst_57 = arith.constant dense<0.000000e+00> : vector<24x384xf32>
    %87 = tpu.matmul %84, %86, %cst_57 {dimension_numbers = #tpu.dot_dimension_numbers<[1], [0], [0], [1], [0, 0, 1, 1], [], []>} : vector<24x112xbf16>, vector<112x384xbf16>, vector<24x384xf32> -> vector<24x384xf32>
    %88 = arith.addf %82, %87 : vector<24x384xf32>
    %c0_58 = arith.constant 0 : index
    %c0_59 = arith.constant 0 : index
    %c0_60 = arith.constant 0 : index
    %89 = vector.load %arg3[%c0_58, %c0_59, %c0_60] : memref<5x112x384xbf16, #tpu.memory_space<vmem>>, vector<1x112x384xbf16>
    %90 = vector.shape_cast %89 : vector<1x112x384xbf16> to vector<112x384xbf16>
    %cst_61 = arith.constant dense<0.000000e+00> : vector<24x384xf32>
    %91 = tpu.matmul %84, %90, %cst_61 {dimension_numbers = #tpu.dot_dimension_numbers<[1], [0], [0], [1], [0, 0, 1, 1], [], []>} : vector<24x112xbf16>, vector<112x384xbf16>, vector<24x384xf32> -> vector<24x384xf32>
    %92 = arith.addf %83, %91 : vector<24x384xf32>
    %93 = vector.extract_strided_slice %81 {offsets = [1, 0], sizes = [24, 112], strides = [1, 1]} : vector<28x112xbf16> to vector<24x112xbf16>
    %c1_62 = arith.constant 1 : index
    %c0_63 = arith.constant 0 : index
    %c0_64 = arith.constant 0 : index
    %94 = vector.load %arg2[%c1_62, %c0_63, %c0_64] : memref<5x112x384xbf16, #tpu.memory_space<vmem>>, vector<1x112x384xbf16>
    %95 = vector.shape_cast %94 : vector<1x112x384xbf16> to vector<112x384xbf16>
    %cst_65 = arith.constant dense<0.000000e+00> : vector<24x384xf32>
    %96 = tpu.matmul %93, %95, %cst_65 {dimension_numbers = #tpu.dot_dimension_numbers<[1], [0], [0], [1], [0, 0, 1, 1], [], []>} : vector<24x112xbf16>, vector<112x384xbf16>, vector<24x384xf32> -> vector<24x384xf32>
    %97 = arith.addf %88, %96 : vector<24x384xf32>
    %c1_66 = arith.constant 1 : index
    %c0_67 = arith.constant 0 : index
    %c0_68 = arith.constant 0 : index
    %98 = vector.load %arg3[%c1_66, %c0_67, %c0_68] : memref<5x112x384xbf16, #tpu.memory_space<vmem>>, vector<1x112x384xbf16>
    %99 = vector.shape_cast %98 : vector<1x112x384xbf16> to vector<112x384xbf16>
    %cst_69 = arith.constant dense<0.000000e+00> : vector<24x384xf32>
    %100 = tpu.matmul %93, %99, %cst_69 {dimension_numbers = #tpu.dot_dimension_numbers<[1], [0], [0], [1], [0, 0, 1, 1], [], []>} : vector<24x112xbf16>, vector<112x384xbf16>, vector<24x384xf32> -> vector<24x384xf32>
    %101 = arith.addf %92, %100 : vector<24x384xf32>
    %102 = vector.extract_strided_slice %81 {offsets = [2, 0], sizes = [24, 112], strides = [1, 1]} : vector<28x112xbf16> to vector<24x112xbf16>
    %c2_70 = arith.constant 2 : index
    %c0_71 = arith.constant 0 : index
    %c0_72 = arith.constant 0 : index
    %103 = vector.load %arg2[%c2_70, %c0_71, %c0_72] : memref<5x112x384xbf16, #tpu.memory_space<vmem>>, vector<1x112x384xbf16>
    %104 = vector.shape_cast %103 : vector<1x112x384xbf16> to vector<112x384xbf16>
    %cst_73 = arith.constant dense<0.000000e+00> : vector<24x384xf32>
    %105 = tpu.matmul %102, %104, %cst_73 {dimension_numbers = #tpu.dot_dimension_numbers<[1], [0], [0], [1], [0, 0, 1, 1], [], []>} : vector<24x112xbf16>, vector<112x384xbf16>, vector<24x384xf32> -> vector<24x384xf32>
    %106 = arith.addf %97, %105 : vector<24x384xf32>
    %c2_74 = arith.constant 2 : index
    %c0_75 = arith.constant 0 : index
    %c0_76 = arith.constant 0 : index
    %107 = vector.load %arg3[%c2_74, %c0_75, %c0_76] : memref<5x112x384xbf16, #tpu.memory_space<vmem>>, vector<1x112x384xbf16>
    %108 = vector.shape_cast %107 : vector<1x112x384xbf16> to vector<112x384xbf16>
    %cst_77 = arith.constant dense<0.000000e+00> : vector<24x384xf32>
    %109 = tpu.matmul %102, %108, %cst_77 {dimension_numbers = #tpu.dot_dimension_numbers<[1], [0], [0], [1], [0, 0, 1, 1], [], []>} : vector<24x112xbf16>, vector<112x384xbf16>, vector<24x384xf32> -> vector<24x384xf32>
    %110 = arith.addf %101, %109 : vector<24x384xf32>
    %111 = vector.extract_strided_slice %81 {offsets = [3, 0], sizes = [24, 112], strides = [1, 1]} : vector<28x112xbf16> to vector<24x112xbf16>
    %c3_78 = arith.constant 3 : index
    %c0_79 = arith.constant 0 : index
    %c0_80 = arith.constant 0 : index
    %112 = vector.load %arg2[%c3_78, %c0_79, %c0_80] : memref<5x112x384xbf16, #tpu.memory_space<vmem>>, vector<1x112x384xbf16>
    %113 = vector.shape_cast %112 : vector<1x112x384xbf16> to vector<112x384xbf16>
    %cst_81 = arith.constant dense<0.000000e+00> : vector<24x384xf32>
    %114 = tpu.matmul %111, %113, %cst_81 {dimension_numbers = #tpu.dot_dimension_numbers<[1], [0], [0], [1], [0, 0, 1, 1], [], []>} : vector<24x112xbf16>, vector<112x384xbf16>, vector<24x384xf32> -> vector<24x384xf32>
    %115 = arith.addf %106, %114 : vector<24x384xf32>
    %c3_82 = arith.constant 3 : index
    %c0_83 = arith.constant 0 : index
    %c0_84 = arith.constant 0 : index
    %116 = vector.load %arg3[%c3_82, %c0_83, %c0_84] : memref<5x112x384xbf16, #tpu.memory_space<vmem>>, vector<1x112x384xbf16>
    %117 = vector.shape_cast %116 : vector<1x112x384xbf16> to vector<112x384xbf16>
    %cst_85 = arith.constant dense<0.000000e+00> : vector<24x384xf32>
    %118 = tpu.matmul %111, %117, %cst_85 {dimension_numbers = #tpu.dot_dimension_numbers<[1], [0], [0], [1], [0, 0, 1, 1], [], []>} : vector<24x112xbf16>, vector<112x384xbf16>, vector<24x384xf32> -> vector<24x384xf32>
    %119 = arith.addf %110, %118 : vector<24x384xf32>
    %120 = vector.extract_strided_slice %81 {offsets = [4, 0], sizes = [24, 112], strides = [1, 1]} : vector<28x112xbf16> to vector<24x112xbf16>
    %c4_86 = arith.constant 4 : index
    %c0_87 = arith.constant 0 : index
    %c0_88 = arith.constant 0 : index
    %121 = vector.load %arg2[%c4_86, %c0_87, %c0_88] : memref<5x112x384xbf16, #tpu.memory_space<vmem>>, vector<1x112x384xbf16>
    %122 = vector.shape_cast %121 : vector<1x112x384xbf16> to vector<112x384xbf16>
    %cst_89 = arith.constant dense<0.000000e+00> : vector<24x384xf32>
    %123 = tpu.matmul %120, %122, %cst_89 {dimension_numbers = #tpu.dot_dimension_numbers<[1], [0], [0], [1], [0, 0, 1, 1], [], []>} : vector<24x112xbf16>, vector<112x384xbf16>, vector<24x384xf32> -> vector<24x384xf32>
    %124 = arith.addf %115, %123 : vector<24x384xf32>
    %c4_90 = arith.constant 4 : index
    %c0_91 = arith.constant 0 : index
    %c0_92 = arith.constant 0 : index
    %125 = vector.load %arg3[%c4_90, %c0_91, %c0_92] : memref<5x112x384xbf16, #tpu.memory_space<vmem>>, vector<1x112x384xbf16>
    %126 = vector.shape_cast %125 : vector<1x112x384xbf16> to vector<112x384xbf16>
    %cst_93 = arith.constant dense<0.000000e+00> : vector<24x384xf32>
    %127 = tpu.matmul %120, %126, %cst_93 {dimension_numbers = #tpu.dot_dimension_numbers<[1], [0], [0], [1], [0, 0, 1, 1], [], []>} : vector<24x112xbf16>, vector<112x384xbf16>, vector<24x384xf32> -> vector<24x384xf32>
    %128 = arith.addf %119, %127 : vector<24x384xf32>
    %129 = vector.broadcast %0 : vector<1x384xf32> to vector<24x384xf32>
    %130 = arith.addf %124, %129 : vector<24x384xf32>
    %cst_94 = arith.constant 0.000000e+00 : f32
    %131 = vector.broadcast %cst_94 : f32 to vector<24x384xf32>
    %132 = arith.maximumf %130, %131 : vector<24x384xf32>
    %133 = vector.broadcast %0 : vector<1x384xf32> to vector<24x384xf32>
    %134 = arith.addf %128, %133 : vector<24x384xf32>
    %cst_95 = arith.constant 0.000000e+00 : f32
    %135 = vector.broadcast %cst_95 : f32 to vector<24x384xf32>
    %136 = arith.maximumf %134, %135 : vector<24x384xf32>
    %137 = arith.maximumf %132, %136 : vector<24x384xf32>
    %cst_96 = arith.constant dense<0.000000e+00> : vector<12x384xf32>
    %138 = tpu.matmul %7, %137, %cst_96 {dimension_numbers = #tpu.dot_dimension_numbers<[1], [0], [0], [1], [0, 0, 1, 1], [], []>} : vector<12x24xf32>, vector<24x384xf32>, vector<12x384xf32> -> vector<12x384xf32>
    %cst_97 = arith.constant dense<0.000000e+00> : vector<12x384xf32>
    %139 = tpu.matmul %14, %137, %cst_97 {dimension_numbers = #tpu.dot_dimension_numbers<[1], [0], [0], [1], [0, 0, 1, 1], [], []>} : vector<12x24xf32>, vector<24x384xf32>, vector<12x384xf32> -> vector<12x384xf32>
    %140 = arith.maximumf %138, %139 : vector<12x384xf32>
    %141 = arith.truncf %140 : vector<12x384xf32> to vector<12x384xbf16>
    %c1_98 = arith.constant 1 : index
    %c0_99 = arith.constant 0 : index
    %c0_100 = arith.constant 0 : index
    %142 = vector.load %arg5[%c1_98, %c0_99, %c0_100] : memref<2x12x384xbf16, #tpu.memory_space<vmem>>, vector<1x12x384xbf16>
    %143 = vector.shape_cast %142 : vector<1x12x384xbf16> to vector<12x384xbf16>
    %144 = vector.shape_cast %141 : vector<12x384xbf16> to vector<1x12x384xbf16>
    tpu.vector_store %arg5[%c1_98, %c0_99, %c0_100], %144 {strides = array<i32>} : memref<2x12x384xbf16, #tpu.memory_space<vmem>>, vector<1x12x384xbf16>,
    return
  }
  func.func @transform_0(%arg0: i32) -> (i32, i32, i32) {
    %c0_i32 = arith.constant 0 : i32
    %c0_i32_0 = arith.constant 0 : i32
    %c0_i32_1 = arith.constant 0 : i32
    return %arg0, %c0_i32, %c0_i32_0 : i32, i32, i32
  }
  func.func @transform_1(%arg0: i32) -> (i32, i32, i32) {
    %c0_i32 = arith.constant 0 : i32
    %c0_i32_0 = arith.constant 0 : i32
    %c0_i32_1 = arith.constant 0 : i32
    %c0_i32_2 = arith.constant 0 : i32
    return %c0_i32, %c0_i32_0, %c0_i32_1 : i32, i32, i32
  }
  func.func @transform_2(%arg0: i32) -> (i32, i32, i32) {
    %c0_i32 = arith.constant 0 : i32
    %c0_i32_0 = arith.constant 0 : i32
    %c0_i32_1 = arith.constant 0 : i32
    %c0_i32_2 = arith.constant 0 : i32
    return %c0_i32, %c0_i32_0, %c0_i32_1 : i32, i32, i32
  }
  func.func @transform_3(%arg0: i32) -> (i32, i32) {
    %c0_i32 = arith.constant 0 : i32
    %c0_i32_0 = arith.constant 0 : i32
    %c0_i32_1 = arith.constant 0 : i32
    return %c0_i32, %c0_i32_0 : i32, i32
  }
  func.func @transform_4(%arg0: i32) -> (i32, i32, i32) {
    %c0_i32 = arith.constant 0 : i32
    %c0_i32_0 = arith.constant 0 : i32
    %c0_i32_1 = arith.constant 0 : i32
    return %arg0, %c0_i32, %c0_i32_0 : i32, i32, i32
  }
}

module attributes {stable_mosaic.version = 11 : i64} {
  func.func @_conv_stage_kernel(%arg0: i32, %arg1: memref<2x4x128xbf16, #tpu.memory_space<vmem>>, %arg2: memref<4x128x32xbf16, #tpu.memory_space<vmem>>, %arg3: memref<1x32xf32, #tpu.memory_space<vmem>>, %arg4: memref<2x1x32xbf16, #tpu.memory_space<vmem>>) attributes {dimension_semantics = [#tpu.dimension_semantics<parallel>], iteration_bounds = array<i64: 1>, scalar_prefetch = 0 : i64, scratch_operands = 0 : i64, tpu.core_type = #tpu.core_type<tc>, window_params = [{transform_indices = @transform_0, window_bounds = array<i64: 2, 4, 128>}, {pipeline_mode = #tpu.pipeline_mode<synchronous>, transform_indices = @transform_1, window_bounds = array<i64: 4, 128, 32>}, {pipeline_mode = #tpu.pipeline_mode<synchronous>, transform_indices = @transform_2, window_bounds = array<i64: 1, 32>}, {transform_indices = @transform_3, window_bounds = array<i64: 2, 1, 32>}]} {
    %c0 = arith.constant 0 : index
    %c0_0 = arith.constant 0 : index
    %0 = vector.load %arg3[%c0, %c0_0] : memref<1x32xf32, #tpu.memory_space<vmem>>, vector<1x32xf32>
    %c0_1 = arith.constant 0 : index
    %c0_2 = arith.constant 0 : index
    %c0_3 = arith.constant 0 : index
    %1 = vector.load %arg1[%c0_1, %c0_2, %c0_3] : memref<2x4x128xbf16, #tpu.memory_space<vmem>>, vector<1x4x128xbf16>
    %2 = vector.shape_cast %1 : vector<1x4x128xbf16> to vector<4x128xbf16>
    %cst = arith.constant 0.000000e+00 : f32
    %3 = vector.broadcast %cst : f32 to vector<1x32xf32>
    %4 = vector.extract_strided_slice %2 {offsets = [0, 0], sizes = [1, 128], strides = [1, 1]} : vector<4x128xbf16> to vector<1x128xbf16>
    %c0_4 = arith.constant 0 : index
    %c0_5 = arith.constant 0 : index
    %c0_6 = arith.constant 0 : index
    %5 = vector.load %arg2[%c0_4, %c0_5, %c0_6] : memref<4x128x32xbf16, #tpu.memory_space<vmem>>, vector<1x128x32xbf16>
    %6 = vector.shape_cast %5 : vector<1x128x32xbf16> to vector<128x32xbf16>
    %cst_7 = arith.constant dense<0.000000e+00> : vector<1x32xf32>
    %7 = tpu.matmul %4, %6, %cst_7 {dimension_numbers = #tpu.dot_dimension_numbers<[1], [0], [0], [1], [0, 0, 1, 1], [], []>} : vector<1x128xbf16>, vector<128x32xbf16>, vector<1x32xf32> -> vector<1x32xf32>
    %8 = arith.addf %3, %7 : vector<1x32xf32>
    %9 = vector.extract_strided_slice %2 {offsets = [1, 0], sizes = [1, 128], strides = [1, 1]} : vector<4x128xbf16> to vector<1x128xbf16>
    %c1 = arith.constant 1 : index
    %c0_8 = arith.constant 0 : index
    %c0_9 = arith.constant 0 : index
    %10 = vector.load %arg2[%c1, %c0_8, %c0_9] : memref<4x128x32xbf16, #tpu.memory_space<vmem>>, vector<1x128x32xbf16>
    %11 = vector.shape_cast %10 : vector<1x128x32xbf16> to vector<128x32xbf16>
    %cst_10 = arith.constant dense<0.000000e+00> : vector<1x32xf32>
    %12 = tpu.matmul %9, %11, %cst_10 {dimension_numbers = #tpu.dot_dimension_numbers<[1], [0], [0], [1], [0, 0, 1, 1], [], []>} : vector<1x128xbf16>, vector<128x32xbf16>, vector<1x32xf32> -> vector<1x32xf32>
    %13 = arith.addf %8, %12 : vector<1x32xf32>
    %14 = vector.extract_strided_slice %2 {offsets = [2, 0], sizes = [1, 128], strides = [1, 1]} : vector<4x128xbf16> to vector<1x128xbf16>
    %c2 = arith.constant 2 : index
    %c0_11 = arith.constant 0 : index
    %c0_12 = arith.constant 0 : index
    %15 = vector.load %arg2[%c2, %c0_11, %c0_12] : memref<4x128x32xbf16, #tpu.memory_space<vmem>>, vector<1x128x32xbf16>
    %16 = vector.shape_cast %15 : vector<1x128x32xbf16> to vector<128x32xbf16>
    %cst_13 = arith.constant dense<0.000000e+00> : vector<1x32xf32>
    %17 = tpu.matmul %14, %16, %cst_13 {dimension_numbers = #tpu.dot_dimension_numbers<[1], [0], [0], [1], [0, 0, 1, 1], [], []>} : vector<1x128xbf16>, vector<128x32xbf16>, vector<1x32xf32> -> vector<1x32xf32>
    %18 = arith.addf %13, %17 : vector<1x32xf32>
    %19 = vector.extract_strided_slice %2 {offsets = [3, 0], sizes = [1, 128], strides = [1, 1]} : vector<4x128xbf16> to vector<1x128xbf16>
    %c3 = arith.constant 3 : index
    %c0_14 = arith.constant 0 : index
    %c0_15 = arith.constant 0 : index
    %20 = vector.load %arg2[%c3, %c0_14, %c0_15] : memref<4x128x32xbf16, #tpu.memory_space<vmem>>, vector<1x128x32xbf16>
    %21 = vector.shape_cast %20 : vector<1x128x32xbf16> to vector<128x32xbf16>
    %cst_16 = arith.constant dense<0.000000e+00> : vector<1x32xf32>
    %22 = tpu.matmul %19, %21, %cst_16 {dimension_numbers = #tpu.dot_dimension_numbers<[1], [0], [0], [1], [0, 0, 1, 1], [], []>} : vector<1x128xbf16>, vector<128x32xbf16>, vector<1x32xf32> -> vector<1x32xf32>
    %23 = arith.addf %18, %22 : vector<1x32xf32>
    %24 = arith.addf %23, %0 : vector<1x32xf32>
    %cst_17 = arith.constant 0.000000e+00 : f32
    %25 = vector.broadcast %cst_17 : f32 to vector<1x32xf32>
    %26 = arith.maximumf %24, %25 : vector<1x32xf32>
    %27 = arith.truncf %26 : vector<1x32xf32> to vector<1x32xbf16>
    %c0_18 = arith.constant 0 : index
    %c0_19 = arith.constant 0 : index
    %c0_20 = arith.constant 0 : index
    %28 = vector.load %arg4[%c0_18, %c0_19, %c0_20] : memref<2x1x32xbf16, #tpu.memory_space<vmem>>, vector<1x1x32xbf16>
    %29 = vector.shape_cast %28 : vector<1x1x32xbf16> to vector<1x32xbf16>
    %30 = vector.shape_cast %27 : vector<1x32xbf16> to vector<1x1x32xbf16>
    tpu.vector_store %arg4[%c0_18, %c0_19, %c0_20], %30 {strides = array<i32>} : memref<2x1x32xbf16, #tpu.memory_space<vmem>>, vector<1x1x32xbf16>,
    %c1_21 = arith.constant 1 : index
    %c0_22 = arith.constant 0 : index
    %c0_23 = arith.constant 0 : index
    %31 = vector.load %arg1[%c1_21, %c0_22, %c0_23] : memref<2x4x128xbf16, #tpu.memory_space<vmem>>, vector<1x4x128xbf16>
    %32 = vector.shape_cast %31 : vector<1x4x128xbf16> to vector<4x128xbf16>
    %cst_24 = arith.constant 0.000000e+00 : f32
    %33 = vector.broadcast %cst_24 : f32 to vector<1x32xf32>
    %34 = vector.extract_strided_slice %32 {offsets = [0, 0], sizes = [1, 128], strides = [1, 1]} : vector<4x128xbf16> to vector<1x128xbf16>
    %c0_25 = arith.constant 0 : index
    %c0_26 = arith.constant 0 : index
    %c0_27 = arith.constant 0 : index
    %35 = vector.load %arg2[%c0_25, %c0_26, %c0_27] : memref<4x128x32xbf16, #tpu.memory_space<vmem>>, vector<1x128x32xbf16>
    %36 = vector.shape_cast %35 : vector<1x128x32xbf16> to vector<128x32xbf16>
    %cst_28 = arith.constant dense<0.000000e+00> : vector<1x32xf32>
    %37 = tpu.matmul %34, %36, %cst_28 {dimension_numbers = #tpu.dot_dimension_numbers<[1], [0], [0], [1], [0, 0, 1, 1], [], []>} : vector<1x128xbf16>, vector<128x32xbf16>, vector<1x32xf32> -> vector<1x32xf32>
    %38 = arith.addf %33, %37 : vector<1x32xf32>
    %39 = vector.extract_strided_slice %32 {offsets = [1, 0], sizes = [1, 128], strides = [1, 1]} : vector<4x128xbf16> to vector<1x128xbf16>
    %c1_29 = arith.constant 1 : index
    %c0_30 = arith.constant 0 : index
    %c0_31 = arith.constant 0 : index
    %40 = vector.load %arg2[%c1_29, %c0_30, %c0_31] : memref<4x128x32xbf16, #tpu.memory_space<vmem>>, vector<1x128x32xbf16>
    %41 = vector.shape_cast %40 : vector<1x128x32xbf16> to vector<128x32xbf16>
    %cst_32 = arith.constant dense<0.000000e+00> : vector<1x32xf32>
    %42 = tpu.matmul %39, %41, %cst_32 {dimension_numbers = #tpu.dot_dimension_numbers<[1], [0], [0], [1], [0, 0, 1, 1], [], []>} : vector<1x128xbf16>, vector<128x32xbf16>, vector<1x32xf32> -> vector<1x32xf32>
    %43 = arith.addf %38, %42 : vector<1x32xf32>
    %44 = vector.extract_strided_slice %32 {offsets = [2, 0], sizes = [1, 128], strides = [1, 1]} : vector<4x128xbf16> to vector<1x128xbf16>
    %c2_33 = arith.constant 2 : index
    %c0_34 = arith.constant 0 : index
    %c0_35 = arith.constant 0 : index
    %45 = vector.load %arg2[%c2_33, %c0_34, %c0_35] : memref<4x128x32xbf16, #tpu.memory_space<vmem>>, vector<1x128x32xbf16>
    %46 = vector.shape_cast %45 : vector<1x128x32xbf16> to vector<128x32xbf16>
    %cst_36 = arith.constant dense<0.000000e+00> : vector<1x32xf32>
    %47 = tpu.matmul %44, %46, %cst_36 {dimension_numbers = #tpu.dot_dimension_numbers<[1], [0], [0], [1], [0, 0, 1, 1], [], []>} : vector<1x128xbf16>, vector<128x32xbf16>, vector<1x32xf32> -> vector<1x32xf32>
    %48 = arith.addf %43, %47 : vector<1x32xf32>
    %49 = vector.extract_strided_slice %32 {offsets = [3, 0], sizes = [1, 128], strides = [1, 1]} : vector<4x128xbf16> to vector<1x128xbf16>
    %c3_37 = arith.constant 3 : index
    %c0_38 = arith.constant 0 : index
    %c0_39 = arith.constant 0 : index
    %50 = vector.load %arg2[%c3_37, %c0_38, %c0_39] : memref<4x128x32xbf16, #tpu.memory_space<vmem>>, vector<1x128x32xbf16>
    %51 = vector.shape_cast %50 : vector<1x128x32xbf16> to vector<128x32xbf16>
    %cst_40 = arith.constant dense<0.000000e+00> : vector<1x32xf32>
    %52 = tpu.matmul %49, %51, %cst_40 {dimension_numbers = #tpu.dot_dimension_numbers<[1], [0], [0], [1], [0, 0, 1, 1], [], []>} : vector<1x128xbf16>, vector<128x32xbf16>, vector<1x32xf32> -> vector<1x32xf32>
    %53 = arith.addf %48, %52 : vector<1x32xf32>
    %54 = arith.addf %53, %0 : vector<1x32xf32>
    %cst_41 = arith.constant 0.000000e+00 : f32
    %55 = vector.broadcast %cst_41 : f32 to vector<1x32xf32>
    %56 = arith.maximumf %54, %55 : vector<1x32xf32>
    %57 = arith.truncf %56 : vector<1x32xf32> to vector<1x32xbf16>
    %c1_42 = arith.constant 1 : index
    %c0_43 = arith.constant 0 : index
    %c0_44 = arith.constant 0 : index
    %58 = vector.load %arg4[%c1_42, %c0_43, %c0_44] : memref<2x1x32xbf16, #tpu.memory_space<vmem>>, vector<1x1x32xbf16>
    %59 = vector.shape_cast %58 : vector<1x1x32xbf16> to vector<1x32xbf16>
    %60 = vector.shape_cast %57 : vector<1x32xbf16> to vector<1x1x32xbf16>
    tpu.vector_store %arg4[%c1_42, %c0_43, %c0_44], %60 {strides = array<i32>} : memref<2x1x32xbf16, #tpu.memory_space<vmem>>, vector<1x1x32xbf16>,
    return
  }
  func.func @transform_0(%arg0: i32) -> (i32, i32, i32) {
    %c0_i32 = arith.constant 0 : i32
    %c0_i32_0 = arith.constant 0 : i32
    %c0_i32_1 = arith.constant 0 : i32
    return %arg0, %c0_i32, %c0_i32_0 : i32, i32, i32
  }
  func.func @transform_1(%arg0: i32) -> (i32, i32, i32) {
    %c0_i32 = arith.constant 0 : i32
    %c0_i32_0 = arith.constant 0 : i32
    %c0_i32_1 = arith.constant 0 : i32
    %c0_i32_2 = arith.constant 0 : i32
    return %c0_i32, %c0_i32_0, %c0_i32_1 : i32, i32, i32
  }
  func.func @transform_2(%arg0: i32) -> (i32, i32) {
    %c0_i32 = arith.constant 0 : i32
    %c0_i32_0 = arith.constant 0 : i32
    %c0_i32_1 = arith.constant 0 : i32
    return %c0_i32, %c0_i32_0 : i32, i32
  }
  func.func @transform_3(%arg0: i32) -> (i32, i32, i32) {
    %c0_i32 = arith.constant 0 : i32
    %c0_i32_0 = arith.constant 0 : i32
    %c0_i32_1 = arith.constant 0 : i32
    return %arg0, %c0_i32, %c0_i32_0 : i32, i32, i32
  }
}

module attributes {stable_mosaic.version = 11 : i64} {
  func.func @_conv_stage_kernel(%arg0: i32, %arg1: memref<2x12x384xbf16, #tpu.memory_space<vmem>>, %arg2: memref<5x384x128xbf16, #tpu.memory_space<vmem>>, %arg3: memref<5x384x128xbf16, #tpu.memory_space<vmem>>, %arg4: memref<1x128xf32, #tpu.memory_space<vmem>>, %arg5: memref<2x4x128xbf16, #tpu.memory_space<vmem>>) attributes {dimension_semantics = [#tpu.dimension_semantics<parallel>], iteration_bounds = array<i64: 1>, scalar_prefetch = 0 : i64, scratch_operands = 0 : i64, tpu.core_type = #tpu.core_type<tc>, window_params = [{transform_indices = @transform_0, window_bounds = array<i64: 2, 12, 384>}, {pipeline_mode = #tpu.pipeline_mode<synchronous>, transform_indices = @transform_1, window_bounds = array<i64: 5, 384, 128>}, {pipeline_mode = #tpu.pipeline_mode<synchronous>, transform_indices = @transform_2, window_bounds = array<i64: 5, 384, 128>}, {pipeline_mode = #tpu.pipeline_mode<synchronous>, transform_indices = @transform_3, window_bounds = array<i64: 1, 128>}, {transform_indices = @transform_4, window_bounds = array<i64: 2, 4, 128>}]} {
    %c0 = arith.constant 0 : index
    %c0_0 = arith.constant 0 : index
    %0 = vector.load %arg4[%c0, %c0_0] : memref<1x128xf32, #tpu.memory_space<vmem>>, vector<1x128xf32>
    %1 = tpu.iota {dimensions = array<i32: 0>} : vector<4x8xi32>
    %2 = tpu.iota {dimensions = array<i32: 1>} : vector<4x8xi32>
    %c2_i32 = arith.constant 2 : i32
    %3 = vector.broadcast %c2_i32 : i32 to vector<4x8xi32>
    %4 = arith.muli %3, %1 : vector<4x8xi32>
    %5 = arith.cmpi eq, %2, %4 : vector<4x8xi32>
    %6 = arith.extui %5 : vector<4x8xi1> to vector<4x8xi32>
    %7 = arith.sitofp %6 : vector<4x8xi32> to vector<4x8xf32>
    %c2_i32_1 = arith.constant 2 : i32
    %8 = vector.broadcast %c2_i32_1 : i32 to vector<4x8xi32>
    %9 = arith.muli %8, %1 : vector<4x8xi32>
    %c1_i32 = arith.constant 1 : i32
    %10 = vector.broadcast %c1_i32 : i32 to vector<4x8xi32>
    %11 = arith.addi %9, %10 : vector<4x8xi32>
    %12 = arith.cmpi eq, %2, %11 : vector<4x8xi32>
    %13 = arith.extui %12 : vector<4x8xi1> to vector<4x8xi32>
    %14 = arith.sitofp %13 : vector<4x8xi32> to vector<4x8xf32>
    %c0_2 = arith.constant 0 : index
    %c0_3 = arith.constant 0 : index
    %c0_4 = arith.constant 0 : index
    %15 = vector.load %arg1[%c0_2, %c0_3, %c0_4] : memref<2x12x384xbf16, #tpu.memory_space<vmem>>, vector<1x12x384xbf16>
    %16 = vector.shape_cast %15 : vector<1x12x384xbf16> to vector<12x384xbf16>
    %cst = arith.constant 0.000000e+00 : f32
    %17 = vector.broadcast %cst : f32 to vector<8x128xf32>
    %cst_5 = arith.constant 0.000000e+00 : f32
    %18 = vector.broadcast %cst_5 : f32 to vector<8x128xf32>
    %19 = vector.extract_strided_slice %16 {offsets = [0, 0], sizes = [8, 384], strides = [1, 1]} : vector<12x384xbf16> to vector<8x384xbf16>
    %c0_6 = arith.constant 0 : index
    %c0_7 = arith.constant 0 : index
    %c0_8 = arith.constant 0 : index
    %20 = vector.load %arg2[%c0_6, %c0_7, %c0_8] : memref<5x384x128xbf16, #tpu.memory_space<vmem>>, vector<1x384x128xbf16>
    %21 = vector.shape_cast %20 : vector<1x384x128xbf16> to vector<384x128xbf16>
    %cst_9 = arith.constant dense<0.000000e+00> : vector<8x128xf32>
    %22 = tpu.matmul %19, %21, %cst_9 {dimension_numbers = #tpu.dot_dimension_numbers<[1], [0], [0], [1], [0, 0, 1, 1], [], []>} : vector<8x384xbf16>, vector<384x128xbf16>, vector<8x128xf32> -> vector<8x128xf32>
    %23 = arith.addf %17, %22 : vector<8x128xf32>
    %c0_10 = arith.constant 0 : index
    %c0_11 = arith.constant 0 : index
    %c0_12 = arith.constant 0 : index
    %24 = vector.load %arg3[%c0_10, %c0_11, %c0_12] : memref<5x384x128xbf16, #tpu.memory_space<vmem>>, vector<1x384x128xbf16>
    %25 = vector.shape_cast %24 : vector<1x384x128xbf16> to vector<384x128xbf16>
    %cst_13 = arith.constant dense<0.000000e+00> : vector<8x128xf32>
    %26 = tpu.matmul %19, %25, %cst_13 {dimension_numbers = #tpu.dot_dimension_numbers<[1], [0], [0], [1], [0, 0, 1, 1], [], []>} : vector<8x384xbf16>, vector<384x128xbf16>, vector<8x128xf32> -> vector<8x128xf32>
    %27 = arith.addf %18, %26 : vector<8x128xf32>
    %28 = vector.extract_strided_slice %16 {offsets = [1, 0], sizes = [8, 384], strides = [1, 1]} : vector<12x384xbf16> to vector<8x384xbf16>
    %c1 = arith.constant 1 : index
    %c0_14 = arith.constant 0 : index
    %c0_15 = arith.constant 0 : index
    %29 = vector.load %arg2[%c1, %c0_14, %c0_15] : memref<5x384x128xbf16, #tpu.memory_space<vmem>>, vector<1x384x128xbf16>
    %30 = vector.shape_cast %29 : vector<1x384x128xbf16> to vector<384x128xbf16>
    %cst_16 = arith.constant dense<0.000000e+00> : vector<8x128xf32>
    %31 = tpu.matmul %28, %30, %cst_16 {dimension_numbers = #tpu.dot_dimension_numbers<[1], [0], [0], [1], [0, 0, 1, 1], [], []>} : vector<8x384xbf16>, vector<384x128xbf16>, vector<8x128xf32> -> vector<8x128xf32>
    %32 = arith.addf %23, %31 : vector<8x128xf32>
    %c1_17 = arith.constant 1 : index
    %c0_18 = arith.constant 0 : index
    %c0_19 = arith.constant 0 : index
    %33 = vector.load %arg3[%c1_17, %c0_18, %c0_19] : memref<5x384x128xbf16, #tpu.memory_space<vmem>>, vector<1x384x128xbf16>
    %34 = vector.shape_cast %33 : vector<1x384x128xbf16> to vector<384x128xbf16>
    %cst_20 = arith.constant dense<0.000000e+00> : vector<8x128xf32>
    %35 = tpu.matmul %28, %34, %cst_20 {dimension_numbers = #tpu.dot_dimension_numbers<[1], [0], [0], [1], [0, 0, 1, 1], [], []>} : vector<8x384xbf16>, vector<384x128xbf16>, vector<8x128xf32> -> vector<8x128xf32>
    %36 = arith.addf %27, %35 : vector<8x128xf32>
    %37 = vector.extract_strided_slice %16 {offsets = [2, 0], sizes = [8, 384], strides = [1, 1]} : vector<12x384xbf16> to vector<8x384xbf16>
    %c2 = arith.constant 2 : index
    %c0_21 = arith.constant 0 : index
    %c0_22 = arith.constant 0 : index
    %38 = vector.load %arg2[%c2, %c0_21, %c0_22] : memref<5x384x128xbf16, #tpu.memory_space<vmem>>, vector<1x384x128xbf16>
    %39 = vector.shape_cast %38 : vector<1x384x128xbf16> to vector<384x128xbf16>
    %cst_23 = arith.constant dense<0.000000e+00> : vector<8x128xf32>
    %40 = tpu.matmul %37, %39, %cst_23 {dimension_numbers = #tpu.dot_dimension_numbers<[1], [0], [0], [1], [0, 0, 1, 1], [], []>} : vector<8x384xbf16>, vector<384x128xbf16>, vector<8x128xf32> -> vector<8x128xf32>
    %41 = arith.addf %32, %40 : vector<8x128xf32>
    %c2_24 = arith.constant 2 : index
    %c0_25 = arith.constant 0 : index
    %c0_26 = arith.constant 0 : index
    %42 = vector.load %arg3[%c2_24, %c0_25, %c0_26] : memref<5x384x128xbf16, #tpu.memory_space<vmem>>, vector<1x384x128xbf16>
    %43 = vector.shape_cast %42 : vector<1x384x128xbf16> to vector<384x128xbf16>
    %cst_27 = arith.constant dense<0.000000e+00> : vector<8x128xf32>
    %44 = tpu.matmul %37, %43, %cst_27 {dimension_numbers = #tpu.dot_dimension_numbers<[1], [0], [0], [1], [0, 0, 1, 1], [], []>} : vector<8x384xbf16>, vector<384x128xbf16>, vector<8x128xf32> -> vector<8x128xf32>
    %45 = arith.addf %36, %44 : vector<8x128xf32>
    %46 = vector.extract_strided_slice %16 {offsets = [3, 0], sizes = [8, 384], strides = [1, 1]} : vector<12x384xbf16> to vector<8x384xbf16>
    %c3 = arith.constant 3 : index
    %c0_28 = arith.constant 0 : index
    %c0_29 = arith.constant 0 : index
    %47 = vector.load %arg2[%c3, %c0_28, %c0_29] : memref<5x384x128xbf16, #tpu.memory_space<vmem>>, vector<1x384x128xbf16>
    %48 = vector.shape_cast %47 : vector<1x384x128xbf16> to vector<384x128xbf16>
    %cst_30 = arith.constant dense<0.000000e+00> : vector<8x128xf32>
    %49 = tpu.matmul %46, %48, %cst_30 {dimension_numbers = #tpu.dot_dimension_numbers<[1], [0], [0], [1], [0, 0, 1, 1], [], []>} : vector<8x384xbf16>, vector<384x128xbf16>, vector<8x128xf32> -> vector<8x128xf32>
    %50 = arith.addf %41, %49 : vector<8x128xf32>
    %c3_31 = arith.constant 3 : index
    %c0_32 = arith.constant 0 : index
    %c0_33 = arith.constant 0 : index
    %51 = vector.load %arg3[%c3_31, %c0_32, %c0_33] : memref<5x384x128xbf16, #tpu.memory_space<vmem>>, vector<1x384x128xbf16>
    %52 = vector.shape_cast %51 : vector<1x384x128xbf16> to vector<384x128xbf16>
    %cst_34 = arith.constant dense<0.000000e+00> : vector<8x128xf32>
    %53 = tpu.matmul %46, %52, %cst_34 {dimension_numbers = #tpu.dot_dimension_numbers<[1], [0], [0], [1], [0, 0, 1, 1], [], []>} : vector<8x384xbf16>, vector<384x128xbf16>, vector<8x128xf32> -> vector<8x128xf32>
    %54 = arith.addf %45, %53 : vector<8x128xf32>
    %55 = vector.extract_strided_slice %16 {offsets = [4, 0], sizes = [8, 384], strides = [1, 1]} : vector<12x384xbf16> to vector<8x384xbf16>
    %c4 = arith.constant 4 : index
    %c0_35 = arith.constant 0 : index
    %c0_36 = arith.constant 0 : index
    %56 = vector.load %arg2[%c4, %c0_35, %c0_36] : memref<5x384x128xbf16, #tpu.memory_space<vmem>>, vector<1x384x128xbf16>
    %57 = vector.shape_cast %56 : vector<1x384x128xbf16> to vector<384x128xbf16>
    %cst_37 = arith.constant dense<0.000000e+00> : vector<8x128xf32>
    %58 = tpu.matmul %55, %57, %cst_37 {dimension_numbers = #tpu.dot_dimension_numbers<[1], [0], [0], [1], [0, 0, 1, 1], [], []>} : vector<8x384xbf16>, vector<384x128xbf16>, vector<8x128xf32> -> vector<8x128xf32>
    %59 = arith.addf %50, %58 : vector<8x128xf32>
    %c4_38 = arith.constant 4 : index
    %c0_39 = arith.constant 0 : index
    %c0_40 = arith.constant 0 : index
    %60 = vector.load %arg3[%c4_38, %c0_39, %c0_40] : memref<5x384x128xbf16, #tpu.memory_space<vmem>>, vector<1x384x128xbf16>
    %61 = vector.shape_cast %60 : vector<1x384x128xbf16> to vector<384x128xbf16>
    %cst_41 = arith.constant dense<0.000000e+00> : vector<8x128xf32>
    %62 = tpu.matmul %55, %61, %cst_41 {dimension_numbers = #tpu.dot_dimension_numbers<[1], [0], [0], [1], [0, 0, 1, 1], [], []>} : vector<8x384xbf16>, vector<384x128xbf16>, vector<8x128xf32> -> vector<8x128xf32>
    %63 = arith.addf %54, %62 : vector<8x128xf32>
    %64 = vector.broadcast %0 : vector<1x128xf32> to vector<8x128xf32>
    %65 = arith.addf %59, %64 : vector<8x128xf32>
    %cst_42 = arith.constant 0.000000e+00 : f32
    %66 = vector.broadcast %cst_42 : f32 to vector<8x128xf32>
    %67 = arith.maximumf %65, %66 : vector<8x128xf32>
    %68 = vector.broadcast %0 : vector<1x128xf32> to vector<8x128xf32>
    %69 = arith.addf %63, %68 : vector<8x128xf32>
    %cst_43 = arith.constant 0.000000e+00 : f32
    %70 = vector.broadcast %cst_43 : f32 to vector<8x128xf32>
    %71 = arith.maximumf %69, %70 : vector<8x128xf32>
    %72 = arith.maximumf %67, %71 : vector<8x128xf32>
    %cst_44 = arith.constant dense<0.000000e+00> : vector<4x128xf32>
    %73 = tpu.matmul %7, %72, %cst_44 {dimension_numbers = #tpu.dot_dimension_numbers<[1], [0], [0], [1], [0, 0, 1, 1], [], []>} : vector<4x8xf32>, vector<8x128xf32>, vector<4x128xf32> -> vector<4x128xf32>
    %cst_45 = arith.constant dense<0.000000e+00> : vector<4x128xf32>
    %74 = tpu.matmul %14, %72, %cst_45 {dimension_numbers = #tpu.dot_dimension_numbers<[1], [0], [0], [1], [0, 0, 1, 1], [], []>} : vector<4x8xf32>, vector<8x128xf32>, vector<4x128xf32> -> vector<4x128xf32>
    %75 = arith.maximumf %73, %74 : vector<4x128xf32>
    %76 = arith.truncf %75 : vector<4x128xf32> to vector<4x128xbf16>
    %c0_46 = arith.constant 0 : index
    %c0_47 = arith.constant 0 : index
    %c0_48 = arith.constant 0 : index
    %77 = vector.load %arg5[%c0_46, %c0_47, %c0_48] : memref<2x4x128xbf16, #tpu.memory_space<vmem>>, vector<1x4x128xbf16>
    %78 = vector.shape_cast %77 : vector<1x4x128xbf16> to vector<4x128xbf16>
    %79 = vector.shape_cast %76 : vector<4x128xbf16> to vector<1x4x128xbf16>
    tpu.vector_store %arg5[%c0_46, %c0_47, %c0_48], %79 {strides = array<i32>} : memref<2x4x128xbf16, #tpu.memory_space<vmem>>, vector<1x4x128xbf16>,
    %c1_49 = arith.constant 1 : index
    %c0_50 = arith.constant 0 : index
    %c0_51 = arith.constant 0 : index
    %80 = vector.load %arg1[%c1_49, %c0_50, %c0_51] : memref<2x12x384xbf16, #tpu.memory_space<vmem>>, vector<1x12x384xbf16>
    %81 = vector.shape_cast %80 : vector<1x12x384xbf16> to vector<12x384xbf16>
    %cst_52 = arith.constant 0.000000e+00 : f32
    %82 = vector.broadcast %cst_52 : f32 to vector<8x128xf32>
    %cst_53 = arith.constant 0.000000e+00 : f32
    %83 = vector.broadcast %cst_53 : f32 to vector<8x128xf32>
    %84 = vector.extract_strided_slice %81 {offsets = [0, 0], sizes = [8, 384], strides = [1, 1]} : vector<12x384xbf16> to vector<8x384xbf16>
    %c0_54 = arith.constant 0 : index
    %c0_55 = arith.constant 0 : index
    %c0_56 = arith.constant 0 : index
    %85 = vector.load %arg2[%c0_54, %c0_55, %c0_56] : memref<5x384x128xbf16, #tpu.memory_space<vmem>>, vector<1x384x128xbf16>
    %86 = vector.shape_cast %85 : vector<1x384x128xbf16> to vector<384x128xbf16>
    %cst_57 = arith.constant dense<0.000000e+00> : vector<8x128xf32>
    %87 = tpu.matmul %84, %86, %cst_57 {dimension_numbers = #tpu.dot_dimension_numbers<[1], [0], [0], [1], [0, 0, 1, 1], [], []>} : vector<8x384xbf16>, vector<384x128xbf16>, vector<8x128xf32> -> vector<8x128xf32>
    %88 = arith.addf %82, %87 : vector<8x128xf32>
    %c0_58 = arith.constant 0 : index
    %c0_59 = arith.constant 0 : index
    %c0_60 = arith.constant 0 : index
    %89 = vector.load %arg3[%c0_58, %c0_59, %c0_60] : memref<5x384x128xbf16, #tpu.memory_space<vmem>>, vector<1x384x128xbf16>
    %90 = vector.shape_cast %89 : vector<1x384x128xbf16> to vector<384x128xbf16>
    %cst_61 = arith.constant dense<0.000000e+00> : vector<8x128xf32>
    %91 = tpu.matmul %84, %90, %cst_61 {dimension_numbers = #tpu.dot_dimension_numbers<[1], [0], [0], [1], [0, 0, 1, 1], [], []>} : vector<8x384xbf16>, vector<384x128xbf16>, vector<8x128xf32> -> vector<8x128xf32>
    %92 = arith.addf %83, %91 : vector<8x128xf32>
    %93 = vector.extract_strided_slice %81 {offsets = [1, 0], sizes = [8, 384], strides = [1, 1]} : vector<12x384xbf16> to vector<8x384xbf16>
    %c1_62 = arith.constant 1 : index
    %c0_63 = arith.constant 0 : index
    %c0_64 = arith.constant 0 : index
    %94 = vector.load %arg2[%c1_62, %c0_63, %c0_64] : memref<5x384x128xbf16, #tpu.memory_space<vmem>>, vector<1x384x128xbf16>
    %95 = vector.shape_cast %94 : vector<1x384x128xbf16> to vector<384x128xbf16>
    %cst_65 = arith.constant dense<0.000000e+00> : vector<8x128xf32>
    %96 = tpu.matmul %93, %95, %cst_65 {dimension_numbers = #tpu.dot_dimension_numbers<[1], [0], [0], [1], [0, 0, 1, 1], [], []>} : vector<8x384xbf16>, vector<384x128xbf16>, vector<8x128xf32> -> vector<8x128xf32>
    %97 = arith.addf %88, %96 : vector<8x128xf32>
    %c1_66 = arith.constant 1 : index
    %c0_67 = arith.constant 0 : index
    %c0_68 = arith.constant 0 : index
    %98 = vector.load %arg3[%c1_66, %c0_67, %c0_68] : memref<5x384x128xbf16, #tpu.memory_space<vmem>>, vector<1x384x128xbf16>
    %99 = vector.shape_cast %98 : vector<1x384x128xbf16> to vector<384x128xbf16>
    %cst_69 = arith.constant dense<0.000000e+00> : vector<8x128xf32>
    %100 = tpu.matmul %93, %99, %cst_69 {dimension_numbers = #tpu.dot_dimension_numbers<[1], [0], [0], [1], [0, 0, 1, 1], [], []>} : vector<8x384xbf16>, vector<384x128xbf16>, vector<8x128xf32> -> vector<8x128xf32>
    %101 = arith.addf %92, %100 : vector<8x128xf32>
    %102 = vector.extract_strided_slice %81 {offsets = [2, 0], sizes = [8, 384], strides = [1, 1]} : vector<12x384xbf16> to vector<8x384xbf16>
    %c2_70 = arith.constant 2 : index
    %c0_71 = arith.constant 0 : index
    %c0_72 = arith.constant 0 : index
    %103 = vector.load %arg2[%c2_70, %c0_71, %c0_72] : memref<5x384x128xbf16, #tpu.memory_space<vmem>>, vector<1x384x128xbf16>
    %104 = vector.shape_cast %103 : vector<1x384x128xbf16> to vector<384x128xbf16>
    %cst_73 = arith.constant dense<0.000000e+00> : vector<8x128xf32>
    %105 = tpu.matmul %102, %104, %cst_73 {dimension_numbers = #tpu.dot_dimension_numbers<[1], [0], [0], [1], [0, 0, 1, 1], [], []>} : vector<8x384xbf16>, vector<384x128xbf16>, vector<8x128xf32> -> vector<8x128xf32>
    %106 = arith.addf %97, %105 : vector<8x128xf32>
    %c2_74 = arith.constant 2 : index
    %c0_75 = arith.constant 0 : index
    %c0_76 = arith.constant 0 : index
    %107 = vector.load %arg3[%c2_74, %c0_75, %c0_76] : memref<5x384x128xbf16, #tpu.memory_space<vmem>>, vector<1x384x128xbf16>
    %108 = vector.shape_cast %107 : vector<1x384x128xbf16> to vector<384x128xbf16>
    %cst_77 = arith.constant dense<0.000000e+00> : vector<8x128xf32>
    %109 = tpu.matmul %102, %108, %cst_77 {dimension_numbers = #tpu.dot_dimension_numbers<[1], [0], [0], [1], [0, 0, 1, 1], [], []>} : vector<8x384xbf16>, vector<384x128xbf16>, vector<8x128xf32> -> vector<8x128xf32>
    %110 = arith.addf %101, %109 : vector<8x128xf32>
    %111 = vector.extract_strided_slice %81 {offsets = [3, 0], sizes = [8, 384], strides = [1, 1]} : vector<12x384xbf16> to vector<8x384xbf16>
    %c3_78 = arith.constant 3 : index
    %c0_79 = arith.constant 0 : index
    %c0_80 = arith.constant 0 : index
    %112 = vector.load %arg2[%c3_78, %c0_79, %c0_80] : memref<5x384x128xbf16, #tpu.memory_space<vmem>>, vector<1x384x128xbf16>
    %113 = vector.shape_cast %112 : vector<1x384x128xbf16> to vector<384x128xbf16>
    %cst_81 = arith.constant dense<0.000000e+00> : vector<8x128xf32>
    %114 = tpu.matmul %111, %113, %cst_81 {dimension_numbers = #tpu.dot_dimension_numbers<[1], [0], [0], [1], [0, 0, 1, 1], [], []>} : vector<8x384xbf16>, vector<384x128xbf16>, vector<8x128xf32> -> vector<8x128xf32>
    %115 = arith.addf %106, %114 : vector<8x128xf32>
    %c3_82 = arith.constant 3 : index
    %c0_83 = arith.constant 0 : index
    %c0_84 = arith.constant 0 : index
    %116 = vector.load %arg3[%c3_82, %c0_83, %c0_84] : memref<5x384x128xbf16, #tpu.memory_space<vmem>>, vector<1x384x128xbf16>
    %117 = vector.shape_cast %116 : vector<1x384x128xbf16> to vector<384x128xbf16>
    %cst_85 = arith.constant dense<0.000000e+00> : vector<8x128xf32>
    %118 = tpu.matmul %111, %117, %cst_85 {dimension_numbers = #tpu.dot_dimension_numbers<[1], [0], [0], [1], [0, 0, 1, 1], [], []>} : vector<8x384xbf16>, vector<384x128xbf16>, vector<8x128xf32> -> vector<8x128xf32>
    %119 = arith.addf %110, %118 : vector<8x128xf32>
    %120 = vector.extract_strided_slice %81 {offsets = [4, 0], sizes = [8, 384], strides = [1, 1]} : vector<12x384xbf16> to vector<8x384xbf16>
    %c4_86 = arith.constant 4 : index
    %c0_87 = arith.constant 0 : index
    %c0_88 = arith.constant 0 : index
    %121 = vector.load %arg2[%c4_86, %c0_87, %c0_88] : memref<5x384x128xbf16, #tpu.memory_space<vmem>>, vector<1x384x128xbf16>
    %122 = vector.shape_cast %121 : vector<1x384x128xbf16> to vector<384x128xbf16>
    %cst_89 = arith.constant dense<0.000000e+00> : vector<8x128xf32>
    %123 = tpu.matmul %120, %122, %cst_89 {dimension_numbers = #tpu.dot_dimension_numbers<[1], [0], [0], [1], [0, 0, 1, 1], [], []>} : vector<8x384xbf16>, vector<384x128xbf16>, vector<8x128xf32> -> vector<8x128xf32>
    %124 = arith.addf %115, %123 : vector<8x128xf32>
    %c4_90 = arith.constant 4 : index
    %c0_91 = arith.constant 0 : index
    %c0_92 = arith.constant 0 : index
    %125 = vector.load %arg3[%c4_90, %c0_91, %c0_92] : memref<5x384x128xbf16, #tpu.memory_space<vmem>>, vector<1x384x128xbf16>
    %126 = vector.shape_cast %125 : vector<1x384x128xbf16> to vector<384x128xbf16>
    %cst_93 = arith.constant dense<0.000000e+00> : vector<8x128xf32>
    %127 = tpu.matmul %120, %126, %cst_93 {dimension_numbers = #tpu.dot_dimension_numbers<[1], [0], [0], [1], [0, 0, 1, 1], [], []>} : vector<8x384xbf16>, vector<384x128xbf16>, vector<8x128xf32> -> vector<8x128xf32>
    %128 = arith.addf %119, %127 : vector<8x128xf32>
    %129 = vector.broadcast %0 : vector<1x128xf32> to vector<8x128xf32>
    %130 = arith.addf %124, %129 : vector<8x128xf32>
    %cst_94 = arith.constant 0.000000e+00 : f32
    %131 = vector.broadcast %cst_94 : f32 to vector<8x128xf32>
    %132 = arith.maximumf %130, %131 : vector<8x128xf32>
    %133 = vector.broadcast %0 : vector<1x128xf32> to vector<8x128xf32>
    %134 = arith.addf %128, %133 : vector<8x128xf32>
    %cst_95 = arith.constant 0.000000e+00 : f32
    %135 = vector.broadcast %cst_95 : f32 to vector<8x128xf32>
    %136 = arith.maximumf %134, %135 : vector<8x128xf32>
    %137 = arith.maximumf %132, %136 : vector<8x128xf32>
    %cst_96 = arith.constant dense<0.000000e+00> : vector<4x128xf32>
    %138 = tpu.matmul %7, %137, %cst_96 {dimension_numbers = #tpu.dot_dimension_numbers<[1], [0], [0], [1], [0, 0, 1, 1], [], []>} : vector<4x8xf32>, vector<8x128xf32>, vector<4x128xf32> -> vector<4x128xf32>
    %cst_97 = arith.constant dense<0.000000e+00> : vector<4x128xf32>
    %139 = tpu.matmul %14, %137, %cst_97 {dimension_numbers = #tpu.dot_dimension_numbers<[1], [0], [0], [1], [0, 0, 1, 1], [], []>} : vector<4x8xf32>, vector<8x128xf32>, vector<4x128xf32> -> vector<4x128xf32>
    %140 = arith.maximumf %138, %139 : vector<4x128xf32>
    %141 = arith.truncf %140 : vector<4x128xf32> to vector<4x128xbf16>
    %c1_98 = arith.constant 1 : index
    %c0_99 = arith.constant 0 : index
    %c0_100 = arith.constant 0 : index
    %142 = vector.load %arg5[%c1_98, %c0_99, %c0_100] : memref<2x4x128xbf16, #tpu.memory_space<vmem>>, vector<1x4x128xbf16>
    %143 = vector.shape_cast %142 : vector<1x4x128xbf16> to vector<4x128xbf16>
    %144 = vector.shape_cast %141 : vector<4x128xbf16> to vector<1x4x128xbf16>
    tpu.vector_store %arg5[%c1_98, %c0_99, %c0_100], %144 {strides = array<i32>} : memref<2x4x128xbf16, #tpu.memory_space<vmem>>, vector<1x4x128xbf16>,
    return
  }
  func.func @transform_0(%arg0: i32) -> (i32, i32, i32) {
    %c0_i32 = arith.constant 0 : i32
    %c0_i32_0 = arith.constant 0 : i32
    %c0_i32_1 = arith.constant 0 : i32
    return %arg0, %c0_i32, %c0_i32_0 : i32, i32, i32
  }
  func.func @transform_1(%arg0: i32) -> (i32, i32, i32) {
    %c0_i32 = arith.constant 0 : i32
    %c0_i32_0 = arith.constant 0 : i32
    %c0_i32_1 = arith.constant 0 : i32
    %c0_i32_2 = arith.constant 0 : i32
    return %c0_i32, %c0_i32_0, %c0_i32_1 : i32, i32, i32
  }
  func.func @transform_2(%arg0: i32) -> (i32, i32, i32) {
    %c0_i32 = arith.constant 0 : i32
    %c0_i32_0 = arith.constant 0 : i32
    %c0_i32_1 = arith.constant 0 : i32
    %c0_i32_2 = arith.constant 0 : i32
    return %c0_i32, %c0_i32_0, %c0_i32_1 : i32, i32, i32
  }
  func.func @transform_3(%arg0: i32) -> (i32, i32) {
    %c0_i32 = arith.constant 0 : i32
    %c0_i32_0 = arith.constant 0 : i32
    %c0_i32_1 = arith.constant 0 : i32
    return %c0_i32, %c0_i32_0 : i32, i32
  }
  func.func @transform_4(%arg0: i32) -> (i32, i32, i32) {
    %c0_i32 = arith.constant 0 : i32
    %c0_i32_0 = arith.constant 0 : i32
    %c0_i32_1 = arith.constant 0 : i32
    return %arg0, %c0_i32, %c0_i32_0 : i32, i32, i32
  }
}

module attributes {stable_mosaic.version = 11 : i64} {
  func.func @_fc_head_kernel(%arg0: i32, %arg1: memref<2x32xbf16, #tpu.memory_space<vmem>>, %arg2: memref<2x4xbf16, #tpu.memory_space<vmem>>, %arg3: memref<32x512xbf16, #tpu.memory_space<vmem>>, %arg4: memref<4x512xbf16, #tpu.memory_space<vmem>>, %arg5: memref<1x512xf32, #tpu.memory_space<vmem>>, %arg6: memref<1x512xf32, #tpu.memory_space<vmem>>, %arg7: memref<1x1xf32, #tpu.memory_space<vmem>>, %arg8: memref<2x1xf32, #tpu.memory_space<vmem>>) attributes {dimension_semantics = [#tpu.dimension_semantics<parallel>], iteration_bounds = array<i64: 1>, scalar_prefetch = 0 : i64, scratch_operands = 0 : i64, tpu.core_type = #tpu.core_type<tc>, window_params = [{transform_indices = @transform_0, window_bounds = array<i64: 2, 32>}, {transform_indices = @transform_1, window_bounds = array<i64: 2, 4>}, {pipeline_mode = #tpu.pipeline_mode<synchronous>, transform_indices = @transform_2, window_bounds = array<i64: 32, 512>}, {pipeline_mode = #tpu.pipeline_mode<synchronous>, transform_indices = @transform_3, window_bounds = array<i64: 4, 512>}, {pipeline_mode = #tpu.pipeline_mode<synchronous>, transform_indices = @transform_4, window_bounds = array<i64: 1, 512>}, {pipeline_mode = #tpu.pipeline_mode<synchronous>, transform_indices = @transform_5, window_bounds = array<i64: 1, 512>}, {pipeline_mode = #tpu.pipeline_mode<synchronous>, transform_indices = @transform_6, window_bounds = array<i64: 1, 1>}, {transform_indices = @transform_7, window_bounds = array<i64: 2, 1>}]} {
    %c0 = arith.constant 0 : index
    %c0_0 = arith.constant 0 : index
    %0 = vector.load %arg1[%c0, %c0_0] : memref<2x32xbf16, #tpu.memory_space<vmem>>, vector<2x32xbf16>
    %c0_1 = arith.constant 0 : index
    %c0_2 = arith.constant 0 : index
    %1 = vector.load %arg3[%c0_1, %c0_2] : memref<32x512xbf16, #tpu.memory_space<vmem>>, vector<32x512xbf16>
    %cst = arith.constant dense<0.000000e+00> : vector<2x512xf32>
    %2 = tpu.matmul %0, %1, %cst {dimension_numbers = #tpu.dot_dimension_numbers<[1], [0], [0], [1], [0, 0, 1, 1], [], []>} : vector<2x32xbf16>, vector<32x512xbf16>, vector<2x512xf32> -> vector<2x512xf32>
    %c0_3 = arith.constant 0 : index
    %c0_4 = arith.constant 0 : index
    %3 = vector.load %arg2[%c0_3, %c0_4] : memref<2x4xbf16, #tpu.memory_space<vmem>>, vector<2x4xbf16>
    %c0_5 = arith.constant 0 : index
    %c0_6 = arith.constant 0 : index
    %4 = vector.load %arg4[%c0_5, %c0_6] : memref<4x512xbf16, #tpu.memory_space<vmem>>, vector<4x512xbf16>
    %cst_7 = arith.constant dense<0.000000e+00> : vector<2x512xf32>
    %5 = tpu.matmul %3, %4, %cst_7 {dimension_numbers = #tpu.dot_dimension_numbers<[1], [0], [0], [1], [0, 0, 1, 1], [], []>} : vector<2x4xbf16>, vector<4x512xbf16>, vector<2x512xf32> -> vector<2x512xf32>
    %6 = arith.addf %2, %5 : vector<2x512xf32>
    %c0_8 = arith.constant 0 : index
    %c0_9 = arith.constant 0 : index
    %7 = vector.load %arg5[%c0_8, %c0_9] : memref<1x512xf32, #tpu.memory_space<vmem>>, vector<1x512xf32>
    %8 = vector.broadcast %7 : vector<1x512xf32> to vector<2x512xf32>
    %9 = arith.addf %6, %8 : vector<2x512xf32>
    %cst_10 = arith.constant 0.000000e+00 : f32
    %10 = vector.broadcast %cst_10 : f32 to vector<2x512xf32>
    %11 = arith.maximumf %9, %10 : vector<2x512xf32>
    %c0_11 = arith.constant 0 : index
    %c0_12 = arith.constant 0 : index
    %12 = vector.load %arg6[%c0_11, %c0_12] : memref<1x512xf32, #tpu.memory_space<vmem>>, vector<1x512xf32>
    %13 = vector.broadcast %12 : vector<1x512xf32> to vector<2x512xf32>
    %14 = arith.mulf %11, %13 : vector<2x512xf32>
    %cst_13 = arith.constant dense<0.000000e+00> : vector<2xf32>
    %15 = vector.multi_reduction <add>, %14, %cst_13 [1] : vector<2x512xf32> to vector<2xf32>
    %16 = vector.shape_cast %15 : vector<2xf32> to vector<2x1xf32>
    %c0_14 = arith.constant 0 : index
    %c0_15 = arith.constant 0 : index
    %17 = vector.load %arg7[%c0_14, %c0_15] : memref<1x1xf32, #tpu.memory_space<vmem>>, vector<1x1xf32>
    %18 = vector.broadcast %17 : vector<1x1xf32> to vector<2x1xf32>
    %19 = arith.addf %16, %18 : vector<2x1xf32>
    %c0_16 = arith.constant 0 : index
    %c0_17 = arith.constant 0 : index
    %20 = vector.load %arg8[%c0_16, %c0_17] : memref<2x1xf32, #tpu.memory_space<vmem>>, vector<2x1xf32>
    tpu.vector_store %arg8[%c0_16, %c0_17], %19 {strides = array<i32>} : memref<2x1xf32, #tpu.memory_space<vmem>>, vector<2x1xf32>,
    return
  }
  func.func @transform_0(%arg0: i32) -> (i32, i32) {
    %c0_i32 = arith.constant 0 : i32
    %c0_i32_0 = arith.constant 0 : i32
    return %arg0, %c0_i32 : i32, i32
  }
  func.func @transform_1(%arg0: i32) -> (i32, i32) {
    %c0_i32 = arith.constant 0 : i32
    %c0_i32_0 = arith.constant 0 : i32
    return %arg0, %c0_i32 : i32, i32
  }
  func.func @transform_2(%arg0: i32) -> (i32, i32) {
    %c0_i32 = arith.constant 0 : i32
    %c0_i32_0 = arith.constant 0 : i32
    %c0_i32_1 = arith.constant 0 : i32
    return %c0_i32, %c0_i32_0 : i32, i32
  }
  func.func @transform_3(%arg0: i32) -> (i32, i32) {
    %c0_i32 = arith.constant 0 : i32
    %c0_i32_0 = arith.constant 0 : i32
    %c0_i32_1 = arith.constant 0 : i32
    return %c0_i32, %c0_i32_0 : i32, i32
  }
  func.func @transform_4(%arg0: i32) -> (i32, i32) {
    %c0_i32 = arith.constant 0 : i32
    %c0_i32_0 = arith.constant 0 : i32
    %c0_i32_1 = arith.constant 0 : i32
    return %c0_i32, %c0_i32_0 : i32, i32
  }
  func.func @transform_5(%arg0: i32) -> (i32, i32) {
    %c0_i32 = arith.constant 0 : i32
    %c0_i32_0 = arith.constant 0 : i32
    %c0_i32_1 = arith.constant 0 : i32
    return %c0_i32, %c0_i32_0 : i32, i32
  }
  func.func @transform_6(%arg0: i32) -> (i32, i32) {
    %c0_i32 = arith.constant 0 : i32
    %c0_i32_0 = arith.constant 0 : i32
    %c0_i32_1 = arith.constant 0 : i32
    return %c0_i32, %c0_i32_0 : i32, i32
  }
  func.func @transform_7(%arg0: i32) -> (i32, i32) {
    %c0_i32 = arith.constant 0 : i32
    %c0_i32_0 = arith.constant 0 : i32
    return %arg0, %c0_i32 : i32, i32
  }
}

</mosaic_0001>

<llo_original>
// kernel: forward.7
$region0: #{forward.7}
  #allocation0 [shape = 'u32[]', space=smem, size = 0x4, offset = 0x4, fixed_abs, tag = 'smem constant byte address 0x4 - core index']
  #allocation1 [shape = 'u32[144,128]{1,0:T(1,128)}', space=vmem, size = 0x12000, scoped, tag = 'internal scratch']
  #allocation2 [shape = 'f32[1,1]{1,0:T(1,128)S(1)}', space=vmem, size = 0x200, scoped, tag = 'scoped memory for forward.7']
  %s0 = inlined_call_operand.vmem [shape: bf16[2,32], index: 0, kind: input, shape index: {}]
  %s1 = inlined_call_operand.vmem [shape: bf16[2,4], index: 1, kind: input, shape index: {}]
  %s2 = inlined_call_operand.vmem [shape: bf16[32,512], index: 2, kind: input, shape index: {}]
  %s3 = inlined_call_operand.vmem [shape: bf16[4,512], index: 3, kind: input, shape index: {}]
  %s4 = inlined_call_operand.vmem [shape: f32[1,512], index: 4, kind: input, shape index: {}]
  %s5 = inlined_call_operand.vmem [shape: f32[1,512], index: 5, kind: input, shape index: {}]
  %s6 = inlined_call_operand.<no memory space> [shape: f32[1,1], index: 6, kind: input, shape index: {}]
  %s7 = inlined_call_operand.vmem [shape: f32[2,1], index: 7, kind: output, shape index: {}]
  %s8 = sld [smem:[#allocation0]]
  $region38: #{forward.7} parent=0
    _
  %s10 = ssub.s32 1, %s8
  %s11 = scalar_select 0, %s10, %s8
  %v12 = vstv %s6
  %13 = vst [vmem:[#allocation2] sm:$0x1] %v12
  // Predicated region
  $region2: #{forward.7} parent=0 // pred_check
    _
  $region3: #{forward.7} parent=0 // pred_check_branch
    %15 = sbr.rel (0) target = $region5
  $region4: #{forward.7} parent=0 // pred_region
    _
  $region5: #{forward.7} parent=0 // pred_fallthru
    _
  // Predicated region
  $region6: #{forward.7} parent=0 // pred_check
    _
  $region7: #{forward.7} parent=0 // pred_check_branch
    %17 = sbr.rel (0) target = $region9
  $region8: #{forward.7} parent=0 // pred_region
    _
  $region9: #{forward.7} parent=0 // pred_fallthru
    _
  // Predicated region
  $region10: #{forward.7} parent=0 // pred_check
    _
  $region11: #{forward.7} parent=0 // pred_check_branch
    %19 = sbr.rel (0) target = $region13
  $region12: #{forward.7} parent=0 // pred_region
    _
  $region13: #{forward.7} parent=0 // pred_fallthru
    _
  // Predicated region
  $region14: #{forward.7} parent=0 // pred_check
    _
  $region15: #{forward.7} parent=0 // pred_check_branch
    %21 = sbr.rel (0) target = $region17
  $region16: #{forward.7} parent=0 // pred_region
    _
  $region17: #{forward.7} parent=0 // pred_fallthru
    _
  // Predicated region
  $region18: #{forward.7} parent=0 // pred_check
    _
  $region19: #{forward.7} parent=0 // pred_check_branch
    %23 = sbr.rel (0) target = $region21
  $region20: #{forward.7} parent=0 // pred_region
    _
  $region21: #{forward.7} parent=0 // pred_fallthru
    _
  // Predicated region
  $region22: #{forward.7} parent=0 // pred_check
    _
  $region23: #{forward.7} parent=0 // pred_check_branch
    %25 = sbr.rel (0) target = $region25
  $region24: #{forward.7} parent=0 // pred_region
    _
  $region25: #{forward.7} parent=0 // pred_fallthru
    _
  // Predicated region
  $region26: #{forward.7} parent=0 // pred_check
    _
  $region27: #{forward.7} parent=0 // pred_check_branch
    %27 = sbr.rel (0) target = $region29
  $region28: #{forward.7} parent=0 // pred_region
    _
  $region29: #{forward.7} parent=0 // pred_fallthru
    _
  %v29 = vld [vmem:[%s0] sm:$0x1]
  %v30 = vld [vmem:[%s2] sm:$0xff]
  %v31 = vld [vmem:[%s2 + $0x8] sm:$0xff]
  %v32 = vld [vmem:[%s2 + $0x10] sm:$0xff]
  %v33 = vld [vmem:[%s2 + $0x18] sm:$0xff]
  %v34 = vld [vmem:[%s2 + $0x20] sm:$0xff]
  %v35 = vld [vmem:[%s2 + $0x28] sm:$0xff]
  %v36 = vld [vmem:[%s2 + $0x30] sm:$0xff]
  %v37 = vld [vmem:[%s2 + $0x38] sm:$0xff]
  %v38 = vld [vmem:[%s1] sm:$0x1]
  %v39 = vld [vmem:[%s3] sm:$0xff]
  %v41 = vcombine.high %v39, %v39
  %v43 = vunpack.c.l.s4 1983009808
  %v44 = vunpack.c.0.s8 %v43
  %v45 = vlaneseq
  %v46 = vshrl.u32 %v45, 7
  %v47 = vsub.s32 %v44, %v46
  %v48 = vrot.slane %v39, %v47
  %v50 = vunpack.c.l.s4 1983009808
  %v51 = vunpack.c.0.s8 %v50
  %v52 = vlaneseq
  %v53 = vshrl.u32 %v52, 7
  %v54 = vsub.s32 %v51, %v53
  %v55 = vrot.slane %v41, %v54
  %v56 = vcombine.high %v48, %v48
  %v57 = vcombine.high %v55, %v55
  %vm58 = vcmask 31744
  %v60 = vsel %vm58, %v38, 0
  %vm62 = vcmask 1041408
  %v64 = vsel %vm62, %v48, 0
  %v67 = vsel %vm62, %v56, 0
  %v70 = vsel %vm62, %v55, 0
  %v73 = vsel %vm62, %v57, 0
  %75 = vmatprep.subr.bf16.mxu0 %v67
  %76 = vmatpush1.bf16.msra.mxu0 %v64
  %77 = vmatprep.subr.bf16.mxu0 0
  %78 = vmatpush1.bf16.msra.mxu0 0
  %79 = vmatprep.subr.bf16.mxu0 0
  %80 = vmatpush1.bf16.msra.mxu0 0
  %81 = vmatprep.subr.bf16.mxu0 0
  %82 = vmatpush1.bf16.msra.mxu0 0
  %83 = vmatprep.subr.bf16.mxu0 0
  %84 = vmatpush1.bf16.msra.mxu0 0
  %85 = vmatprep.subr.bf16.mxu0 0
  %86 = vmatpush1.bf16.msra.mxu0 0
  %87 = vmatprep.subr.bf16.mxu0 0
  %88 = vmatpush1.bf16.msra.mxu0 0
  %89 = vmatprep.subr.bf16.mxu0 0
  %90 = vmatpush1.bf16.msra.mxu0 0
  %91 = vmatprep.subr.bf16.mxu0 0
  %92 = vmatpush1.bf16.msra.mxu0 0
  %93 = vmatprep.subr.bf16.mxu0 0
  %94 = vmatpush1.bf16.msra.mxu0 0
  %95 = vmatprep.subr.bf16.mxu0 0
  %96 = vmatpush1.bf16.msra.mxu0 0
  %97 = vmatprep.subr.bf16.mxu0 0
  %98 = vmatpush1.bf16.msra.mxu0 0
  %99 = vmatprep.subr.bf16.mxu0 0
  %100 = vmatpush1.bf16.msra.mxu0 0
  %101 = vmatprep.subr.bf16.mxu0 0
  %102 = vmatpush1.bf16.msra.mxu0 0
  %103 = vmatprep.subr.bf16.mxu0 0
  %104 = vmatpush1.bf16.msra.mxu0 0
  %105 = vmatprep.subr.bf16.mxu0 0
  %106 = vmatpush1.bf16.msra.mxu0 0
  %107 = vmatprep.mubr.bf16.mxu0 0
  %108 = vmatmul.mubr.bf16.gmra.mrb[0].mxu0 %v60
  %v109 = vpop.f32.mrb[0].mxu0
  %v110 = vadd.f32 0.0, %v109
  %v111 = vpop.f32.mrb[0].mxu0
  %v112 = vadd.f32 0.0, %v111
  %v113 = vpop.f32.mrb[0].mxu0
  %v114 = vpop.f32.mrb[0].mxu0
  %115 = vdwg.mxu0
  %116 = vmatprep.subr.bf16.mxu0 %v73
  %117 = vmatpush1.bf16.msra.mxu0 %v70
  %118 = vmatprep.subr.bf16.mxu0 0
  %119 = vmatpush1.bf16.msra.mxu0 0
  %120 = vmatprep.subr.bf16.mxu0 0
  %121 = vmatpush1.bf16.msra.mxu0 0
  %122 = vmatprep.subr.bf16.mxu0 0
  %123 = vmatpush1.bf16.msra.mxu0 0
  %124 = vmatprep.subr.bf16.mxu0 0
  %125 = vmatpush1.bf16.msra.mxu0 0
  %126 = vmatprep.subr.bf16.mxu0 0
  %127 = vmatpush1.bf16.msra.mxu0 0
  %128 = vmatprep.subr.bf16.mxu0 0
  %129 = vmatpush1.bf16.msra.mxu0 0
  %130 = vmatprep.subr.bf16.mxu0 0
  %131 = vmatpush1.bf16.msra.mxu0 0
  %132 = vmatprep.subr.bf16.mxu0 0
  %133 = vmatpush1.bf16.msra.mxu0 0
  %134 = vmatprep.subr.bf16.mxu0 0
  %135 = vmatpush1.bf16.msra.mxu0 0
  %136 = vmatprep.subr.bf16.mxu0 0
  %137 = vmatpush1.bf16.msra.mxu0 0
  %138 = vmatprep.subr.bf16.mxu0 0
  %139 = vmatpush1.bf16.msra.mxu0 0
  %140 = vmatprep.subr.bf16.mxu0 0
  %141 = vmatpush1.bf16.msra.mxu0 0
  %142 = vmatprep.subr.bf16.mxu0 0
  %143 = vmatpush1.bf16.msra.mxu0 0
  %144 = vmatprep.subr.bf16.mxu0 0
  %145 = vmatpush1.bf16.msra.mxu0 0
  %146 = vmatprep.subr.bf16.mxu0 0
  %147 = vmatpush1.bf16.msra.mxu0 0
  %148 = vmatprep.mubr.bf16.mxu0 0
  %149 = vmatmul.mubr.bf16.gmra.mrb[0].mxu0 %v60
  %v150 = vpop.f32.mrb[0].mxu0
  %v151 = vadd.f32 0.0, %v150
  %v152 = vpop.f32.mrb[0].mxu0
  %v153 = vadd.f32 0.0, %v152
  %v154 = vpop.f32.mrb[0].mxu0
  %v155 = vpop.f32.mrb[0].mxu0
  %156 = vdwg.mxu0
  %v165 = vunpack.c.l.b16 %v30
  %v166 = vunpack.c.h.b16 %v30
  %v167 = vunpack.c.l.b16 %v31
  %v168 = vunpack.c.h.b16 %v31
  %v169 = vunpack.c.l.b16 %v32
  %v170 = vunpack.c.h.b16 %v32
  %v171 = vunpack.c.l.b16 %v33
  %v172 = vunpack.c.h.b16 %v33
  %v173 = vunpack.c.l.b16 %v34
  %v174 = vunpack.c.h.b16 %v34
  %v175 = vunpack.c.l.b16 %v35
  %v176 = vunpack.c.h.b16 %v35
  %v177 = vunpack.c.l.b16 %v36
  %v178 = vunpack.c.h.b16 %v36
  %v179 = vunpack.c.l.b16 %v37
  %v180 = vunpack.c.h.b16 %v37
  %v181 = vpack.c.b16 %v169, %v165
  %v182 = vpack.c.b16 %v170, %v166
  %v183 = vpack.c.b16 %v171, %v167
  %v184 = vpack.c.b16 %v172, %v168
  %v185 = vpack.c.b16 %v177, %v173
  %v186 = vpack.c.b16 %v178, %v174
  %v187 = vpack.c.b16 %v179, %v175
  %v188 = vpack.c.b16 %v180, %v176
  %vm197 = vcmask 261120
  %v199 = vsel %vm197, %v29, 0
  %201 = vmatprep.subr.bf16.mxu0 %v182
  %202 = vmatpush1.bf16.msra.mxu0 %v181
  %203 = vmatprep.subr.bf16.mxu0 %v186
  %204 = vmatpush1.bf16.msra.mxu0 %v185
  %205 = vmatprep.subr.bf16.mxu0 0
  %206 = vmatpush1.bf16.msra.mxu0 0
  %207 = vmatprep.subr.bf16.mxu0 0
  %208 = vmatpush1.bf16.msra.mxu0 0
  %209 = vmatprep.subr.bf16.mxu0 0
  %210 = vmatpush1.bf16.msra.mxu0 0
  %211 = vmatprep.subr.bf16.mxu0 0
  %212 = vmatpush1.bf16.msra.mxu0 0
  %213 = vmatprep.subr.bf16.mxu0 0
  %214 = vmatpush1.bf16.msra.mxu0 0
  %215 = vmatprep.subr.bf16.mxu0 0
  %216 = vmatpush1.bf16.msra.mxu0 0
  %217 = vmatprep.subr.bf16.mxu0 0
  %218 = vmatpush1.bf16.msra.mxu0 0
  %219 = vmatprep.subr.bf16.mxu0 0
  %220 = vmatpush1.bf16.msra.mxu0 0
  %221 = vmatprep.subr.bf16.mxu0 0
  %222 = vmatpush1.bf16.msra.mxu0 0
  %223 = vmatprep.subr.bf16.mxu0 0
  %224 = vmatpush1.bf16.msra.mxu0 0
  %225 = vmatprep.subr.bf16.mxu0 0
  %226 = vmatpush1.bf16.msra.mxu0 0
  %227 = vmatprep.subr.bf16.mxu0 0
  %228 = vmatpush1.bf16.msra.mxu0 0
  %229 = vmatprep.subr.bf16.mxu0 0
  %230 = vmatpush1.bf16.msra.mxu0 0
  %231 = vmatprep.subr.bf16.mxu0 0
  %232 = vmatpush1.bf16.msra.mxu0 0
  %233 = vmatprep.mubr.bf16.mxu0 0
  %234 = vmatmul.mubr.bf16.gmra.mrb[0].mxu0 %v199
  %v235 = vpop.f32.mrb[0].mxu0
  %v236 = vadd.f32 %v110, %v235
  %v237 = vpop.f32.mrb[0].mxu0
  %v238 = vadd.f32 %v112, %v237
  %v239 = vpop.f32.mrb[0].mxu0
  %v240 = vpop.f32.mrb[0].mxu0
  %241 = vdwg.mxu0
  %242 = vmatprep.subr.bf16.mxu0 %v184
  %243 = vmatpush1.bf16.msra.mxu0 %v183
  %244 = vmatprep.subr.bf16.mxu0 %v188
  %245 = vmatpush1.bf16.msra.mxu0 %v187
  %246 = vmatprep.subr.bf16.mxu0 0
  %247 = vmatpush1.bf16.msra.mxu0 0
  %248 = vmatprep.subr.bf16.mxu0 0
  %249 = vmatpush1.bf16.msra.mxu0 0
  %250 = vmatprep.subr.bf16.mxu0 0
  %251 = vmatpush1.bf16.msra.mxu0 0
  %252 = vmatprep.subr.bf16.mxu0 0
  %253 = vmatpush1.bf16.msra.mxu0 0
  %254 = vmatprep.subr.bf16.mxu0 0
  %255 = vmatpush1.bf16.msra.mxu0 0
  %256 = vmatprep.subr.bf16.mxu0 0
  %257 = vmatpush1.bf16.msra.mxu0 0
  %258 = vmatprep.subr.bf16.mxu0 0
  %259 = vmatpush1.bf16.msra.mxu0 0
  %260 = vmatprep.subr.bf16.mxu0 0
  %261 = vmatpush1.bf16.msra.mxu0 0
  %262 = vmatprep.subr.bf16.mxu0 0
  %263 = vmatpush1.bf16.msra.mxu0 0
  %264 = vmatprep.subr.bf16.mxu0 0
  %265 = vmatpush1.bf16.msra.mxu0 0
  %266 = vmatprep.subr.bf16.mxu0 0
  %267 = vmatpush1.bf16.msra.mxu0 0
  %268 = vmatprep.subr.bf16.mxu0 0
  %269 = vmatpush1.bf16.msra.mxu0 0
  %270 = vmatprep.subr.bf16.mxu0 0
  %271 = vmatpush1.bf16.msra.mxu0 0
  %272 = vmatprep.subr.bf16.mxu0 0
  %273 = vmatpush1.bf16.msra.mxu0 0
  %274 = vmatprep.mubr.bf16.mxu0 0
  %275 = vmatmul.mubr.bf16.gmra.mrb[0].mxu0 %v199
  %v276 = vpop.f32.mrb[0].mxu0
  %v277 = vadd.f32 %v151, %v276
  %v278 = vpop.f32.mrb[0].mxu0
  %v279 = vadd.f32 %v153, %v278
  %v280 = vpop.f32.mrb[0].mxu0
  %v281 = vpop.f32.mrb[0].mxu0
  %282 = vdwg.mxu0
  %v283 = vld [vmem:[%s4] sm:$0xf]
  %v285 = vlaneseq
  %v286 = vshrl.u32 %v285, 7
  %v287 = vsub.s32 0, %v286
  %v288 = vrot.slane %v283, %v287
  %v289 = vlaneseq
  %v290 = vshrl.u32 %v289, 7
  %v291 = vsub.s32 1, %v290
  %v292 = vrot.slane %v283, %v291
  %v293 = vlaneseq
  %v294 = vshrl.u32 %v293, 7
  %v295 = vsub.s32 2, %v294
  %v296 = vrot.slane %v283, %v295
  %v297 = vlaneseq
  %v298 = vshrl.u32 %v297, 7
  %v299 = vsub.s32 3, %v298
  %v300 = vrot.slane %v283, %v299
  %v305 = vadd.f32 %v236, %v288
  %v306 = vadd.f32 %v238, %v292
  %v307 = vadd.f32 %v277, %v296
  %v308 = vadd.f32 %v279, %v300
  %v309 = vmax.f32 %v305, 0.0
  %v310 = vmax.f32 %v306, 0.0
  %v311 = vmax.f32 %v307, 0.0
  %v312 = vmax.f32 %v308, 0.0
  %v313 = vld [vmem:[%s5] sm:$0xf]
  %v315 = vlaneseq
  %v316 = vshrl.u32 %v315, 7
  %v317 = vsub.s32 0, %v316
  %v318 = vrot.slane %v313, %v317
  %v319 = vlaneseq
  %v320 = vshrl.u32 %v319, 7
  %v321 = vsub.s32 1, %v320
  %v322 = vrot.slane %v313, %v321
  %v323 = vlaneseq
  %v324 = vshrl.u32 %v323, 7
  %v325 = vsub.s32 2, %v324
  %v326 = vrot.slane %v313, %v325
  %v327 = vlaneseq
  %v328 = vshrl.u32 %v327, 7
  %v329 = vsub.s32 3, %v328
  %v330 = vrot.slane %v313, %v329
  %v335 = vmul.f32 %v309, %v318
  %v336 = vmul.f32 %v310, %v322
  %v337 = vmul.f32 %v311, %v326
  %v338 = vmul.f32 %v312, %v330
  %v339 = vsel %vm62, %v335, 0.0
  %v340 = vsel %vm62, %v336, 0.0
  %v341 = vadd.f32 %v339, %v340
  %v342 = vsel %vm62, %v337, 0.0
  %v343 = vadd.f32 %v341, %v342
  %v344 = vsel %vm62, %v338, 0.0
  %v345 = vadd.f32 %v343, %v344
  %346 = vadd.xlane.f32.xlu0 %v345
  %v347 = vpop.xlane.xlu0 %346
  %v348 = vld [vmem:[#allocation2] sm:$0x1]
  %v350 = vlaneseq
  %v351 = vshrl.u32 %v350, 7
  %v352 = vsub.s32 0, %v351
  %v353 = vrot.slane %v348, %v352
  %v355 = vadd.f32 %v347, %v353
  %vm356 = vcmask 1024
  %357 = vst.msk [vmem:[%s7] sm:$0x3] %vm356, %v355
  // Predicated region
  $region30: #{forward.7} parent=0 // pred_check
    _
  $region31: #{forward.7} parent=0 // pred_check_branch
    %359 = sbr.rel (0) target = $region33
  $region32: #{forward.7} parent=0 // pred_region
    _
  $region33: #{forward.7} parent=0 // pred_fallthru
    _
  // Predicated region
  $region34: #{forward.7} parent=0 // pred_check
    _
  $region35: #{forward.7} parent=0 // pred_check_branch
    %361 = sbr.rel (0) target = $region37
  $region36: #{forward.7} parent=0 // pred_region
    _
  $region37: #{forward.7} parent=0 // pred_fallthru
    _

// kernel: forward.6
$region0: #{forward.6}
  #allocation0 [shape = 'u32[]', space=smem, size = 0x4, offset = 0x4, fixed_abs, tag = 'smem constant byte address 0x4 - core index']
  #allocation1 [shape = 'u32[144,128]{1,0:T(1,128)}', space=vmem, size = 0x12000, scoped, tag = 'internal scratch']
  %s0 = inlined_call_operand.vmem [shape: bf16[2,4,128], index: 0, kind: input, shape index: {}]
  %s1 = inlined_call_operand.vmem [shape: bf16[4,128,32], index: 1, kind: input, shape index: {}]
  %s2 = inlined_call_operand.vmem [shape: f32[1,32], index: 2, kind: input, shape index: {}]
  %s3 = inlined_call_operand.vmem [shape: bf16[2,1,32], index: 3, kind: output, shape index: {}]
  %s4 = sld [smem:[#allocation0]]
  $region22: #{forward.6} parent=0
    _
  %s6 = ssub.s32 1, %s4
  %s7 = scalar_select 0, %s6, %s4
  // Predicated region
  $region2: #{forward.6} parent=0 // pred_check
    _
  $region3: #{forward.6} parent=0 // pred_check_branch
    %9 = sbr.rel (0) target = $region5
  $region4: #{forward.6} parent=0 // pred_region
    _
  $region5: #{forward.6} parent=0 // pred_fallthru
    _
  // Predicated region
  $region6: #{forward.6} parent=0 // pred_check
    _
  $region7: #{forward.6} parent=0 // pred_check_branch
    %11 = sbr.rel (0) target = $region9
  $region8: #{forward.6} parent=0 // pred_region
    _
  $region9: #{forward.6} parent=0 // pred_fallthru
    _
  // Predicated region
  $region10: #{forward.6} parent=0 // pred_check
    _
  $region11: #{forward.6} parent=0 // pred_check_branch
    %13 = sbr.rel (0) target = $region13
  $region12: #{forward.6} parent=0 // pred_region
    _
  $region13: #{forward.6} parent=0 // pred_fallthru
    _
  %v15 = vld [vmem:[%s2] sm:$0x1]
  %v16 = vld [vmem:[%s0] sm:$0x3]
  %v17 = vld [vmem:[%s1] sm:$0xf]
  %v18 = vld [vmem:[%s1 + $0x4] sm:$0xf]
  %v19 = vld [vmem:[%s1 + $0x8] sm:$0xf]
  %v20 = vld [vmem:[%s1 + $0xc] sm:$0xf]
  %v21 = vld [vmem:[%s1 + $0x10] sm:$0xf]
  %v22 = vld [vmem:[%s1 + $0x14] sm:$0xf]
  %v23 = vld [vmem:[%s1 + $0x18] sm:$0xf]
  %v24 = vld [vmem:[%s1 + $0x1c] sm:$0xf]
  %v25 = vld [vmem:[%s1 + $0x20] sm:$0xf]
  %v26 = vld [vmem:[%s1 + $0x24] sm:$0xf]
  %v27 = vld [vmem:[%s1 + $0x28] sm:$0xf]
  %v28 = vld [vmem:[%s1 + $0x2c] sm:$0xf]
  %v29 = vld [vmem:[%s1 + $0x30] sm:$0xf]
  %v30 = vld [vmem:[%s1 + $0x34] sm:$0xf]
  %v31 = vld [vmem:[%s1 + $0x38] sm:$0xf]
  %v32 = vld [vmem:[%s1 + $0x3c] sm:$0xf]
  %s33 = scalar_lea.vmem %s1, 64
  %v34 = vld [vmem:[%s33] sm:$0xf]
  %v35 = vld [vmem:[%s33 + $0x4] sm:$0xf]
  %v36 = vld [vmem:[%s33 + $0x8] sm:$0xf]
  %v37 = vld [vmem:[%s33 + $0xc] sm:$0xf]
  %v38 = vld [vmem:[%s33 + $0x10] sm:$0xf]
  %v39 = vld [vmem:[%s33 + $0x14] sm:$0xf]
  %v40 = vld [vmem:[%s33 + $0x18] sm:$0xf]
  %v41 = vld [vmem:[%s33 + $0x1c] sm:$0xf]
  %v42 = vld [vmem:[%s33 + $0x20] sm:$0xf]
  %v43 = vld [vmem:[%s33 + $0x24] sm:$0xf]
  %v44 = vld [vmem:[%s33 + $0x28] sm:$0xf]
  %v45 = vld [vmem:[%s33 + $0x2c] sm:$0xf]
  %v46 = vld [vmem:[%s33 + $0x30] sm:$0xf]
  %v47 = vld [vmem:[%s33 + $0x34] sm:$0xf]
  %v48 = vld [vmem:[%s33 + $0x38] sm:$0xf]
  %v49 = vld [vmem:[%s33 + $0x3c] sm:$0xf]
  %v52 = vunpack.c.l.s4 1983009808
  %v53 = vunpack.c.0.s8 %v52
  %v54 = vlaneseq
  %v55 = vshrl.u32 %v54, 7
  %v56 = vsub.s32 %v53, %v55
  %v57 = vrot.slane %v16, %v56
  %v59 = vshrl.u32 %v57, 16
  %v78 = vunpack.c.l.b16 %v34
  %v79 = vunpack.c.l.b16 %v35
  %v80 = vunpack.c.l.b16 %v36
  %v81 = vunpack.c.l.b16 %v37
  %v82 = vunpack.c.l.b16 %v38
  %v83 = vunpack.c.l.b16 %v39
  %v84 = vunpack.c.l.b16 %v40
  %v85 = vunpack.c.l.b16 %v41
  %v86 = vunpack.c.l.b16 %v42
  %v87 = vunpack.c.l.b16 %v43
  %v88 = vunpack.c.l.b16 %v44
  %v89 = vunpack.c.l.b16 %v45
  %v90 = vunpack.c.l.b16 %v46
  %v91 = vunpack.c.l.b16 %v47
  %v92 = vunpack.c.l.b16 %v48
  %v93 = vunpack.c.l.b16 %v49
  %v94 = vpack.c.b16 %v79, %v78
  %v95 = vpack.c.b16 %v81, %v80
  %v96 = vpack.c.b16 %v83, %v82
  %v97 = vpack.c.b16 %v85, %v84
  %v98 = vpack.c.b16 %v87, %v86
  %v99 = vpack.c.b16 %v89, %v88
  %v100 = vpack.c.b16 %v91, %v90
  %v101 = vpack.c.b16 %v93, %v92
  %110 = vmatprep.subr.bf16.mxu0 0
  %111 = vmatpush1.bf16.msra.mxu0 %v94
  %112 = vmatprep.subr.bf16.mxu0 0
  %113 = vmatpush1.bf16.msra.mxu0 %v95
  %114 = vmatprep.subr.bf16.mxu0 0
  %115 = vmatpush1.bf16.msra.mxu0 %v96
  %116 = vmatprep.subr.bf16.mxu0 0
  %117 = vmatpush1.bf16.msra.mxu0 %v97
  %118 = vmatprep.subr.bf16.mxu0 0
  %119 = vmatpush1.bf16.msra.mxu0 %v98
  %120 = vmatprep.subr.bf16.mxu0 0
  %121 = vmatpush1.bf16.msra.mxu0 %v99
  %122 = vmatprep.subr.bf16.mxu0 0
  %123 = vmatpush1.bf16.msra.mxu0 %v100
  %124 = vmatprep.subr.bf16.mxu0 0
  %125 = vmatpush1.bf16.msra.mxu0 %v101
  %126 = vmatprep.subr.bf16.mxu0 0
  %127 = vmatpush1.bf16.msra.mxu0 0
  %128 = vmatprep.subr.bf16.mxu0 0
  %129 = vmatpush1.bf16.msra.mxu0 0
  %130 = vmatprep.subr.bf16.mxu0 0
  %131 = vmatpush1.bf16.msra.mxu0 0
  %132 = vmatprep.subr.bf16.mxu0 0
  %133 = vmatpush1.bf16.msra.mxu0 0
  %134 = vmatprep.subr.bf16.mxu0 0
  %135 = vmatpush1.bf16.msra.mxu0 0
  %136 = vmatprep.subr.bf16.mxu0 0
  %137 = vmatpush1.bf16.msra.mxu0 0
  %138 = vmatprep.subr.bf16.mxu0 0
  %139 = vmatpush1.bf16.msra.mxu0 0
  %140 = vmatprep.subr.bf16.mxu0 0
  %141 = vmatpush1.bf16.msra.mxu0 0
  %142 = vmatprep.mubr.bf16.mxu0 0
  %143 = vmatmul.mubr.bf16.gmra.mrb[0].mxu0 %v59
  %v144 = vpop.f32.mrb[0].mxu0
  %v145 = vadd.f32 0.0, %v144
  %v146 = vpop.f32.mrb[0].mxu0
  %v147 = vpop.f32.mrb[0].mxu0
  %v148 = vpop.f32.mrb[0].mxu0
  %149 = vdwg.mxu0
  %v166 = vunpack.c.l.b16 %v17
  %v167 = vunpack.c.l.b16 %v18
  %v168 = vunpack.c.l.b16 %v19
  %v169 = vunpack.c.l.b16 %v20
  %v170 = vunpack.c.l.b16 %v21
  %v171 = vunpack.c.l.b16 %v22
  %v172 = vunpack.c.l.b16 %v23
  %v173 = vunpack.c.l.b16 %v24
  %v174 = vunpack.c.l.b16 %v25
  %v175 = vunpack.c.l.b16 %v26
  %v176 = vunpack.c.l.b16 %v27
  %v177 = vunpack.c.l.b16 %v28
  %v178 = vunpack.c.l.b16 %v29
  %v179 = vunpack.c.l.b16 %v30
  %v180 = vunpack.c.l.b16 %v31
  %v181 = vunpack.c.l.b16 %v32
  %v182 = vpack.c.b16 %v167, %v166
  %v183 = vpack.c.b16 %v169, %v168
  %v184 = vpack.c.b16 %v171, %v170
  %v185 = vpack.c.b16 %v173, %v172
  %v186 = vpack.c.b16 %v175, %v174
  %v187 = vpack.c.b16 %v177, %v176
  %v188 = vpack.c.b16 %v179, %v178
  %v189 = vpack.c.b16 %v181, %v180
  %198 = vmatprep.subr.bf16.mxu0 0
  %199 = vmatpush1.bf16.msra.mxu0 %v182
  %200 = vmatprep.subr.bf16.mxu0 0
  %201 = vmatpush1.bf16.msra.mxu0 %v183
  %202 = vmatprep.subr.bf16.mxu0 0
  %203 = vmatpush1.bf16.msra.mxu0 %v184
  %204 = vmatprep.subr.bf16.mxu0 0
  %205 = vmatpush1.bf16.msra.mxu0 %v185
  %206 = vmatprep.subr.bf16.mxu0 0
  %207 = vmatpush1.bf16.msra.mxu0 %v186
  %208 = vmatprep.subr.bf16.mxu0 0
  %209 = vmatpush1.bf16.msra.mxu0 %v187
  %210 = vmatprep.subr.bf16.mxu0 0
  %211 = vmatpush1.bf16.msra.mxu0 %v188
  %212 = vmatprep.subr.bf16.mxu0 0
  %213 = vmatpush1.bf16.msra.mxu0 %v189
  %214 = vmatprep.subr.bf16.mxu0 0
  %215 = vmatpush1.bf16.msra.mxu0 0
  %216 = vmatprep.subr.bf16.mxu0 0
  %217 = vmatpush1.bf16.msra.mxu0 0
  %218 = vmatprep.subr.bf16.mxu0 0
  %219 = vmatpush1.bf16.msra.mxu0 0
  %220 = vmatprep.subr.bf16.mxu0 0
  %221 = vmatpush1.bf16.msra.mxu0 0
  %222 = vmatprep.subr.bf16.mxu0 0
  %223 = vmatpush1.bf16.msra.mxu0 0
  %224 = vmatprep.subr.bf16.mxu0 0
  %225 = vmatpush1.bf16.msra.mxu0 0
  %226 = vmatprep.subr.bf16.mxu0 0
  %227 = vmatpush1.bf16.msra.mxu0 0
  %228 = vmatprep.subr.bf16.mxu0 0
  %229 = vmatpush1.bf16.msra.mxu0 0
  %230 = vmatprep.mubr.bf16.mxu0 0
  %231 = vmatmul.mubr.bf16.gmra.mrb[0].mxu0 %v16
  %v232 = vpop.f32.mrb[0].mxu0
  %v233 = vadd.f32 %v145, %v232
  %v234 = vpop.f32.mrb[0].mxu0
  %v235 = vpop.f32.mrb[0].mxu0
  %v236 = vpop.f32.mrb[0].mxu0
  %237 = vdwg.mxu0
  %s238 = scalar_lea.vmem %s1, 128
  %v239 = vld [vmem:[%s238] sm:$0xf]
  %v240 = vld [vmem:[%s238 + $0x4] sm:$0xf]
  %v241 = vld [vmem:[%s238 + $0x8] sm:$0xf]
  %v242 = vld [vmem:[%s238 + $0xc] sm:$0xf]
  %v243 = vld [vmem:[%s238 + $0x10] sm:$0xf]
  %v244 = vld [vmem:[%s238 + $0x14] sm:$0xf]
  %v245 = vld [vmem:[%s238 + $0x18] sm:$0xf]
  %v246 = vld [vmem:[%s238 + $0x1c] sm:$0xf]
  %v247 = vld [vmem:[%s238 + $0x20] sm:$0xf]
  %v248 = vld [vmem:[%s238 + $0x24] sm:$0xf]
  %v249 = vld [vmem:[%s238 + $0x28] sm:$0xf]
  %v250 = vld [vmem:[%s238 + $0x2c] sm:$0xf]
  %v251 = vld [vmem:[%s238 + $0x30] sm:$0xf]
  %v252 = vld [vmem:[%s238 + $0x34] sm:$0xf]
  %v253 = vld [vmem:[%s238 + $0x38] sm:$0xf]
  %v254 = vld [vmem:[%s238 + $0x3c] sm:$0xf]
  %v255 = vrot.slane %v57, 1
  %v273 = vunpack.c.l.b16 %v239
  %v274 = vunpack.c.l.b16 %v240
  %v275 = vunpack.c.l.b16 %v241
  %v276 = vunpack.c.l.b16 %v242
  %v277 = vunpack.c.l.b16 %v243
  %v278 = vunpack.c.l.b16 %v244
  %v279 = vunpack.c.l.b16 %v245
  %v280 = vunpack.c.l.b16 %v246
  %v281 = vunpack.c.l.b16 %v247
  %v282 = vunpack.c.l.b16 %v248
  %v283 = vunpack.c.l.b16 %v249
  %v284 = vunpack.c.l.b16 %v250
  %v285 = vunpack.c.l.b16 %v251
  %v286 = vunpack.c.l.b16 %v252
  %v287 = vunpack.c.l.b16 %v253
  %v288 = vunpack.c.l.b16 %v254
  %v289 = vpack.c.b16 %v274, %v273
  %v290 = vpack.c.b16 %v276, %v275
  %v291 = vpack.c.b16 %v278, %v277
  %v292 = vpack.c.b16 %v280, %v279
  %v293 = vpack.c.b16 %v282, %v281
  %v294 = vpack.c.b16 %v284, %v283
  %v295 = vpack.c.b16 %v286, %v285
  %v296 = vpack.c.b16 %v288, %v287
  %305 = vmatprep.subr.bf16.mxu0 0
  %306 = vmatpush1.bf16.msra.mxu0 %v289
  %307 = vmatprep.subr.bf16.mxu0 0
  %308 = vmatpush1.bf16.msra.mxu0 %v290
  %309 = vmatprep.subr.bf16.mxu0 0
  %310 = vmatpush1.bf16.msra.mxu0 %v291
  %311 = vmatprep.subr.bf16.mxu0 0
  %312 = vmatpush1.bf16.msra.mxu0 %v292
  %313 = vmatprep.subr.bf16.mxu0 0
  %314 = vmatpush1.bf16.msra.mxu0 %v293
  %315 = vmatprep.subr.bf16.mxu0 0
  %316 = vmatpush1.bf16.msra.mxu0 %v294
  %317 = vmatprep.subr.bf16.mxu0 0
  %318 = vmatpush1.bf16.msra.mxu0 %v295
  %319 = vmatprep.subr.bf16.mxu0 0
  %320 = vmatpush1.bf16.msra.mxu0 %v296
  %321 = vmatprep.subr.bf16.mxu0 0
  %322 = vmatpush1.bf16.msra.mxu0 0
  %323 = vmatprep.subr.bf16.mxu0 0
  %324 = vmatpush1.bf16.msra.mxu0 0
  %325 = vmatprep.subr.bf16.mxu0 0
  %326 = vmatpush1.bf16.msra.mxu0 0
  %327 = vmatprep.subr.bf16.mxu0 0
  %328 = vmatpush1.bf16.msra.mxu0 0
  %329 = vmatprep.subr.bf16.mxu0 0
  %330 = vmatpush1.bf16.msra.mxu0 0
  %331 = vmatprep.subr.bf16.mxu0 0
  %332 = vmatpush1.bf16.msra.mxu0 0
  %333 = vmatprep.subr.bf16.mxu0 0
  %334 = vmatpush1.bf16.msra.mxu0 0
  %335 = vmatprep.subr.bf16.mxu0 0
  %336 = vmatpush1.bf16.msra.mxu0 0
  %337 = vmatprep.mubr.bf16.mxu0 0
  %338 = vmatmul.mubr.bf16.gmra.mrb[0].mxu0 %v255
  %v339 = vpop.f32.mrb[0].mxu0
  %v340 = vadd.f32 0.0, %v339
  %v341 = vpop.f32.mrb[0].mxu0
  %v342 = vpop.f32.mrb[0].mxu0
  %v343 = vpop.f32.mrb[0].mxu0
  %344 = vdwg.mxu0
  %v345 = vadd.f32 %v233, %v340
  %s346 = scalar_lea.vmem %s1, 192
  %v347 = vld [vmem:[%s346] sm:$0xf]
  %v348 = vld [vmem:[%s346 + $0x4] sm:$0xf]
  %v349 = vld [vmem:[%s346 + $0x8] sm:$0xf]
  %v350 = vld [vmem:[%s346 + $0xc] sm:$0xf]
  %v351 = vld [vmem:[%s346 + $0x10] sm:$0xf]
  %v352 = vld [vmem:[%s346 + $0x14] sm:$0xf]
  %v353 = vld [vmem:[%s346 + $0x18] sm:$0xf]
  %v354 = vld [vmem:[%s346 + $0x1c] sm:$0xf]
  %v355 = vld [vmem:[%s346 + $0x20] sm:$0xf]
  %v356 = vld [vmem:[%s346 + $0x24] sm:$0xf]
  %v357 = vld [vmem:[%s346 + $0x28] sm:$0xf]
  %v358 = vld [vmem:[%s346 + $0x2c] sm:$0xf]
  %v359 = vld [vmem:[%s346 + $0x30] sm:$0xf]
  %v360 = vld [vmem:[%s346 + $0x34] sm:$0xf]
  %v361 = vld [vmem:[%s346 + $0x38] sm:$0xf]
  %v362 = vld [vmem:[%s346 + $0x3c] sm:$0xf]
  %v363 = vrot.slane %v59, 1
  %v381 = vunpack.c.l.b16 %v347
  %v382 = vunpack.c.l.b16 %v348
  %v383 = vunpack.c.l.b16 %v349
  %v384 = vunpack.c.l.b16 %v350
  %v385 = vunpack.c.l.b16 %v351
  %v386 = vunpack.c.l.b16 %v352
  %v387 = vunpack.c.l.b16 %v353
  %v388 = vunpack.c.l.b16 %v354
  %v389 = vunpack.c.l.b16 %v355
  %v390 = vunpack.c.l.b16 %v356
  %v391 = vunpack.c.l.b16 %v357
  %v392 = vunpack.c.l.b16 %v358
  %v393 = vunpack.c.l.b16 %v359
  %v394 = vunpack.c.l.b16 %v360
  %v395 = vunpack.c.l.b16 %v361
  %v396 = vunpack.c.l.b16 %v362
  %v397 = vpack.c.b16 %v382, %v381
  %v398 = vpack.c.b16 %v384, %v383
  %v399 = vpack.c.b16 %v386, %v385
  %v400 = vpack.c.b16 %v388, %v387
  %v401 = vpack.c.b16 %v390, %v389
  %v402 = vpack.c.b16 %v392, %v391
  %v403 = vpack.c.b16 %v394, %v393
  %v404 = vpack.c.b16 %v396, %v395
  %413 = vmatprep.subr.bf16.mxu0 0
  %414 = vmatpush1.bf16.msra.mxu0 %v397
  %415 = vmatprep.subr.bf16.mxu0 0
  %416 = vmatpush1.bf16.msra.mxu0 %v398
  %417 = vmatprep.subr.bf16.mxu0 0
  %418 = vmatpush1.bf16.msra.mxu0 %v399
  %419 = vmatprep.subr.bf16.mxu0 0
  %420 = vmatpush1.bf16.msra.mxu0 %v400
  %421 = vmatprep.subr.bf16.mxu0 0
  %422 = vmatpush1.bf16.msra.mxu0 %v401
  %423 = vmatprep.subr.bf16.mxu0 0
  %424 = vmatpush1.bf16.msra.mxu0 %v402
  %425 = vmatprep.subr.bf16.mxu0 0
  %426 = vmatpush1.bf16.msra.mxu0 %v403
  %427 = vmatprep.subr.bf16.mxu0 0
  %428 = vmatpush1.bf16.msra.mxu0 %v404
  %429 = vmatprep.subr.bf16.mxu0 0
  %430 = vmatpush1.bf16.msra.mxu0 0
  %431 = vmatprep.subr.bf16.mxu0 0
  %432 = vmatpush1.bf16.msra.mxu0 0
  %433 = vmatprep.subr.bf16.mxu0 0
  %434 = vmatpush1.bf16.msra.mxu0 0
  %435 = vmatprep.subr.bf16.mxu0 0
  %436 = vmatpush1.bf16.msra.mxu0 0
  %437 = vmatprep.subr.bf16.mxu0 0
  %438 = vmatpush1.bf16.msra.mxu0 0
  %439 = vmatprep.subr.bf16.mxu0 0
  %440 = vmatpush1.bf16.msra.mxu0 0
  %441 = vmatprep.subr.bf16.mxu0 0
  %442 = vmatpush1.bf16.msra.mxu0 0
  %443 = vmatprep.subr.bf16.mxu0 0
  %444 = vmatpush1.bf16.msra.mxu0 0
  %445 = vmatprep.mubr.bf16.mxu0 0
  %446 = vmatmul.mubr.bf16.gmra.mrb[0].mxu0 %v363
  %v447 = vpop.f32.mrb[0].mxu0
  %v448 = vadd.f32 0.0, %v447
  %v449 = vpop.f32.mrb[0].mxu0
  %v450 = vpop.f32.mrb[0].mxu0
  %v451 = vpop.f32.mrb[0].mxu0
  %452 = vdwg.mxu0
  %v453 = vadd.f32 %v345, %v448
  %v454 = vadd.f32 %v453, %v15
  %v455 = vmax.f32 %v454, 0.0
  %v456 = vpack.c.bf16 %v455, %v455
  %vm457 = vcmask 253952
  %vm458 = vsmask.f32 256
  %vm459 = vmand %vm457, %vm458
  %v460 = vld [vmem:[%s3] sm:$0x1]
  %v461 = vsel %vm459, %v456, %v460
  %462 = vst [vmem:[%s3] sm:$0x1] %v461
  %s463 = scalar_lea.vmem %s0, 2
  %v464 = vld [vmem:[%s463] sm:$0x3]
  %v465 = vld [vmem:[%s1] sm:$0xf]
  %v466 = vld [vmem:[%s1 + $0x4] sm:$0xf]
  %v467 = vld [vmem:[%s1 + $0x8] sm:$0xf]
  %v468 = vld [vmem:[%s1 + $0xc] sm:$0xf]
  %v469 = vld [vmem:[%s1 + $0x10] sm:$0xf]
  %v470 = vld [vmem:[%s1 + $0x14] sm:$0xf]
  %v471 = vld [vmem:[%s1 + $0x18] sm:$0xf]
  %v472 = vld [vmem:[%s1 + $0x1c] sm:$0xf]
  %v473 = vld [vmem:[%s1 + $0x20] sm:$0xf]
  %v474 = vld [vmem:[%s1 + $0x24] sm:$0xf]
  %v475 = vld [vmem:[%s1 + $0x28] sm:$0xf]
  %v476 = vld [vmem:[%s1 + $0x2c] sm:$0xf]
  %v477 = vld [vmem:[%s1 + $0x30] sm:$0xf]
  %v478 = vld [vmem:[%s1 + $0x34] sm:$0xf]
  %v479 = vld [vmem:[%s1 + $0x38] sm:$0xf]
  %v480 = vld [vmem:[%s1 + $0x3c] sm:$0xf]
  %v481 = vld [vmem:[%s33] sm:$0xf]
  %v482 = vld [vmem:[%s33 + $0x4] sm:$0xf]
  %v483 = vld [vmem:[%s33 + $0x8] sm:$0xf]
  %v484 = vld [vmem:[%s33 + $0xc] sm:$0xf]
  %v485 = vld [vmem:[%s33 + $0x10] sm:$0xf]
  %v486 = vld [vmem:[%s33 + $0x14] sm:$0xf]
  %v487 = vld [vmem:[%s33 + $0x18] sm:$0xf]
  %v488 = vld [vmem:[%s33 + $0x1c] sm:$0xf]
  %v489 = vld [vmem:[%s33 + $0x20] sm:$0xf]
  %v490 = vld [vmem:[%s33 + $0x24] sm:$0xf]
  %v491 = vld [vmem:[%s33 + $0x28] sm:$0xf]
  %v492 = vld [vmem:[%s33 + $0x2c] sm:$0xf]
  %v493 = vld [vmem:[%s33 + $0x30] sm:$0xf]
  %v494 = vld [vmem:[%s33 + $0x34] sm:$0xf]
  %v495 = vld [vmem:[%s33 + $0x38] sm:$0xf]
  %v496 = vld [vmem:[%s33 + $0x3c] sm:$0xf]
  %v499 = vunpack.c.l.s4 1983009808
  %v500 = vunpack.c.0.s8 %v499
  %v501 = vlaneseq
  %v502 = vshrl.u32 %v501, 7
  %v503 = vsub.s32 %v500, %v502
  %v504 = vrot.slane %v464, %v503
  %v506 = vshrl.u32 %v504, 16
  %v525 = vunpack.c.l.b16 %v481
  %v526 = vunpack.c.l.b16 %v482
  %v527 = vunpack.c.l.b16 %v483
  %v528 = vunpack.c.l.b16 %v484
  %v529 = vunpack.c.l.b16 %v485
  %v530 = vunpack.c.l.b16 %v486
  %v531 = vunpack.c.l.b16 %v487
  %v532 = vunpack.c.l.b16 %v488
  %v533 = vunpack.c.l.b16 %v489
  %v534 = vunpack.c.l.b16 %v490
  %v535 = vunpack.c.l.b16 %v491
  %v536 = vunpack.c.l.b16 %v492
  %v537 = vunpack.c.l.b16 %v493
  %v538 = vunpack.c.l.b16 %v494
  %v539 = vunpack.c.l.b16 %v495
  %v540 = vunpack.c.l.b16 %v496
  %v541 = vpack.c.b16 %v526, %v525
  %v542 = vpack.c.b16 %v528, %v527
  %v543 = vpack.c.b16 %v530, %v529
  %v544 = vpack.c.b16 %v532, %v531
  %v545 = vpack.c.b16 %v534, %v533
  %v546 = vpack.c.b16 %v536, %v535
  %v547 = vpack.c.b16 %v538, %v537
  %v548 = vpack.c.b16 %v540, %v539
  %557 = vmatprep.subr.bf16.mxu0 0
  %558 = vmatpush1.bf16.msra.mxu0 %v541
  %559 = vmatprep.subr.bf16.mxu0 0
  %560 = vmatpush1.bf16.msra.mxu0 %v542
  %561 = vmatprep.subr.bf16.mxu0 0
  %562 = vmatpush1.bf16.msra.mxu0 %v543
  %563 = vmatprep.subr.bf16.mxu0 0
  %564 = vmatpush1.bf16.msra.mxu0 %v544
  %565 = vmatprep.subr.bf16.mxu0 0
  %566 = vmatpush1.bf16.msra.mxu0 %v545
  %567 = vmatprep.subr.bf16.mxu0 0
  %568 = vmatpush1.bf16.msra.mxu0 %v546
  %569 = vmatprep.subr.bf16.mxu0 0
  %570 = vmatpush1.bf16.msra.mxu0 %v547
  %571 = vmatprep.subr.bf16.mxu0 0
  %572 = vmatpush1.bf16.msra.mxu0 %v548
  %573 = vmatprep.subr.bf16.mxu0 0
  %574 = vmatpush1.bf16.msra.mxu0 0
  %575 = vmatprep.subr.bf16.mxu0 0
  %576 = vmatpush1.bf16.msra.mxu0 0
  %577 = vmatprep.subr.bf16.mxu0 0
  %578 = vmatpush1.bf16.msra.mxu0 0
  %579 = vmatprep.subr.bf16.mxu0 0
  %580 = vmatpush1.bf16.msra.mxu0 0
  %581 = vmatprep.subr.bf16.mxu0 0
  %582 = vmatpush1.bf16.msra.mxu0 0
  %583 = vmatprep.subr.bf16.mxu0 0
  %584 = vmatpush1.bf16.msra.mxu0 0
  %585 = vmatprep.subr.bf16.mxu0 0
  %586 = vmatpush1.bf16.msra.mxu0 0
  %587 = vmatprep.subr.bf16.mxu0 0
  %588 = vmatpush1.bf16.msra.mxu0 0
  %589 = vmatprep.mubr.bf16.mxu0 0
  %590 = vmatmul.mubr.bf16.gmra.mrb[0].mxu0 %v506
  %v591 = vpop.f32.mrb[0].mxu0
  %v592 = vadd.f32 0.0, %v591
  %v593 = vpop.f32.mrb[0].mxu0
  %v594 = vpop.f32.mrb[0].mxu0
  %v595 = vpop.f32.mrb[0].mxu0
  %596 = vdwg.mxu0
  %v613 = vunpack.c.l.b16 %v465
  %v614 = vunpack.c.l.b16 %v466
  %v615 = vunpack.c.l.b16 %v467
  %v616 = vunpack.c.l.b16 %v468
  %v617 = vunpack.c.l.b16 %v469
  %v618 = vunpack.c.l.b16 %v470
  %v619 = vunpack.c.l.b16 %v471
  %v620 = vunpack.c.l.b16 %v472
  %v621 = vunpack.c.l.b16 %v473
  %v622 = vunpack.c.l.b16 %v474
  %v623 = vunpack.c.l.b16 %v475
  %v624 = vunpack.c.l.b16 %v476
  %v625 = vunpack.c.l.b16 %v477
  %v626 = vunpack.c.l.b16 %v478
  %v627 = vunpack.c.l.b16 %v479
  %v628 = vunpack.c.l.b16 %v480
  %v629 = vpack.c.b16 %v614, %v613
  %v630 = vpack.c.b16 %v616, %v615
  %v631 = vpack.c.b16 %v618, %v617
  %v632 = vpack.c.b16 %v620, %v619
  %v633 = vpack.c.b16 %v622, %v621
  %v634 = vpack.c.b16 %v624, %v623
  %v635 = vpack.c.b16 %v626, %v625
  %v636 = vpack.c.b16 %v628, %v627
  %645 = vmatprep.subr.bf16.mxu0 0
  %646 = vmatpush1.bf16.msra.mxu0 %v629
  %647 = vmatprep.subr.bf16.mxu0 0
  %648 = vmatpush1.bf16.msra.mxu0 %v630
  %649 = vmatprep.subr.bf16.mxu0 0
  %650 = vmatpush1.bf16.msra.mxu0 %v631
  %651 = vmatprep.subr.bf16.mxu0 0
  %652 = vmatpush1.bf16.msra.mxu0 %v632
  %653 = vmatprep.subr.bf16.mxu0 0
  %654 = vmatpush1.bf16.msra.mxu0 %v633
  %655 = vmatprep.subr.bf16.mxu0 0
  %656 = vmatpush1.bf16.msra.mxu0 %v634
  %657 = vmatprep.subr.bf16.mxu0 0
  %658 = vmatpush1.bf16.msra.mxu0 %v635
  %659 = vmatprep.subr.bf16.mxu0 0
  %660 = vmatpush1.bf16.msra.mxu0 %v636
  %661 = vmatprep.subr.bf16.mxu0 0
  %662 = vmatpush1.bf16.msra.mxu0 0
  %663 = vmatprep.subr.bf16.mxu0 0
  %664 = vmatpush1.bf16.msra.mxu0 0
  %665 = vmatprep.subr.bf16.mxu0 0
  %666 = vmatpush1.bf16.msra.mxu0 0
  %667 = vmatprep.subr.bf16.mxu0 0
  %668 = vmatpush1.bf16.msra.mxu0 0
  %669 = vmatprep.subr.bf16.mxu0 0
  %670 = vmatpush1.bf16.msra.mxu0 0
  %671 = vmatprep.subr.bf16.mxu0 0
  %672 = vmatpush1.bf16.msra.mxu0 0
  %673 = vmatprep.subr.bf16.mxu0 0
  %674 = vmatpush1.bf16.msra.mxu0 0
  %675 = vmatprep.subr.bf16.mxu0 0
  %676 = vmatpush1.bf16.msra.mxu0 0
  %677 = vmatprep.mubr.bf16.mxu0 0
  %678 = vmatmul.mubr.bf16.gmra.mrb[0].mxu0 %v464
  %v679 = vpop.f32.mrb[0].mxu0
  %v680 = vadd.f32 %v592, %v679
  %v681 = vpop.f32.mrb[0].mxu0
  %v682 = vpop.f32.mrb[0].mxu0
  %v683 = vpop.f32.mrb[0].mxu0
  %684 = vdwg.mxu0
  %v685 = vld [vmem:[%s238] sm:$0xf]
  %v686 = vld [vmem:[%s238 + $0x4] sm:$0xf]
  %v687 = vld [vmem:[%s238 + $0x8] sm:$0xf]
  %v688 = vld [vmem:[%s238 + $0xc] sm:$0xf]
  %v689 = vld [vmem:[%s238 + $0x10] sm:$0xf]
  %v690 = vld [vmem:[%s238 + $0x14] sm:$0xf]
  %v691 = vld [vmem:[%s238 + $0x18] sm:$0xf]
  %v692 = vld [vmem:[%s238 + $0x1c] sm:$0xf]
  %v693 = vld [vmem:[%s238 + $0x20] sm:$0xf]
  %v694 = vld [vmem:[%s238 + $0x24] sm:$0xf]
  %v695 = vld [vmem:[%s238 + $0x28] sm:$0xf]
  %v696 = vld [vmem:[%s238 + $0x2c] sm:$0xf]
  %v697 = vld [vmem:[%s238 + $0x30] sm:$0xf]
  %v698 = vld [vmem:[%s238 + $0x34] sm:$0xf]
  %v699 = vld [vmem:[%s238 + $0x38] sm:$0xf]
  %v700 = vld [vmem:[%s238 + $0x3c] sm:$0xf]
  %v701 = vrot.slane %v504, 1
  %v719 = vunpack.c.l.b16 %v685
  %v720 = vunpack.c.l.b16 %v686
  %v721 = vunpack.c.l.b16 %v687
  %v722 = vunpack.c.l.b16 %v688
  %v723 = vunpack.c.l.b16 %v689
  %v724 = vunpack.c.l.b16 %v690
  %v725 = vunpack.c.l.b16 %v691
  %v726 = vunpack.c.l.b16 %v692
  %v727 = vunpack.c.l.b16 %v693
  %v728 = vunpack.c.l.b16 %v694
  %v729 = vunpack.c.l.b16 %v695
  %v730 = vunpack.c.l.b16 %v696
  %v731 = vunpack.c.l.b16 %v697
  %v732 = vunpack.c.l.b16 %v698
  %v733 = vunpack.c.l.b16 %v699
  %v734 = vunpack.c.l.b16 %v700
  %v735 = vpack.c.b16 %v720, %v719
  %v736 = vpack.c.b16 %v722, %v721
  %v737 = vpack.c.b16 %v724, %v723
  %v738 = vpack.c.b16 %v726, %v725
  %v739 = vpack.c.b16 %v728, %v727
  %v740 = vpack.c.b16 %v730, %v729
  %v741 = vpack.c.b16 %v732, %v731
  %v742 = vpack.c.b16 %v734, %v733
  %751 = vmatprep.subr.bf16.mxu0 0
  %752 = vmatpush1.bf16.msra.mxu0 %v735
  %753 = vmatprep.subr.bf16.mxu0 0
  %754 = vmatpush1.bf16.msra.mxu0 %v736
  %755 = vmatprep.subr.bf16.mxu0 0
  %756 = vmatpush1.bf16.msra.mxu0 %v737
  %757 = vmatprep.subr.bf16.mxu0 0
  %758 = vmatpush1.bf16.msra.mxu0 %v738
  %759 = vmatprep.subr.bf16.mxu0 0
  %760 = vmatpush1.bf16.msra.mxu0 %v739
  %761 = vmatprep.subr.bf16.mxu0 0
  %762 = vmatpush1.bf16.msra.mxu0 %v740
  %763 = vmatprep.subr.bf16.mxu0 0
  %764 = vmatpush1.bf16.msra.mxu0 %v741
  %765 = vmatprep.subr.bf16.mxu0 0
  %766 = vmatpush1.bf16.msra.mxu0 %v742
  %767 = vmatprep.subr.bf16.mxu0 0
  %768 = vmatpush1.bf16.msra.mxu0 0
  %769 = vmatprep.subr.bf16.mxu0 0
  %770 = vmatpush1.bf16.msra.mxu0 0
  %771 = vmatprep.subr.bf16.mxu0 0
  %772 = vmatpush1.bf16.msra.mxu0 0
  %773 = vmatprep.subr.bf16.mxu0 0
  %774 = vmatpush1.bf16.msra.mxu0 0
  %775 = vmatprep.subr.bf16.mxu0 0
  %776 = vmatpush1.bf16.msra.mxu0 0
  %777 = vmatprep.subr.bf16.mxu0 0
  %778 = vmatpush1.bf16.msra.mxu0 0
  %779 = vmatprep.subr.bf16.mxu0 0
  %780 = vmatpush1.bf16.msra.mxu0 0
  %781 = vmatprep.subr.bf16.mxu0 0
  %782 = vmatpush1.bf16.msra.mxu0 0
  %783 = vmatprep.mubr.bf16.mxu0 0
  %784 = vmatmul.mubr.bf16.gmra.mrb[0].mxu0 %v701
  %v785 = vpop.f32.mrb[0].mxu0
  %v786 = vadd.f32 0.0, %v785
  %v787 = vpop.f32.mrb[0].mxu0
  %v788 = vpop.f32.mrb[0].mxu0
  %v789 = vpop.f32.mrb[0].mxu0
  %790 = vdwg.mxu0
  %v791 = vadd.f32 %v680, %v786
  %v792 = vld [vmem:[%s346] sm:$0xf]
  %v793 = vld [vmem:[%s346 + $0x4] sm:$0xf]
  %v794 = vld [vmem:[%s346 + $0x8] sm:$0xf]
  %v795 = vld [vmem:[%s346 + $0xc] sm:$0xf]
  %v796 = vld [vmem:[%s346 + $0x10] sm:$0xf]
  %v797 = vld [vmem:[%s346 + $0x14] sm:$0xf]
  %v798 = vld [vmem:[%s346 + $0x18] sm:$0xf]
  %v799 = vld [vmem:[%s346 + $0x1c] sm:$0xf]
  %v800 = vld [vmem:[%s346 + $0x20] sm:$0xf]
  %v801 = vld [vmem:[%s346 + $0x24] sm:$0xf]
  %v802 = vld [vmem:[%s346 + $0x28] sm:$0xf]
  %v803 = vld [vmem:[%s346 + $0x2c] sm:$0xf]
  %v804 = vld [vmem:[%s346 + $0x30] sm:$0xf]
  %v805 = vld [vmem:[%s346 + $0x34] sm:$0xf]
  %v806 = vld [vmem:[%s346 + $0x38] sm:$0xf]
  %v807 = vld [vmem:[%s346 + $0x3c] sm:$0xf]
  %v808 = vrot.slane %v506, 1
  %v826 = vunpack.c.l.b16 %v792
  %v827 = vunpack.c.l.b16 %v793
  %v828 = vunpack.c.l.b16 %v794
  %v829 = vunpack.c.l.b16 %v795
  %v830 = vunpack.c.l.b16 %v796
  %v831 = vunpack.c.l.b16 %v797
  %v832 = vunpack.c.l.b16 %v798
  %v833 = vunpack.c.l.b16 %v799
  %v834 = vunpack.c.l.b16 %v800
  %v835 = vunpack.c.l.b16 %v801
  %v836 = vunpack.c.l.b16 %v802
  %v837 = vunpack.c.l.b16 %v803
  %v838 = vunpack.c.l.b16 %v804
  %v839 = vunpack.c.l.b16 %v805
  %v840 = vunpack.c.l.b16 %v806
  %v841 = vunpack.c.l.b16 %v807
  %v842 = vpack.c.b16 %v827, %v826
  %v843 = vpack.c.b16 %v829, %v828
  %v844 = vpack.c.b16 %v831, %v830
  %v845 = vpack.c.b16 %v833, %v832
  %v846 = vpack.c.b16 %v835, %v834
  %v847 = vpack.c.b16 %v837, %v836
  %v848 = vpack.c.b16 %v839, %v838
  %v849 = vpack.c.b16 %v841, %v840
  %858 = vmatprep.subr.bf16.mxu0 0
  %859 = vmatpush1.bf16.msra.mxu0 %v842
  %860 = vmatprep.subr.bf16.mxu0 0
  %861 = vmatpush1.bf16.msra.mxu0 %v843
  %862 = vmatprep.subr.bf16.mxu0 0
  %863 = vmatpush1.bf16.msra.mxu0 %v844
  %864 = vmatprep.subr.bf16.mxu0 0
  %865 = vmatpush1.bf16.msra.mxu0 %v845
  %866 = vmatprep.subr.bf16.mxu0 0
  %867 = vmatpush1.bf16.msra.mxu0 %v846
  %868 = vmatprep.subr.bf16.mxu0 0
  %869 = vmatpush1.bf16.msra.mxu0 %v847
  %870 = vmatprep.subr.bf16.mxu0 0
  %871 = vmatpush1.bf16.msra.mxu0 %v848
  %872 = vmatprep.subr.bf16.mxu0 0
  %873 = vmatpush1.bf16.msra.mxu0 %v849
  %874 = vmatprep.subr.bf16.mxu0 0
  %875 = vmatpush1.bf16.msra.mxu0 0
  %876 = vmatprep.subr.bf16.mxu0 0
  %877 = vmatpush1.bf16.msra.mxu0 0
  %878 = vmatprep.subr.bf16.mxu0 0
  %879 = vmatpush1.bf16.msra.mxu0 0
  %880 = vmatprep.subr.bf16.mxu0 0
  %881 = vmatpush1.bf16.msra.mxu0 0
  %882 = vmatprep.subr.bf16.mxu0 0
  %883 = vmatpush1.bf16.msra.mxu0 0
  %884 = vmatprep.subr.bf16.mxu0 0
  %885 = vmatpush1.bf16.msra.mxu0 0
  %886 = vmatprep.subr.bf16.mxu0 0
  %887 = vmatpush1.bf16.msra.mxu0 0
  %888 = vmatprep.subr.bf16.mxu0 0
  %889 = vmatpush1.bf16.msra.mxu0 0
  %890 = vmatprep.mubr.bf16.mxu0 0
  %891 = vmatmul.mubr.bf16.gmra.mrb[0].mxu0 %v808
  %v892 = vpop.f32.mrb[0].mxu0
  %v893 = vadd.f32 0.0, %v892
  %v894 = vpop.f32.mrb[0].mxu0
  %v895 = vpop.f32.mrb[0].mxu0
  %v896 = vpop.f32.mrb[0].mxu0
  %897 = vdwg.mxu0
  %v898 = vadd.f32 %v791, %v893
  %v899 = vadd.f32 %v898, %v15
  %v900 = vmax.f32 %v899, 0.0
  %v901 = vpack.c.bf16 %v900, %v900
  %s902 = scalar_lea.vmem %s3, 1
  %v903 = vld [vmem:[%s902] sm:$0x1]
  %v904 = vsel %vm459, %v901, %v903
  %905 = vst [vmem:[%s902] sm:$0x1] %v904
  // Predicated region
  $region14: #{forward.6} parent=0 // pred_check
    _
  $region15: #{forward.6} parent=0 // pred_check_branch
    %907 = sbr.rel (0) target = $region17
  $region16: #{forward.6} parent=0 // pred_region
    _
  $region17: #{forward.6} parent=0 // pred_fallthru
    _
  // Predicated region
  $region18: #{forward.6} parent=0 // pred_check
    _
  $region19: #{forward.6} parent=0 // pred_check_branch
    %909 = sbr.rel (0) target = $region21
  $region20: #{forward.6} parent=0 // pred_region
    _
  $region21: #{forward.6} parent=0 // pred_fallthru
    _

// kernel: forward.4
$region0: #{forward.4}
  #allocation0 [shape = 'u32[]', space=smem, size = 0x4, offset = 0x4, fixed_abs, tag = 'smem constant byte address 0x4 - core index']
  #allocation1 [shape = 'u32[144,128]{1,0:T(1,128)}', space=vmem, size = 0x12000, scoped, tag = 'internal scratch']
  %s0 = inlined_call_operand.vmem [shape: bf16[2,28,112], index: 0, kind: input, shape index: {}]
  %s1 = inlined_call_operand.hbm [shape: bf16[5,112,384], index: 1, kind: input, shape index: {}]
  %s2 = inlined_call_operand.hbm [shape: bf16[5,112,384], index: 2, kind: input, shape index: {}]
  %s3 = inlined_call_operand.vmem [shape: f32[1,384], index: 3, kind: input, shape index: {}]
  %s4 = inlined_call_operand.vmem [shape: bf16[2,12,384], index: 4, kind: output, shape index: {}]
  %s5 = sld [smem:[#allocation0]]
  $region34: #{forward.4} parent=0
    _
  %s7 = ssub.s32 1, %s5
  %s8 = scalar_select 0, %s7, %s5
  $region1: #{forward.4} parent=0
    #allocation2 [shape = 'u8[430080]{0}', space=vmem, size = 0x69000, scoped, tag = 'input window, operand 1, single buffered']
    #allocation3 [shape = 's32[1]{0}', space=sflag, size = 0x4, scoped, tag = 'scoped memory for forward.4']
    #allocation4 [shape = 'u8[430080]{0}', space=vmem, size = 0x69000, scoped, tag = 'input window, operand 2, single buffered']
    #allocation5 [shape = 's32[1]{0}', space=sflag, size = 0x4, scoped, tag = 'scoped memory for forward.4']
    %9 = vsyncpa [#allocation3], 0
    %10 = vsyncpa [#allocation5], 0
    // Predicated region
    $region2: #{forward.4} parent=1 // pred_check
      _
    $region3: #{forward.4} parent=1 // pred_check_branch
      %12 = sbr.rel (0) target = $region5
    $region4: #{forward.4} parent=1 // pred_region
      _
    $region5: #{forward.4} parent=1 // pred_fallthru
      _
    // Predicated region
    $region6: #{forward.4} parent=1 // pred_check
      _
    $region7: #{forward.4} parent=1 // pred_check_branch
      %14 = sbr.rel (0) target = $region9
    $region8: #{forward.4} parent=1 // pred_region
      %s16 = ssub.s32 13440, 13440
      %17 = vsyncadd [#allocation3], %s16
      %s18 = sshll.u32 [#allocation2], 4
      %s19 = int_to_ptr.vmem [resolvable:$true] %s18
      %24 = dma.hbm_to_vmem [thread:$0]  %s1, 13440, %s19, [#allocation3], 192, 192, 12
    $region9: #{forward.4} parent=1 // pred_fallthru
      _
    // Predicated region
    $region10: #{forward.4} parent=1 // pred_check
      _
    $region11: #{forward.4} parent=1 // pred_check_branch
      %26 = sbr.rel (0) target = $region13
    $region12: #{forward.4} parent=1 // pred_region
      %s28 = ssub.s32 13440, 13440
      %29 = vsyncadd [#allocation5], %s28
      %s30 = sshll.u32 [#allocation4], 4
      %s31 = int_to_ptr.vmem [resolvable:$true] %s30
      %36 = dma.hbm_to_vmem [thread:$0]  %s2, 13440, %s31, [#allocation5], 192, 192, 12
    $region13: #{forward.4} parent=1 // pred_fallthru
      _
    // Predicated region
    $region14: #{forward.4} parent=1 // pred_check
      _
    $region15: #{forward.4} parent=1 // pred_check_branch
      %38 = sbr.rel (0) target = $region17
    $region16: #{forward.4} parent=1 // pred_region
      _
    $region17: #{forward.4} parent=1 // pred_fallthru
      _
    // Predicated region
    $region18: #{forward.4} parent=1 // pred_check
      _
    $region19: #{forward.4} parent=1 // pred_check_branch
      %40 = sbr.rel (0) target = $region21
    $region20: #{forward.4} parent=1 // pred_region
      %41 = dma.done [#allocation3], 13440
    $region21: #{forward.4} parent=1 // pred_fallthru
      _
    // Predicated region
    $region22: #{forward.4} parent=1 // pred_check
      _
    $region23: #{forward.4} parent=1 // pred_check_branch
      %43 = sbr.rel (0) target = $region25
    $region24: #{forward.4} parent=1 // pred_region
      %44 = dma.done [#allocation5], 13440
    $region25: #{forward.4} parent=1 // pred_fallthru
      _
    %v46 = vld [vmem:[%s3] sm:$0x7]
    %v47 = vlaneseq
    %v48 = vshrl.u32 %v47, 7
    %v49 = vadd.s32 %v48, 8
    %v50 = vlaneseq
    %v51 = vand.u32 %v50, 127
    %v52 = vmul.u32 %v48, 2
    %v53 = vmul.u32 %v49, 2
    %vm54 = vcmp.eq.s32.totalorder %v51, %v52
    %vm55 = vcmp.eq.s32.totalorder %v51, %v53
    %v56 = vsel %vm54, 1, 0
    %v57 = vsel %vm55, 1, 0
    %v58 = vcvt.s32.f32 %v56
    %v59 = vcvt.s32.f32 %v57
    %v60 = vadd.s32 %v52, 1
    %v61 = vadd.s32 %v53, 1
    %vm62 = vcmp.eq.s32.totalorder %v51, %v60
    %vm63 = vcmp.eq.s32.totalorder %v51, %v61
    %v64 = vsel %vm62, 1, 0
    %v65 = vsel %vm63, 1, 0
    %v66 = vcvt.s32.f32 %v64
    %v67 = vcvt.s32.f32 %v65
    %v68 = vld [vmem:[%s0] sm:$0xf]
    %v69 = vld [vmem:[%s0 + $0x4] sm:$0xf]
    %v70 = vld [vmem:[%s0 + $0x8] sm:$0xf]
    %v71 = vld [vmem:[%s0 + $0xc] sm:$0x3]
    %v72 = vld [vmem:[#allocation2] sm:$0xff]
    %v73 = vld [vmem:[#allocation2 + $0x8] sm:$0xf]
    %v74 = vld [vmem:[#allocation2 + $0xc] sm:$0xff]
    %v75 = vld [vmem:[#allocation2 + $0x14] sm:$0xf]
    %v76 = vld [vmem:[#allocation2 + $0x18] sm:$0xff]
    %v77 = vld [vmem:[#allocation2 + $0x20] sm:$0xf]
    %v78 = vld [vmem:[#allocation2 + $0x24] sm:$0xff]
    %v79 = vld [vmem:[#allocation2 + $0x2c] sm:$0xf]
    %v80 = vld [vmem:[#allocation2 + $0x30] sm:$0xff]
    %v81 = vld [vmem:[#allocation2 + $0x38] sm:$0xf]
    %v82 = vld [vmem:[#allocation2 + $0x3c] sm:$0xff]
    %v83 = vld [vmem:[#allocation2 + $0x44] sm:$0xf]
    %v84 = vld [vmem:[#allocation2 + $0x48] sm:$0xff]
    %v85 = vld [vmem:[#allocation2 + $0x50] sm:$0xf]
    %v86 = vld [vmem:[#allocation2 + $0x54] sm:$0xff]
    %v87 = vld [vmem:[#allocation2 + $0x5c] sm:$0xf]
    %v88 = vld [vmem:[#allocation2 + $0x60] sm:$0xff]
    %v89 = vld [vmem:[#allocation2 + $0x68] sm:$0xf]
    %v90 = vld [vmem:[#allocation2 + $0x6c] sm:$0xff]
    %v91 = vld [vmem:[#allocation2 + $0x74] sm:$0xf]
    %v92 = vld [vmem:[#allocation2 + $0x78] sm:$0xff]
    %v93 = vld [vmem:[#allocation2 + $0x80] sm:$0xf]
    %v94 = vld [vmem:[#allocation2 + $0x84] sm:$0xff]
    %v95 = vld [vmem:[#allocation2 + $0x8c] sm:$0xf]
    %v96 = vld [vmem:[#allocation2 + $0x90] sm:$0xff]
    %v97 = vld [vmem:[#allocation2 + $0x98] sm:$0xf]
    %v98 = vld [vmem:[#allocation2 + $0x9c] sm:$0xff]
    %v99 = vld [vmem:[#allocation2 + $0xa4] sm:$0xf]
    %v100 = vld [vmem:[#allocation4] sm:$0xff]
    %v101 = vld [vmem:[#allocation4 + $0x8] sm:$0xf]
    %v102 = vld [vmem:[#allocation4 + $0xc] sm:$0xff]
    %v103 = vld [vmem:[#allocation4 + $0x14] sm:$0xf]
    %v104 = vld [vmem:[#allocation4 + $0x18] sm:$0xff]
    %v105 = vld [vmem:[#allocation4 + $0x20] sm:$0xf]
    %v106 = vld [vmem:[#allocation4 + $0x24] sm:$0xff]
    %v107 = vld [vmem:[#allocation4 + $0x2c] sm:$0xf]
    %v108 = vld [vmem:[#allocation4 + $0x30] sm:$0xff]
    %v109 = vld [vmem:[#allocation4 + $0x38] sm:$0xf]
    %v110 = vld [vmem:[#allocation4 + $0x3c] sm:$0xff]
    %v111 = vld [vmem:[#allocation4 + $0x44] sm:$0xf]
    %v112 = vld [vmem:[#allocation4 + $0x48] sm:$0xff]
    %v113 = vld [vmem:[#allocation4 + $0x50] sm:$0xf]
    %v114 = vld [vmem:[#allocation4 + $0x54] sm:$0xff]
    %v115 = vld [vmem:[#allocation4 + $0x5c] sm:$0xf]
    %v116 = vld [vmem:[#allocation4 + $0x60] sm:$0xff]
    %v117 = vld [vmem:[#allocation4 + $0x68] sm:$0xf]
    %v118 = vld [vmem:[#allocation4 + $0x6c] sm:$0xff]
    %v119 = vld [vmem:[#allocation4 + $0x74] sm:$0xf]
    %v120 = vld [vmem:[#allocation4 + $0x78] sm:$0xff]
    %v121 = vld [vmem:[#allocation4 + $0x80] sm:$0xf]
    %v122 = vld [vmem:[#allocation4 + $0x84] sm:$0xff]
    %v123 = vld [vmem:[#allocation4 + $0x8c] sm:$0xf]
    %v124 = vld [vmem:[#allocation4 + $0x90] sm:$0xff]
    %v125 = vld [vmem:[#allocation4 + $0x98] sm:$0xf]
    %v126 = vld [vmem:[#allocation4 + $0x9c] sm:$0xff]
    %v127 = vld [vmem:[#allocation4 + $0xa4] sm:$0xf]
    %s128 = scalar_lea.vmem [#allocation2], 168
    %v129 = vld [vmem:[%s128] sm:$0xff]
    %v130 = vld [vmem:[%s128 + $0x8] sm:$0xf]
    %v131 = vld [vmem:[%s128 + $0xc] sm:$0xff]
    %v132 = vld [vmem:[%s128 + $0x14] sm:$0xf]
    %v133 = vld [vmem:[%s128 + $0x18] sm:$0xff]
    %v134 = vld [vmem:[%s128 + $0x20] sm:$0xf]
    %v135 = vld [vmem:[%s128 + $0x24] sm:$0xff]
    %v136 = vld [vmem:[%s128 + $0x2c] sm:$0xf]
    %v137 = vld [vmem:[%s128 + $0x30] sm:$0xff]
    %v138 = vld [vmem:[%s128 + $0x38] sm:$0xf]
    %v139 = vld [vmem:[%s128 + $0x3c] sm:$0xff]
    %v140 = vld [vmem:[%s128 + $0x44] sm:$0xf]
    %v141 = vld [vmem:[%s128 + $0x48] sm:$0xff]
    %v142 = vld [vmem:[%s128 + $0x50] sm:$0xf]
    %v143 = vld [vmem:[%s128 + $0x54] sm:$0xff]
    %v144 = vld [vmem:[%s128 + $0x5c] sm:$0xf]
    %v145 = vld [vmem:[%s128 + $0x60] sm:$0xff]
    %v146 = vld [vmem:[%s128 + $0x68] sm:$0xf]
    %v147 = vld [vmem:[%s128 + $0x6c] sm:$0xff]
    %v148 = vld [vmem:[%s128 + $0x74] sm:$0xf]
    %v149 = vld [vmem:[%s128 + $0x78] sm:$0xff]
    %v150 = vld [vmem:[%s128 + $0x80] sm:$0xf]
    %v151 = vld [vmem:[%s128 + $0x84] sm:$0xff]
    %v152 = vld [vmem:[%s128 + $0x8c] sm:$0xf]
    %v153 = vld [vmem:[%s128 + $0x90] sm:$0xff]
    %v154 = vld [vmem:[%s128 + $0x98] sm:$0xf]
    %v155 = vld [vmem:[%s128 + $0x9c] sm:$0xff]
    %v156 = vld [vmem:[%s128 + $0xa4] sm:$0xf]
    %v161 = vunpack.c.l.b16 %v68
    %v162 = vunpack.c.l.b16 %v69
    %v163 = vunpack.c.l.b16 %v70
    %v164 = vunpack.c.l.b16 %v71
    %v165 = vpack.c.b16 %v162, %v161
    %v166 = vpack.c.b16 %v164, %v163
    %vm167 = vsmask.f32 7424
    %v169 = vshrl.u32 %v165, 16
    %v171 = vshll.u32 %v165, 16
    %v173 = vrot.slane %v171, 1
    %v174 = vor.u32 %v169, %v173
    %v176 = vshll.u32 %v166, 16
    %v178 = vrot.slane %v176, 1
    %v179 = vsel %vm167, %v174, %v178
    %v180 = vshrl.u32 %v166, 16
    %v182 = vor.u32 %v180, %v178
    %v211 = vunpack.c.l.b16 %v129
    %v212 = vunpack.c.h.b16 %v129
    %v213 = vunpack.c.l.b16 %v130
    %v214 = vunpack.c.l.b16 %v131
    %v215 = vunpack.c.h.b16 %v131
    %v216 = vunpack.c.l.b16 %v132
    %v217 = vunpack.c.l.b16 %v133
    %v218 = vunpack.c.h.b16 %v133
    %v219 = vunpack.c.l.b16 %v134
    %v220 = vunpack.c.l.b16 %v135
    %v221 = vunpack.c.h.b16 %v135
    %v222 = vunpack.c.l.b16 %v136
    %v223 = vunpack.c.l.b16 %v137
    %v224 = vunpack.c.h.b16 %v137
    %v225 = vunpack.c.l.b16 %v138
    %v226 = vunpack.c.l.b16 %v139
    %v227 = vunpack.c.h.b16 %v139
    %v228 = vunpack.c.l.b16 %v140
    %v229 = vunpack.c.l.b16 %v141
    %v230 = vunpack.c.h.b16 %v141
    %v231 = vunpack.c.l.b16 %v142
    %v232 = vunpack.c.l.b16 %v143
    %v233 = vunpack.c.h.b16 %v143
    %v234 = vunpack.c.l.b16 %v144
    %v235 = vunpack.c.l.b16 %v145
    %v236 = vunpack.c.h.b16 %v145
    %v237 = vunpack.c.l.b16 %v146
    %v238 = vunpack.c.l.b16 %v147
    %v239 = vunpack.c.h.b16 %v147
    %v240 = vunpack.c.l.b16 %v148
    %v241 = vunpack.c.l.b16 %v149
    %v242 = vunpack.c.h.b16 %v149
    %v243 = vunpack.c.l.b16 %v150
    %v244 = vunpack.c.l.b16 %v151
    %v245 = vunpack.c.h.b16 %v151
    %v246 = vunpack.c.l.b16 %v152
    %v247 = vunpack.c.l.b16 %v153
    %v248 = vunpack.c.h.b16 %v153
    %v249 = vunpack.c.l.b16 %v154
    %v250 = vunpack.c.l.b16 %v155
    %v251 = vunpack.c.h.b16 %v155
    %v252 = vunpack.c.l.b16 %v156
    %v253 = vpack.c.b16 %v214, %v211
    %v254 = vpack.c.b16 %v215, %v212
    %v255 = vpack.c.b16 %v216, %v213
    %v256 = vpack.c.b16 %v220, %v217
    %v257 = vpack.c.b16 %v221, %v218
    %v258 = vpack.c.b16 %v222, %v219
    %v259 = vpack.c.b16 %v226, %v223
    %v260 = vpack.c.b16 %v227, %v224
    %v261 = vpack.c.b16 %v228, %v225
    %v262 = vpack.c.b16 %v232, %v229
    %v263 = vpack.c.b16 %v233, %v230
    %v264 = vpack.c.b16 %v234, %v231
    %v265 = vpack.c.b16 %v238, %v235
    %v266 = vpack.c.b16 %v239, %v236
    %v267 = vpack.c.b16 %v240, %v237
    %v268 = vpack.c.b16 %v244, %v241
    %v269 = vpack.c.b16 %v245, %v242
    %v270 = vpack.c.b16 %v246, %v243
    %v271 = vpack.c.b16 %v250, %v247
    %v272 = vpack.c.b16 %v251, %v248
    %v273 = vpack.c.b16 %v252, %v249
    %vm295 = vcmask 916480
    %v297 = vsel %vm295, %v179, 0
    %v300 = vsel %vm295, %v182, 0
    %302 = vmatprep.subr.bf16.mxu0 %v254
    %303 = vmatpush1.bf16.msra.mxu0 %v253
    %304 = vmatprep.subr.bf16.mxu0 %v257
    %305 = vmatpush1.bf16.msra.mxu0 %v256
    %306 = vmatprep.subr.bf16.mxu0 %v260
    %307 = vmatpush1.bf16.msra.mxu0 %v259
    %308 = vmatprep.subr.bf16.mxu0 %v263
    %309 = vmatpush1.bf16.msra.mxu0 %v262
    %310 = vmatprep.subr.bf16.mxu0 %v266
    %311 = vmatpush1.bf16.msra.mxu0 %v265
    %312 = vmatprep.subr.bf16.mxu0 %v269
    %313 = vmatpush1.bf16.msra.mxu0 %v268
    %314 = vmatprep.subr.bf16.mxu0 %v272
    %315 = vmatpush1.bf16.msra.mxu0 %v271
    %316 = vmatprep.subr.bf16.mxu0 0
    %317 = vmatpush1.bf16.msra.mxu0 0
    %318 = vmatprep.subr.bf16.mxu0 0
    %319 = vmatpush1.bf16.msra.mxu0 0
    %320 = vmatprep.subr.bf16.mxu0 0
    %321 = vmatpush1.bf16.msra.mxu0 0
    %322 = vmatprep.subr.bf16.mxu0 0
    %323 = vmatpush1.bf16.msra.mxu0 0
    %324 = vmatprep.subr.bf16.mxu0 0
    %325 = vmatpush1.bf16.msra.mxu0 0
    %326 = vmatprep.subr.bf16.mxu0 0
    %327 = vmatpush1.bf16.msra.mxu0 0
    %328 = vmatprep.subr.bf16.mxu0 0
    %329 = vmatpush1.bf16.msra.mxu0 0
    %330 = vmatprep.subr.bf16.mxu0 0
    %331 = vmatpush1.bf16.msra.mxu0 0
    %332 = vmatprep.subr.bf16.mxu0 0
    %333 = vmatpush1.bf16.msra.mxu0 0
    %334 = vmatprep.mubr.bf16.mxu0 0
    %335 = vmatmul.mubr.bf16.gmra.mrb[0].mxu0 %v297
    %v336 = vpop.f32.mrb[0].mxu0
    %v337 = vadd.f32 0.0, %v336
    %v338 = vpop.f32.mrb[0].mxu0
    %v339 = vadd.f32 0.0, %v338
    %v340 = vpop.f32.mrb[0].mxu0
    %v341 = vadd.f32 0.0, %v340
    %v342 = vpop.f32.mrb[0].mxu0
    %v343 = vadd.f32 0.0, %v342
    %344 = vmatprep.mubr.bf16.mxu0 0
    %345 = vmatmul.mubr.bf16.gmra.mrb[0].mxu0 %v300
    %v346 = vpop.f32.mrb[0].mxu0
    %v347 = vadd.f32 0.0, %v346
    %v348 = vpop.f32.mrb[0].mxu0
    %v349 = vadd.f32 0.0, %v348
    %v350 = vpop.f32.mrb[0].mxu0
    %v351 = vpop.f32.mrb[0].mxu0
    %352 = vdwg.mxu0
    %353 = vmatprep.subr.bf16.mxu0 0
    %354 = vmatpush1.bf16.msra.mxu0 %v255
    %355 = vmatprep.subr.bf16.mxu0 0
    %356 = vmatpush1.bf16.msra.mxu0 %v258
    %357 = vmatprep.subr.bf16.mxu0 0
    %358 = vmatpush1.bf16.msra.mxu0 %v261
    %359 = vmatprep.subr.bf16.mxu0 0
    %360 = vmatpush1.bf16.msra.mxu0 %v264
    %361 = vmatprep.subr.bf16.mxu0 0
    %362 = vmatpush1.bf16.msra.mxu0 %v267
    %363 = vmatprep.subr.bf16.mxu0 0
    %364 = vmatpush1.bf16.msra.mxu0 %v270
    %365 = vmatprep.subr.bf16.mxu0 0
    %366 = vmatpush1.bf16.msra.mxu0 %v273
    %367 = vmatprep.subr.bf16.mxu0 0
    %368 = vmatpush1.bf16.msra.mxu0 0
    %369 = vmatprep.subr.bf16.mxu0 0
    %370 = vmatpush1.bf16.msra.mxu0 0
    %371 = vmatprep.subr.bf16.mxu0 0
    %372 = vmatpush1.bf16.msra.mxu0 0
    %373 = vmatprep.subr.bf16.mxu0 0
    %374 = vmatpush1.bf16.msra.mxu0 0
    %375 = vmatprep.subr.bf16.mxu0 0
    %376 = vmatpush1.bf16.msra.mxu0 0
    %377 = vmatprep.subr.bf16.mxu0 0
    %378 = vmatpush1.bf16.msra.mxu0 0
    %379 = vmatprep.subr.bf16.mxu0 0
    %380 = vmatpush1.bf16.msra.mxu0 0
    %381 = vmatprep.subr.bf16.mxu0 0
    %382 = vmatpush1.bf16.msra.mxu0 0
    %383 = vmatprep.subr.bf16.mxu0 0
    %384 = vmatpush1.bf16.msra.mxu0 0
    %385 = vmatprep.mubr.bf16.mxu0 0
    %386 = vmatmul.mubr.bf16.gmra.mrb[0].mxu0 %v297
    %v387 = vpop.f32.mrb[0].mxu0
    %v388 = vadd.f32 0.0, %v387
    %v389 = vpop.f32.mrb[0].mxu0
    %v390 = vpop.f32.mrb[0].mxu0
    %v391 = vadd.f32 0.0, %v390
    %v392 = vpop.f32.mrb[0].mxu0
    %393 = vmatprep.mubr.bf16.mxu0 0
    %394 = vmatmul.mubr.bf16.gmra.mrb[0].mxu0 %v300
    %v395 = vpop.f32.mrb[0].mxu0
    %v396 = vadd.f32 0.0, %v395
    %v397 = vpop.f32.mrb[0].mxu0
    %v398 = vpop.f32.mrb[0].mxu0
    %v399 = vpop.f32.mrb[0].mxu0
    %400 = vdwg.mxu0
    %v401 = vpack.c.b16 %v163, %v163
    %v430 = vunpack.c.l.b16 %v72
    %v431 = vunpack.c.h.b16 %v72
    %v432 = vunpack.c.l.b16 %v73
    %v433 = vunpack.c.l.b16 %v74
    %v434 = vunpack.c.h.b16 %v74
    %v435 = vunpack.c.l.b16 %v75
    %v436 = vunpack.c.l.b16 %v76
    %v437 = vunpack.c.h.b16 %v76
    %v438 = vunpack.c.l.b16 %v77
    %v439 = vunpack.c.l.b16 %v78
    %v440 = vunpack.c.h.b16 %v78
    %v441 = vunpack.c.l.b16 %v79
    %v442 = vunpack.c.l.b16 %v80
    %v443 = vunpack.c.h.b16 %v80
    %v444 = vunpack.c.l.b16 %v81
    %v445 = vunpack.c.l.b16 %v82
    %v446 = vunpack.c.h.b16 %v82
    %v447 = vunpack.c.l.b16 %v83
    %v448 = vunpack.c.l.b16 %v84
    %v449 = vunpack.c.h.b16 %v84
    %v450 = vunpack.c.l.b16 %v85
    %v451 = vunpack.c.l.b16 %v86
    %v452 = vunpack.c.h.b16 %v86
    %v453 = vunpack.c.l.b16 %v87
    %v454 = vunpack.c.l.b16 %v88
    %v455 = vunpack.c.h.b16 %v88
    %v456 = vunpack.c.l.b16 %v89
    %v457 = vunpack.c.l.b16 %v90
    %v458 = vunpack.c.h.b16 %v90
    %v459 = vunpack.c.l.b16 %v91
    %v460 = vunpack.c.l.b16 %v92
    %v461 = vunpack.c.h.b16 %v92
    %v462 = vunpack.c.l.b16 %v93
    %v463 = vunpack.c.l.b16 %v94
    %v464 = vunpack.c.h.b16 %v94
    %v465 = vunpack.c.l.b16 %v95
    %v466 = vunpack.c.l.b16 %v96
    %v467 = vunpack.c.h.b16 %v96
    %v468 = vunpack.c.l.b16 %v97
    %v469 = vunpack.c.l.b16 %v98
    %v470 = vunpack.c.h.b16 %v98
    %v471 = vunpack.c.l.b16 %v99
    %v472 = vpack.c.b16 %v433, %v430
    %v473 = vpack.c.b16 %v434, %v431
    %v474 = vpack.c.b16 %v435, %v432
    %v475 = vpack.c.b16 %v439, %v436
    %v476 = vpack.c.b16 %v440, %v437
    %v477 = vpack.c.b16 %v441, %v438
    %v478 = vpack.c.b16 %v445, %v442
    %v479 = vpack.c.b16 %v446, %v443
    %v480 = vpack.c.b16 %v447, %v444
    %v481 = vpack.c.b16 %v451, %v448
    %v482 = vpack.c.b16 %v452, %v449
    %v483 = vpack.c.b16 %v453, %v450
    %v484 = vpack.c.b16 %v457, %v454
    %v485 = vpack.c.b16 %v458, %v455
    %v486 = vpack.c.b16 %v459, %v456
    %v487 = vpack.c.b16 %v463, %v460
    %v488 = vpack.c.b16 %v464, %v461
    %v489 = vpack.c.b16 %v465, %v462
    %v490 = vpack.c.b16 %v469, %v466
    %v491 = vpack.c.b16 %v470, %v467
    %v492 = vpack.c.b16 %v471, %v468
    %v514 = vsel %vm295, %v165, 0
    %v517 = vsel %vm295, %v401, 0
    %519 = vmatprep.subr.bf16.mxu0 %v473
    %520 = vmatpush1.bf16.msra.mxu0 %v472
    %521 = vmatprep.subr.bf16.mxu0 %v476
    %522 = vmatpush1.bf16.msra.mxu0 %v475
    %523 = vmatprep.subr.bf16.mxu0 %v479
    %524 = vmatpush1.bf16.msra.mxu0 %v478
    %525 = vmatprep.subr.bf16.mxu0 %v482
    %526 = vmatpush1.bf16.msra.mxu0 %v481
    %527 = vmatprep.subr.bf16.mxu0 %v485
    %528 = vmatpush1.bf16.msra.mxu0 %v484
    %529 = vmatprep.subr.bf16.mxu0 %v488
    %530 = vmatpush1.bf16.msra.mxu0 %v487
    %531 = vmatprep.subr.bf16.mxu0 %v491
    %532 = vmatpush1.bf16.msra.mxu0 %v490
    %533 = vmatprep.subr.bf16.mxu0 0
    %534 = vmatpush1.bf16.msra.mxu0 0
    %535 = vmatprep.subr.bf16.mxu0 0
    %536 = vmatpush1.bf16.msra.mxu0 0
    %537 = vmatprep.subr.bf16.mxu0 0
    %538 = vmatpush1.bf16.msra.mxu0 0
    %539 = vmatprep.subr.bf16.mxu0 0
    %540 = vmatpush1.bf16.msra.mxu0 0
    %541 = vmatprep.subr.bf16.mxu0 0
    %542 = vmatpush1.bf16.msra.mxu0 0
    %543 = vmatprep.subr.bf16.mxu0 0
    %544 = vmatpush1.bf16.msra.mxu0 0
    %545 = vmatprep.subr.bf16.mxu0 0
    %546 = vmatpush1.bf16.msra.mxu0 0
    %547 = vmatprep.subr.bf16.mxu0 0
    %548 = vmatpush1.bf16.msra.mxu0 0
    %549 = vmatprep.subr.bf16.mxu0 0
    %550 = vmatpush1.bf16.msra.mxu0 0
    %551 = vmatprep.mubr.bf16.mxu0 0
    %552 = vmatmul.mubr.bf16.gmra.mrb[0].mxu0 %v514
    %v553 = vpop.f32.mrb[0].mxu0
    %v554 = vadd.f32 %v337, %v553
    %v555 = vpop.f32.mrb[0].mxu0
    %v556 = vadd.f32 %v339, %v555
    %v557 = vpop.f32.mrb[0].mxu0
    %v558 = vadd.f32 %v341, %v557
    %v559 = vpop.f32.mrb[0].mxu0
    %v560 = vadd.f32 %v343, %v559
    %561 = vmatprep.mubr.bf16.mxu0 0
    %562 = vmatmul.mubr.bf16.gmra.mrb[0].mxu0 %v517
    %v563 = vpop.f32.mrb[0].mxu0
    %v564 = vadd.f32 %v347, %v563
    %v565 = vpop.f32.mrb[0].mxu0
    %v566 = vadd.f32 %v349, %v565
    %v567 = vpop.f32.mrb[0].mxu0
    %v568 = vpop.f32.mrb[0].mxu0
    %569 = vdwg.mxu0
    %570 = vmatprep.subr.bf16.mxu0 0
    %571 = vmatpush1.bf16.msra.mxu0 %v474
    %572 = vmatprep.subr.bf16.mxu0 0
    %573 = vmatpush1.bf16.msra.mxu0 %v477
    %574 = vmatprep.subr.bf16.mxu0 0
    %575 = vmatpush1.bf16.msra.mxu0 %v480
    %576 = vmatprep.subr.bf16.mxu0 0
    %577 = vmatpush1.bf16.msra.mxu0 %v483
    %578 = vmatprep.subr.bf16.mxu0 0
    %579 = vmatpush1.bf16.msra.mxu0 %v486
    %580 = vmatprep.subr.bf16.mxu0 0
    %581 = vmatpush1.bf16.msra.mxu0 %v489
    %582 = vmatprep.subr.bf16.mxu0 0
    %583 = vmatpush1.bf16.msra.mxu0 %v492
    %584 = vmatprep.subr.bf16.mxu0 0
    %585 = vmatpush1.bf16.msra.mxu0 0
    %586 = vmatprep.subr.bf16.mxu0 0
    %587 = vmatpush1.bf16.msra.mxu0 0
    %588 = vmatprep.subr.bf16.mxu0 0
    %589 = vmatpush1.bf16.msra.mxu0 0
    %590 = vmatprep.subr.bf16.mxu0 0
    %591 = vmatpush1.bf16.msra.mxu0 0
    %592 = vmatprep.subr.bf16.mxu0 0
    %593 = vmatpush1.bf16.msra.mxu0 0
    %594 = vmatprep.subr.bf16.mxu0 0
    %595 = vmatpush1.bf16.msra.mxu0 0
    %596 = vmatprep.subr.bf16.mxu0 0
    %597 = vmatpush1.bf16.msra.mxu0 0
    %598 = vmatprep.subr.bf16.mxu0 0
    %599 = vmatpush1.bf16.msra.mxu0 0
    %600 = vmatprep.subr.bf16.mxu0 0
    %601 = vmatpush1.bf16.msra.mxu0 0
    %602 = vmatprep.mubr.bf16.mxu0 0
    %603 = vmatmul.mubr.bf16.gmra.mrb[0].mxu0 %v514
    %v604 = vpop.f32.mrb[0].mxu0
    %v605 = vadd.f32 %v388, %v604
    %v606 = vpop.f32.mrb[0].mxu0
    %v607 = vpop.f32.mrb[0].mxu0
    %v608 = vadd.f32 %v391, %v607
    %v609 = vpop.f32.mrb[0].mxu0
    %610 = vmatprep.mubr.bf16.mxu0 0
    %611 = vmatmul.mubr.bf16.gmra.mrb[0].mxu0 %v517
    %v612 = vpop.f32.mrb[0].mxu0
    %v613 = vadd.f32 %v396, %v612
    %v614 = vpop.f32.mrb[0].mxu0
    %v615 = vpop.f32.mrb[0].mxu0
    %v616 = vpop.f32.mrb[0].mxu0
    %617 = vdwg.mxu0
    %s618 = scalar_lea.vmem [#allocation4], 168
    %v619 = vld [vmem:[%s618] sm:$0xff]
    %v620 = vld [vmem:[%s618 + $0x8] sm:$0xf]
    %v621 = vld [vmem:[%s618 + $0xc] sm:$0xff]
    %v622 = vld [vmem:[%s618 + $0x14] sm:$0xf]
    %v623 = vld [vmem:[%s618 + $0x18] sm:$0xff]
    %v624 = vld [vmem:[%s618 + $0x20] sm:$0xf]
    %v625 = vld [vmem:[%s618 + $0x24] sm:$0xff]
    %v626 = vld [vmem:[%s618 + $0x2c] sm:$0xf]
    %v627 = vld [vmem:[%s618 + $0x30] sm:$0xff]
    %v628 = vld [vmem:[%s618 + $0x38] sm:$0xf]
    %v629 = vld [vmem:[%s618 + $0x3c] sm:$0xff]
    %v630 = vld [vmem:[%s618 + $0x44] sm:$0xf]
    %v631 = vld [vmem:[%s618 + $0x48] sm:$0xff]
    %v632 = vld [vmem:[%s618 + $0x50] sm:$0xf]
    %v633 = vld [vmem:[%s618 + $0x54] sm:$0xff]
    %v634 = vld [vmem:[%s618 + $0x5c] sm:$0xf]
    %v635 = vld [vmem:[%s618 + $0x60] sm:$0xff]
    %v636 = vld [vmem:[%s618 + $0x68] sm:$0xf]
    %v637 = vld [vmem:[%s618 + $0x6c] sm:$0xff]
    %v638 = vld [vmem:[%s618 + $0x74] sm:$0xf]
    %v639 = vld [vmem:[%s618 + $0x78] sm:$0xff]
    %v640 = vld [vmem:[%s618 + $0x80] sm:$0xf]
    %v641 = vld [vmem:[%s618 + $0x84] sm:$0xff]
    %v642 = vld [vmem:[%s618 + $0x8c] sm:$0xf]
    %v643 = vld [vmem:[%s618 + $0x90] sm:$0xff]
    %v644 = vld [vmem:[%s618 + $0x98] sm:$0xf]
    %v645 = vld [vmem:[%s618 + $0x9c] sm:$0xff]
    %v646 = vld [vmem:[%s618 + $0xa4] sm:$0xf]
    %v675 = vunpack.c.l.b16 %v619
    %v676 = vunpack.c.h.b16 %v619
    %v677 = vunpack.c.l.b16 %v620
    %v678 = vunpack.c.l.b16 %v621
    %v679 = vunpack.c.h.b16 %v621
    %v680 = vunpack.c.l.b16 %v622
    %v681 = vunpack.c.l.b16 %v623
    %v682 = vunpack.c.h.b16 %v623
    %v683 = vunpack.c.l.b16 %v624
    %v684 = vunpack.c.l.b16 %v625
    %v685 = vunpack.c.h.b16 %v625
    %v686 = vunpack.c.l.b16 %v626
    %v687 = vunpack.c.l.b16 %v627
    %v688 = vunpack.c.h.b16 %v627
    %v689 = vunpack.c.l.b16 %v628
    %v690 = vunpack.c.l.b16 %v629
    %v691 = vunpack.c.h.b16 %v629
    %v692 = vunpack.c.l.b16 %v630
    %v693 = vunpack.c.l.b16 %v631
    %v694 = vunpack.c.h.b16 %v631
    %v695 = vunpack.c.l.b16 %v632
    %v696 = vunpack.c.l.b16 %v633
    %v697 = vunpack.c.h.b16 %v633
    %v698 = vunpack.c.l.b16 %v634
    %v699 = vunpack.c.l.b16 %v635
    %v700 = vunpack.c.h.b16 %v635
    %v701 = vunpack.c.l.b16 %v636
    %v702 = vunpack.c.l.b16 %v637
    %v703 = vunpack.c.h.b16 %v637
    %v704 = vunpack.c.l.b16 %v638
    %v705 = vunpack.c.l.b16 %v639
    %v706 = vunpack.c.h.b16 %v639
    %v707 = vunpack.c.l.b16 %v640
    %v708 = vunpack.c.l.b16 %v641
    %v709 = vunpack.c.h.b16 %v641
    %v710 = vunpack.c.l.b16 %v642
    %v711 = vunpack.c.l.b16 %v643
    %v712 = vunpack.c.h.b16 %v643
    %v713 = vunpack.c.l.b16 %v644
    %v714 = vunpack.c.l.b16 %v645
    %v715 = vunpack.c.h.b16 %v645
    %v716 = vunpack.c.l.b16 %v646
    %v717 = vpack.c.b16 %v678, %v675
    %v718 = vpack.c.b16 %v679, %v676
    %v719 = vpack.c.b16 %v680, %v677
    %v720 = vpack.c.b16 %v684, %v681
    %v721 = vpack.c.b16 %v685, %v682
    %v722 = vpack.c.b16 %v686, %v683
    %v723 = vpack.c.b16 %v690, %v687
    %v724 = vpack.c.b16 %v691, %v688
    %v725 = vpack.c.b16 %v692, %v689
    %v726 = vpack.c.b16 %v696, %v693
    %v727 = vpack.c.b16 %v697, %v694
    %v728 = vpack.c.b16 %v698, %v695
    %v729 = vpack.c.b16 %v702, %v699
    %v730 = vpack.c.b16 %v703, %v700
    %v731 = vpack.c.b16 %v704, %v701
    %v732 = vpack.c.b16 %v708, %v705
    %v733 = vpack.c.b16 %v709, %v706
    %v734 = vpack.c.b16 %v710, %v707
    %v735 = vpack.c.b16 %v714, %v711
    %v736 = vpack.c.b16 %v715, %v712
    %v737 = vpack.c.b16 %v716, %v713
    %759 = vmatprep.subr.bf16.mxu0 %v718
    %760 = vmatpush1.bf16.msra.mxu0 %v717
    %761 = vmatprep.subr.bf16.mxu0 %v721
    %762 = vmatpush1.bf16.msra.mxu0 %v720
    %763 = vmatprep.subr.bf16.mxu0 %v724
    %764 = vmatpush1.bf16.msra.mxu0 %v723
    %765 = vmatprep.subr.bf16.mxu0 %v727
    %766 = vmatpush1.bf16.msra.mxu0 %v726
    %767 = vmatprep.subr.bf16.mxu0 %v730
    %768 = vmatpush1.bf16.msra.mxu0 %v729
    %769 = vmatprep.subr.bf16.mxu0 %v733
    %770 = vmatpush1.bf16.msra.mxu0 %v732
    %771 = vmatprep.subr.bf16.mxu0 %v736
    %772 = vmatpush1.bf16.msra.mxu0 %v735
    %773 = vmatprep.subr.bf16.mxu0 0
    %774 = vmatpush1.bf16.msra.mxu0 0
    %775 = vmatprep.subr.bf16.mxu0 0
    %776 = vmatpush1.bf16.msra.mxu0 0
    %777 = vmatprep.subr.bf16.mxu0 0
    %778 = vmatpush1.bf16.msra.mxu0 0
    %779 = vmatprep.subr.bf16.mxu0 0
    %780 = vmatpush1.bf16.msra.mxu0 0
    %781 = vmatprep.subr.bf16.mxu0 0
    %782 = vmatpush1.bf16.msra.mxu0 0
    %783 = vmatprep.subr.bf16.mxu0 0
    %784 = vmatpush1.bf16.msra.mxu0 0
    %785 = vmatprep.subr.bf16.mxu0 0
    %786 = vmatpush1.bf16.msra.mxu0 0
    %787 = vmatprep.subr.bf16.mxu0 0
    %788 = vmatpush1.bf16.msra.mxu0 0
    %789 = vmatprep.subr.bf16.mxu0 0
    %790 = vmatpush1.bf16.msra.mxu0 0
    %791 = vmatprep.mubr.bf16.mxu0 0
    %792 = vmatmul.mubr.bf16.gmra.mrb[0].mxu0 %v297
    %v793 = vpop.f32.mrb[0].mxu0
    %v794 = vadd.f32 0.0, %v793
    %v795 = vpop.f32.mrb[0].mxu0
    %v796 = vadd.f32 0.0, %v795
    %v797 = vpop.f32.mrb[0].mxu0
    %v798 = vadd.f32 0.0, %v797
    %v799 = vpop.f32.mrb[0].mxu0
    %v800 = vadd.f32 0.0, %v799
    %801 = vmatprep.mubr.bf16.mxu0 0
    %802 = vmatmul.mubr.bf16.gmra.mrb[0].mxu0 %v300
    %v803 = vpop.f32.mrb[0].mxu0
    %v804 = vadd.f32 0.0, %v803
    %v805 = vpop.f32.mrb[0].mxu0
    %v806 = vadd.f32 0.0, %v805
    %v807 = vpop.f32.mrb[0].mxu0
    %v808 = vpop.f32.mrb[0].mxu0
    %809 = vdwg.mxu0
    %810 = vmatprep.subr.bf16.mxu0 0
    %811 = vmatpush1.bf16.msra.mxu0 %v719
    %812 = vmatprep.subr.bf16.mxu0 0
    %813 = vmatpush1.bf16.msra.mxu0 %v722
    %814 = vmatprep.subr.bf16.mxu0 0
    %815 = vmatpush1.bf16.msra.mxu0 %v725
    %816 = vmatprep.subr.bf16.mxu0 0
    %817 = vmatpush1.bf16.msra.mxu0 %v728
    %818 = vmatprep.subr.bf16.mxu0 0
    %819 = vmatpush1.bf16.msra.mxu0 %v731
    %820 = vmatprep.subr.bf16.mxu0 0
    %821 = vmatpush1.bf16.msra.mxu0 %v734
    %822 = vmatprep.subr.bf16.mxu0 0
    %823 = vmatpush1.bf16.msra.mxu0 %v737
    %824 = vmatprep.subr.bf16.mxu0 0
    %825 = vmatpush1.bf16.msra.mxu0 0
    %826 = vmatprep.subr.bf16.mxu0 0
    %827 = vmatpush1.bf16.msra.mxu0 0
    %828 = vmatprep.subr.bf16.mxu0 0
    %829 = vmatpush1.bf16.msra.mxu0 0
    %830 = vmatprep.subr.bf16.mxu0 0
    %831 = vmatpush1.bf16.msra.mxu0 0
    %832 = vmatprep.subr.bf16.mxu0 0
    %833 = vmatpush1.bf16.msra.mxu0 0
    %834 = vmatprep.subr.bf16.mxu0 0
    %835 = vmatpush1.bf16.msra.mxu0 0
    %836 = vmatprep.subr.bf16.mxu0 0
    %837 = vmatpush1.bf16.msra.mxu0 0
    %838 = vmatprep.subr.bf16.mxu0 0
    %839 = vmatpush1.bf16.msra.mxu0 0
    %840 = vmatprep.subr.bf16.mxu0 0
    %841 = vmatpush1.bf16.msra.mxu0 0
    %842 = vmatprep.mubr.bf16.mxu0 0
    %843 = vmatmul.mubr.bf16.gmra.mrb[0].mxu0 %v297
    %v844 = vpop.f32.mrb[0].mxu0
    %v845 = vadd.f32 0.0, %v844
    %v846 = vpop.f32.mrb[0].mxu0
    %v847 = vpop.f32.mrb[0].mxu0
    %v848 = vadd.f32 0.0, %v847
    %v849 = vpop.f32.mrb[0].mxu0
    %850 = vmatprep.mubr.bf16.mxu0 0
    %851 = vmatmul.mubr.bf16.gmra.mrb[0].mxu0 %v300
    %v852 = vpop.f32.mrb[0].mxu0
    %v853 = vadd.f32 0.0, %v852
    %v854 = vpop.f32.mrb[0].mxu0
    %v855 = vpop.f32.mrb[0].mxu0
    %v856 = vpop.f32.mrb[0].mxu0
    %857 = vdwg.mxu0
    %v886 = vunpack.c.l.b16 %v100
    %v887 = vunpack.c.h.b16 %v100
    %v888 = vunpack.c.l.b16 %v101
    %v889 = vunpack.c.l.b16 %v102
    %v890 = vunpack.c.h.b16 %v102
    %v891 = vunpack.c.l.b16 %v103
    %v892 = vunpack.c.l.b16 %v104
    %v893 = vunpack.c.h.b16 %v104
    %v894 = vunpack.c.l.b16 %v105
    %v895 = vunpack.c.l.b16 %v106
    %v896 = vunpack.c.h.b16 %v106
    %v897 = vunpack.c.l.b16 %v107
    %v898 = vunpack.c.l.b16 %v108
    %v899 = vunpack.c.h.b16 %v108
    %v900 = vunpack.c.l.b16 %v109
    %v901 = vunpack.c.l.b16 %v110
    %v902 = vunpack.c.h.b16 %v110
    %v903 = vunpack.c.l.b16 %v111
    %v904 = vunpack.c.l.b16 %v112
    %v905 = vunpack.c.h.b16 %v112
    %v906 = vunpack.c.l.b16 %v113
    %v907 = vunpack.c.l.b16 %v114
    %v908 = vunpack.c.h.b16 %v114
    %v909 = vunpack.c.l.b16 %v115
    %v910 = vunpack.c.l.b16 %v116
    %v911 = vunpack.c.h.b16 %v116
    %v912 = vunpack.c.l.b16 %v117
    %v913 = vunpack.c.l.b16 %v118
    %v914 = vunpack.c.h.b16 %v118
    %v915 = vunpack.c.l.b16 %v119
    %v916 = vunpack.c.l.b16 %v120
    %v917 = vunpack.c.h.b16 %v120
    %v918 = vunpack.c.l.b16 %v121
    %v919 = vunpack.c.l.b16 %v122
    %v920 = vunpack.c.h.b16 %v122
    %v921 = vunpack.c.l.b16 %v123
    %v922 = vunpack.c.l.b16 %v124
    %v923 = vunpack.c.h.b16 %v124
    %v924 = vunpack.c.l.b16 %v125
    %v925 = vunpack.c.l.b16 %v126
    %v926 = vunpack.c.h.b16 %v126
    %v927 = vunpack.c.l.b16 %v127
    %v928 = vpack.c.b16 %v889, %v886
    %v929 = vpack.c.b16 %v890, %v887
    %v930 = vpack.c.b16 %v891, %v888
    %v931 = vpack.c.b16 %v895, %v892
    %v932 = vpack.c.b16 %v896, %v893
    %v933 = vpack.c.b16 %v897, %v894
    %v934 = vpack.c.b16 %v901, %v898
    %v935 = vpack.c.b16 %v902, %v899
    %v936 = vpack.c.b16 %v903, %v900
    %v937 = vpack.c.b16 %v907, %v904
    %v938 = vpack.c.b16 %v908, %v905
    %v939 = vpack.c.b16 %v909, %v906
    %v940 = vpack.c.b16 %v913, %v910
    %v941 = vpack.c.b16 %v914, %v911
    %v942 = vpack.c.b16 %v915, %v912
    %v943 = vpack.c.b16 %v919, %v916
    %v944 = vpack.c.b16 %v920, %v917
    %v945 = vpack.c.b16 %v921, %v918
    %v946 = vpack.c.b16 %v925, %v922
    %v947 = vpack.c.b16 %v926, %v923
    %v948 = vpack.c.b16 %v927, %v924
    %970 = vmatprep.subr.bf16.mxu0 %v929
    %971 = vmatpush1.bf16.msra.mxu0 %v928
    %972 = vmatprep.subr.bf16.mxu0 %v932
    %973 = vmatpush1.bf16.msra.mxu0 %v931
    %974 = vmatprep.subr.bf16.mxu0 %v935
    %975 = vmatpush1.bf16.msra.mxu0 %v934
    %976 = vmatprep.subr.bf16.mxu0 %v938
    %977 = vmatpush1.bf16.msra.mxu0 %v937
    %978 = vmatprep.subr.bf16.mxu0 %v941
    %979 = vmatpush1.bf16.msra.mxu0 %v940
    %980 = vmatprep.subr.bf16.mxu0 %v944
    %981 = vmatpush1.bf16.msra.mxu0 %v943
    %982 = vmatprep.subr.bf16.mxu0 %v947
    %983 = vmatpush1.bf16.msra.mxu0 %v946
    %984 = vmatprep.subr.bf16.mxu0 0
    %985 = vmatpush1.bf16.msra.mxu0 0
    %986 = vmatprep.subr.bf16.mxu0 0
    %987 = vmatpush1.bf16.msra.mxu0 0
    %988 = vmatprep.subr.bf16.mxu0 0
    %989 = vmatpush1.bf16.msra.mxu0 0
    %990 = vmatprep.subr.bf16.mxu0 0
    %991 = vmatpush1.bf16.msra.mxu0 0
    %992 = vmatprep.subr.bf16.mxu0 0
    %993 = vmatpush1.bf16.msra.mxu0 0
    %994 = vmatprep.subr.bf16.mxu0 0
    %995 = vmatpush1.bf16.msra.mxu0 0
    %996 = vmatprep.subr.bf16.mxu0 0
    %997 = vmatpush1.bf16.msra.mxu0 0
    %998 = vmatprep.subr.bf16.mxu0 0
    %999 = vmatpush1.bf16.msra.mxu0 0
    %1000 = vmatprep.subr.bf16.mxu0 0
    %1001 = vmatpush1.bf16.msra.mxu0 0
    %1002 = vmatprep.mubr.bf16.mxu0 0
    %1003 = vmatmul.mubr.bf16.gmra.mrb[0].mxu0 %v514
    %v1004 = vpop.f32.mrb[0].mxu0
    %v1005 = vadd.f32 %v794, %v1004
    %v1006 = vpop.f32.mrb[0].mxu0
    %v1007 = vadd.f32 %v796, %v1006
    %v1008 = vpop.f32.mrb[0].mxu0
    %v1009 = vadd.f32 %v798, %v1008
    %v1010 = vpop.f32.mrb[0].mxu0
    %v1011 = vadd.f32 %v800, %v1010
    %1012 = vmatprep.mubr.bf16.mxu0 0
    %1013 = vmatmul.mubr.bf16.gmra.mrb[0].mxu0 %v517
    %v1014 = vpop.f32.mrb[0].mxu0
    %v1015 = vadd.f32 %v804, %v1014
    %v1016 = vpop.f32.mrb[0].mxu0
    %v1017 = vadd.f32 %v806, %v1016
    %v1018 = vpop.f32.mrb[0].mxu0
    %v1019 = vpop.f32.mrb[0].mxu0
    %1020 = vdwg.mxu0
    %1021 = vmatprep.subr.bf16.mxu0 0
    %1022 = vmatpush1.bf16.msra.mxu0 %v930
    %1023 = vmatprep.subr.bf16.mxu0 0
    %1024 = vmatpush1.bf16.msra.mxu0 %v933
    %1025 = vmatprep.subr.bf16.mxu0 0
    %1026 = vmatpush1.bf16.msra.mxu0 %v936
    %1027 = vmatprep.subr.bf16.mxu0 0
    %1028 = vmatpush1.bf16.msra.mxu0 %v939
    %1029 = vmatprep.subr.bf16.mxu0 0
    %1030 = vmatpush1.bf16.msra.mxu0 %v942
    %1031 = vmatprep.subr.bf16.mxu0 0
    %1032 = vmatpush1.bf16.msra.mxu0 %v945
    %1033 = vmatprep.subr.bf16.mxu0 0
    %1034 = vmatpush1.bf16.msra.mxu0 %v948
    %1035 = vmatprep.subr.bf16.mxu0 0
    %1036 = vmatpush1.bf16.msra.mxu0 0
    %1037 = vmatprep.subr.bf16.mxu0 0
    %1038 = vmatpush1.bf16.msra.mxu0 0
    %1039 = vmatprep.subr.bf16.mxu0 0
    %1040 = vmatpush1.bf16.msra.mxu0 0
    %1041 = vmatprep.subr.bf16.mxu0 0
    %1042 = vmatpush1.bf16.msra.mxu0 0
    %1043 = vmatprep.subr.bf16.mxu0 0
    %1044 = vmatpush1.bf16.msra.mxu0 0
    %1045 = vmatprep.subr.bf16.mxu0 0
    %1046 = vmatpush1.bf16.msra.mxu0 0
    %1047 = vmatprep.subr.bf16.mxu0 0
    %1048 = vmatpush1.bf16.msra.mxu0 0
    %1049 = vmatprep.subr.bf16.mxu0 0
    %1050 = vmatpush1.bf16.msra.mxu0 0
    %1051 = vmatprep.subr.bf16.mxu0 0
    %1052 = vmatpush1.bf16.msra.mxu0 0
    %1053 = vmatprep.mubr.bf16.mxu0 0
    %1054 = vmatmul.mubr.bf16.gmra.mrb[0].mxu0 %v514
    %v1055 = vpop.f32.mrb[0].mxu0
    %v1056 = vadd.f32 %v845, %v1055
    %v1057 = vpop.f32.mrb[0].mxu0
    %v1058 = vpop.f32.mrb[0].mxu0
    %v1059 = vadd.f32 %v848, %v1058
    %v1060 = vpop.f32.mrb[0].mxu0
    %1061 = vmatprep.mubr.bf16.mxu0 0
    %1062 = vmatmul.mubr.bf16.gmra.mrb[0].mxu0 %v517
    %v1063 = vpop.f32.mrb[0].mxu0
    %v1064 = vadd.f32 %v853, %v1063
    %v1065 = vpop.f32.mrb[0].mxu0
    %v1066 = vpop.f32.mrb[0].mxu0
    %v1067 = vpop.f32.mrb[0].mxu0
    %1068 = vdwg.mxu0
    %s1069 = scalar_lea.vmem [#allocation2], 336
    %v1070 = vld [vmem:[%s1069] sm:$0xff]
    %v1071 = vld [vmem:[%s1069 + $0x8] sm:$0xf]
    %v1072 = vld [vmem:[%s1069 + $0xc] sm:$0xff]
    %v1073 = vld [vmem:[%s1069 + $0x14] sm:$0xf]
    %v1074 = vld [vmem:[%s1069 + $0x18] sm:$0xff]
    %v1075 = vld [vmem:[%s1069 + $0x20] sm:$0xf]
    %v1076 = vld [vmem:[%s1069 + $0x24] sm:$0xff]
    %v1077 = vld [vmem:[%s1069 + $0x2c] sm:$0xf]
    %v1078 = vld [vmem:[%s1069 + $0x30] sm:$0xff]
    %v1079 = vld [vmem:[%s1069 + $0x38] sm:$0xf]
    %v1080 = vld [vmem:[%s1069 + $0x3c] sm:$0xff]
    %v1081 = vld [vmem:[%s1069 + $0x44] sm:$0xf]
    %v1082 = vld [vmem:[%s1069 + $0x48] sm:$0xff]
    %v1083 = vld [vmem:[%s1069 + $0x50] sm:$0xf]
    %v1084 = vld [vmem:[%s1069 + $0x54] sm:$0xff]
    %v1085 = vld [vmem:[%s1069 + $0x5c] sm:$0xf]
    %v1086 = vld [vmem:[%s1069 + $0x60] sm:$0xff]
    %v1087 = vld [vmem:[%s1069 + $0x68] sm:$0xf]
    %v1088 = vld [vmem:[%s1069 + $0x6c] sm:$0xff]
    %v1089 = vld [vmem:[%s1069 + $0x74] sm:$0xf]
    %v1090 = vld [vmem:[%s1069 + $0x78] sm:$0xff]
    %v1091 = vld [vmem:[%s1069 + $0x80] sm:$0xf]
    %v1092 = vld [vmem:[%s1069 + $0x84] sm:$0xff]
    %v1093 = vld [vmem:[%s1069 + $0x8c] sm:$0xf]
    %v1094 = vld [vmem:[%s1069 + $0x90] sm:$0xff]
    %v1095 = vld [vmem:[%s1069 + $0x98] sm:$0xf]
    %v1096 = vld [vmem:[%s1069 + $0x9c] sm:$0xff]
    %v1097 = vld [vmem:[%s1069 + $0xa4] sm:$0xf]
    %vm1098 = vcmask 1046528
    %v1099 = vrot.slane %v165, 1
    %v1100 = vrot.slane %v166, 1
    %v1101 = vsel %vm1098, %v1099, %v1100
    %v1130 = vunpack.c.l.b16 %v1070
    %v1131 = vunpack.c.h.b16 %v1070
    %v1132 = vunpack.c.l.b16 %v1071
    %v1133 = vunpack.c.l.b16 %v1072
    %v1134 = vunpack.c.h.b16 %v1072
    %v1135 = vunpack.c.l.b16 %v1073
    %v1136 = vunpack.c.l.b16 %v1074
    %v1137 = vunpack.c.h.b16 %v1074
    %v1138 = vunpack.c.l.b16 %v1075
    %v1139 = vunpack.c.l.b16 %v1076
    %v1140 = vunpack.c.h.b16 %v1076
    %v1141 = vunpack.c.l.b16 %v1077
    %v1142 = vunpack.c.l.b16 %v1078
    %v1143 = vunpack.c.h.b16 %v1078
    %v1144 = vunpack.c.l.b16 %v1079
    %v1145 = vunpack.c.l.b16 %v1080
    %v1146 = vunpack.c.h.b16 %v1080
    %v1147 = vunpack.c.l.b16 %v1081
    %v1148 = vunpack.c.l.b16 %v1082
    %v1149 = vunpack.c.h.b16 %v1082
    %v1150 = vunpack.c.l.b16 %v1083
    %v1151 = vunpack.c.l.b16 %v1084
    %v1152 = vunpack.c.h.b16 %v1084
    %v1153 = vunpack.c.l.b16 %v1085
    %v1154 = vunpack.c.l.b16 %v1086
    %v1155 = vunpack.c.h.b16 %v1086
    %v1156 = vunpack.c.l.b16 %v1087
    %v1157 = vunpack.c.l.b16 %v1088
    %v1158 = vunpack.c.h.b16 %v1088
    %v1159 = vunpack.c.l.b16 %v1089
    %v1160 = vunpack.c.l.b16 %v1090
    %v1161 = vunpack.c.h.b16 %v1090
    %v1162 = vunpack.c.l.b16 %v1091
    %v1163 = vunpack.c.l.b16 %v1092
    %v1164 = vunpack.c.h.b16 %v1092
    %v1165 = vunpack.c.l.b16 %v1093
    %v1166 = vunpack.c.l.b16 %v1094
    %v1167 = vunpack.c.h.b16 %v1094
    %v1168 = vunpack.c.l.b16 %v1095
    %v1169 = vunpack.c.l.b16 %v1096
    %v1170 = vunpack.c.h.b16 %v1096
    %v1171 = vunpack.c.l.b16 %v1097
    %v1172 = vpack.c.b16 %v1133, %v1130
    %v1173 = vpack.c.b16 %v1134, %v1131
    %v1174 = vpack.c.b16 %v1135, %v1132
    %v1175 = vpack.c.b16 %v1139, %v1136
    %v1176 = vpack.c.b16 %v1140, %v1137
    %v1177 = vpack.c.b16 %v1141, %v1138
    %v1178 = vpack.c.b16 %v1145, %v1142
    %v1179 = vpack.c.b16 %v1146, %v1143
    %v1180 = vpack.c.b16 %v1147, %v1144
    %v1181 = vpack.c.b16 %v1151, %v1148
    %v1182 = vpack.c.b16 %v1152, %v1149
    %v1183 = vpack.c.b16 %v1153, %v1150
    %v1184 = vpack.c.b16 %v1157, %v1154
    %v1185 = vpack.c.b16 %v1158, %v1155
    %v1186 = vpack.c.b16 %v1159, %v1156
    %v1187 = vpack.c.b16 %v1163, %v1160
    %v1188 = vpack.c.b16 %v1164, %v1161
    %v1189 = vpack.c.b16 %v1165, %v1162
    %v1190 = vpack.c.b16 %v1169, %v1166
    %v1191 = vpack.c.b16 %v1170, %v1167
    %v1192 = vpack.c.b16 %v1171, %v1168
    %v1215 = vsel %vm295, %v1101, 0
    %v1218 = vsel %vm295, %v1100, 0
    %1220 = vmatprep.subr.bf16.mxu0 %v1173
    %1221 = vmatpush1.bf16.msra.mxu0 %v1172
    %1222 = vmatprep.subr.bf16.mxu0 %v1176
    %1223 = vmatpush1.bf16.msra.mxu0 %v1175
    %1224 = vmatprep.subr.bf16.mxu0 %v1179
    %1225 = vmatpush1.bf16.msra.mxu0 %v1178
    %1226 = vmatprep.subr.bf16.mxu0 %v1182
    %1227 = vmatpush1.bf16.msra.mxu0 %v1181
    %1228 = vmatprep.subr.bf16.mxu0 %v1185
    %1229 = vmatpush1.bf16.msra.mxu0 %v1184
    %1230 = vmatprep.subr.bf16.mxu0 %v1188
    %1231 = vmatpush1.bf16.msra.mxu0 %v1187
    %1232 = vmatprep.subr.bf16.mxu0 %v1191
    %1233 = vmatpush1.bf16.msra.mxu0 %v1190
    %1234 = vmatprep.subr.bf16.mxu0 0
    %1235 = vmatpush1.bf16.msra.mxu0 0
    %1236 = vmatprep.subr.bf16.mxu0 0
    %1237 = vmatpush1.bf16.msra.mxu0 0
    %1238 = vmatprep.subr.bf16.mxu0 0
    %1239 = vmatpush1.bf16.msra.mxu0 0
    %1240 = vmatprep.subr.bf16.mxu0 0
    %1241 = vmatpush1.bf16.msra.mxu0 0
    %1242 = vmatprep.subr.bf16.mxu0 0
    %1243 = vmatpush1.bf16.msra.mxu0 0
    %1244 = vmatprep.subr.bf16.mxu0 0
    %1245 = vmatpush1.bf16.msra.mxu0 0
    %1246 = vmatprep.subr.bf16.mxu0 0
    %1247 = vmatpush1.bf16.msra.mxu0 0
    %1248 = vmatprep.subr.bf16.mxu0 0
    %1249 = vmatpush1.bf16.msra.mxu0 0
    %1250 = vmatprep.subr.bf16.mxu0 0
    %1251 = vmatpush1.bf16.msra.mxu0 0
    %1252 = vmatprep.mubr.bf16.mxu0 0
    %1253 = vmatmul.mubr.bf16.gmra.mrb[0].mxu0 %v1215
    %v1254 = vpop.f32.mrb[0].mxu0
    %v1255 = vadd.f32 0.0, %v1254
    %v1256 = vpop.f32.mrb[0].mxu0
    %v1257 = vadd.f32 0.0, %v1256
    %v1258 = vpop.f32.mrb[0].mxu0
    %v1259 = vadd.f32 0.0, %v1258
    %v1260 = vpop.f32.mrb[0].mxu0
    %v1261 = vadd.f32 0.0, %v1260
    %1262 = vmatprep.mubr.bf16.mxu0 0
    %1263 = vmatmul.mubr.bf16.gmra.mrb[0].mxu0 %v1218
    %v1264 = vpop.f32.mrb[0].mxu0
    %v1265 = vadd.f32 0.0, %v1264
    %v1266 = vpop.f32.mrb[0].mxu0
    %v1267 = vadd.f32 0.0, %v1266
    %v1268 = vpop.f32.mrb[0].mxu0
    %v1269 = vpop.f32.mrb[0].mxu0
    %1270 = vdwg.mxu0
    %1271 = vmatprep.subr.bf16.mxu0 0
    %1272 = vmatpush1.bf16.msra.mxu0 %v1174
    %1273 = vmatprep.subr.bf16.mxu0 0
    %1274 = vmatpush1.bf16.msra.mxu0 %v1177
    %1275 = vmatprep.subr.bf16.mxu0 0
    %1276 = vmatpush1.bf16.msra.mxu0 %v1180
    %1277 = vmatprep.subr.bf16.mxu0 0
    %1278 = vmatpush1.bf16.msra.mxu0 %v1183
    %1279 = vmatprep.subr.bf16.mxu0 0
    %1280 = vmatpush1.bf16.msra.mxu0 %v1186
    %1281 = vmatprep.subr.bf16.mxu0 0
    %1282 = vmatpush1.bf16.msra.mxu0 %v1189
    %1283 = vmatprep.subr.bf16.mxu0 0
    %1284 = vmatpush1.bf16.msra.mxu0 %v1192
    %1285 = vmatprep.subr.bf16.mxu0 0
    %1286 = vmatpush1.bf16.msra.mxu0 0
    %1287 = vmatprep.subr.bf16.mxu0 0
    %1288 = vmatpush1.bf16.msra.mxu0 0
    %1289 = vmatprep.subr.bf16.mxu0 0
    %1290 = vmatpush1.bf16.msra.mxu0 0
    %1291 = vmatprep.subr.bf16.mxu0 0
    %1292 = vmatpush1.bf16.msra.mxu0 0
    %1293 = vmatprep.subr.bf16.mxu0 0
    %1294 = vmatpush1.bf16.msra.mxu0 0
    %1295 = vmatprep.subr.bf16.mxu0 0
    %1296 = vmatpush1.bf16.msra.mxu0 0
    %1297 = vmatprep.subr.bf16.mxu0 0
    %1298 = vmatpush1.bf16.msra.mxu0 0
    %1299 = vmatprep.subr.bf16.mxu0 0
    %1300 = vmatpush1.bf16.msra.mxu0 0
    %1301 = vmatprep.subr.bf16.mxu0 0
    %1302 = vmatpush1.bf16.msra.mxu0 0
    %1303 = vmatprep.mubr.bf16.mxu0 0
    %1304 = vmatmul.mubr.bf16.gmra.mrb[0].mxu0 %v1215
    %v1305 = vpop.f32.mrb[0].mxu0
    %v1306 = vadd.f32 0.0, %v1305
    %v1307 = vpop.f32.mrb[0].mxu0
    %v1308 = vpop.f32.mrb[0].mxu0
    %v1309 = vadd.f32 0.0, %v1308
    %v1310 = vpop.f32.mrb[0].mxu0
    %1311 = vmatprep.mubr.bf16.mxu0 0
    %1312 = vmatmul.mubr.bf16.gmra.mrb[0].mxu0 %v1218
    %v1313 = vpop.f32.mrb[0].mxu0
    %v1314 = vadd.f32 0.0, %v1313
    %v1315 = vpop.f32.mrb[0].mxu0
    %v1316 = vpop.f32.mrb[0].mxu0
    %v1317 = vpop.f32.mrb[0].mxu0
    %1318 = vdwg.mxu0
    %v1319 = vadd.f32 %v554, %v1255
    %v1320 = vadd.f32 %v556, %v1257
    %v1321 = vadd.f32 %v605, %v1306
    %v1322 = vadd.f32 %v558, %v1259
    %v1323 = vadd.f32 %v560, %v1261
    %v1324 = vadd.f32 %v608, %v1309
    %v1325 = vadd.f32 %v564, %v1265
    %v1326 = vadd.f32 %v566, %v1267
    %v1327 = vadd.f32 %v613, %v1314
    %s1328 = scalar_lea.vmem [#allocation4], 336
    %v1329 = vld [vmem:[%s1328] sm:$0xff]
    %v1330 = vld [vmem:[%s1328 + $0x8] sm:$0xf]
    %v1331 = vld [vmem:[%s1328 + $0xc] sm:$0xff]
    %v1332 = vld [vmem:[%s1328 + $0x14] sm:$0xf]
    %v1333 = vld [vmem:[%s1328 + $0x18] sm:$0xff]
    %v1334 = vld [vmem:[%s1328 + $0x20] sm:$0xf]
    %v1335 = vld [vmem:[%s1328 + $0x24] sm:$0xff]
    %v1336 = vld [vmem:[%s1328 + $0x2c] sm:$0xf]
    %v1337 = vld [vmem:[%s1328 + $0x30] sm:$0xff]
    %v1338 = vld [vmem:[%s1328 + $0x38] sm:$0xf]
    %v1339 = vld [vmem:[%s1328 + $0x3c] sm:$0xff]
    %v1340 = vld [vmem:[%s1328 + $0x44] sm:$0xf]
    %v1341 = vld [vmem:[%s1328 + $0x48] sm:$0xff]
    %v1342 = vld [vmem:[%s1328 + $0x50] sm:$0xf]
    %v1343 = vld [vmem:[%s1328 + $0x54] sm:$0xff]
    %v1344 = vld [vmem:[%s1328 + $0x5c] sm:$0xf]
    %v1345 = vld [vmem:[%s1328 + $0x60] sm:$0xff]
    %v1346 = vld [vmem:[%s1328 + $0x68] sm:$0xf]
    %v1347 = vld [vmem:[%s1328 + $0x6c] sm:$0xff]
    %v1348 = vld [vmem:[%s1328 + $0x74] sm:$0xf]
    %v1349 = vld [vmem:[%s1328 + $0x78] sm:$0xff]
    %v1350 = vld [vmem:[%s1328 + $0x80] sm:$0xf]
    %v1351 = vld [vmem:[%s1328 + $0x84] sm:$0xff]
    %v1352 = vld [vmem:[%s1328 + $0x8c] sm:$0xf]
    %v1353 = vld [vmem:[%s1328 + $0x90] sm:$0xff]
    %v1354 = vld [vmem:[%s1328 + $0x98] sm:$0xf]
    %v1355 = vld [vmem:[%s1328 + $0x9c] sm:$0xff]
    %v1356 = vld [vmem:[%s1328 + $0xa4] sm:$0xf]
    %v1385 = vunpack.c.l.b16 %v1329
    %v1386 = vunpack.c.h.b16 %v1329
    %v1387 = vunpack.c.l.b16 %v1330
    %v1388 = vunpack.c.l.b16 %v1331
    %v1389 = vunpack.c.h.b16 %v1331
    %v1390 = vunpack.c.l.b16 %v1332
    %v1391 = vunpack.c.l.b16 %v1333
    %v1392 = vunpack.c.h.b16 %v1333
    %v1393 = vunpack.c.l.b16 %v1334
    %v1394 = vunpack.c.l.b16 %v1335
    %v1395 = vunpack.c.h.b16 %v1335
    %v1396 = vunpack.c.l.b16 %v1336
    %v1397 = vunpack.c.l.b16 %v1337
    %v1398 = vunpack.c.h.b16 %v1337
    %v1399 = vunpack.c.l.b16 %v1338
    %v1400 = vunpack.c.l.b16 %v1339
    %v1401 = vunpack.c.h.b16 %v1339
    %v1402 = vunpack.c.l.b16 %v1340
    %v1403 = vunpack.c.l.b16 %v1341
    %v1404 = vunpack.c.h.b16 %v1341
    %v1405 = vunpack.c.l.b16 %v1342
    %v1406 = vunpack.c.l.b16 %v1343
    %v1407 = vunpack.c.h.b16 %v1343
    %v1408 = vunpack.c.l.b16 %v1344
    %v1409 = vunpack.c.l.b16 %v1345
    %v1410 = vunpack.c.h.b16 %v1345
    %v1411 = vunpack.c.l.b16 %v1346
    %v1412 = vunpack.c.l.b16 %v1347
    %v1413 = vunpack.c.h.b16 %v1347
    %v1414 = vunpack.c.l.b16 %v1348
    %v1415 = vunpack.c.l.b16 %v1349
    %v1416 = vunpack.c.h.b16 %v1349
    %v1417 = vunpack.c.l.b16 %v1350
    %v1418 = vunpack.c.l.b16 %v1351
    %v1419 = vunpack.c.h.b16 %v1351
    %v1420 = vunpack.c.l.b16 %v1352
    %v1421 = vunpack.c.l.b16 %v1353
    %v1422 = vunpack.c.h.b16 %v1353
    %v1423 = vunpack.c.l.b16 %v1354
    %v1424 = vunpack.c.l.b16 %v1355
    %v1425 = vunpack.c.h.b16 %v1355
    %v1426 = vunpack.c.l.b16 %v1356
    %v1427 = vpack.c.b16 %v1388, %v1385
    %v1428 = vpack.c.b16 %v1389, %v1386
    %v1429 = vpack.c.b16 %v1390, %v1387
    %v1430 = vpack.c.b16 %v1394, %v1391
    %v1431 = vpack.c.b16 %v1395, %v1392
    %v1432 = vpack.c.b16 %v1396, %v1393
    %v1433 = vpack.c.b16 %v1400, %v1397
    %v1434 = vpack.c.b16 %v1401, %v1398
    %v1435 = vpack.c.b16 %v1402, %v1399
    %v1436 = vpack.c.b16 %v1406, %v1403
    %v1437 = vpack.c.b16 %v1407, %v1404
    %v1438 = vpack.c.b16 %v1408, %v1405
    %v1439 = vpack.c.b16 %v1412, %v1409
    %v1440 = vpack.c.b16 %v1413, %v1410
    %v1441 = vpack.c.b16 %v1414, %v1411
    %v1442 = vpack.c.b16 %v1418, %v1415
    %v1443 = vpack.c.b16 %v1419, %v1416
    %v1444 = vpack.c.b16 %v1420, %v1417
    %v1445 = vpack.c.b16 %v1424, %v1421
    %v1446 = vpack.c.b16 %v1425, %v1422
    %v1447 = vpack.c.b16 %v1426, %v1423
    %1469 = vmatprep.subr.bf16.mxu0 %v1428
    %1470 = vmatpush1.bf16.msra.mxu0 %v1427
    %1471 = vmatprep.subr.bf16.mxu0 %v1431
    %1472 = vmatpush1.bf16.msra.mxu0 %v1430
    %1473 = vmatprep.subr.bf16.mxu0 %v1434
    %1474 = vmatpush1.bf16.msra.mxu0 %v1433
    %1475 = vmatprep.subr.bf16.mxu0 %v1437
    %1476 = vmatpush1.bf16.msra.mxu0 %v1436
    %1477 = vmatprep.subr.bf16.mxu0 %v1440
    %1478 = vmatpush1.bf16.msra.mxu0 %v1439
    %1479 = vmatprep.subr.bf16.mxu0 %v1443
    %1480 = vmatpush1.bf16.msra.mxu0 %v1442
    %1481 = vmatprep.subr.bf16.mxu0 %v1446
    %1482 = vmatpush1.bf16.msra.mxu0 %v1445
    %1483 = vmatprep.subr.bf16.mxu0 0
    %1484 = vmatpush1.bf16.msra.mxu0 0
    %1485 = vmatprep.subr.bf16.mxu0 0
    %1486 = vmatpush1.bf16.msra.mxu0 0
    %1487 = vmatprep.subr.bf16.mxu0 0
    %1488 = vmatpush1.bf16.msra.mxu0 0
    %1489 = vmatprep.subr.bf16.mxu0 0
    %1490 = vmatpush1.bf16.msra.mxu0 0
    %1491 = vmatprep.subr.bf16.mxu0 0
    %1492 = vmatpush1.bf16.msra.mxu0 0
    %1493 = vmatprep.subr.bf16.mxu0 0
    %1494 = vmatpush1.bf16.msra.mxu0 0
    %1495 = vmatprep.subr.bf16.mxu0 0
    %1496 = vmatpush1.bf16.msra.mxu0 0
    %1497 = vmatprep.subr.bf16.mxu0 0
    %1498 = vmatpush1.bf16.msra.mxu0 0
    %1499 = vmatprep.subr.bf16.mxu0 0
    %1500 = vmatpush1.bf16.msra.mxu0 0
    %1501 = vmatprep.mubr.bf16.mxu0 0
    %1502 = vmatmul.mubr.bf16.gmra.mrb[0].mxu0 %v1215
    %v1503 = vpop.f32.mrb[0].mxu0
    %v1504 = vadd.f32 0.0, %v1503
    %v1505 = vpop.f32.mrb[0].mxu0
    %v1506 = vadd.f32 0.0, %v1505
    %v1507 = vpop.f32.mrb[0].mxu0
    %v1508 = vadd.f32 0.0, %v1507
    %v1509 = vpop.f32.mrb[0].mxu0
    %v1510 = vadd.f32 0.0, %v1509
    %1511 = vmatprep.mubr.bf16.mxu0 0
    %1512 = vmatmul.mubr.bf16.gmra.mrb[0].mxu0 %v1218
    %v1513 = vpop.f32.mrb[0].mxu0
    %v1514 = vadd.f32 0.0, %v1513
    %v1515 = vpop.f32.mrb[0].mxu0
    %v1516 = vadd.f32 0.0, %v1515
    %v1517 = vpop.f32.mrb[0].mxu0
    %v1518 = vpop.f32.mrb[0].mxu0
    %1519 = vdwg.mxu0
    %1520 = vmatprep.subr.bf16.mxu0 0
    %1521 = vmatpush1.bf16.msra.mxu0 %v1429
    %1522 = vmatprep.subr.bf16.mxu0 0
    %1523 = vmatpush1.bf16.msra.mxu0 %v1432
    %1524 = vmatprep.subr.bf16.mxu0 0
    %1525 = vmatpush1.bf16.msra.mxu0 %v1435
    %1526 = vmatprep.subr.bf16.mxu0 0
    %1527 = vmatpush1.bf16.msra.mxu0 %v1438
    %1528 = vmatprep.subr.bf16.mxu0 0
    %1529 = vmatpush1.bf16.msra.mxu0 %v1441
    %1530 = vmatprep.subr.bf16.mxu0 0
    %1531 = vmatpush1.bf16.msra.mxu0 %v1444
    %1532 = vmatprep.subr.bf16.mxu0 0
    %1533 = vmatpush1.bf16.msra.mxu0 %v1447
    %1534 = vmatprep.subr.bf16.mxu0 0
    %1535 = vmatpush1.bf16.msra.mxu0 0
    %1536 = vmatprep.subr.bf16.mxu0 0
    %1537 = vmatpush1.bf16.msra.mxu0 0
    %1538 = vmatprep.subr.bf16.mxu0 0
    %1539 = vmatpush1.bf16.msra.mxu0 0
    %1540 = vmatprep.subr.bf16.mxu0 0
    %1541 = vmatpush1.bf16.msra.mxu0 0
    %1542 = vmatprep.subr.bf16.mxu0 0
    %1543 = vmatpush1.bf16.msra.mxu0 0
    %1544 = vmatprep.subr.bf16.mxu0 0
    %1545 = vmatpush1.bf16.msra.mxu0 0
    %1546 = vmatprep.subr.bf16.mxu0 0
    %1547 = vmatpush1.bf16.msra.mxu0 0
    %1548 = vmatprep.subr.bf16.mxu0 0
    %1549 = vmatpush1.bf16.msra.mxu0 0
    %1550 = vmatprep.subr.bf16.mxu0 0
    %1551 = vmatpush1.bf16.msra.mxu0 0
    %1552 = vmatprep.mubr.bf16.mxu0 0
    %1553 = vmatmul.mubr.bf16.gmra.mrb[0].mxu0 %v1215
    %v1554 = vpop.f32.mrb[0].mxu0
    %v1555 = vadd.f32 0.0, %v1554
    %v1556 = vpop.f32.mrb[0].mxu0
    %v1557 = vpop.f32.mrb[0].mxu0
    %v1558 = vadd.f32 0.0, %v1557
    %v1559 = vpop.f32.mrb[0].mxu0
    %1560 = vmatprep.mubr.bf16.mxu0 0
    %1561 = vmatmul.mubr.bf16.gmra.mrb[0].mxu0 %v1218
    %v1562 = vpop.f32.mrb[0].mxu0
    %v1563 = vadd.f32 0.0, %v1562
    %v1564 = vpop.f32.mrb[0].mxu0
    %v1565 = vpop.f32.mrb[0].mxu0
    %v1566 = vpop.f32.mrb[0].mxu0
    %1567 = vdwg.mxu0
    %v1568 = vadd.f32 %v1005, %v1504
    %v1569 = vadd.f32 %v1007, %v1506
    %v1570 = vadd.f32 %v1056, %v1555
    %v1571 = vadd.f32 %v1009, %v1508
    %v1572 = vadd.f32 %v1011, %v1510
    %v1573 = vadd.f32 %v1059, %v1558
    %v1574 = vadd.f32 %v1015, %v1514
    %v1575 = vadd.f32 %v1017, %v1516
    %v1576 = vadd.f32 %v1064, %v1563
    %s1577 = scalar_lea.vmem [#allocation2], 504
    %v1578 = vld [vmem:[%s1577] sm:$0xff]
    %v1579 = vld [vmem:[%s1577 + $0x8] sm:$0xf]
    %v1580 = vld [vmem:[%s1577 + $0xc] sm:$0xff]
    %v1581 = vld [vmem:[%s1577 + $0x14] sm:$0xf]
    %v1582 = vld [vmem:[%s1577 + $0x18] sm:$0xff]
    %v1583 = vld [vmem:[%s1577 + $0x20] sm:$0xf]
    %v1584 = vld [vmem:[%s1577 + $0x24] sm:$0xff]
    %v1585 = vld [vmem:[%s1577 + $0x2c] sm:$0xf]
    %v1586 = vld [vmem:[%s1577 + $0x30] sm:$0xff]
    %v1587 = vld [vmem:[%s1577 + $0x38] sm:$0xf]
    %v1588 = vld [vmem:[%s1577 + $0x3c] sm:$0xff]
    %v1589 = vld [vmem:[%s1577 + $0x44] sm:$0xf]
    %v1590 = vld [vmem:[%s1577 + $0x48] sm:$0xff]
    %v1591 = vld [vmem:[%s1577 + $0x50] sm:$0xf]
    %v1592 = vld [vmem:[%s1577 + $0x54] sm:$0xff]
    %v1593 = vld [vmem:[%s1577 + $0x5c] sm:$0xf]
    %v1594 = vld [vmem:[%s1577 + $0x60] sm:$0xff]
    %v1595 = vld [vmem:[%s1577 + $0x68] sm:$0xf]
    %v1596 = vld [vmem:[%s1577 + $0x6c] sm:$0xff]
    %v1597 = vld [vmem:[%s1577 + $0x74] sm:$0xf]
    %v1598 = vld [vmem:[%s1577 + $0x78] sm:$0xff]
    %v1599 = vld [vmem:[%s1577 + $0x80] sm:$0xf]
    %v1600 = vld [vmem:[%s1577 + $0x84] sm:$0xff]
    %v1601 = vld [vmem:[%s1577 + $0x8c] sm:$0xf]
    %v1602 = vld [vmem:[%s1577 + $0x90] sm:$0xff]
    %v1603 = vld [vmem:[%s1577 + $0x98] sm:$0xf]
    %v1604 = vld [vmem:[%s1577 + $0x9c] sm:$0xff]
    %v1605 = vld [vmem:[%s1577 + $0xa4] sm:$0xf]
    %vm1606 = vsmask.f32 6400
    %v1607 = vrot.slane %v169, 1
    %v1608 = vrot.slane %v171, 2
    %v1609 = vor.u32 %v1607, %v1608
    %v1610 = vrot.slane %v180, 1
    %v1611 = vrot.slane %v176, 2
    %v1612 = vor.u32 %v1610, %v1611
    %v1613 = vsel %vm1606, %v1609, %v1612
    %v1642 = vunpack.c.l.b16 %v1578
    %v1643 = vunpack.c.h.b16 %v1578
    %v1644 = vunpack.c.l.b16 %v1579
    %v1645 = vunpack.c.l.b16 %v1580
    %v1646 = vunpack.c.h.b16 %v1580
    %v1647 = vunpack.c.l.b16 %v1581
    %v1648 = vunpack.c.l.b16 %v1582
    %v1649 = vunpack.c.h.b16 %v1582
    %v1650 = vunpack.c.l.b16 %v1583
    %v1651 = vunpack.c.l.b16 %v1584
    %v1652 = vunpack.c.h.b16 %v1584
    %v1653 = vunpack.c.l.b16 %v1585
    %v1654 = vunpack.c.l.b16 %v1586
    %v1655 = vunpack.c.h.b16 %v1586
    %v1656 = vunpack.c.l.b16 %v1587
    %v1657 = vunpack.c.l.b16 %v1588
    %v1658 = vunpack.c.h.b16 %v1588
    %v1659 = vunpack.c.l.b16 %v1589
    %v1660 = vunpack.c.l.b16 %v1590
    %v1661 = vunpack.c.h.b16 %v1590
    %v1662 = vunpack.c.l.b16 %v1591
    %v1663 = vunpack.c.l.b16 %v1592
    %v1664 = vunpack.c.h.b16 %v1592
    %v1665 = vunpack.c.l.b16 %v1593
    %v1666 = vunpack.c.l.b16 %v1594
    %v1667 = vunpack.c.h.b16 %v1594
    %v1668 = vunpack.c.l.b16 %v1595
    %v1669 = vunpack.c.l.b16 %v1596
    %v1670 = vunpack.c.h.b16 %v1596
    %v1671 = vunpack.c.l.b16 %v1597
    %v1672 = vunpack.c.l.b16 %v1598
    %v1673 = vunpack.c.h.b16 %v1598
    %v1674 = vunpack.c.l.b16 %v1599
    %v1675 = vunpack.c.l.b16 %v1600
    %v1676 = vunpack.c.h.b16 %v1600
    %v1677 = vunpack.c.l.b16 %v1601
    %v1678 = vunpack.c.l.b16 %v1602
    %v1679 = vunpack.c.h.b16 %v1602
    %v1680 = vunpack.c.l.b16 %v1603
    %v1681 = vunpack.c.l.b16 %v1604
    %v1682 = vunpack.c.h.b16 %v1604
    %v1683 = vunpack.c.l.b16 %v1605
    %v1684 = vpack.c.b16 %v1645, %v1642
    %v1685 = vpack.c.b16 %v1646, %v1643
    %v1686 = vpack.c.b16 %v1647, %v1644
    %v1687 = vpack.c.b16 %v1651, %v1648
    %v1688 = vpack.c.b16 %v1652, %v1649
    %v1689 = vpack.c.b16 %v1653, %v1650
    %v1690 = vpack.c.b16 %v1657, %v1654
    %v1691 = vpack.c.b16 %v1658, %v1655
    %v1692 = vpack.c.b16 %v1659, %v1656
    %v1693 = vpack.c.b16 %v1663, %v1660
    %v1694 = vpack.c.b16 %v1664, %v1661
    %v1695 = vpack.c.b16 %v1665, %v1662
    %v1696 = vpack.c.b16 %v1669, %v1666
    %v1697 = vpack.c.b16 %v1670, %v1667
    %v1698 = vpack.c.b16 %v1671, %v1668
    %v1699 = vpack.c.b16 %v1675, %v1672
    %v1700 = vpack.c.b16 %v1676, %v1673
    %v1701 = vpack.c.b16 %v1677, %v1674
    %v1702 = vpack.c.b16 %v1681, %v1678
    %v1703 = vpack.c.b16 %v1682, %v1679
    %v1704 = vpack.c.b16 %v1683, %v1680
    %v1727 = vsel %vm295, %v1613, 0
    %v1730 = vsel %vm295, %v1612, 0
    %1732 = vmatprep.subr.bf16.mxu0 %v1685
    %1733 = vmatpush1.bf16.msra.mxu0 %v1684
    %1734 = vmatprep.subr.bf16.mxu0 %v1688
    %1735 = vmatpush1.bf16.msra.mxu0 %v1687
    %1736 = vmatprep.subr.bf16.mxu0 %v1691
    %1737 = vmatpush1.bf16.msra.mxu0 %v1690
    %1738 = vmatprep.subr.bf16.mxu0 %v1694
    %1739 = vmatpush1.bf16.msra.mxu0 %v1693
    %1740 = vmatprep.subr.bf16.mxu0 %v1697
    %1741 = vmatpush1.bf16.msra.mxu0 %v1696
    %1742 = vmatprep.subr.bf16.mxu0 %v1700
    %1743 = vmatpush1.bf16.msra.mxu0 %v1699
    %1744 = vmatprep.subr.bf16.mxu0 %v1703
    %1745 = vmatpush1.bf16.msra.mxu0 %v1702
    %1746 = vmatprep.subr.bf16.mxu0 0
    %1747 = vmatpush1.bf16.msra.mxu0 0
    %1748 = vmatprep.subr.bf16.mxu0 0
    %1749 = vmatpush1.bf16.msra.mxu0 0
    %1750 = vmatprep.subr.bf16.mxu0 0
    %1751 = vmatpush1.bf16.msra.mxu0 0
    %1752 = vmatprep.subr.bf16.mxu0 0
    %1753 = vmatpush1.bf16.msra.mxu0 0
    %1754 = vmatprep.subr.bf16.mxu0 0
    %1755 = vmatpush1.bf16.msra.mxu0 0
    %1756 = vmatprep.subr.bf16.mxu0 0
    %1757 = vmatpush1.bf16.msra.mxu0 0
    %1758 = vmatprep.subr.bf16.mxu0 0
    %1759 = vmatpush1.bf16.msra.mxu0 0
    %1760 = vmatprep.subr.bf16.mxu0 0
    %1761 = vmatpush1.bf16.msra.mxu0 0
    %1762 = vmatprep.subr.bf16.mxu0 0
    %1763 = vmatpush1.bf16.msra.mxu0 0
    %1764 = vmatprep.mubr.bf16.mxu0 0
    %1765 = vmatmul.mubr.bf16.gmra.mrb[0].mxu0 %v1727
    %v1766 = vpop.f32.mrb[0].mxu0
    %v1767 = vadd.f32 0.0, %v1766
    %v1768 = vpop.f32.mrb[0].mxu0
    %v1769 = vadd.f32 0.0, %v1768
    %v1770 = vpop.f32.mrb[0].mxu0
    %v1771 = vadd.f32 0.0, %v1770
    %v1772 = vpop.f32.mrb[0].mxu0
    %v1773 = vadd.f32 0.0, %v1772
    %1774 = vmatprep.mubr.bf16.mxu0 0
    %1775 = vmatmul.mubr.bf16.gmra.mrb[0].mxu0 %v1730
    %v1776 = vpop.f32.mrb[0].mxu0
    %v1777 = vadd.f32 0.0, %v1776
    %v1778 = vpop.f32.mrb[0].mxu0
    %v1779 = vadd.f32 0.0, %v1778
    %v1780 = vpop.f32.mrb[0].mxu0
    %v1781 = vpop.f32.mrb[0].mxu0
    %1782 = vdwg.mxu0
    %1783 = vmatprep.subr.bf16.mxu0 0
    %1784 = vmatpush1.bf16.msra.mxu0 %v1686
    %1785 = vmatprep.subr.bf16.mxu0 0
    %1786 = vmatpush1.bf16.msra.mxu0 %v1689
    %1787 = vmatprep.subr.bf16.mxu0 0
    %1788 = vmatpush1.bf16.msra.mxu0 %v1692
    %1789 = vmatprep.subr.bf16.mxu0 0
    %1790 = vmatpush1.bf16.msra.mxu0 %v1695
    %1791 = vmatprep.subr.bf16.mxu0 0
    %1792 = vmatpush1.bf16.msra.mxu0 %v1698
    %1793 = vmatprep.subr.bf16.mxu0 0
    %1794 = vmatpush1.bf16.msra.mxu0 %v1701
    %1795 = vmatprep.subr.bf16.mxu0 0
    %1796 = vmatpush1.bf16.msra.mxu0 %v1704
    %1797 = vmatprep.subr.bf16.mxu0 0
    %1798 = vmatpush1.bf16.msra.mxu0 0
    %1799 = vmatprep.subr.bf16.mxu0 0
    %1800 = vmatpush1.bf16.msra.mxu0 0
    %1801 = vmatprep.subr.bf16.mxu0 0
    %1802 = vmatpush1.bf16.msra.mxu0 0
    %1803 = vmatprep.subr.bf16.mxu0 0
    %1804 = vmatpush1.bf16.msra.mxu0 0
    %1805 = vmatprep.subr.bf16.mxu0 0
    %1806 = vmatpush1.bf16.msra.mxu0 0
    %1807 = vmatprep.subr.bf16.mxu0 0
    %1808 = vmatpush1.bf16.msra.mxu0 0
    %1809 = vmatprep.subr.bf16.mxu0 0
    %1810 = vmatpush1.bf16.msra.mxu0 0
    %1811 = vmatprep.subr.bf16.mxu0 0
    %1812 = vmatpush1.bf16.msra.mxu0 0
    %1813 = vmatprep.subr.bf16.mxu0 0
    %1814 = vmatpush1.bf16.msra.mxu0 0
    %1815 = vmatprep.mubr.bf16.mxu0 0
    %1816 = vmatmul.mubr.bf16.gmra.mrb[0].mxu0 %v1727
    %v1817 = vpop.f32.mrb[0].mxu0
    %v1818 = vadd.f32 0.0, %v1817
    %v1819 = vpop.f32.mrb[0].mxu0
    %v1820 = vpop.f32.mrb[0].mxu0
    %v1821 = vadd.f32 0.0, %v1820
    %v1822 = vpop.f32.mrb[0].mxu0
    %1823 = vmatprep.mubr.bf16.mxu0 0
    %1824 = vmatmul.mubr.bf16.gmra.mrb[0].mxu0 %v1730
    %v1825 = vpop.f32.mrb[0].mxu0
    %v1826 = vadd.f32 0.0, %v1825
    %v1827 = vpop.f32.mrb[0].mxu0
    %v1828 = vpop.f32.mrb[0].mxu0
    %v1829 = vpop.f32.mrb[0].mxu0
    %1830 = vdwg.mxu0
    %v1831 = vadd.f32 %v1319, %v1767
    %v1832 = vadd.f32 %v1320, %v1769
    %v1833 = vadd.f32 %v1321, %v1818
    %v1834 = vadd.f32 %v1322, %v1771
    %v1835 = vadd.f32 %v1323, %v1773
    %v1836 = vadd.f32 %v1324, %v1821
    %v1837 = vadd.f32 %v1325, %v1777
    %v1838 = vadd.f32 %v1326, %v1779
    %v1839 = vadd.f32 %v1327, %v1826
    %s1840 = scalar_lea.vmem [#allocation4], 504
    %v1841 = vld [vmem:[%s1840] sm:$0xff]
    %v1842 = vld [vmem:[%s1840 + $0x8] sm:$0xf]
    %v1843 = vld [vmem:[%s1840 + $0xc] sm:$0xff]
    %v1844 = vld [vmem:[%s1840 + $0x14] sm:$0xf]
    %v1845 = vld [vmem:[%s1840 + $0x18] sm:$0xff]
    %v1846 = vld [vmem:[%s1840 + $0x20] sm:$0xf]
    %v1847 = vld [vmem:[%s1840 + $0x24] sm:$0xff]
    %v1848 = vld [vmem:[%s1840 + $0x2c] sm:$0xf]
    %v1849 = vld [vmem:[%s1840 + $0x30] sm:$0xff]
    %v1850 = vld [vmem:[%s1840 + $0x38] sm:$0xf]
    %v1851 = vld [vmem:[%s1840 + $0x3c] sm:$0xff]
    %v1852 = vld [vmem:[%s1840 + $0x44] sm:$0xf]
    %v1853 = vld [vmem:[%s1840 + $0x48] sm:$0xff]
    %v1854 = vld [vmem:[%s1840 + $0x50] sm:$0xf]
    %v1855 = vld [vmem:[%s1840 + $0x54] sm:$0xff]
    %v1856 = vld [vmem:[%s1840 + $0x5c] sm:$0xf]
    %v1857 = vld [vmem:[%s1840 + $0x60] sm:$0xff]
    %v1858 = vld [vmem:[%s1840 + $0x68] sm:$0xf]
    %v1859 = vld [vmem:[%s1840 + $0x6c] sm:$0xff]
    %v1860 = vld [vmem:[%s1840 + $0x74] sm:$0xf]
    %v1861 = vld [vmem:[%s1840 + $0x78] sm:$0xff]
    %v1862 = vld [vmem:[%s1840 + $0x80] sm:$0xf]
    %v1863 = vld [vmem:[%s1840 + $0x84] sm:$0xff]
    %v1864 = vld [vmem:[%s1840 + $0x8c] sm:$0xf]
    %v1865 = vld [vmem:[%s1840 + $0x90] sm:$0xff]
    %v1866 = vld [vmem:[%s1840 + $0x98] sm:$0xf]
    %v1867 = vld [vmem:[%s1840 + $0x9c] sm:$0xff]
    %v1868 = vld [vmem:[%s1840 + $0xa4] sm:$0xf]
    %v1897 = vunpack.c.l.b16 %v1841
    %v1898 = vunpack.c.h.b16 %v1841
    %v1899 = vunpack.c.l.b16 %v1842
    %v1900 = vunpack.c.l.b16 %v1843
    %v1901 = vunpack.c.h.b16 %v1843
    %v1902 = vunpack.c.l.b16 %v1844
    %v1903 = vunpack.c.l.b16 %v1845
    %v1904 = vunpack.c.h.b16 %v1845
    %v1905 = vunpack.c.l.b16 %v1846
    %v1906 = vunpack.c.l.b16 %v1847
    %v1907 = vunpack.c.h.b16 %v1847
    %v1908 = vunpack.c.l.b16 %v1848
    %v1909 = vunpack.c.l.b16 %v1849
    %v1910 = vunpack.c.h.b16 %v1849
    %v1911 = vunpack.c.l.b16 %v1850
    %v1912 = vunpack.c.l.b16 %v1851
    %v1913 = vunpack.c.h.b16 %v1851
    %v1914 = vunpack.c.l.b16 %v1852
    %v1915 = vunpack.c.l.b16 %v1853
    %v1916 = vunpack.c.h.b16 %v1853
    %v1917 = vunpack.c.l.b16 %v1854
    %v1918 = vunpack.c.l.b16 %v1855
    %v1919 = vunpack.c.h.b16 %v1855
    %v1920 = vunpack.c.l.b16 %v1856
    %v1921 = vunpack.c.l.b16 %v1857
    %v1922 = vunpack.c.h.b16 %v1857
    %v1923 = vunpack.c.l.b16 %v1858
    %v1924 = vunpack.c.l.b16 %v1859
    %v1925 = vunpack.c.h.b16 %v1859
    %v1926 = vunpack.c.l.b16 %v1860
    %v1927 = vunpack.c.l.b16 %v1861
    %v1928 = vunpack.c.h.b16 %v1861
    %v1929 = vunpack.c.l.b16 %v1862
    %v1930 = vunpack.c.l.b16 %v1863
    %v1931 = vunpack.c.h.b16 %v1863
    %v1932 = vunpack.c.l.b16 %v1864
    %v1933 = vunpack.c.l.b16 %v1865
    %v1934 = vunpack.c.h.b16 %v1865
    %v1935 = vunpack.c.l.b16 %v1866
    %v1936 = vunpack.c.l.b16 %v1867
    %v1937 = vunpack.c.h.b16 %v1867
    %v1938 = vunpack.c.l.b16 %v1868
    %v1939 = vpack.c.b16 %v1900, %v1897
    %v1940 = vpack.c.b16 %v1901, %v1898
    %v1941 = vpack.c.b16 %v1902, %v1899
    %v1942 = vpack.c.b16 %v1906, %v1903
    %v1943 = vpack.c.b16 %v1907, %v1904
    %v1944 = vpack.c.b16 %v1908, %v1905
    %v1945 = vpack.c.b16 %v1912, %v1909
    %v1946 = vpack.c.b16 %v1913, %v1910
    %v1947 = vpack.c.b16 %v1914, %v1911
    %v1948 = vpack.c.b16 %v1918, %v1915
    %v1949 = vpack.c.b16 %v1919, %v1916
    %v1950 = vpack.c.b16 %v1920, %v1917
    %v1951 = vpack.c.b16 %v1924, %v1921
    %v1952 = vpack.c.b16 %v1925, %v1922
    %v1953 = vpack.c.b16 %v1926, %v1923
    %v1954 = vpack.c.b16 %v1930, %v1927
    %v1955 = vpack.c.b16 %v1931, %v1928
    %v1956 = vpack.c.b16 %v1932, %v1929
    %v1957 = vpack.c.b16 %v1936, %v1933
    %v1958 = vpack.c.b16 %v1937, %v1934
    %v1959 = vpack.c.b16 %v1938, %v1935
    %1981 = vmatprep.subr.bf16.mxu0 %v1940
    %1982 = vmatpush1.bf16.msra.mxu0 %v1939
    %1983 = vmatprep.subr.bf16.mxu0 %v1943
    %1984 = vmatpush1.bf16.msra.mxu0 %v1942
    %1985 = vmatprep.subr.bf16.mxu0 %v1946
    %1986 = vmatpush1.bf16.msra.mxu0 %v1945
    %1987 = vmatprep.subr.bf16.mxu0 %v1949
    %1988 = vmatpush1.bf16.msra.mxu0 %v1948
    %1989 = vmatprep.subr.bf16.mxu0 %v1952
    %1990 = vmatpush1.bf16.msra.mxu0 %v1951
    %1991 = vmatprep.subr.bf16.mxu0 %v1955
    %1992 = vmatpush1.bf16.msra.mxu0 %v1954
    %1993 = vmatprep.subr.bf16.mxu0 %v1958
    %1994 = vmatpush1.bf16.msra.mxu0 %v1957
    %1995 = vmatprep.subr.bf16.mxu0 0
    %1996 = vmatpush1.bf16.msra.mxu0 0
    %1997 = vmatprep.subr.bf16.mxu0 0
    %1998 = vmatpush1.bf16.msra.mxu0 0
    %1999 = vmatprep.subr.bf16.mxu0 0
    %2000 = vmatpush1.bf16.msra.mxu0 0
    %2001 = vmatprep.subr.bf16.mxu0 0
    %2002 = vmatpush1.bf16.msra.mxu0 0
    %2003 = vmatprep.subr.bf16.mxu0 0
    %2004 = vmatpush1.bf16.msra.mxu0 0
    %2005 = vmatprep.subr.bf16.mxu0 0
    %2006 = vmatpush1.bf16.msra.mxu0 0
    %2007 = vmatprep.subr.bf16.mxu0 0
    %2008 = vmatpush1.bf16.msra.mxu0 0
    %2009 = vmatprep.subr.bf16.mxu0 0
    %2010 = vmatpush1.bf16.msra.mxu0 0
    %2011 = vmatprep.subr.bf16.mxu0 0
    %2012 = vmatpush1.bf16.msra.mxu0 0
    %2013 = vmatprep.mubr.bf16.mxu0 0
    %2014 = vmatmul.mubr.bf16.gmra.mrb[0].mxu0 %v1727
    %v2015 = vpop.f32.mrb[0].mxu0
    %v2016 = vadd.f32 0.0, %v2015
    %v2017 = vpop.f32.mrb[0].mxu0
    %v2018 = vadd.f32 0.0, %v2017
    %v2019 = vpop.f32.mrb[0].mxu0
    %v2020 = vadd.f32 0.0, %v2019
    %v2021 = vpop.f32.mrb[0].mxu0
    %v2022 = vadd.f32 0.0, %v2021
    %2023 = vmatprep.mubr.bf16.mxu0 0
    %2024 = vmatmul.mubr.bf16.gmra.mrb[0].mxu0 %v1730
    %v2025 = vpop.f32.mrb[0].mxu0
    %v2026 = vadd.f32 0.0, %v2025
    %v2027 = vpop.f32.mrb[0].mxu0
    %v2028 = vadd.f32 0.0, %v2027
    %v2029 = vpop.f32.mrb[0].mxu0
    %v2030 = vpop.f32.mrb[0].mxu0
    %2031 = vdwg.mxu0
    %2032 = vmatprep.subr.bf16.mxu0 0
    %2033 = vmatpush1.bf16.msra.mxu0 %v1941
    %2034 = vmatprep.subr.bf16.mxu0 0
    %2035 = vmatpush1.bf16.msra.mxu0 %v1944
    %2036 = vmatprep.subr.bf16.mxu0 0
    %2037 = vmatpush1.bf16.msra.mxu0 %v1947
    %2038 = vmatprep.subr.bf16.mxu0 0
    %2039 = vmatpush1.bf16.msra.mxu0 %v1950
    %2040 = vmatprep.subr.bf16.mxu0 0
    %2041 = vmatpush1.bf16.msra.mxu0 %v1953
    %2042 = vmatprep.subr.bf16.mxu0 0
    %2043 = vmatpush1.bf16.msra.mxu0 %v1956
    %2044 = vmatprep.subr.bf16.mxu0 0
    %2045 = vmatpush1.bf16.msra.mxu0 %v1959
    %2046 = vmatprep.subr.bf16.mxu0 0
    %2047 = vmatpush1.bf16.msra.mxu0 0
    %2048 = vmatprep.subr.bf16.mxu0 0
    %2049 = vmatpush1.bf16.msra.mxu0 0
    %2050 = vmatprep.subr.bf16.mxu0 0
    %2051 = vmatpush1.bf16.msra.mxu0 0
    %2052 = vmatprep.subr.bf16.mxu0 0
    %2053 = vmatpush1.bf16.msra.mxu0 0
    %2054 = vmatprep.subr.bf16.mxu0 0
    %2055 = vmatpush1.bf16.msra.mxu0 0
    %2056 = vmatprep.subr.bf16.mxu0 0
    %2057 = vmatpush1.bf16.msra.mxu0 0
    %2058 = vmatprep.subr.bf16.mxu0 0
    %2059 = vmatpush1.bf16.msra.mxu0 0
    %2060 = vmatprep.subr.bf16.mxu0 0
    %2061 = vmatpush1.bf16.msra.mxu0 0
    %2062 = vmatprep.subr.bf16.mxu0 0
    %2063 = vmatpush1.bf16.msra.mxu0 0
    %2064 = vmatprep.mubr.bf16.mxu0 0
    %2065 = vmatmul.mubr.bf16.gmra.mrb[0].mxu0 %v1727
    %v2066 = vpop.f32.mrb[0].mxu0
    %v2067 = vadd.f32 0.0, %v2066
    %v2068 = vpop.f32.mrb[0].mxu0
    %v2069 = vpop.f32.mrb[0].mxu0
    %v2070 = vadd.f32 0.0, %v2069
    %v2071 = vpop.f32.mrb[0].mxu0
    %2072 = vmatprep.mubr.bf16.mxu0 0
    %2073 = vmatmul.mubr.bf16.gmra.mrb[0].mxu0 %v1730
    %v2074 = vpop.f32.mrb[0].mxu0
    %v2075 = vadd.f32 0.0, %v2074
    %v2076 = vpop.f32.mrb[0].mxu0
    %v2077 = vpop.f32.mrb[0].mxu0
    %v2078 = vpop.f32.mrb[0].mxu0
    %2079 = vdwg.mxu0
    %v2080 = vadd.f32 %v1568, %v2016
    %v2081 = vadd.f32 %v1569, %v2018
    %v2082 = vadd.f32 %v1570, %v2067
    %v2083 = vadd.f32 %v1571, %v2020
    %v2084 = vadd.f32 %v1572, %v2022
    %v2085 = vadd.f32 %v1573, %v2070
    %v2086 = vadd.f32 %v1574, %v2026
    %v2087 = vadd.f32 %v1575, %v2028
    %v2088 = vadd.f32 %v1576, %v2075
    %s2089 = scalar_lea.vmem [#allocation2], 672
    %v2090 = vld [vmem:[%s2089] sm:$0xff]
    %v2091 = vld [vmem:[%s2089 + $0x8] sm:$0xf]
    %v2092 = vld [vmem:[%s2089 + $0xc] sm:$0xff]
    %v2093 = vld [vmem:[%s2089 + $0x14] sm:$0xf]
    %v2094 = vld [vmem:[%s2089 + $0x18] sm:$0xff]
    %v2095 = vld [vmem:[%s2089 + $0x20] sm:$0xf]
    %v2096 = vld [vmem:[%s2089 + $0x24] sm:$0xff]
    %v2097 = vld [vmem:[%s2089 + $0x2c] sm:$0xf]
    %v2098 = vld [vmem:[%s2089 + $0x30] sm:$0xff]
    %v2099 = vld [vmem:[%s2089 + $0x38] sm:$0xf]
    %v2100 = vld [vmem:[%s2089 + $0x3c] sm:$0xff]
    %v2101 = vld [vmem:[%s2089 + $0x44] sm:$0xf]
    %v2102 = vld [vmem:[%s2089 + $0x48] sm:$0xff]
    %v2103 = vld [vmem:[%s2089 + $0x50] sm:$0xf]
    %v2104 = vld [vmem:[%s2089 + $0x54] sm:$0xff]
    %v2105 = vld [vmem:[%s2089 + $0x5c] sm:$0xf]
    %v2106 = vld [vmem:[%s2089 + $0x60] sm:$0xff]
    %v2107 = vld [vmem:[%s2089 + $0x68] sm:$0xf]
    %v2108 = vld [vmem:[%s2089 + $0x6c] sm:$0xff]
    %v2109 = vld [vmem:[%s2089 + $0x74] sm:$0xf]
    %v2110 = vld [vmem:[%s2089 + $0x78] sm:$0xff]
    %v2111 = vld [vmem:[%s2089 + $0x80] sm:$0xf]
    %v2112 = vld [vmem:[%s2089 + $0x84] sm:$0xff]
    %v2113 = vld [vmem:[%s2089 + $0x8c] sm:$0xf]
    %v2114 = vld [vmem:[%s2089 + $0x90] sm:$0xff]
    %v2115 = vld [vmem:[%s2089 + $0x98] sm:$0xf]
    %v2116 = vld [vmem:[%s2089 + $0x9c] sm:$0xff]
    %v2117 = vld [vmem:[%s2089 + $0xa4] sm:$0xf]
    %vm2118 = vcmask 1045504
    %v2119 = vrot.slane %v165, 2
    %v2120 = vrot.slane %v166, 2
    %v2121 = vsel %vm2118, %v2119, %v2120
    %v2150 = vunpack.c.l.b16 %v2090
    %v2151 = vunpack.c.h.b16 %v2090
    %v2152 = vunpack.c.l.b16 %v2091
    %v2153 = vunpack.c.l.b16 %v2092
    %v2154 = vunpack.c.h.b16 %v2092
    %v2155 = vunpack.c.l.b16 %v2093
    %v2156 = vunpack.c.l.b16 %v2094
    %v2157 = vunpack.c.h.b16 %v2094
    %v2158 = vunpack.c.l.b16 %v2095
    %v2159 = vunpack.c.l.b16 %v2096
    %v2160 = vunpack.c.h.b16 %v2096
    %v2161 = vunpack.c.l.b16 %v2097
    %v2162 = vunpack.c.l.b16 %v2098
    %v2163 = vunpack.c.h.b16 %v2098
    %v2164 = vunpack.c.l.b16 %v2099
    %v2165 = vunpack.c.l.b16 %v2100
    %v2166 = vunpack.c.h.b16 %v2100
    %v2167 = vunpack.c.l.b16 %v2101
    %v2168 = vunpack.c.l.b16 %v2102
    %v2169 = vunpack.c.h.b16 %v2102
    %v2170 = vunpack.c.l.b16 %v2103
    %v2171 = vunpack.c.l.b16 %v2104
    %v2172 = vunpack.c.h.b16 %v2104
    %v2173 = vunpack.c.l.b16 %v2105
    %v2174 = vunpack.c.l.b16 %v2106
    %v2175 = vunpack.c.h.b16 %v2106
    %v2176 = vunpack.c.l.b16 %v2107
    %v2177 = vunpack.c.l.b16 %v2108
    %v2178 = vunpack.c.h.b16 %v2108
    %v2179 = vunpack.c.l.b16 %v2109
    %v2180 = vunpack.c.l.b16 %v2110
    %v2181 = vunpack.c.h.b16 %v2110
    %v2182 = vunpack.c.l.b16 %v2111
    %v2183 = vunpack.c.l.b16 %v2112
    %v2184 = vunpack.c.h.b16 %v2112
    %v2185 = vunpack.c.l.b16 %v2113
    %v2186 = vunpack.c.l.b16 %v2114
    %v2187 = vunpack.c.h.b16 %v2114
    %v2188 = vunpack.c.l.b16 %v2115
    %v2189 = vunpack.c.l.b16 %v2116
    %v2190 = vunpack.c.h.b16 %v2116
    %v2191 = vunpack.c.l.b16 %v2117
    %v2192 = vpack.c.b16 %v2153, %v2150
    %v2193 = vpack.c.b16 %v2154, %v2151
    %v2194 = vpack.c.b16 %v2155, %v2152
    %v2195 = vpack.c.b16 %v2159, %v2156
    %v2196 = vpack.c.b16 %v2160, %v2157
    %v2197 = vpack.c.b16 %v2161, %v2158
    %v2198 = vpack.c.b16 %v2165, %v2162
    %v2199 = vpack.c.b16 %v2166, %v2163
    %v2200 = vpack.c.b16 %v2167, %v2164
    %v2201 = vpack.c.b16 %v2171, %v2168
    %v2202 = vpack.c.b16 %v2172, %v2169
    %v2203 = vpack.c.b16 %v2173, %v2170
    %v2204 = vpack.c.b16 %v2177, %v2174
    %v2205 = vpack.c.b16 %v2178, %v2175
    %v2206 = vpack.c.b16 %v2179, %v2176
    %v2207 = vpack.c.b16 %v2183, %v2180
    %v2208 = vpack.c.b16 %v2184, %v2181
    %v2209 = vpack.c.b16 %v2185, %v2182
    %v2210 = vpack.c.b16 %v2189, %v2186
    %v2211 = vpack.c.b16 %v2190, %v2187
    %v2212 = vpack.c.b16 %v2191, %v2188
    %v2235 = vsel %vm295, %v2121, 0
    %v2238 = vsel %vm295, %v2120, 0
    %2240 = vmatprep.subr.bf16.mxu0 %v2193
    %2241 = vmatpush1.bf16.msra.mxu0 %v2192
    %2242 = vmatprep.subr.bf16.mxu0 %v2196
    %2243 = vmatpush1.bf16.msra.mxu0 %v2195
    %2244 = vmatprep.subr.bf16.mxu0 %v2199
    %2245 = vmatpush1.bf16.msra.mxu0 %v2198
    %2246 = vmatprep.subr.bf16.mxu0 %v2202
    %2247 = vmatpush1.bf16.msra.mxu0 %v2201
    %2248 = vmatprep.subr.bf16.mxu0 %v2205
    %2249 = vmatpush1.bf16.msra.mxu0 %v2204
    %2250 = vmatprep.subr.bf16.mxu0 %v2208
    %2251 = vmatpush1.bf16.msra.mxu0 %v2207
    %2252 = vmatprep.subr.bf16.mxu0 %v2211
    %2253 = vmatpush1.bf16.msra.mxu0 %v2210
    %2254 = vmatprep.subr.bf16.mxu0 0
    %2255 = vmatpush1.bf16.msra.mxu0 0
    %2256 = vmatprep.subr.bf16.mxu0 0
    %2257 = vmatpush1.bf16.msra.mxu0 0
    %2258 = vmatprep.subr.bf16.mxu0 0
    %2259 = vmatpush1.bf16.msra.mxu0 0
    %2260 = vmatprep.subr.bf16.mxu0 0
    %2261 = vmatpush1.bf16.msra.mxu0 0
    %2262 = vmatprep.subr.bf16.mxu0 0
    %2263 = vmatpush1.bf16.msra.mxu0 0
    %2264 = vmatprep.subr.bf16.mxu0 0
    %2265 = vmatpush1.bf16.msra.mxu0 0
    %2266 = vmatprep.subr.bf16.mxu0 0
    %2267 = vmatpush1.bf16.msra.mxu0 0
    %2268 = vmatprep.subr.bf16.mxu0 0
    %2269 = vmatpush1.bf16.msra.mxu0 0
    %2270 = vmatprep.subr.bf16.mxu0 0
    %2271 = vmatpush1.bf16.msra.mxu0 0
    %2272 = vmatprep.mubr.bf16.mxu0 0
    %2273 = vmatmul.mubr.bf16.gmra.mrb[0].mxu0 %v2235
    %v2274 = vpop.f32.mrb[0].mxu0
    %v2275 = vadd.f32 0.0, %v2274
    %v2276 = vpop.f32.mrb[0].mxu0
    %v2277 = vadd.f32 0.0, %v2276
    %v2278 = vpop.f32.mrb[0].mxu0
    %v2279 = vadd.f32 0.0, %v2278
    %v2280 = vpop.f32.mrb[0].mxu0
    %v2281 = vadd.f32 0.0, %v2280
    %2282 = vmatprep.mubr.bf16.mxu0 0
    %2283 = vmatmul.mubr.bf16.gmra.mrb[0].mxu0 %v2238
    %v2284 = vpop.f32.mrb[0].mxu0
    %v2285 = vadd.f32 0.0, %v2284
    %v2286 = vpop.f32.mrb[0].mxu0
    %v2287 = vadd.f32 0.0, %v2286
    %v2288 = vpop.f32.mrb[0].mxu0
    %v2289 = vpop.f32.mrb[0].mxu0
    %2290 = vdwg.mxu0
    %2291 = vmatprep.subr.bf16.mxu0 0
    %2292 = vmatpush1.bf16.msra.mxu0 %v2194
    %2293 = vmatprep.subr.bf16.mxu0 0
    %2294 = vmatpush1.bf16.msra.mxu0 %v2197
    %2295 = vmatprep.subr.bf16.mxu0 0
    %2296 = vmatpush1.bf16.msra.mxu0 %v2200
    %2297 = vmatprep.subr.bf16.mxu0 0
    %2298 = vmatpush1.bf16.msra.mxu0 %v2203
    %2299 = vmatprep.subr.bf16.mxu0 0
    %2300 = vmatpush1.bf16.msra.mxu0 %v2206
    %2301 = vmatprep.subr.bf16.mxu0 0
    %2302 = vmatpush1.bf16.msra.mxu0 %v2209
    %2303 = vmatprep.subr.bf16.mxu0 0
    %2304 = vmatpush1.bf16.msra.mxu0 %v2212
    %2305 = vmatprep.subr.bf16.mxu0 0
    %2306 = vmatpush1.bf16.msra.mxu0 0
    %2307 = vmatprep.subr.bf16.mxu0 0
    %2308 = vmatpush1.bf16.msra.mxu0 0
    %2309 = vmatprep.subr.bf16.mxu0 0
    %2310 = vmatpush1.bf16.msra.mxu0 0
    %2311 = vmatprep.subr.bf16.mxu0 0
    %2312 = vmatpush1.bf16.msra.mxu0 0
    %2313 = vmatprep.subr.bf16.mxu0 0
    %2314 = vmatpush1.bf16.msra.mxu0 0
    %2315 = vmatprep.subr.bf16.mxu0 0
    %2316 = vmatpush1.bf16.msra.mxu0 0
    %2317 = vmatprep.subr.bf16.mxu0 0
    %2318 = vmatpush1.bf16.msra.mxu0 0
    %2319 = vmatprep.subr.bf16.mxu0 0
    %2320 = vmatpush1.bf16.msra.mxu0 0
    %2321 = vmatprep.subr.bf16.mxu0 0
    %2322 = vmatpush1.bf16.msra.mxu0 0
    %2323 = vmatprep.mubr.bf16.mxu0 0
    %2324 = vmatmul.mubr.bf16.gmra.mrb[0].mxu0 %v2235
    %v2325 = vpop.f32.mrb[0].mxu0
    %v2326 = vadd.f32 0.0, %v2325
    %v2327 = vpop.f32.mrb[0].mxu0
    %v2328 = vpop.f32.mrb[0].mxu0
    %v2329 = vadd.f32 0.0, %v2328
    %v2330 = vpop.f32.mrb[0].mxu0
    %2331 = vmatprep.mubr.bf16.mxu0 0
    %2332 = vmatmul.mubr.bf16.gmra.mrb[0].mxu0 %v2238
    %v2333 = vpop.f32.mrb[0].mxu0
    %v2334 = vadd.f32 0.0, %v2333
    %v2335 = vpop.f32.mrb[0].mxu0
    %v2336 = vpop.f32.mrb[0].mxu0
    %v2337 = vpop.f32.mrb[0].mxu0
    %2338 = vdwg.mxu0
    %v2339 = vadd.f32 %v1831, %v2275
    %v2340 = vadd.f32 %v1832, %v2277
    %v2341 = vadd.f32 %v1833, %v2326
    %v2342 = vadd.f32 %v1834, %v2279
    %v2343 = vadd.f32 %v1835, %v2281
    %v2344 = vadd.f32 %v1836, %v2329
    %v2345 = vadd.f32 %v1837, %v2285
    %v2346 = vadd.f32 %v1838, %v2287
    %v2347 = vadd.f32 %v1839, %v2334
    %s2348 = scalar_lea.vmem [#allocation4], 672
    %v2349 = vld [vmem:[%s2348] sm:$0xff]
    %v2350 = vld [vmem:[%s2348 + $0x8] sm:$0xf]
    %v2351 = vld [vmem:[%s2348 + $0xc] sm:$0xff]
    %v2352 = vld [vmem:[%s2348 + $0x14] sm:$0xf]
    %v2353 = vld [vmem:[%s2348 + $0x18] sm:$0xff]
    %v2354 = vld [vmem:[%s2348 + $0x20] sm:$0xf]
    %v2355 = vld [vmem:[%s2348 + $0x24] sm:$0xff]
    %v2356 = vld [vmem:[%s2348 + $0x2c] sm:$0xf]
    %v2357 = vld [vmem:[%s2348 + $0x30] sm:$0xff]
    %v2358 = vld [vmem:[%s2348 + $0x38] sm:$0xf]
    %v2359 = vld [vmem:[%s2348 + $0x3c] sm:$0xff]
    %v2360 = vld [vmem:[%s2348 + $0x44] sm:$0xf]
    %v2361 = vld [vmem:[%s2348 + $0x48] sm:$0xff]
    %v2362 = vld [vmem:[%s2348 + $0x50] sm:$0xf]
    %v2363 = vld [vmem:[%s2348 + $0x54] sm:$0xff]
    %v2364 = vld [vmem:[%s2348 + $0x5c] sm:$0xf]
    %v2365 = vld [vmem:[%s2348 + $0x60] sm:$0xff]
    %v2366 = vld [vmem:[%s2348 + $0x68] sm:$0xf]
    %v2367 = vld [vmem:[%s2348 + $0x6c] sm:$0xff]
    %v2368 = vld [vmem:[%s2348 + $0x74] sm:$0xf]
    %v2369 = vld [vmem:[%s2348 + $0x78] sm:$0xff]
    %v2370 = vld [vmem:[%s2348 + $0x80] sm:$0xf]
    %v2371 = vld [vmem:[%s2348 + $0x84] sm:$0xff]
    %v2372 = vld [vmem:[%s2348 + $0x8c] sm:$0xf]
    %v2373 = vld [vmem:[%s2348 + $0x90] sm:$0xff]
    %v2374 = vld [vmem:[%s2348 + $0x98] sm:$0xf]
    %v2375 = vld [vmem:[%s2348 + $0x9c] sm:$0xff]
    %v2376 = vld [vmem:[%s2348 + $0xa4] sm:$0xf]
    %v2405 = vunpack.c.l.b16 %v2349
    %v2406 = vunpack.c.h.b16 %v2349
    %v2407 = vunpack.c.l.b16 %v2350
    %v2408 = vunpack.c.l.b16 %v2351
    %v2409 = vunpack.c.h.b16 %v2351
    %v2410 = vunpack.c.l.b16 %v2352
    %v2411 = vunpack.c.l.b16 %v2353
    %v2412 = vunpack.c.h.b16 %v2353
    %v2413 = vunpack.c.l.b16 %v2354
    %v2414 = vunpack.c.l.b16 %v2355
    %v2415 = vunpack.c.h.b16 %v2355
    %v2416 = vunpack.c.l.b16 %v2356
    %v2417 = vunpack.c.l.b16 %v2357
    %v2418 = vunpack.c.h.b16 %v2357
    %v2419 = vunpack.c.l.b16 %v2358
    %v2420 = vunpack.c.l.b16 %v2359
    %v2421 = vunpack.c.h.b16 %v2359
    %v2422 = vunpack.c.l.b16 %v2360
    %v2423 = vunpack.c.l.b16 %v2361
    %v2424 = vunpack.c.h.b16 %v2361
    %v2425 = vunpack.c.l.b16 %v2362
    %v2426 = vunpack.c.l.b16 %v2363
    %v2427 = vunpack.c.h.b16 %v2363
    %v2428 = vunpack.c.l.b16 %v2364
    %v2429 = vunpack.c.l.b16 %v2365
    %v2430 = vunpack.c.h.b16 %v2365
    %v2431 = vunpack.c.l.b16 %v2366
    %v2432 = vunpack.c.l.b16 %v2367
    %v2433 = vunpack.c.h.b16 %v2367
    %v2434 = vunpack.c.l.b16 %v2368
    %v2435 = vunpack.c.l.b16 %v2369
    %v2436 = vunpack.c.h.b16 %v2369
    %v2437 = vunpack.c.l.b16 %v2370
    %v2438 = vunpack.c.l.b16 %v2371
    %v2439 = vunpack.c.h.b16 %v2371
    %v2440 = vunpack.c.l.b16 %v2372
    %v2441 = vunpack.c.l.b16 %v2373
    %v2442 = vunpack.c.h.b16 %v2373
    %v2443 = vunpack.c.l.b16 %v2374
    %v2444 = vunpack.c.l.b16 %v2375
    %v2445 = vunpack.c.h.b16 %v2375
    %v2446 = vunpack.c.l.b16 %v2376
    %v2447 = vpack.c.b16 %v2408, %v2405
    %v2448 = vpack.c.b16 %v2409, %v2406
    %v2449 = vpack.c.b16 %v2410, %v2407
    %v2450 = vpack.c.b16 %v2414, %v2411
    %v2451 = vpack.c.b16 %v2415, %v2412
    %v2452 = vpack.c.b16 %v2416, %v2413
    %v2453 = vpack.c.b16 %v2420, %v2417
    %v2454 = vpack.c.b16 %v2421, %v2418
    %v2455 = vpack.c.b16 %v2422, %v2419
    %v2456 = vpack.c.b16 %v2426, %v2423
    %v2457 = vpack.c.b16 %v2427, %v2424
    %v2458 = vpack.c.b16 %v2428, %v2425
    %v2459 = vpack.c.b16 %v2432, %v2429
    %v2460 = vpack.c.b16 %v2433, %v2430
    %v2461 = vpack.c.b16 %v2434, %v2431
    %v2462 = vpack.c.b16 %v2438, %v2435
    %v2463 = vpack.c.b16 %v2439, %v2436
    %v2464 = vpack.c.b16 %v2440, %v2437
    %v2465 = vpack.c.b16 %v2444, %v2441
    %v2466 = vpack.c.b16 %v2445, %v2442
    %v2467 = vpack.c.b16 %v2446, %v2443
    %2489 = vmatprep.subr.bf16.mxu0 %v2448
    %2490 = vmatpush1.bf16.msra.mxu0 %v2447
    %2491 = vmatprep.subr.bf16.mxu0 %v2451
    %2492 = vmatpush1.bf16.msra.mxu0 %v2450
    %2493 = vmatprep.subr.bf16.mxu0 %v2454
    %2494 = vmatpush1.bf16.msra.mxu0 %v2453
    %2495 = vmatprep.subr.bf16.mxu0 %v2457
    %2496 = vmatpush1.bf16.msra.mxu0 %v2456
    %2497 = vmatprep.subr.bf16.mxu0 %v2460
    %2498 = vmatpush1.bf16.msra.mxu0 %v2459
    %2499 = vmatprep.subr.bf16.mxu0 %v2463
    %2500 = vmatpush1.bf16.msra.mxu0 %v2462
    %2501 = vmatprep.subr.bf16.mxu0 %v2466
    %2502 = vmatpush1.bf16.msra.mxu0 %v2465
    %2503 = vmatprep.subr.bf16.mxu0 0
    %2504 = vmatpush1.bf16.msra.mxu0 0
    %2505 = vmatprep.subr.bf16.mxu0 0
    %2506 = vmatpush1.bf16.msra.mxu0 0
    %2507 = vmatprep.subr.bf16.mxu0 0
    %2508 = vmatpush1.bf16.msra.mxu0 0
    %2509 = vmatprep.subr.bf16.mxu0 0
    %2510 = vmatpush1.bf16.msra.mxu0 0
    %2511 = vmatprep.subr.bf16.mxu0 0
    %2512 = vmatpush1.bf16.msra.mxu0 0
    %2513 = vmatprep.subr.bf16.mxu0 0
    %2514 = vmatpush1.bf16.msra.mxu0 0
    %2515 = vmatprep.subr.bf16.mxu0 0
    %2516 = vmatpush1.bf16.msra.mxu0 0
    %2517 = vmatprep.subr.bf16.mxu0 0
    %2518 = vmatpush1.bf16.msra.mxu0 0
    %2519 = vmatprep.subr.bf16.mxu0 0
    %2520 = vmatpush1.bf16.msra.mxu0 0
    %2521 = vmatprep.mubr.bf16.mxu0 0
    %2522 = vmatmul.mubr.bf16.gmra.mrb[0].mxu0 %v2235
    %v2523 = vpop.f32.mrb[0].mxu0
    %v2524 = vadd.f32 0.0, %v2523
    %v2525 = vpop.f32.mrb[0].mxu0
    %v2526 = vadd.f32 0.0, %v2525
    %v2527 = vpop.f32.mrb[0].mxu0
    %v2528 = vadd.f32 0.0, %v2527
    %v2529 = vpop.f32.mrb[0].mxu0
    %v2530 = vadd.f32 0.0, %v2529
    %2531 = vmatprep.mubr.bf16.mxu0 0
    %2532 = vmatmul.mubr.bf16.gmra.mrb[0].mxu0 %v2238
    %v2533 = vpop.f32.mrb[0].mxu0
    %v2534 = vadd.f32 0.0, %v2533
    %v2535 = vpop.f32.mrb[0].mxu0
    %v2536 = vadd.f32 0.0, %v2535
    %v2537 = vpop.f32.mrb[0].mxu0
    %v2538 = vpop.f32.mrb[0].mxu0
    %2539 = vdwg.mxu0
    %2540 = vmatprep.subr.bf16.mxu0 0
    %2541 = vmatpush1.bf16.msra.mxu0 %v2449
    %2542 = vmatprep.subr.bf16.mxu0 0
    %2543 = vmatpush1.bf16.msra.mxu0 %v2452
    %2544 = vmatprep.subr.bf16.mxu0 0
    %2545 = vmatpush1.bf16.msra.mxu0 %v2455
    %2546 = vmatprep.subr.bf16.mxu0 0
    %2547 = vmatpush1.bf16.msra.mxu0 %v2458
    %2548 = vmatprep.subr.bf16.mxu0 0
    %2549 = vmatpush1.bf16.msra.mxu0 %v2461
    %2550 = vmatprep.subr.bf16.mxu0 0
    %2551 = vmatpush1.bf16.msra.mxu0 %v2464
    %2552 = vmatprep.subr.bf16.mxu0 0
    %2553 = vmatpush1.bf16.msra.mxu0 %v2467
    %2554 = vmatprep.subr.bf16.mxu0 0
    %2555 = vmatpush1.bf16.msra.mxu0 0
    %2556 = vmatprep.subr.bf16.mxu0 0
    %2557 = vmatpush1.bf16.msra.mxu0 0
    %2558 = vmatprep.subr.bf16.mxu0 0
    %2559 = vmatpush1.bf16.msra.mxu0 0
    %2560 = vmatprep.subr.bf16.mxu0 0
    %2561 = vmatpush1.bf16.msra.mxu0 0
    %2562 = vmatprep.subr.bf16.mxu0 0
    %2563 = vmatpush1.bf16.msra.mxu0 0
    %2564 = vmatprep.subr.bf16.mxu0 0
    %2565 = vmatpush1.bf16.msra.mxu0 0
    %2566 = vmatprep.subr.bf16.mxu0 0
    %2567 = vmatpush1.bf16.msra.mxu0 0
    %2568 = vmatprep.subr.bf16.mxu0 0
    %2569 = vmatpush1.bf16.msra.mxu0 0
    %2570 = vmatprep.subr.bf16.mxu0 0
    %2571 = vmatpush1.bf16.msra.mxu0 0
    %2572 = vmatprep.mubr.bf16.mxu0 0
    %2573 = vmatmul.mubr.bf16.gmra.mrb[0].mxu0 %v2235
    %v2574 = vpop.f32.mrb[0].mxu0
    %v2575 = vadd.f32 0.0, %v2574
    %v2576 = vpop.f32.mrb[0].mxu0
    %v2577 = vpop.f32.mrb[0].mxu0
    %v2578 = vadd.f32 0.0, %v2577
    %v2579 = vpop.f32.mrb[0].mxu0
    %2580 = vmatprep.mubr.bf16.mxu0 0
    %2581 = vmatmul.mubr.bf16.gmra.mrb[0].mxu0 %v2238
    %v2582 = vpop.f32.mrb[0].mxu0
    %v2583 = vadd.f32 0.0, %v2582
    %v2584 = vpop.f32.mrb[0].mxu0
    %v2585 = vpop.f32.mrb[0].mxu0
    %v2586 = vpop.f32.mrb[0].mxu0
    %2587 = vdwg.mxu0
    %v2588 = vadd.f32 %v2080, %v2524
    %v2589 = vadd.f32 %v2081, %v2526
    %v2590 = vadd.f32 %v2082, %v2575
    %v2591 = vadd.f32 %v2083, %v2528
    %v2592 = vadd.f32 %v2084, %v2530
    %v2593 = vadd.f32 %v2085, %v2578
    %v2594 = vadd.f32 %v2086, %v2534
    %v2595 = vadd.f32 %v2087, %v2536
    %v2596 = vadd.f32 %v2088, %v2583
    %v2598 = vlaneseq
    %v2599 = vshrl.u32 %v2598, 7
    %v2600 = vsub.s32 0, %v2599
    %v2601 = vrot.slane %v46, %v2600
    %v2602 = vlaneseq
    %v2603 = vshrl.u32 %v2602, 7
    %v2604 = vsub.s32 1, %v2603
    %v2605 = vrot.slane %v46, %v2604
    %v2606 = vlaneseq
    %v2607 = vshrl.u32 %v2606, 7
    %v2608 = vsub.s32 2, %v2607
    %v2609 = vrot.slane %v46, %v2608
    %v2613 = vadd.f32 %v2339, %v2601
    %v2614 = vadd.f32 %v2340, %v2605
    %v2615 = vadd.f32 %v2341, %v2609
    %v2616 = vadd.f32 %v2342, %v2601
    %v2617 = vadd.f32 %v2343, %v2605
    %v2618 = vadd.f32 %v2344, %v2609
    %v2619 = vadd.f32 %v2345, %v2601
    %v2620 = vadd.f32 %v2346, %v2605
    %v2621 = vadd.f32 %v2347, %v2609
    %v2622 = vmax.f32 %v2613, 0.0
    %v2623 = vmax.f32 %v2614, 0.0
    %v2624 = vmax.f32 %v2615, 0.0
    %v2625 = vmax.f32 %v2616, 0.0
    %v2626 = vmax.f32 %v2617, 0.0
    %v2627 = vmax.f32 %v2618, 0.0
    %v2628 = vmax.f32 %v2619, 0.0
    %v2629 = vmax.f32 %v2620, 0.0
    %v2630 = vmax.f32 %v2621, 0.0
    %v2631 = vadd.f32 %v2588, %v2601
    %v2632 = vadd.f32 %v2589, %v2605
    %v2633 = vadd.f32 %v2590, %v2609
    %v2634 = vadd.f32 %v2591, %v2601
    %v2635 = vadd.f32 %v2592, %v2605
    %v2636 = vadd.f32 %v2593, %v2609
    %v2637 = vadd.f32 %v2594, %v2601
    %v2638 = vadd.f32 %v2595, %v2605
    %v2639 = vadd.f32 %v2596, %v2609
    %v2640 = vmax.f32 %v2631, 0.0
    %v2641 = vmax.f32 %v2632, 0.0
    %v2642 = vmax.f32 %v2633, 0.0
    %v2643 = vmax.f32 %v2634, 0.0
    %v2644 = vmax.f32 %v2635, 0.0
    %v2645 = vmax.f32 %v2636, 0.0
    %v2646 = vmax.f32 %v2637, 0.0
    %v2647 = vmax.f32 %v2638, 0.0
    %v2648 = vmax.f32 %v2639, 0.0
    %v2649 = vmax.f32 %v2622, %v2640
    %v2650 = vmax.f32 %v2623, %v2641
    %v2651 = vmax.f32 %v2624, %v2642
    %v2652 = vmax.f32 %v2625, %v2643
    %v2653 = vmax.f32 %v2626, %v2644
    %v2654 = vmax.f32 %v2627, %v2645
    %v2655 = vmax.f32 %v2628, %v2646
    %v2656 = vmax.f32 %v2629, %v2647
    %v2657 = vmax.f32 %v2630, %v2648
    %vm2658 = vcmask 195584
    %v2660 = vsel %vm2658, %v58, 0
    %v2663 = vsel %vm2658, %v59, 0
    %2665 = vmatprep.subr.mxu0 %v2650
    %2666 = vmatpush1.msra.mxu0 %v2649
    %2667 = vmatprep.subr.mxu0 %v2653
    %2668 = vmatpush1.msra.mxu0 %v2652
    %2669 = vmatprep.subr.mxu0 %v2656
    %2670 = vmatpush1.msra.mxu0 %v2655
    %2671 = vmatprep.subr.mxu0 0.0
    %2672 = vmatpush1.msra.mxu0 0.0
    %2673 = vmatprep.subr.mxu0 0.0
    %2674 = vmatpush1.msra.mxu0 0.0
    %2675 = vmatprep.subr.mxu0 0.0
    %2676 = vmatpush1.msra.mxu0 0.0
    %2677 = vmatprep.subr.mxu0 0.0
    %2678 = vmatpush1.msra.mxu0 0.0
    %2679 = vmatprep.subr.mxu0 0.0
    %2680 = vmatpush1.msra.mxu0 0.0
    %2681 = vmatprep.subr.mxu0 0.0
    %2682 = vmatpush1.msra.mxu0 0.0
    %2683 = vmatprep.subr.mxu0 0.0
    %2684 = vmatpush1.msra.mxu0 0.0
    %2685 = vmatprep.subr.mxu0 0.0
    %2686 = vmatpush1.msra.mxu0 0.0
    %2687 = vmatprep.subr.mxu0 0.0
    %2688 = vmatpush1.msra.mxu0 0.0
    %2689 = vmatprep.subr.mxu0 0.0
    %2690 = vmatpush1.msra.mxu0 0.0
    %2691 = vmatprep.subr.mxu0 0.0
    %2692 = vmatpush1.msra.mxu0 0.0
    %2693 = vmatprep.subr.mxu0 0.0
    %2694 = vmatpush1.msra.mxu0 0.0
    %2695 = vmatprep.subr.mxu0 0.0
    %2696 = vmatpush1.msra.mxu0 0.0
    %2697 = vmatprep.subr.mxu0 0.0
    %2698 = vmatpush1.msra.mxu0 0.0
    %2699 = vmatprep.subr.mxu0 0.0
    %2700 = vmatpush1.msra.mxu0 0.0
    %2701 = vmatprep.subr.mxu0 0.0
    %2702 = vmatpush1.msra.mxu0 0.0
    %2703 = vmatprep.subr.mxu0 0.0
    %2704 = vmatpush1.msra.mxu0 0.0
    %2705 = vmatprep.subr.mxu0 0.0
    %2706 = vmatpush1.msra.mxu0 0.0
    %2707 = vmatprep.subr.mxu0 0.0
    %2708 = vmatpush1.msra.mxu0 0.0
    %2709 = vmatprep.subr.mxu0 0.0
    %2710 = vmatpush1.msra.mxu0 0.0
    %2711 = vmatprep.subr.mxu0 0.0
    %2712 = vmatpush1.msra.mxu0 0.0
    %2713 = vmatprep.subr.mxu0 0.0
    %2714 = vmatpush1.msra.mxu0 0.0
    %2715 = vmatprep.subr.mxu0 0.0
    %2716 = vmatpush1.msra.mxu0 0.0
    %2717 = vmatprep.subr.mxu0 0.0
    %2718 = vmatpush1.msra.mxu0 0.0
    %2719 = vmatprep.subr.mxu0 0.0
    %2720 = vmatpush1.msra.mxu0 0.0
    %2721 = vmatprep.subr.mxu0 0.0
    %2722 = vmatpush1.msra.mxu0 0.0
    %2723 = vmatprep.subr.mxu0 0.0
    %2724 = vmatpush1.msra.mxu0 0.0
    %2725 = vmatprep.subr.mxu0 0.0
    %2726 = vmatpush1.msra.mxu0 0.0
    %2727 = vmatprep.subr.mxu0 0.0
    %2728 = vmatpush1.msra.mxu0 0.0
    %2729 = vmatprep.mubr.f32.mxu0 0.0
    %2730 = vmatmul.mubr.f32.gmra.mrb[0].mxu0 %v2660
    %v2731 = vpop.f32.mrb[0].mxu0
    %v2732 = vadd.f32 0.0, %v2731
    %v2733 = vpop.f32.mrb[0].mxu0
    %v2734 = vadd.f32 0.0, %v2733
    %2735 = vmatprep.mubr.f32.mxu0 0.0
    %2736 = vmatmul.mubr.f32.gmra.mrb[0].mxu0 %v2663
    %v2737 = vpop.f32.mrb[0].mxu0
    %v2738 = vadd.f32 0.0, %v2737
    %v2739 = vpop.f32.mrb[0].mxu0
    %v2740 = vadd.f32 0.0, %v2739
    %2741 = vdwg.mxu0
    %2742 = vmatprep.subr.mxu0 0.0
    %2743 = vmatpush1.msra.mxu0 %v2651
    %2744 = vmatprep.subr.mxu0 0.0
    %2745 = vmatpush1.msra.mxu0 %v2654
    %2746 = vmatprep.subr.mxu0 0.0
    %2747 = vmatpush1.msra.mxu0 %v2657
    %2748 = vmatprep.subr.mxu0 0.0
    %2749 = vmatpush1.msra.mxu0 0.0
    %2750 = vmatprep.subr.mxu0 0.0
    %2751 = vmatpush1.msra.mxu0 0.0
    %2752 = vmatprep.subr.mxu0 0.0
    %2753 = vmatpush1.msra.mxu0 0.0
    %2754 = vmatprep.subr.mxu0 0.0
    %2755 = vmatpush1.msra.mxu0 0.0
    %2756 = vmatprep.subr.mxu0 0.0
    %2757 = vmatpush1.msra.mxu0 0.0
    %2758 = vmatprep.subr.mxu0 0.0
    %2759 = vmatpush1.msra.mxu0 0.0
    %2760 = vmatprep.subr.mxu0 0.0
    %2761 = vmatpush1.msra.mxu0 0.0
    %2762 = vmatprep.subr.mxu0 0.0
    %2763 = vmatpush1.msra.mxu0 0.0
    %2764 = vmatprep.subr.mxu0 0.0
    %2765 = vmatpush1.msra.mxu0 0.0
    %2766 = vmatprep.subr.mxu0 0.0
    %2767 = vmatpush1.msra.mxu0 0.0
    %2768 = vmatprep.subr.mxu0 0.0
    %2769 = vmatpush1.msra.mxu0 0.0
    %2770 = vmatprep.subr.mxu0 0.0
    %2771 = vmatpush1.msra.mxu0 0.0
    %2772 = vmatprep.subr.mxu0 0.0
    %2773 = vmatpush1.msra.mxu0 0.0
    %2774 = vmatprep.subr.mxu0 0.0
    %2775 = vmatpush1.msra.mxu0 0.0
    %2776 = vmatprep.subr.mxu0 0.0
    %2777 = vmatpush1.msra.mxu0 0.0
    %2778 = vmatprep.subr.mxu0 0.0
    %2779 = vmatpush1.msra.mxu0 0.0
    %2780 = vmatprep.subr.mxu0 0.0
    %2781 = vmatpush1.msra.mxu0 0.0
    %2782 = vmatprep.subr.mxu0 0.0
    %2783 = vmatpush1.msra.mxu0 0.0
    %2784 = vmatprep.subr.mxu0 0.0
    %2785 = vmatpush1.msra.mxu0 0.0
    %2786 = vmatprep.subr.mxu0 0.0
    %2787 = vmatpush1.msra.mxu0 0.0
    %2788 = vmatprep.subr.mxu0 0.0
    %2789 = vmatpush1.msra.mxu0 0.0
    %2790 = vmatprep.subr.mxu0 0.0
    %2791 = vmatpush1.msra.mxu0 0.0
    %2792 = vmatprep.subr.mxu0 0.0
    %2793 = vmatpush1.msra.mxu0 0.0
    %2794 = vmatprep.subr.mxu0 0.0
    %2795 = vmatpush1.msra.mxu0 0.0
    %2796 = vmatprep.subr.mxu0 0.0
    %2797 = vmatpush1.msra.mxu0 0.0
    %2798 = vmatprep.subr.mxu0 0.0
    %2799 = vmatpush1.msra.mxu0 0.0
    %2800 = vmatprep.subr.mxu0 0.0
    %2801 = vmatpush1.msra.mxu0 0.0
    %2802 = vmatprep.subr.mxu0 0.0
    %2803 = vmatpush1.msra.mxu0 0.0
    %2804 = vmatprep.subr.mxu0 0.0
    %2805 = vmatpush1.msra.mxu0 0.0
    %2806 = vmatprep.mubr.f32.mxu0 0.0
    %2807 = vmatmul.mubr.f32.gmra.mrb[0].mxu0 %v2660
    %v2808 = vpop.f32.mrb[0].mxu0
    %v2809 = vadd.f32 0.0, %v2808
    %v2810 = vpop.f32.mrb[0].mxu0
    %2811 = vmatprep.mubr.f32.mxu0 0.0
    %2812 = vmatmul.mubr.f32.gmra.mrb[0].mxu0 %v2663
    %v2813 = vpop.f32.mrb[0].mxu0
    %v2814 = vadd.f32 0.0, %v2813
    %v2815 = vpop.f32.mrb[0].mxu0
    %2816 = vdwg.mxu0
    %v2818 = vsel %vm2658, %v66, 0
    %v2821 = vsel %vm2658, %v67, 0
    %2823 = vmatprep.subr.mxu0 %v2650
    %2824 = vmatpush1.msra.mxu0 %v2649
    %2825 = vmatprep.subr.mxu0 %v2653
    %2826 = vmatpush1.msra.mxu0 %v2652
    %2827 = vmatprep.subr.mxu0 %v2656
    %2828 = vmatpush1.msra.mxu0 %v2655
    %2829 = vmatprep.subr.mxu0 0.0
    %2830 = vmatpush1.msra.mxu0 0.0
    %2831 = vmatprep.subr.mxu0 0.0
    %2832 = vmatpush1.msra.mxu0 0.0
    %2833 = vmatprep.subr.mxu0 0.0
    %2834 = vmatpush1.msra.mxu0 0.0
    %2835 = vmatprep.subr.mxu0 0.0
    %2836 = vmatpush1.msra.mxu0 0.0
    %2837 = vmatprep.subr.mxu0 0.0
    %2838 = vmatpush1.msra.mxu0 0.0
    %2839 = vmatprep.subr.mxu0 0.0
    %2840 = vmatpush1.msra.mxu0 0.0
    %2841 = vmatprep.subr.mxu0 0.0
    %2842 = vmatpush1.msra.mxu0 0.0
    %2843 = vmatprep.subr.mxu0 0.0
    %2844 = vmatpush1.msra.mxu0 0.0
    %2845 = vmatprep.subr.mxu0 0.0
    %2846 = vmatpush1.msra.mxu0 0.0
    %2847 = vmatprep.subr.mxu0 0.0
    %2848 = vmatpush1.msra.mxu0 0.0
    %2849 = vmatprep.subr.mxu0 0.0
    %2850 = vmatpush1.msra.mxu0 0.0
    %2851 = vmatprep.subr.mxu0 0.0
    %2852 = vmatpush1.msra.mxu0 0.0
    %2853 = vmatprep.subr.mxu0 0.0
    %2854 = vmatpush1.msra.mxu0 0.0
    %2855 = vmatprep.subr.mxu0 0.0
    %2856 = vmatpush1.msra.mxu0 0.0
    %2857 = vmatprep.subr.mxu0 0.0
    %2858 = vmatpush1.msra.mxu0 0.0
    %2859 = vmatprep.subr.mxu0 0.0
    %2860 = vmatpush1.msra.mxu0 0.0
    %2861 = vmatprep.subr.mxu0 0.0
    %2862 = vmatpush1.msra.mxu0 0.0
    %2863 = vmatprep.subr.mxu0 0.0
    %2864 = vmatpush1.msra.mxu0 0.0
    %2865 = vmatprep.subr.mxu0 0.0
    %2866 = vmatpush1.msra.mxu0 0.0
    %2867 = vmatprep.subr.mxu0 0.0
    %2868 = vmatpush1.msra.mxu0 0.0
    %2869 = vmatprep.subr.mxu0 0.0
    %2870 = vmatpush1.msra.mxu0 0.0
    %2871 = vmatprep.subr.mxu0 0.0
    %2872 = vmatpush1.msra.mxu0 0.0
    %2873 = vmatprep.subr.mxu0 0.0
    %2874 = vmatpush1.msra.mxu0 0.0
    %2875 = vmatprep.subr.mxu0 0.0
    %2876 = vmatpush1.msra.mxu0 0.0
    %2877 = vmatprep.subr.mxu0 0.0
    %2878 = vmatpush1.msra.mxu0 0.0
    %2879 = vmatprep.subr.mxu0 0.0
    %2880 = vmatpush1.msra.mxu0 0.0
    %2881 = vmatprep.subr.mxu0 0.0
    %2882 = vmatpush1.msra.mxu0 0.0
    %2883 = vmatprep.subr.mxu0 0.0
    %2884 = vmatpush1.msra.mxu0 0.0
    %2885 = vmatprep.subr.mxu0 0.0
    %2886 = vmatpush1.msra.mxu0 0.0
    %2887 = vmatprep.mubr.f32.mxu0 0.0
    %2888 = vmatmul.mubr.f32.gmra.mrb[0].mxu0 %v2818
    %v2889 = vpop.f32.mrb[0].mxu0
    %v2890 = vadd.f32 0.0, %v2889
    %v2891 = vpop.f32.mrb[0].mxu0
    %v2892 = vadd.f32 0.0, %v2891
    %2893 = vmatprep.mubr.f32.mxu0 0.0
    %2894 = vmatmul.mubr.f32.gmra.mrb[0].mxu0 %v2821
    %v2895 = vpop.f32.mrb[0].mxu0
    %v2896 = vadd.f32 0.0, %v2895
    %v2897 = vpop.f32.mrb[0].mxu0
    %v2898 = vadd.f32 0.0, %v2897
    %2899 = vdwg.mxu0
    %2900 = vmatprep.subr.mxu0 0.0
    %2901 = vmatpush1.msra.mxu0 %v2651
    %2902 = vmatprep.subr.mxu0 0.0
    %2903 = vmatpush1.msra.mxu0 %v2654
    %2904 = vmatprep.subr.mxu0 0.0
    %2905 = vmatpush1.msra.mxu0 %v2657
    %2906 = vmatprep.subr.mxu0 0.0
    %2907 = vmatpush1.msra.mxu0 0.0
    %2908 = vmatprep.subr.mxu0 0.0
    %2909 = vmatpush1.msra.mxu0 0.0
    %2910 = vmatprep.subr.mxu0 0.0
    %2911 = vmatpush1.msra.mxu0 0.0
    %2912 = vmatprep.subr.mxu0 0.0
    %2913 = vmatpush1.msra.mxu0 0.0
    %2914 = vmatprep.subr.mxu0 0.0
    %2915 = vmatpush1.msra.mxu0 0.0
    %2916 = vmatprep.subr.mxu0 0.0
    %2917 = vmatpush1.msra.mxu0 0.0
    %2918 = vmatprep.subr.mxu0 0.0
    %2919 = vmatpush1.msra.mxu0 0.0
    %2920 = vmatprep.subr.mxu0 0.0
    %2921 = vmatpush1.msra.mxu0 0.0
    %2922 = vmatprep.subr.mxu0 0.0
    %2923 = vmatpush1.msra.mxu0 0.0
    %2924 = vmatprep.subr.mxu0 0.0
    %2925 = vmatpush1.msra.mxu0 0.0
    %2926 = vmatprep.subr.mxu0 0.0
    %2927 = vmatpush1.msra.mxu0 0.0
    %2928 = vmatprep.subr.mxu0 0.0
    %2929 = vmatpush1.msra.mxu0 0.0
    %2930 = vmatprep.subr.mxu0 0.0
    %2931 = vmatpush1.msra.mxu0 0.0
    %2932 = vmatprep.subr.mxu0 0.0
    %2933 = vmatpush1.msra.mxu0 0.0
    %2934 = vmatprep.subr.mxu0 0.0
    %2935 = vmatpush1.msra.mxu0 0.0
    %2936 = vmatprep.subr.mxu0 0.0
    %2937 = vmatpush1.msra.mxu0 0.0
    %2938 = vmatprep.subr.mxu0 0.0
    %2939 = vmatpush1.msra.mxu0 0.0
    %2940 = vmatprep.subr.mxu0 0.0
    %2941 = vmatpush1.msra.mxu0 0.0
    %2942 = vmatprep.subr.mxu0 0.0
    %2943 = vmatpush1.msra.mxu0 0.0
    %2944 = vmatprep.subr.mxu0 0.0
    %2945 = vmatpush1.msra.mxu0 0.0
    %2946 = vmatprep.subr.mxu0 0.0
    %2947 = vmatpush1.msra.mxu0 0.0
    %2948 = vmatprep.subr.mxu0 0.0
    %2949 = vmatpush1.msra.mxu0 0.0
    %2950 = vmatprep.subr.mxu0 0.0
    %2951 = vmatpush1.msra.mxu0 0.0
    %2952 = vmatprep.subr.mxu0 0.0
    %2953 = vmatpush1.msra.mxu0 0.0
    %2954 = vmatprep.subr.mxu0 0.0
    %2955 = vmatpush1.msra.mxu0 0.0
    %2956 = vmatprep.subr.mxu0 0.0
    %2957 = vmatpush1.msra.mxu0 0.0
    %2958 = vmatprep.subr.mxu0 0.0
    %2959 = vmatpush1.msra.mxu0 0.0
    %2960 = vmatprep.subr.mxu0 0.0
    %2961 = vmatpush1.msra.mxu0 0.0
    %2962 = vmatprep.subr.mxu0 0.0
    %2963 = vmatpush1.msra.mxu0 0.0
    %2964 = vmatprep.mubr.f32.mxu0 0.0
    %2965 = vmatmul.mubr.f32.gmra.mrb[0].mxu0 %v2818
    %v2966 = vpop.f32.mrb[0].mxu0
    %v2967 = vadd.f32 0.0, %v2966
    %v2968 = vpop.f32.mrb[0].mxu0
    %2969 = vmatprep.mubr.f32.mxu0 0.0
    %2970 = vmatmul.mubr.f32.gmra.mrb[0].mxu0 %v2821
    %v2971 = vpop.f32.mrb[0].mxu0
    %v2972 = vadd.f32 0.0, %v2971
    %v2973 = vpop.f32.mrb[0].mxu0
    %2974 = vdwg.mxu0
    %v2975 = vmax.f32 %v2732, %v2890
    %v2976 = vmax.f32 %v2734, %v2892
    %v2977 = vmax.f32 %v2809, %v2967
    %v2978 = vmax.f32 %v2738, %v2896
    %v2979 = vmax.f32 %v2740, %v2898
    %v2980 = vmax.f32 %v2814, %v2972
    %v2981 = vpack.c.bf16 %v2978, %v2975
    %v2982 = vpack.c.bf16 %v2979, %v2976
    %v2983 = vpack.c.bf16 %v2980, %v2977
    %v2987 = vunpack.c.l.b16 %v2981
    %v2988 = vunpack.c.l.b16 %v2982
    %v2989 = vunpack.c.l.b16 %v2983
    %v2990 = vunpack.c.h.b16 %v2981
    %v2991 = vunpack.c.h.b16 %v2982
    %v2992 = vunpack.c.h.b16 %v2983
    %v2993 = vpack.c.b16 %v2988, %v2987
    %v2994 = vpack.c.b16 %v2989, %v2989
    %v2995 = vpack.c.b16 %v2991, %v2990
    %v2996 = vpack.c.b16 %v2992, %v2992
    %3001 = vst [vmem:[%s4] sm:$0xff] %v2993
    %3002 = vst [vmem:[%s4 + $0x8] sm:$0xf] %v2994
    %3003 = vst [vmem:[%s4 + $0xc] sm:$0x33] %v2995
    %3004 = vst [vmem:[%s4 + $0x14] sm:$0x3] %v2996
    %s3005 = scalar_lea.vmem %s0, 16
    %v3006 = vld [vmem:[%s3005] sm:$0xf]
    %v3007 = vld [vmem:[%s3005 + $0x4] sm:$0xf]
    %v3008 = vld [vmem:[%s3005 + $0x8] sm:$0xf]
    %v3009 = vld [vmem:[%s3005 + $0xc] sm:$0x3]
    %v3010 = vld [vmem:[#allocation2] sm:$0xff]
    %v3011 = vld [vmem:[#allocation2 + $0x8] sm:$0xf]
    %v3012 = vld [vmem:[#allocation2 + $0xc] sm:$0xff]
    %v3013 = vld [vmem:[#allocation2 + $0x14] sm:$0xf]
    %v3014 = vld [vmem:[#allocation2 + $0x18] sm:$0xff]
    %v3015 = vld [vmem:[#allocation2 + $0x20] sm:$0xf]
    %v3016 = vld [vmem:[#allocation2 + $0x24] sm:$0xff]
    %v3017 = vld [vmem:[#allocation2 + $0x2c] sm:$0xf]
    %v3018 = vld [vmem:[#allocation2 + $0x30] sm:$0xff]
    %v3019 = vld [vmem:[#allocation2 + $0x38] sm:$0xf]
    %v3020 = vld [vmem:[#allocation2 + $0x3c] sm:$0xff]
    %v3021 = vld [vmem:[#allocation2 + $0x44] sm:$0xf]
    %v3022 = vld [vmem:[#allocation2 + $0x48] sm:$0xff]
    %v3023 = vld [vmem:[#allocation2 + $0x50] sm:$0xf]
    %v3024 = vld [vmem:[#allocation2 + $0x54] sm:$0xff]
    %v3025 = vld [vmem:[#allocation2 + $0x5c] sm:$0xf]
    %v3026 = vld [vmem:[#allocation2 + $0x60] sm:$0xff]
    %v3027 = vld [vmem:[#allocation2 + $0x68] sm:$0xf]
    %v3028 = vld [vmem:[#allocation2 + $0x6c] sm:$0xff]
    %v3029 = vld [vmem:[#allocation2 + $0x74] sm:$0xf]
    %v3030 = vld [vmem:[#allocation2 + $0x78] sm:$0xff]
    %v3031 = vld [vmem:[#allocation2 + $0x80] sm:$0xf]
    %v3032 = vld [vmem:[#allocation2 + $0x84] sm:$0xff]
    %v3033 = vld [vmem:[#allocation2 + $0x8c] sm:$0xf]
    %v3034 = vld [vmem:[#allocation2 + $0x90] sm:$0xff]
    %v3035 = vld [vmem:[#allocation2 + $0x98] sm:$0xf]
    %v3036 = vld [vmem:[#allocation2 + $0x9c] sm:$0xff]
    %v3037 = vld [vmem:[#allocation2 + $0xa4] sm:$0xf]
    %v3038 = vld [vmem:[#allocation4] sm:$0xff]
    %v3039 = vld [vmem:[#allocation4 + $0x8] sm:$0xf]
    %v3040 = vld [vmem:[#allocation4 + $0xc] sm:$0xff]
    %v3041 = vld [vmem:[#allocation4 + $0x14] sm:$0xf]
    %v3042 = vld [vmem:[#allocation4 + $0x18] sm:$0xff]
    %v3043 = vld [vmem:[#allocation4 + $0x20] sm:$0xf]
    %v3044 = vld [vmem:[#allocation4 + $0x24] sm:$0xff]
    %v3045 = vld [vmem:[#allocation4 + $0x2c] sm:$0xf]
    %v3046 = vld [vmem:[#allocation4 + $0x30] sm:$0xff]
    %v3047 = vld [vmem:[#allocation4 + $0x38] sm:$0xf]
    %v3048 = vld [vmem:[#allocation4 + $0x3c] sm:$0xff]
    %v3049 = vld [vmem:[#allocation4 + $0x44] sm:$0xf]
    %v3050 = vld [vmem:[#allocation4 + $0x48] sm:$0xff]
    %v3051 = vld [vmem:[#allocation4 + $0x50] sm:$0xf]
    %v3052 = vld [vmem:[#allocation4 + $0x54] sm:$0xff]
    %v3053 = vld [vmem:[#allocation4 + $0x5c] sm:$0xf]
    %v3054 = vld [vmem:[#allocation4 + $0x60] sm:$0xff]
    %v3055 = vld [vmem:[#allocation4 + $0x68] sm:$0xf]
    %v3056 = vld [vmem:[#allocation4 + $0x6c] sm:$0xff]
    %v3057 = vld [vmem:[#allocation4 + $0x74] sm:$0xf]
    %v3058 = vld [vmem:[#allocation4 + $0x78] sm:$0xff]
    %v3059 = vld [vmem:[#allocation4 + $0x80] sm:$0xf]
    %v3060 = vld [vmem:[#allocation4 + $0x84] sm:$0xff]
    %v3061 = vld [vmem:[#allocation4 + $0x8c] sm:$0xf]
    %v3062 = vld [vmem:[#allocation4 + $0x90] sm:$0xff]
    %v3063 = vld [vmem:[#allocation4 + $0x98] sm:$0xf]
    %v3064 = vld [vmem:[#allocation4 + $0x9c] sm:$0xff]
    %v3065 = vld [vmem:[#allocation4 + $0xa4] sm:$0xf]
    %v3066 = vld [vmem:[%s128] sm:$0xff]
    %v3067 = vld [vmem:[%s128 + $0x8] sm:$0xf]
    %v3068 = vld [vmem:[%s128 + $0xc] sm:$0xff]
    %v3069 = vld [vmem:[%s128 + $0x14] sm:$0xf]
    %v3070 = vld [vmem:[%s128 + $0x18] sm:$0xff]
    %v3071 = vld [vmem:[%s128 + $0x20] sm:$0xf]
    %v3072 = vld [vmem:[%s128 + $0x24] sm:$0xff]
    %v3073 = vld [vmem:[%s128 + $0x2c] sm:$0xf]
    %v3074 = vld [vmem:[%s128 + $0x30] sm:$0xff]
    %v3075 = vld [vmem:[%s128 + $0x38] sm:$0xf]
    %v3076 = vld [vmem:[%s128 + $0x3c] sm:$0xff]
    %v3077 = vld [vmem:[%s128 + $0x44] sm:$0xf]
    %v3078 = vld [vmem:[%s128 + $0x48] sm:$0xff]
    %v3079 = vld [vmem:[%s128 + $0x50] sm:$0xf]
    %v3080 = vld [vmem:[%s128 + $0x54] sm:$0xff]
    %v3081 = vld [vmem:[%s128 + $0x5c] sm:$0xf]
    %v3082 = vld [vmem:[%s128 + $0x60] sm:$0xff]
    %v3083 = vld [vmem:[%s128 + $0x68] sm:$0xf]
    %v3084 = vld [vmem:[%s128 + $0x6c] sm:$0xff]
    %v3085 = vld [vmem:[%s128 + $0x74] sm:$0xf]
    %v3086 = vld [vmem:[%s128 + $0x78] sm:$0xff]
    %v3087 = vld [vmem:[%s128 + $0x80] sm:$0xf]
    %v3088 = vld [vmem:[%s128 + $0x84] sm:$0xff]
    %v3089 = vld [vmem:[%s128 + $0x8c] sm:$0xf]
    %v3090 = vld [vmem:[%s128 + $0x90] sm:$0xff]
    %v3091 = vld [vmem:[%s128 + $0x98] sm:$0xf]
    %v3092 = vld [vmem:[%s128 + $0x9c] sm:$0xff]
    %v3093 = vld [vmem:[%s128 + $0xa4] sm:$0xf]
    %v3098 = vunpack.c.l.b16 %v3006
    %v3099 = vunpack.c.l.b16 %v3007
    %v3100 = vunpack.c.l.b16 %v3008
    %v3101 = vunpack.c.l.b16 %v3009
    %v3102 = vpack.c.b16 %v3099, %v3098
    %v3103 = vpack.c.b16 %v3101, %v3100
    %v3105 = vshrl.u32 %v3102, 16
    %v3107 = vshll.u32 %v3102, 16
    %v3109 = vrot.slane %v3107, 1
    %v3110 = vor.u32 %v3105, %v3109
    %v3112 = vshll.u32 %v3103, 16
    %v3114 = vrot.slane %v3112, 1
    %v3115 = vsel %vm167, %v3110, %v3114
    %v3116 = vshrl.u32 %v3103, 16
    %v3118 = vor.u32 %v3116, %v3114
    %v3147 = vunpack.c.l.b16 %v3066
    %v3148 = vunpack.c.h.b16 %v3066
    %v3149 = vunpack.c.l.b16 %v3067
    %v3150 = vunpack.c.l.b16 %v3068
    %v3151 = vunpack.c.h.b16 %v3068
    %v3152 = vunpack.c.l.b16 %v3069
    %v3153 = vunpack.c.l.b16 %v3070
    %v3154 = vunpack.c.h.b16 %v3070
    %v3155 = vunpack.c.l.b16 %v3071
    %v3156 = vunpack.c.l.b16 %v3072
    %v3157 = vunpack.c.h.b16 %v3072
    %v3158 = vunpack.c.l.b16 %v3073
    %v3159 = vunpack.c.l.b16 %v3074
    %v3160 = vunpack.c.h.b16 %v3074
    %v3161 = vunpack.c.l.b16 %v3075
    %v3162 = vunpack.c.l.b16 %v3076
    %v3163 = vunpack.c.h.b16 %v3076
    %v3164 = vunpack.c.l.b16 %v3077
    %v3165 = vunpack.c.l.b16 %v3078
    %v3166 = vunpack.c.h.b16 %v3078
    %v3167 = vunpack.c.l.b16 %v3079
    %v3168 = vunpack.c.l.b16 %v3080
    %v3169 = vunpack.c.h.b16 %v3080
    %v3170 = vunpack.c.l.b16 %v3081
    %v3171 = vunpack.c.l.b16 %v3082
    %v3172 = vunpack.c.h.b16 %v3082
    %v3173 = vunpack.c.l.b16 %v3083
    %v3174 = vunpack.c.l.b16 %v3084
    %v3175 = vunpack.c.h.b16 %v3084
    %v3176 = vunpack.c.l.b16 %v3085
    %v3177 = vunpack.c.l.b16 %v3086
    %v3178 = vunpack.c.h.b16 %v3086
    %v3179 = vunpack.c.l.b16 %v3087
    %v3180 = vunpack.c.l.b16 %v3088
    %v3181 = vunpack.c.h.b16 %v3088
    %v3182 = vunpack.c.l.b16 %v3089
    %v3183 = vunpack.c.l.b16 %v3090
    %v3184 = vunpack.c.h.b16 %v3090
    %v3185 = vunpack.c.l.b16 %v3091
    %v3186 = vunpack.c.l.b16 %v3092
    %v3187 = vunpack.c.h.b16 %v3092
    %v3188 = vunpack.c.l.b16 %v3093
    %v3189 = vpack.c.b16 %v3150, %v3147
    %v3190 = vpack.c.b16 %v3151, %v3148
    %v3191 = vpack.c.b16 %v3152, %v3149
    %v3192 = vpack.c.b16 %v3156, %v3153
    %v3193 = vpack.c.b16 %v3157, %v3154
    %v3194 = vpack.c.b16 %v3158, %v3155
    %v3195 = vpack.c.b16 %v3162, %v3159
    %v3196 = vpack.c.b16 %v3163, %v3160
    %v3197 = vpack.c.b16 %v3164, %v3161
    %v3198 = vpack.c.b16 %v3168, %v3165
    %v3199 = vpack.c.b16 %v3169, %v3166
    %v3200 = vpack.c.b16 %v3170, %v3167
    %v3201 = vpack.c.b16 %v3174, %v3171
    %v3202 = vpack.c.b16 %v3175, %v3172
    %v3203 = vpack.c.b16 %v3176, %v3173
    %v3204 = vpack.c.b16 %v3180, %v3177
    %v3205 = vpack.c.b16 %v3181, %v3178
    %v3206 = vpack.c.b16 %v3182, %v3179
    %v3207 = vpack.c.b16 %v3186, %v3183
    %v3208 = vpack.c.b16 %v3187, %v3184
    %v3209 = vpack.c.b16 %v3188, %v3185
    %v3232 = vsel %vm295, %v3115, 0
    %v3235 = vsel %vm295, %v3118, 0
    %3237 = vmatprep.subr.bf16.mxu0 %v3190
    %3238 = vmatpush1.bf16.msra.mxu0 %v3189
    %3239 = vmatprep.subr.bf16.mxu0 %v3193
    %3240 = vmatpush1.bf16.msra.mxu0 %v3192
    %3241 = vmatprep.subr.bf16.mxu0 %v3196
    %3242 = vmatpush1.bf16.msra.mxu0 %v3195
    %3243 = vmatprep.subr.bf16.mxu0 %v3199
    %3244 = vmatpush1.bf16.msra.mxu0 %v3198
    %3245 = vmatprep.subr.bf16.mxu0 %v3202
    %3246 = vmatpush1.bf16.msra.mxu0 %v3201
    %3247 = vmatprep.subr.bf16.mxu0 %v3205
    %3248 = vmatpush1.bf16.msra.mxu0 %v3204
    %3249 = vmatprep.subr.bf16.mxu0 %v3208
    %3250 = vmatpush1.bf16.msra.mxu0 %v3207
    %3251 = vmatprep.subr.bf16.mxu0 0
    %3252 = vmatpush1.bf16.msra.mxu0 0
    %3253 = vmatprep.subr.bf16.mxu0 0
    %3254 = vmatpush1.bf16.msra.mxu0 0
    %3255 = vmatprep.subr.bf16.mxu0 0
    %3256 = vmatpush1.bf16.msra.mxu0 0
    %3257 = vmatprep.subr.bf16.mxu0 0
    %3258 = vmatpush1.bf16.msra.mxu0 0
    %3259 = vmatprep.subr.bf16.mxu0 0
    %3260 = vmatpush1.bf16.msra.mxu0 0
    %3261 = vmatprep.subr.bf16.mxu0 0
    %3262 = vmatpush1.bf16.msra.mxu0 0
    %3263 = vmatprep.subr.bf16.mxu0 0
    %3264 = vmatpush1.bf16.msra.mxu0 0
    %3265 = vmatprep.subr.bf16.mxu0 0
    %3266 = vmatpush1.bf16.msra.mxu0 0
    %3267 = vmatprep.subr.bf16.mxu0 0
    %3268 = vmatpush1.bf16.msra.mxu0 0
    %3269 = vmatprep.mubr.bf16.mxu0 0
    %3270 = vmatmul.mubr.bf16.gmra.mrb[0].mxu0 %v3232
    %v3271 = vpop.f32.mrb[0].mxu0
    %v3272 = vadd.f32 0.0, %v3271
    %v3273 = vpop.f32.mrb[0].mxu0
    %v3274 = vadd.f32 0.0, %v3273
    %v3275 = vpop.f32.mrb[0].mxu0
    %v3276 = vadd.f32 0.0, %v3275
    %v3277 = vpop.f32.mrb[0].mxu0
    %v3278 = vadd.f32 0.0, %v3277
    %3279 = vmatprep.mubr.bf16.mxu0 0
    %3280 = vmatmul.mubr.bf16.gmra.mrb[0].mxu0 %v3235
    %v3281 = vpop.f32.mrb[0].mxu0
    %v3282 = vadd.f32 0.0, %v3281
    %v3283 = vpop.f32.mrb[0].mxu0
    %v3284 = vadd.f32 0.0, %v3283
    %v3285 = vpop.f32.mrb[0].mxu0
    %v3286 = vpop.f32.mrb[0].mxu0
    %3287 = vdwg.mxu0
    %3288 = vmatprep.subr.bf16.mxu0 0
    %3289 = vmatpush1.bf16.msra.mxu0 %v3191
    %3290 = vmatprep.subr.bf16.mxu0 0
    %3291 = vmatpush1.bf16.msra.mxu0 %v3194
    %3292 = vmatprep.subr.bf16.mxu0 0
    %3293 = vmatpush1.bf16.msra.mxu0 %v3197
    %3294 = vmatprep.subr.bf16.mxu0 0
    %3295 = vmatpush1.bf16.msra.mxu0 %v3200
    %3296 = vmatprep.subr.bf16.mxu0 0
    %3297 = vmatpush1.bf16.msra.mxu0 %v3203
    %3298 = vmatprep.subr.bf16.mxu0 0
    %3299 = vmatpush1.bf16.msra.mxu0 %v3206
    %3300 = vmatprep.subr.bf16.mxu0 0
    %3301 = vmatpush1.bf16.msra.mxu0 %v3209
    %3302 = vmatprep.subr.bf16.mxu0 0
    %3303 = vmatpush1.bf16.msra.mxu0 0
    %3304 = vmatprep.subr.bf16.mxu0 0
    %3305 = vmatpush1.bf16.msra.mxu0 0
    %3306 = vmatprep.subr.bf16.mxu0 0
    %3307 = vmatpush1.bf16.msra.mxu0 0
    %3308 = vmatprep.subr.bf16.mxu0 0
    %3309 = vmatpush1.bf16.msra.mxu0 0
    %3310 = vmatprep.subr.bf16.mxu0 0
    %3311 = vmatpush1.bf16.msra.mxu0 0
    %3312 = vmatprep.subr.bf16.mxu0 0
    %3313 = vmatpush1.bf16.msra.mxu0 0
    %3314 = vmatprep.subr.bf16.mxu0 0
    %3315 = vmatpush1.bf16.msra.mxu0 0
    %3316 = vmatprep.subr.bf16.mxu0 0
    %3317 = vmatpush1.bf16.msra.mxu0 0
    %3318 = vmatprep.subr.bf16.mxu0 0
    %3319 = vmatpush1.bf16.msra.mxu0 0
    %3320 = vmatprep.mubr.bf16.mxu0 0
    %3321 = vmatmul.mubr.bf16.gmra.mrb[0].mxu0 %v3232
    %v3322 = vpop.f32.mrb[0].mxu0
    %v3323 = vadd.f32 0.0, %v3322
    %v3324 = vpop.f32.mrb[0].mxu0
    %v3325 = vpop.f32.mrb[0].mxu0
    %v3326 = vadd.f32 0.0, %v3325
    %v3327 = vpop.f32.mrb[0].mxu0
    %3328 = vmatprep.mubr.bf16.mxu0 0
    %3329 = vmatmul.mubr.bf16.gmra.mrb[0].mxu0 %v3235
    %v3330 = vpop.f32.mrb[0].mxu0
    %v3331 = vadd.f32 0.0, %v3330
    %v3332 = vpop.f32.mrb[0].mxu0
    %v3333 = vpop.f32.mrb[0].mxu0
    %v3334 = vpop.f32.mrb[0].mxu0
    %3335 = vdwg.mxu0
    %v3336 = vpack.c.b16 %v3100, %v3100
    %v3365 = vunpack.c.l.b16 %v3010
    %v3366 = vunpack.c.h.b16 %v3010
    %v3367 = vunpack.c.l.b16 %v3011
    %v3368 = vunpack.c.l.b16 %v3012
    %v3369 = vunpack.c.h.b16 %v3012
    %v3370 = vunpack.c.l.b16 %v3013
    %v3371 = vunpack.c.l.b16 %v3014
    %v3372 = vunpack.c.h.b16 %v3014
    %v3373 = vunpack.c.l.b16 %v3015
    %v3374 = vunpack.c.l.b16 %v3016
    %v3375 = vunpack.c.h.b16 %v3016
    %v3376 = vunpack.c.l.b16 %v3017
    %v3377 = vunpack.c.l.b16 %v3018
    %v3378 = vunpack.c.h.b16 %v3018
    %v3379 = vunpack.c.l.b16 %v3019
    %v3380 = vunpack.c.l.b16 %v3020
    %v3381 = vunpack.c.h.b16 %v3020
    %v3382 = vunpack.c.l.b16 %v3021
    %v3383 = vunpack.c.l.b16 %v3022
    %v3384 = vunpack.c.h.b16 %v3022
    %v3385 = vunpack.c.l.b16 %v3023
    %v3386 = vunpack.c.l.b16 %v3024
    %v3387 = vunpack.c.h.b16 %v3024
    %v3388 = vunpack.c.l.b16 %v3025
    %v3389 = vunpack.c.l.b16 %v3026
    %v3390 = vunpack.c.h.b16 %v3026
    %v3391 = vunpack.c.l.b16 %v3027
    %v3392 = vunpack.c.l.b16 %v3028
    %v3393 = vunpack.c.h.b16 %v3028
    %v3394 = vunpack.c.l.b16 %v3029
    %v3395 = vunpack.c.l.b16 %v3030
    %v3396 = vunpack.c.h.b16 %v3030
    %v3397 = vunpack.c.l.b16 %v3031
    %v3398 = vunpack.c.l.b16 %v3032
    %v3399 = vunpack.c.h.b16 %v3032
    %v3400 = vunpack.c.l.b16 %v3033
    %v3401 = vunpack.c.l.b16 %v3034
    %v3402 = vunpack.c.h.b16 %v3034
    %v3403 = vunpack.c.l.b16 %v3035
    %v3404 = vunpack.c.l.b16 %v3036
    %v3405 = vunpack.c.h.b16 %v3036
    %v3406 = vunpack.c.l.b16 %v3037
    %v3407 = vpack.c.b16 %v3368, %v3365
    %v3408 = vpack.c.b16 %v3369, %v3366
    %v3409 = vpack.c.b16 %v3370, %v3367
    %v3410 = vpack.c.b16 %v3374, %v3371
    %v3411 = vpack.c.b16 %v3375, %v3372
    %v3412 = vpack.c.b16 %v3376, %v3373
    %v3413 = vpack.c.b16 %v3380, %v3377
    %v3414 = vpack.c.b16 %v3381, %v3378
    %v3415 = vpack.c.b16 %v3382, %v3379
    %v3416 = vpack.c.b16 %v3386, %v3383
    %v3417 = vpack.c.b16 %v3387, %v3384
    %v3418 = vpack.c.b16 %v3388, %v3385
    %v3419 = vpack.c.b16 %v3392, %v3389
    %v3420 = vpack.c.b16 %v3393, %v3390
    %v3421 = vpack.c.b16 %v3394, %v3391
    %v3422 = vpack.c.b16 %v3398, %v3395
    %v3423 = vpack.c.b16 %v3399, %v3396
    %v3424 = vpack.c.b16 %v3400, %v3397
    %v3425 = vpack.c.b16 %v3404, %v3401
    %v3426 = vpack.c.b16 %v3405, %v3402
    %v3427 = vpack.c.b16 %v3406, %v3403
    %v3449 = vsel %vm295, %v3102, 0
    %v3452 = vsel %vm295, %v3336, 0
    %3454 = vmatprep.subr.bf16.mxu0 %v3408
    %3455 = vmatpush1.bf16.msra.mxu0 %v3407
    %3456 = vmatprep.subr.bf16.mxu0 %v3411
    %3457 = vmatpush1.bf16.msra.mxu0 %v3410
    %3458 = vmatprep.subr.bf16.mxu0 %v3414
    %3459 = vmatpush1.bf16.msra.mxu0 %v3413
    %3460 = vmatprep.subr.bf16.mxu0 %v3417
    %3461 = vmatpush1.bf16.msra.mxu0 %v3416
    %3462 = vmatprep.subr.bf16.mxu0 %v3420
    %3463 = vmatpush1.bf16.msra.mxu0 %v3419
    %3464 = vmatprep.subr.bf16.mxu0 %v3423
    %3465 = vmatpush1.bf16.msra.mxu0 %v3422
    %3466 = vmatprep.subr.bf16.mxu0 %v3426
    %3467 = vmatpush1.bf16.msra.mxu0 %v3425
    %3468 = vmatprep.subr.bf16.mxu0 0
    %3469 = vmatpush1.bf16.msra.mxu0 0
    %3470 = vmatprep.subr.bf16.mxu0 0
    %3471 = vmatpush1.bf16.msra.mxu0 0
    %3472 = vmatprep.subr.bf16.mxu0 0
    %3473 = vmatpush1.bf16.msra.mxu0 0
    %3474 = vmatprep.subr.bf16.mxu0 0
    %3475 = vmatpush1.bf16.msra.mxu0 0
    %3476 = vmatprep.subr.bf16.mxu0 0
    %3477 = vmatpush1.bf16.msra.mxu0 0
    %3478 = vmatprep.subr.bf16.mxu0 0
    %3479 = vmatpush1.bf16.msra.mxu0 0
    %3480 = vmatprep.subr.bf16.mxu0 0
    %3481 = vmatpush1.bf16.msra.mxu0 0
    %3482 = vmatprep.subr.bf16.mxu0 0
    %3483 = vmatpush1.bf16.msra.mxu0 0
    %3484 = vmatprep.subr.bf16.mxu0 0
    %3485 = vmatpush1.bf16.msra.mxu0 0
    %3486 = vmatprep.mubr.bf16.mxu0 0
    %3487 = vmatmul.mubr.bf16.gmra.mrb[0].mxu0 %v3449
    %v3488 = vpop.f32.mrb[0].mxu0
    %v3489 = vadd.f32 %v3272, %v3488
    %v3490 = vpop.f32.mrb[0].mxu0
    %v3491 = vadd.f32 %v3274, %v3490
    %v3492 = vpop.f32.mrb[0].mxu0
    %v3493 = vadd.f32 %v3276, %v3492
    %v3494 = vpop.f32.mrb[0].mxu0
    %v3495 = vadd.f32 %v3278, %v3494
    %3496 = vmatprep.mubr.bf16.mxu0 0
    %3497 = vmatmul.mubr.bf16.gmra.mrb[0].mxu0 %v3452
    %v3498 = vpop.f32.mrb[0].mxu0
    %v3499 = vadd.f32 %v3282, %v3498
    %v3500 = vpop.f32.mrb[0].mxu0
    %v3501 = vadd.f32 %v3284, %v3500
    %v3502 = vpop.f32.mrb[0].mxu0
    %v3503 = vpop.f32.mrb[0].mxu0
    %3504 = vdwg.mxu0
    %3505 = vmatprep.subr.bf16.mxu0 0
    %3506 = vmatpush1.bf16.msra.mxu0 %v3409
    %3507 = vmatprep.subr.bf16.mxu0 0
    %3508 = vmatpush1.bf16.msra.mxu0 %v3412
    %3509 = vmatprep.subr.bf16.mxu0 0
    %3510 = vmatpush1.bf16.msra.mxu0 %v3415
    %3511 = vmatprep.subr.bf16.mxu0 0
    %3512 = vmatpush1.bf16.msra.mxu0 %v3418
    %3513 = vmatprep.subr.bf16.mxu0 0
    %3514 = vmatpush1.bf16.msra.mxu0 %v3421
    %3515 = vmatprep.subr.bf16.mxu0 0
    %3516 = vmatpush1.bf16.msra.mxu0 %v3424
    %3517 = vmatprep.subr.bf16.mxu0 0
    %3518 = vmatpush1.bf16.msra.mxu0 %v3427
    %3519 = vmatprep.subr.bf16.mxu0 0
    %3520 = vmatpush1.bf16.msra.mxu0 0
    %3521 = vmatprep.subr.bf16.mxu0 0
    %3522 = vmatpush1.bf16.msra.mxu0 0
    %3523 = vmatprep.subr.bf16.mxu0 0
    %3524 = vmatpush1.bf16.msra.mxu0 0
    %3525 = vmatprep.subr.bf16.mxu0 0
    %3526 = vmatpush1.bf16.msra.mxu0 0
    %3527 = vmatprep.subr.bf16.mxu0 0
    %3528 = vmatpush1.bf16.msra.mxu0 0
    %3529 = vmatprep.subr.bf16.mxu0 0
    %3530 = vmatpush1.bf16.msra.mxu0 0
    %3531 = vmatprep.subr.bf16.mxu0 0
    %3532 = vmatpush1.bf16.msra.mxu0 0
    %3533 = vmatprep.subr.bf16.mxu0 0
    %3534 = vmatpush1.bf16.msra.mxu0 0
    %3535 = vmatprep.subr.bf16.mxu0 0
    %3536 = vmatpush1.bf16.msra.mxu0 0
    %3537 = vmatprep.mubr.bf16.mxu0 0
    %3538 = vmatmul.mubr.bf16.gmra.mrb[0].mxu0 %v3449
    %v3539 = vpop.f32.mrb[0].mxu0
    %v3540 = vadd.f32 %v3323, %v3539
    %v3541 = vpop.f32.mrb[0].mxu0
    %v3542 = vpop.f32.mrb[0].mxu0
    %v3543 = vadd.f32 %v3326, %v3542
    %v3544 = vpop.f32.mrb[0].mxu0
    %3545 = vmatprep.mubr.bf16.mxu0 0
    %3546 = vmatmul.mubr.bf16.gmra.mrb[0].mxu0 %v3452
    %v3547 = vpop.f32.mrb[0].mxu0
    %v3548 = vadd.f32 %v3331, %v3547
    %v3549 = vpop.f32.mrb[0].mxu0
    %v3550 = vpop.f32.mrb[0].mxu0
    %v3551 = vpop.f32.mrb[0].mxu0
    %3552 = vdwg.mxu0
    %v3553 = vld [vmem:[%s618] sm:$0xff]
    %v3554 = vld [vmem:[%s618 + $0x8] sm:$0xf]
    %v3555 = vld [vmem:[%s618 + $0xc] sm:$0xff]
    %v3556 = vld [vmem:[%s618 + $0x14] sm:$0xf]
    %v3557 = vld [vmem:[%s618 + $0x18] sm:$0xff]
    %v3558 = vld [vmem:[%s618 + $0x20] sm:$0xf]
    %v3559 = vld [vmem:[%s618 + $0x24] sm:$0xff]
    %v3560 = vld [vmem:[%s618 + $0x2c] sm:$0xf]
    %v3561 = vld [vmem:[%s618 + $0x30] sm:$0xff]
    %v3562 = vld [vmem:[%s618 + $0x38] sm:$0xf]
    %v3563 = vld [vmem:[%s618 + $0x3c] sm:$0xff]
    %v3564 = vld [vmem:[%s618 + $0x44] sm:$0xf]
    %v3565 = vld [vmem:[%s618 + $0x48] sm:$0xff]
    %v3566 = vld [vmem:[%s618 + $0x50] sm:$0xf]
    %v3567 = vld [vmem:[%s618 + $0x54] sm:$0xff]
    %v3568 = vld [vmem:[%s618 + $0x5c] sm:$0xf]
    %v3569 = vld [vmem:[%s618 + $0x60] sm:$0xff]
    %v3570 = vld [vmem:[%s618 + $0x68] sm:$0xf]
    %v3571 = vld [vmem:[%s618 + $0x6c] sm:$0xff]
    %v3572 = vld [vmem:[%s618 + $0x74] sm:$0xf]
    %v3573 = vld [vmem:[%s618 + $0x78] sm:$0xff]
    %v3574 = vld [vmem:[%s618 + $0x80] sm:$0xf]
    %v3575 = vld [vmem:[%s618 + $0x84] sm:$0xff]
    %v3576 = vld [vmem:[%s618 + $0x8c] sm:$0xf]
    %v3577 = vld [vmem:[%s618 + $0x90] sm:$0xff]
    %v3578 = vld [vmem:[%s618 + $0x98] sm:$0xf]
    %v3579 = vld [vmem:[%s618 + $0x9c] sm:$0xff]
    %v3580 = vld [vmem:[%s618 + $0xa4] sm:$0xf]
    %v3609 = vunpack.c.l.b16 %v3553
    %v3610 = vunpack.c.h.b16 %v3553
    %v3611 = vunpack.c.l.b16 %v3554
    %v3612 = vunpack.c.l.b16 %v3555
    %v3613 = vunpack.c.h.b16 %v3555
    %v3614 = vunpack.c.l.b16 %v3556
    %v3615 = vunpack.c.l.b16 %v3557
    %v3616 = vunpack.c.h.b16 %v3557
    %v3617 = vunpack.c.l.b16 %v3558
    %v3618 = vunpack.c.l.b16 %v3559
    %v3619 = vunpack.c.h.b16 %v3559
    %v3620 = vunpack.c.l.b16 %v3560
    %v3621 = vunpack.c.l.b16 %v3561
    %v3622 = vunpack.c.h.b16 %v3561
    %v3623 = vunpack.c.l.b16 %v3562
    %v3624 = vunpack.c.l.b16 %v3563
    %v3625 = vunpack.c.h.b16 %v3563
    %v3626 = vunpack.c.l.b16 %v3564
    %v3627 = vunpack.c.l.b16 %v3565
    %v3628 = vunpack.c.h.b16 %v3565
    %v3629 = vunpack.c.l.b16 %v3566
    %v3630 = vunpack.c.l.b16 %v3567
    %v3631 = vunpack.c.h.b16 %v3567
    %v3632 = vunpack.c.l.b16 %v3568
    %v3633 = vunpack.c.l.b16 %v3569
    %v3634 = vunpack.c.h.b16 %v3569
    %v3635 = vunpack.c.l.b16 %v3570
    %v3636 = vunpack.c.l.b16 %v3571
    %v3637 = vunpack.c.h.b16 %v3571
    %v3638 = vunpack.c.l.b16 %v3572
    %v3639 = vunpack.c.l.b16 %v3573
    %v3640 = vunpack.c.h.b16 %v3573
    %v3641 = vunpack.c.l.b16 %v3574
    %v3642 = vunpack.c.l.b16 %v3575
    %v3643 = vunpack.c.h.b16 %v3575
    %v3644 = vunpack.c.l.b16 %v3576
    %v3645 = vunpack.c.l.b16 %v3577
    %v3646 = vunpack.c.h.b16 %v3577
    %v3647 = vunpack.c.l.b16 %v3578
    %v3648 = vunpack.c.l.b16 %v3579
    %v3649 = vunpack.c.h.b16 %v3579
    %v3650 = vunpack.c.l.b16 %v3580
    %v3651 = vpack.c.b16 %v3612, %v3609
    %v3652 = vpack.c.b16 %v3613, %v3610
    %v3653 = vpack.c.b16 %v3614, %v3611
    %v3654 = vpack.c.b16 %v3618, %v3615
    %v3655 = vpack.c.b16 %v3619, %v3616
    %v3656 = vpack.c.b16 %v3620, %v3617
    %v3657 = vpack.c.b16 %v3624, %v3621
    %v3658 = vpack.c.b16 %v3625, %v3622
    %v3659 = vpack.c.b16 %v3626, %v3623
    %v3660 = vpack.c.b16 %v3630, %v3627
    %v3661 = vpack.c.b16 %v3631, %v3628
    %v3662 = vpack.c.b16 %v3632, %v3629
    %v3663 = vpack.c.b16 %v3636, %v3633
    %v3664 = vpack.c.b16 %v3637, %v3634
    %v3665 = vpack.c.b16 %v3638, %v3635
    %v3666 = vpack.c.b16 %v3642, %v3639
    %v3667 = vpack.c.b16 %v3643, %v3640
    %v3668 = vpack.c.b16 %v3644, %v3641
    %v3669 = vpack.c.b16 %v3648, %v3645
    %v3670 = vpack.c.b16 %v3649, %v3646
    %v3671 = vpack.c.b16 %v3650, %v3647
    %3693 = vmatprep.subr.bf16.mxu0 %v3652
    %3694 = vmatpush1.bf16.msra.mxu0 %v3651
    %3695 = vmatprep.subr.bf16.mxu0 %v3655
    %3696 = vmatpush1.bf16.msra.mxu0 %v3654
    %3697 = vmatprep.subr.bf16.mxu0 %v3658
    %3698 = vmatpush1.bf16.msra.mxu0 %v3657
    %3699 = vmatprep.subr.bf16.mxu0 %v3661
    %3700 = vmatpush1.bf16.msra.mxu0 %v3660
    %3701 = vmatprep.subr.bf16.mxu0 %v3664
    %3702 = vmatpush1.bf16.msra.mxu0 %v3663
    %3703 = vmatprep.subr.bf16.mxu0 %v3667
    %3704 = vmatpush1.bf16.msra.mxu0 %v3666
    %3705 = vmatprep.subr.bf16.mxu0 %v3670
    %3706 = vmatpush1.bf16.msra.mxu0 %v3669
    %3707 = vmatprep.subr.bf16.mxu0 0
    %3708 = vmatpush1.bf16.msra.mxu0 0
    %3709 = vmatprep.subr.bf16.mxu0 0
    %3710 = vmatpush1.bf16.msra.mxu0 0
    %3711 = vmatprep.subr.bf16.mxu0 0
    %3712 = vmatpush1.bf16.msra.mxu0 0
    %3713 = vmatprep.subr.bf16.mxu0 0
    %3714 = vmatpush1.bf16.msra.mxu0 0
    %3715 = vmatprep.subr.bf16.mxu0 0
    %3716 = vmatpush1.bf16.msra.mxu0 0
    %3717 = vmatprep.subr.bf16.mxu0 0
    %3718 = vmatpush1.bf16.msra.mxu0 0
    %3719 = vmatprep.subr.bf16.mxu0 0
    %3720 = vmatpush1.bf16.msra.mxu0 0
    %3721 = vmatprep.subr.bf16.mxu0 0
    %3722 = vmatpush1.bf16.msra.mxu0 0
    %3723 = vmatprep.subr.bf16.mxu0 0
    %3724 = vmatpush1.bf16.msra.mxu0 0
    %3725 = vmatprep.mubr.bf16.mxu0 0
    %3726 = vmatmul.mubr.bf16.gmra.mrb[0].mxu0 %v3232
    %v3727 = vpop.f32.mrb[0].mxu0
    %v3728 = vadd.f32 0.0, %v3727
    %v3729 = vpop.f32.mrb[0].mxu0
    %v3730 = vadd.f32 0.0, %v3729
    %v3731 = vpop.f32.mrb[0].mxu0
    %v3732 = vadd.f32 0.0, %v3731
    %v3733 = vpop.f32.mrb[0].mxu0
    %v3734 = vadd.f32 0.0, %v3733
    %3735 = vmatprep.mubr.bf16.mxu0 0
    %3736 = vmatmul.mubr.bf16.gmra.mrb[0].mxu0 %v3235
    %v3737 = vpop.f32.mrb[0].mxu0
    %v3738 = vadd.f32 0.0, %v3737
    %v3739 = vpop.f32.mrb[0].mxu0
    %v3740 = vadd.f32 0.0, %v3739
    %v3741 = vpop.f32.mrb[0].mxu0
    %v3742 = vpop.f32.mrb[0].mxu0
    %3743 = vdwg.mxu0
    %3744 = vmatprep.subr.bf16.mxu0 0
    %3745 = vmatpush1.bf16.msra.mxu0 %v3653
    %3746 = vmatprep.subr.bf16.mxu0 0
    %3747 = vmatpush1.bf16.msra.mxu0 %v3656
    %3748 = vmatprep.subr.bf16.mxu0 0
    %3749 = vmatpush1.bf16.msra.mxu0 %v3659
    %3750 = vmatprep.subr.bf16.mxu0 0
    %3751 = vmatpush1.bf16.msra.mxu0 %v3662
    %3752 = vmatprep.subr.bf16.mxu0 0
    %3753 = vmatpush1.bf16.msra.mxu0 %v3665
    %3754 = vmatprep.subr.bf16.mxu0 0
    %3755 = vmatpush1.bf16.msra.mxu0 %v3668
    %3756 = vmatprep.subr.bf16.mxu0 0
    %3757 = vmatpush1.bf16.msra.mxu0 %v3671
    %3758 = vmatprep.subr.bf16.mxu0 0
    %3759 = vmatpush1.bf16.msra.mxu0 0
    %3760 = vmatprep.subr.bf16.mxu0 0
    %3761 = vmatpush1.bf16.msra.mxu0 0
    %3762 = vmatprep.subr.bf16.mxu0 0
    %3763 = vmatpush1.bf16.msra.mxu0 0
    %3764 = vmatprep.subr.bf16.mxu0 0
    %3765 = vmatpush1.bf16.msra.mxu0 0
    %3766 = vmatprep.subr.bf16.mxu0 0
    %3767 = vmatpush1.bf16.msra.mxu0 0
    %3768 = vmatprep.subr.bf16.mxu0 0
    %3769 = vmatpush1.bf16.msra.mxu0 0
    %3770 = vmatprep.subr.bf16.mxu0 0
    %3771 = vmatpush1.bf16.msra.mxu0 0
    %3772 = vmatprep.subr.bf16.mxu0 0
    %3773 = vmatpush1.bf16.msra.mxu0 0
    %3774 = vmatprep.subr.bf16.mxu0 0
    %3775 = vmatpush1.bf16.msra.mxu0 0
    %3776 = vmatprep.mubr.bf16.mxu0 0
    %3777 = vmatmul.mubr.bf16.gmra.mrb[0].mxu0 %v3232
    %v3778 = vpop.f32.mrb[0].mxu0
    %v3779 = vadd.f32 0.0, %v3778
    %v3780 = vpop.f32.mrb[0].mxu0
    %v3781 = vpop.f32.mrb[0].mxu0
    %v3782 = vadd.f32 0.0, %v3781
    %v3783 = vpop.f32.mrb[0].mxu0
    %3784 = vmatprep.mubr.bf16.mxu0 0
    %3785 = vmatmul.mubr.bf16.gmra.mrb[0].mxu0 %v3235
    %v3786 = vpop.f32.mrb[0].mxu0
    %v3787 = vadd.f32 0.0, %v3786
    %v3788 = vpop.f32.mrb[0].mxu0
    %v3789 = vpop.f32.mrb[0].mxu0
    %v3790 = vpop.f32.mrb[0].mxu0
    %3791 = vdwg.mxu0
    %v3820 = vunpack.c.l.b16 %v3038
    %v3821 = vunpack.c.h.b16 %v3038
    %v3822 = vunpack.c.l.b16 %v3039
    %v3823 = vunpack.c.l.b16 %v3040
    %v3824 = vunpack.c.h.b16 %v3040
    %v3825 = vunpack.c.l.b16 %v3041
    %v3826 = vunpack.c.l.b16 %v3042
    %v3827 = vunpack.c.h.b16 %v3042
    %v3828 = vunpack.c.l.b16 %v3043
    %v3829 = vunpack.c.l.b16 %v3044
    %v3830 = vunpack.c.h.b16 %v3044
    %v3831 = vunpack.c.l.b16 %v3045
    %v3832 = vunpack.c.l.b16 %v3046
    %v3833 = vunpack.c.h.b16 %v3046
    %v3834 = vunpack.c.l.b16 %v3047
    %v3835 = vunpack.c.l.b16 %v3048
    %v3836 = vunpack.c.h.b16 %v3048
    %v3837 = vunpack.c.l.b16 %v3049
    %v3838 = vunpack.c.l.b16 %v3050
    %v3839 = vunpack.c.h.b16 %v3050
    %v3840 = vunpack.c.l.b16 %v3051
    %v3841 = vunpack.c.l.b16 %v3052
    %v3842 = vunpack.c.h.b16 %v3052
    %v3843 = vunpack.c.l.b16 %v3053
    %v3844 = vunpack.c.l.b16 %v3054
    %v3845 = vunpack.c.h.b16 %v3054
    %v3846 = vunpack.c.l.b16 %v3055
    %v3847 = vunpack.c.l.b16 %v3056
    %v3848 = vunpack.c.h.b16 %v3056
    %v3849 = vunpack.c.l.b16 %v3057
    %v3850 = vunpack.c.l.b16 %v3058
    %v3851 = vunpack.c.h.b16 %v3058
    %v3852 = vunpack.c.l.b16 %v3059
    %v3853 = vunpack.c.l.b16 %v3060
    %v3854 = vunpack.c.h.b16 %v3060
    %v3855 = vunpack.c.l.b16 %v3061
    %v3856 = vunpack.c.l.b16 %v3062
    %v3857 = vunpack.c.h.b16 %v3062
    %v3858 = vunpack.c.l.b16 %v3063
    %v3859 = vunpack.c.l.b16 %v3064
    %v3860 = vunpack.c.h.b16 %v3064
    %v3861 = vunpack.c.l.b16 %v3065
    %v3862 = vpack.c.b16 %v3823, %v3820
    %v3863 = vpack.c.b16 %v3824, %v3821
    %v3864 = vpack.c.b16 %v3825, %v3822
    %v3865 = vpack.c.b16 %v3829, %v3826
    %v3866 = vpack.c.b16 %v3830, %v3827
    %v3867 = vpack.c.b16 %v3831, %v3828
    %v3868 = vpack.c.b16 %v3835, %v3832
    %v3869 = vpack.c.b16 %v3836, %v3833
    %v3870 = vpack.c.b16 %v3837, %v3834
    %v3871 = vpack.c.b16 %v3841, %v3838
    %v3872 = vpack.c.b16 %v3842, %v3839
    %v3873 = vpack.c.b16 %v3843, %v3840
    %v3874 = vpack.c.b16 %v3847, %v3844
    %v3875 = vpack.c.b16 %v3848, %v3845
    %v3876 = vpack.c.b16 %v3849, %v3846
    %v3877 = vpack.c.b16 %v3853, %v3850
    %v3878 = vpack.c.b16 %v3854, %v3851
    %v3879 = vpack.c.b16 %v3855, %v3852
    %v3880 = vpack.c.b16 %v3859, %v3856
    %v3881 = vpack.c.b16 %v3860, %v3857
    %v3882 = vpack.c.b16 %v3861, %v3858
    %3904 = vmatprep.subr.bf16.mxu0 %v3863
    %3905 = vmatpush1.bf16.msra.mxu0 %v3862
    %3906 = vmatprep.subr.bf16.mxu0 %v3866
    %3907 = vmatpush1.bf16.msra.mxu0 %v3865
    %3908 = vmatprep.subr.bf16.mxu0 %v3869
    %3909 = vmatpush1.bf16.msra.mxu0 %v3868
    %3910 = vmatprep.subr.bf16.mxu0 %v3872
    %3911 = vmatpush1.bf16.msra.mxu0 %v3871
    %3912 = vmatprep.subr.bf16.mxu0 %v3875
    %3913 = vmatpush1.bf16.msra.mxu0 %v3874
    %3914 = vmatprep.subr.bf16.mxu0 %v3878
    %3915 = vmatpush1.bf16.msra.mxu0 %v3877
    %3916 = vmatprep.subr.bf16.mxu0 %v3881
    %3917 = vmatpush1.bf16.msra.mxu0 %v3880
    %3918 = vmatprep.subr.bf16.mxu0 0
    %3919 = vmatpush1.bf16.msra.mxu0 0
    %3920 = vmatprep.subr.bf16.mxu0 0
    %3921 = vmatpush1.bf16.msra.mxu0 0
    %3922 = vmatprep.subr.bf16.mxu0 0
    %3923 = vmatpush1.bf16.msra.mxu0 0
    %3924 = vmatprep.subr.bf16.mxu0 0
    %3925 = vmatpush1.bf16.msra.mxu0 0
    %3926 = vmatprep.subr.bf16.mxu0 0
    %3927 = vmatpush1.bf16.msra.mxu0 0
    %3928 = vmatprep.subr.bf16.mxu0 0
    %3929 = vmatpush1.bf16.msra.mxu0 0
    %3930 = vmatprep.subr.bf16.mxu0 0
    %3931 = vmatpush1.bf16.msra.mxu0 0
    %3932 = vmatprep.subr.bf16.mxu0 0
    %3933 = vmatpush1.bf16.msra.mxu0 0
    %3934 = vmatprep.subr.bf16.mxu0 0
    %3935 = vmatpush1.bf16.msra.mxu0 0
    %3936 = vmatprep.mubr.bf16.mxu0 0
    %3937 = vmatmul.mubr.bf16.gmra.mrb[0].mxu0 %v3449
    %v3938 = vpop.f32.mrb[0].mxu0
    %v3939 = vadd.f32 %v3728, %v3938
    %v3940 = vpop.f32.mrb[0].mxu0
    %v3941 = vadd.f32 %v3730, %v3940
    %v3942 = vpop.f32.mrb[0].mxu0
    %v3943 = vadd.f32 %v3732, %v3942
    %v3944 = vpop.f32.mrb[0].mxu0
    %v3945 = vadd.f32 %v3734, %v3944
    %3946 = vmatprep.mubr.bf16.mxu0 0
    %3947 = vmatmul.mubr.bf16.gmra.mrb[0].mxu0 %v3452
    %v3948 = vpop.f32.mrb[0].mxu0
    %v3949 = vadd.f32 %v3738, %v3948
    %v3950 = vpop.f32.mrb[0].mxu0
    %v3951 = vadd.f32 %v3740, %v3950
    %v3952 = vpop.f32.mrb[0].mxu0
    %v3953 = vpop.f32.mrb[0].mxu0
    %3954 = vdwg.mxu0
    %3955 = vmatprep.subr.bf16.mxu0 0
    %3956 = vmatpush1.bf16.msra.mxu0 %v3864
    %3957 = vmatprep.subr.bf16.mxu0 0
    %3958 = vmatpush1.bf16.msra.mxu0 %v3867
    %3959 = vmatprep.subr.bf16.mxu0 0
    %3960 = vmatpush1.bf16.msra.mxu0 %v3870
    %3961 = vmatprep.subr.bf16.mxu0 0
    %3962 = vmatpush1.bf16.msra.mxu0 %v3873
    %3963 = vmatprep.subr.bf16.mxu0 0
    %3964 = vmatpush1.bf16.msra.mxu0 %v3876
    %3965 = vmatprep.subr.bf16.mxu0 0
    %3966 = vmatpush1.bf16.msra.mxu0 %v3879
    %3967 = vmatprep.subr.bf16.mxu0 0
    %3968 = vmatpush1.bf16.msra.mxu0 %v3882
    %3969 = vmatprep.subr.bf16.mxu0 0
    %3970 = vmatpush1.bf16.msra.mxu0 0
    %3971 = vmatprep.subr.bf16.mxu0 0
    %3972 = vmatpush1.bf16.msra.mxu0 0
    %3973 = vmatprep.subr.bf16.mxu0 0
    %3974 = vmatpush1.bf16.msra.mxu0 0
    %3975 = vmatprep.subr.bf16.mxu0 0
    %3976 = vmatpush1.bf16.msra.mxu0 0
    %3977 = vmatprep.subr.bf16.mxu0 0
    %3978 = vmatpush1.bf16.msra.mxu0 0
    %3979 = vmatprep.subr.bf16.mxu0 0
    %3980 = vmatpush1.bf16.msra.mxu0 0
    %3981 = vmatprep.subr.bf16.mxu0 0
    %3982 = vmatpush1.bf16.msra.mxu0 0
    %3983 = vmatprep.subr.bf16.mxu0 0
    %3984 = vmatpush1.bf16.msra.mxu0 0
    %3985 = vmatprep.subr.bf16.mxu0 0
    %3986 = vmatpush1.bf16.msra.mxu0 0
    %3987 = vmatprep.mubr.bf16.mxu0 0
    %3988 = vmatmul.mubr.bf16.gmra.mrb[0].mxu0 %v3449
    %v3989 = vpop.f32.mrb[0].mxu0
    %v3990 = vadd.f32 %v3779, %v3989
    %v3991 = vpop.f32.mrb[0].mxu0
    %v3992 = vpop.f32.mrb[0].mxu0
    %v3993 = vadd.f32 %v3782, %v3992
    %v3994 = vpop.f32.mrb[0].mxu0
    %3995 = vmatprep.mubr.bf16.mxu0 0
    %3996 = vmatmul.mubr.bf16.gmra.mrb[0].mxu0 %v3452
    %v3997 = vpop.f32.mrb[0].mxu0
    %v3998 = vadd.f32 %v3787, %v3997
    %v3999 = vpop.f32.mrb[0].mxu0
    %v4000 = vpop.f32.mrb[0].mxu0
    %v4001 = vpop.f32.mrb[0].mxu0
    %4002 = vdwg.mxu0
    %v4003 = vld [vmem:[%s1069] sm:$0xff]
    %v4004 = vld [vmem:[%s1069 + $0x8] sm:$0xf]
    %v4005 = vld [vmem:[%s1069 + $0xc] sm:$0xff]
    %v4006 = vld [vmem:[%s1069 + $0x14] sm:$0xf]
    %v4007 = vld [vmem:[%s1069 + $0x18] sm:$0xff]
    %v4008 = vld [vmem:[%s1069 + $0x20] sm:$0xf]
    %v4009 = vld [vmem:[%s1069 + $0x24] sm:$0xff]
    %v4010 = vld [vmem:[%s1069 + $0x2c] sm:$0xf]
    %v4011 = vld [vmem:[%s1069 + $0x30] sm:$0xff]
    %v4012 = vld [vmem:[%s1069 + $0x38] sm:$0xf]
    %v4013 = vld [vmem:[%s1069 + $0x3c] sm:$0xff]
    %v4014 = vld [vmem:[%s1069 + $0x44] sm:$0xf]
    %v4015 = vld [vmem:[%s1069 + $0x48] sm:$0xff]
    %v4016 = vld [vmem:[%s1069 + $0x50] sm:$0xf]
    %v4017 = vld [vmem:[%s1069 + $0x54] sm:$0xff]
    %v4018 = vld [vmem:[%s1069 + $0x5c] sm:$0xf]
    %v4019 = vld [vmem:[%s1069 + $0x60] sm:$0xff]
    %v4020 = vld [vmem:[%s1069 + $0x68] sm:$0xf]
    %v4021 = vld [vmem:[%s1069 + $0x6c] sm:$0xff]
    %v4022 = vld [vmem:[%s1069 + $0x74] sm:$0xf]
    %v4023 = vld [vmem:[%s1069 + $0x78] sm:$0xff]
    %v4024 = vld [vmem:[%s1069 + $0x80] sm:$0xf]
    %v4025 = vld [vmem:[%s1069 + $0x84] sm:$0xff]
    %v4026 = vld [vmem:[%s1069 + $0x8c] sm:$0xf]
    %v4027 = vld [vmem:[%s1069 + $0x90] sm:$0xff]
    %v4028 = vld [vmem:[%s1069 + $0x98] sm:$0xf]
    %v4029 = vld [vmem:[%s1069 + $0x9c] sm:$0xff]
    %v4030 = vld [vmem:[%s1069 + $0xa4] sm:$0xf]
    %v4031 = vrot.slane %v3102, 1
    %v4032 = vrot.slane %v3103, 1
    %v4033 = vsel %vm1098, %v4031, %v4032
    %v4062 = vunpack.c.l.b16 %v4003
    %v4063 = vunpack.c.h.b16 %v4003
    %v4064 = vunpack.c.l.b16 %v4004
    %v4065 = vunpack.c.l.b16 %v4005
    %v4066 = vunpack.c.h.b16 %v4005
    %v4067 = vunpack.c.l.b16 %v4006
    %v4068 = vunpack.c.l.b16 %v4007
    %v4069 = vunpack.c.h.b16 %v4007
    %v4070 = vunpack.c.l.b16 %v4008
    %v4071 = vunpack.c.l.b16 %v4009
    %v4072 = vunpack.c.h.b16 %v4009
    %v4073 = vunpack.c.l.b16 %v4010
    %v4074 = vunpack.c.l.b16 %v4011
    %v4075 = vunpack.c.h.b16 %v4011
    %v4076 = vunpack.c.l.b16 %v4012
    %v4077 = vunpack.c.l.b16 %v4013
    %v4078 = vunpack.c.h.b16 %v4013
    %v4079 = vunpack.c.l.b16 %v4014
    %v4080 = vunpack.c.l.b16 %v4015
    %v4081 = vunpack.c.h.b16 %v4015
    %v4082 = vunpack.c.l.b16 %v4016
    %v4083 = vunpack.c.l.b16 %v4017
    %v4084 = vunpack.c.h.b16 %v4017
    %v4085 = vunpack.c.l.b16 %v4018
    %v4086 = vunpack.c.l.b16 %v4019
    %v4087 = vunpack.c.h.b16 %v4019
    %v4088 = vunpack.c.l.b16 %v4020
    %v4089 = vunpack.c.l.b16 %v4021
    %v4090 = vunpack.c.h.b16 %v4021
    %v4091 = vunpack.c.l.b16 %v4022
    %v4092 = vunpack.c.l.b16 %v4023
    %v4093 = vunpack.c.h.b16 %v4023
    %v4094 = vunpack.c.l.b16 %v4024
    %v4095 = vunpack.c.l.b16 %v4025
    %v4096 = vunpack.c.h.b16 %v4025
    %v4097 = vunpack.c.l.b16 %v4026
    %v4098 = vunpack.c.l.b16 %v4027
    %v4099 = vunpack.c.h.b16 %v4027
    %v4100 = vunpack.c.l.b16 %v4028
    %v4101 = vunpack.c.l.b16 %v4029
    %v4102 = vunpack.c.h.b16 %v4029
    %v4103 = vunpack.c.l.b16 %v4030
    %v4104 = vpack.c.b16 %v4065, %v4062
    %v4105 = vpack.c.b16 %v4066, %v4063
    %v4106 = vpack.c.b16 %v4067, %v4064
    %v4107 = vpack.c.b16 %v4071, %v4068
    %v4108 = vpack.c.b16 %v4072, %v4069
    %v4109 = vpack.c.b16 %v4073, %v4070
    %v4110 = vpack.c.b16 %v4077, %v4074
    %v4111 = vpack.c.b16 %v4078, %v4075
    %v4112 = vpack.c.b16 %v4079, %v4076
    %v4113 = vpack.c.b16 %v4083, %v4080
    %v4114 = vpack.c.b16 %v4084, %v4081
    %v4115 = vpack.c.b16 %v4085, %v4082
    %v4116 = vpack.c.b16 %v4089, %v4086
    %v4117 = vpack.c.b16 %v4090, %v4087
    %v4118 = vpack.c.b16 %v4091, %v4088
    %v4119 = vpack.c.b16 %v4095, %v4092
    %v4120 = vpack.c.b16 %v4096, %v4093
    %v4121 = vpack.c.b16 %v4097, %v4094
    %v4122 = vpack.c.b16 %v4101, %v4098
    %v4123 = vpack.c.b16 %v4102, %v4099
    %v4124 = vpack.c.b16 %v4103, %v4100
    %v4147 = vsel %vm295, %v4033, 0
    %v4150 = vsel %vm295, %v4032, 0
    %4152 = vmatprep.subr.bf16.mxu0 %v4105
    %4153 = vmatpush1.bf16.msra.mxu0 %v4104
    %4154 = vmatprep.subr.bf16.mxu0 %v4108
    %4155 = vmatpush1.bf16.msra.mxu0 %v4107
    %4156 = vmatprep.subr.bf16.mxu0 %v4111
    %4157 = vmatpush1.bf16.msra.mxu0 %v4110
    %4158 = vmatprep.subr.bf16.mxu0 %v4114
    %4159 = vmatpush1.bf16.msra.mxu0 %v4113
    %4160 = vmatprep.subr.bf16.mxu0 %v4117
    %4161 = vmatpush1.bf16.msra.mxu0 %v4116
    %4162 = vmatprep.subr.bf16.mxu0 %v4120
    %4163 = vmatpush1.bf16.msra.mxu0 %v4119
    %4164 = vmatprep.subr.bf16.mxu0 %v4123
    %4165 = vmatpush1.bf16.msra.mxu0 %v4122
    %4166 = vmatprep.subr.bf16.mxu0 0
    %4167 = vmatpush1.bf16.msra.mxu0 0
    %4168 = vmatprep.subr.bf16.mxu0 0
    %4169 = vmatpush1.bf16.msra.mxu0 0
    %4170 = vmatprep.subr.bf16.mxu0 0
    %4171 = vmatpush1.bf16.msra.mxu0 0
    %4172 = vmatprep.subr.bf16.mxu0 0
    %4173 = vmatpush1.bf16.msra.mxu0 0
    %4174 = vmatprep.subr.bf16.mxu0 0
    %4175 = vmatpush1.bf16.msra.mxu0 0
    %4176 = vmatprep.subr.bf16.mxu0 0
    %4177 = vmatpush1.bf16.msra.mxu0 0
    %4178 = vmatprep.subr.bf16.mxu0 0
    %4179 = vmatpush1.bf16.msra.mxu0 0
    %4180 = vmatprep.subr.bf16.mxu0 0
    %4181 = vmatpush1.bf16.msra.mxu0 0
    %4182 = vmatprep.subr.bf16.mxu0 0
    %4183 = vmatpush1.bf16.msra.mxu0 0
    %4184 = vmatprep.mubr.bf16.mxu0 0
    %4185 = vmatmul.mubr.bf16.gmra.mrb[0].mxu0 %v4147
    %v4186 = vpop.f32.mrb[0].mxu0
    %v4187 = vadd.f32 0.0, %v4186
    %v4188 = vpop.f32.mrb[0].mxu0
    %v4189 = vadd.f32 0.0, %v4188
    %v4190 = vpop.f32.mrb[0].mxu0
    %v4191 = vadd.f32 0.0, %v4190
    %v4192 = vpop.f32.mrb[0].mxu0
    %v4193 = vadd.f32 0.0, %v4192
    %4194 = vmatprep.mubr.bf16.mxu0 0
    %4195 = vmatmul.mubr.bf16.gmra.mrb[0].mxu0 %v4150
    %v4196 = vpop.f32.mrb[0].mxu0
    %v4197 = vadd.f32 0.0, %v4196
    %v4198 = vpop.f32.mrb[0].mxu0
    %v4199 = vadd.f32 0.0, %v4198
    %v4200 = vpop.f32.mrb[0].mxu0
    %v4201 = vpop.f32.mrb[0].mxu0
    %4202 = vdwg.mxu0
    %4203 = vmatprep.subr.bf16.mxu0 0
    %4204 = vmatpush1.bf16.msra.mxu0 %v4106
    %4205 = vmatprep.subr.bf16.mxu0 0
    %4206 = vmatpush1.bf16.msra.mxu0 %v4109
    %4207 = vmatprep.subr.bf16.mxu0 0
    %4208 = vmatpush1.bf16.msra.mxu0 %v4112
    %4209 = vmatprep.subr.bf16.mxu0 0
    %4210 = vmatpush1.bf16.msra.mxu0 %v4115
    %4211 = vmatprep.subr.bf16.mxu0 0
    %4212 = vmatpush1.bf16.msra.mxu0 %v4118
    %4213 = vmatprep.subr.bf16.mxu0 0
    %4214 = vmatpush1.bf16.msra.mxu0 %v4121
    %4215 = vmatprep.subr.bf16.mxu0 0
    %4216 = vmatpush1.bf16.msra.mxu0 %v4124
    %4217 = vmatprep.subr.bf16.mxu0 0
    %4218 = vmatpush1.bf16.msra.mxu0 0
    %4219 = vmatprep.subr.bf16.mxu0 0
    %4220 = vmatpush1.bf16.msra.mxu0 0
    %4221 = vmatprep.subr.bf16.mxu0 0
    %4222 = vmatpush1.bf16.msra.mxu0 0
    %4223 = vmatprep.subr.bf16.mxu0 0
    %4224 = vmatpush1.bf16.msra.mxu0 0
    %4225 = vmatprep.subr.bf16.mxu0 0
    %4226 = vmatpush1.bf16.msra.mxu0 0
    %4227 = vmatprep.subr.bf16.mxu0 0
    %4228 = vmatpush1.bf16.msra.mxu0 0
    %4229 = vmatprep.subr.bf16.mxu0 0
    %4230 = vmatpush1.bf16.msra.mxu0 0
    %4231 = vmatprep.subr.bf16.mxu0 0
    %4232 = vmatpush1.bf16.msra.mxu0 0
    %4233 = vmatprep.subr.bf16.mxu0 0
    %4234 = vmatpush1.bf16.msra.mxu0 0
    %4235 = vmatprep.mubr.bf16.mxu0 0
    %4236 = vmatmul.mubr.bf16.gmra.mrb[0].mxu0 %v4147
    %v4237 = vpop.f32.mrb[0].mxu0
    %v4238 = vadd.f32 0.0, %v4237
    %v4239 = vpop.f32.mrb[0].mxu0
    %v4240 = vpop.f32.mrb[0].mxu0
    %v4241 = vadd.f32 0.0, %v4240
    %v4242 = vpop.f32.mrb[0].mxu0
    %4243 = vmatprep.mubr.bf16.mxu0 0
    %4244 = vmatmul.mubr.bf16.gmra.mrb[0].mxu0 %v4150
    %v4245 = vpop.f32.mrb[0].mxu0
    %v4246 = vadd.f32 0.0, %v4245
    %v4247 = vpop.f32.mrb[0].mxu0
    %v4248 = vpop.f32.mrb[0].mxu0
    %v4249 = vpop.f32.mrb[0].mxu0
    %4250 = vdwg.mxu0
    %v4251 = vadd.f32 %v3489, %v4187
    %v4252 = vadd.f32 %v3491, %v4189
    %v4253 = vadd.f32 %v3540, %v4238
    %v4254 = vadd.f32 %v3493, %v4191
    %v4255 = vadd.f32 %v3495, %v4193
    %v4256 = vadd.f32 %v3543, %v4241
    %v4257 = vadd.f32 %v3499, %v4197
    %v4258 = vadd.f32 %v3501, %v4199
    %v4259 = vadd.f32 %v3548, %v4246
    %v4260 = vld [vmem:[%s1328] sm:$0xff]
    %v4261 = vld [vmem:[%s1328 + $0x8] sm:$0xf]
    %v4262 = vld [vmem:[%s1328 + $0xc] sm:$0xff]
    %v4263 = vld [vmem:[%s1328 + $0x14] sm:$0xf]
    %v4264 = vld [vmem:[%s1328 + $0x18] sm:$0xff]
    %v4265 = vld [vmem:[%s1328 + $0x20] sm:$0xf]
    %v4266 = vld [vmem:[%s1328 + $0x24] sm:$0xff]
    %v4267 = vld [vmem:[%s1328 + $0x2c] sm:$0xf]
    %v4268 = vld [vmem:[%s1328 + $0x30] sm:$0xff]
    %v4269 = vld [vmem:[%s1328 + $0x38] sm:$0xf]
    %v4270 = vld [vmem:[%s1328 + $0x3c] sm:$0xff]
    %v4271 = vld [vmem:[%s1328 + $0x44] sm:$0xf]
    %v4272 = vld [vmem:[%s1328 + $0x48] sm:$0xff]
    %v4273 = vld [vmem:[%s1328 + $0x50] sm:$0xf]
    %v4274 = vld [vmem:[%s1328 + $0x54] sm:$0xff]
    %v4275 = vld [vmem:[%s1328 + $0x5c] sm:$0xf]
    %v4276 = vld [vmem:[%s1328 + $0x60] sm:$0xff]
    %v4277 = vld [vmem:[%s1328 + $0x68] sm:$0xf]
    %v4278 = vld [vmem:[%s1328 + $0x6c] sm:$0xff]
    %v4279 = vld [vmem:[%s1328 + $0x74] sm:$0xf]
    %v4280 = vld [vmem:[%s1328 + $0x78] sm:$0xff]
    %v4281 = vld [vmem:[%s1328 + $0x80] sm:$0xf]
    %v4282 = vld [vmem:[%s1328 + $0x84] sm:$0xff]
    %v4283 = vld [vmem:[%s1328 + $0x8c] sm:$0xf]
    %v4284 = vld [vmem:[%s1328 + $0x90] sm:$0xff]
    %v4285 = vld [vmem:[%s1328 + $0x98] sm:$0xf]
    %v4286 = vld [vmem:[%s1328 + $0x9c] sm:$0xff]
    %v4287 = vld [vmem:[%s1328 + $0xa4] sm:$0xf]
    %v4316 = vunpack.c.l.b16 %v4260
    %v4317 = vunpack.c.h.b16 %v4260
    %v4318 = vunpack.c.l.b16 %v4261
    %v4319 = vunpack.c.l.b16 %v4262
    %v4320 = vunpack.c.h.b16 %v4262
    %v4321 = vunpack.c.l.b16 %v4263
    %v4322 = vunpack.c.l.b16 %v4264
    %v4323 = vunpack.c.h.b16 %v4264
    %v4324 = vunpack.c.l.b16 %v4265
    %v4325 = vunpack.c.l.b16 %v4266
    %v4326 = vunpack.c.h.b16 %v4266
    %v4327 = vunpack.c.l.b16 %v4267
    %v4328 = vunpack.c.l.b16 %v4268
    %v4329 = vunpack.c.h.b16 %v4268
    %v4330 = vunpack.c.l.b16 %v4269
    %v4331 = vunpack.c.l.b16 %v4270
    %v4332 = vunpack.c.h.b16 %v4270
    %v4333 = vunpack.c.l.b16 %v4271
    %v4334 = vunpack.c.l.b16 %v4272
    %v4335 = vunpack.c.h.b16 %v4272
    %v4336 = vunpack.c.l.b16 %v4273
    %v4337 = vunpack.c.l.b16 %v4274
    %v4338 = vunpack.c.h.b16 %v4274
    %v4339 = vunpack.c.l.b16 %v4275
    %v4340 = vunpack.c.l.b16 %v4276
    %v4341 = vunpack.c.h.b16 %v4276
    %v4342 = vunpack.c.l.b16 %v4277
    %v4343 = vunpack.c.l.b16 %v4278
    %v4344 = vunpack.c.h.b16 %v4278
    %v4345 = vunpack.c.l.b16 %v4279
    %v4346 = vunpack.c.l.b16 %v4280
    %v4347 = vunpack.c.h.b16 %v4280
    %v4348 = vunpack.c.l.b16 %v4281
    %v4349 = vunpack.c.l.b16 %v4282
    %v4350 = vunpack.c.h.b16 %v4282
    %v4351 = vunpack.c.l.b16 %v4283
    %v4352 = vunpack.c.l.b16 %v4284
    %v4353 = vunpack.c.h.b16 %v4284
    %v4354 = vunpack.c.l.b16 %v4285
    %v4355 = vunpack.c.l.b16 %v4286
    %v4356 = vunpack.c.h.b16 %v4286
    %v4357 = vunpack.c.l.b16 %v4287
    %v4358 = vpack.c.b16 %v4319, %v4316
    %v4359 = vpack.c.b16 %v4320, %v4317
    %v4360 = vpack.c.b16 %v4321, %v4318
    %v4361 = vpack.c.b16 %v4325, %v4322
    %v4362 = vpack.c.b16 %v4326, %v4323
    %v4363 = vpack.c.b16 %v4327, %v4324
    %v4364 = vpack.c.b16 %v4331, %v4328
    %v4365 = vpack.c.b16 %v4332, %v4329
    %v4366 = vpack.c.b16 %v4333, %v4330
    %v4367 = vpack.c.b16 %v4337, %v4334
    %v4368 = vpack.c.b16 %v4338, %v4335
    %v4369 = vpack.c.b16 %v4339, %v4336
    %v4370 = vpack.c.b16 %v4343, %v4340
    %v4371 = vpack.c.b16 %v4344, %v4341
    %v4372 = vpack.c.b16 %v4345, %v4342
    %v4373 = vpack.c.b16 %v4349, %v4346
    %v4374 = vpack.c.b16 %v4350, %v4347
    %v4375 = vpack.c.b16 %v4351, %v4348
    %v4376 = vpack.c.b16 %v4355, %v4352
    %v4377 = vpack.c.b16 %v4356, %v4353
    %v4378 = vpack.c.b16 %v4357, %v4354
    %4400 = vmatprep.subr.bf16.mxu0 %v4359
    %4401 = vmatpush1.bf16.msra.mxu0 %v4358
    %4402 = vmatprep.subr.bf16.mxu0 %v4362
    %4403 = vmatpush1.bf16.msra.mxu0 %v4361
    %4404 = vmatprep.subr.bf16.mxu0 %v4365
    %4405 = vmatpush1.bf16.msra.mxu0 %v4364
    %4406 = vmatprep.subr.bf16.mxu0 %v4368
    %4407 = vmatpush1.bf16.msra.mxu0 %v4367
    %4408 = vmatprep.subr.bf16.mxu0 %v4371
    %4409 = vmatpush1.bf16.msra.mxu0 %v4370
    %4410 = vmatprep.subr.bf16.mxu0 %v4374
    %4411 = vmatpush1.bf16.msra.mxu0 %v4373
    %4412 = vmatprep.subr.bf16.mxu0 %v4377
    %4413 = vmatpush1.bf16.msra.mxu0 %v4376
    %4414 = vmatprep.subr.bf16.mxu0 0
    %4415 = vmatpush1.bf16.msra.mxu0 0
    %4416 = vmatprep.subr.bf16.mxu0 0
    %4417 = vmatpush1.bf16.msra.mxu0 0
    %4418 = vmatprep.subr.bf16.mxu0 0
    %4419 = vmatpush1.bf16.msra.mxu0 0
    %4420 = vmatprep.subr.bf16.mxu0 0
    %4421 = vmatpush1.bf16.msra.mxu0 0
    %4422 = vmatprep.subr.bf16.mxu0 0
    %4423 = vmatpush1.bf16.msra.mxu0 0
    %4424 = vmatprep.subr.bf16.mxu0 0
    %4425 = vmatpush1.bf16.msra.mxu0 0
    %4426 = vmatprep.subr.bf16.mxu0 0
    %4427 = vmatpush1.bf16.msra.mxu0 0
    %4428 = vmatprep.subr.bf16.mxu0 0
    %4429 = vmatpush1.bf16.msra.mxu0 0
    %4430 = vmatprep.subr.bf16.mxu0 0
    %4431 = vmatpush1.bf16.msra.mxu0 0
    %4432 = vmatprep.mubr.bf16.mxu0 0
    %4433 = vmatmul.mubr.bf16.gmra.mrb[0].mxu0 %v4147
    %v4434 = vpop.f32.mrb[0].mxu0
    %v4435 = vadd.f32 0.0, %v4434
    %v4436 = vpop.f32.mrb[0].mxu0
    %v4437 = vadd.f32 0.0, %v4436
    %v4438 = vpop.f32.mrb[0].mxu0
    %v4439 = vadd.f32 0.0, %v4438
    %v4440 = vpop.f32.mrb[0].mxu0
    %v4441 = vadd.f32 0.0, %v4440
    %4442 = vmatprep.mubr.bf16.mxu0 0
    %4443 = vmatmul.mubr.bf16.gmra.mrb[0].mxu0 %v4150
    %v4444 = vpop.f32.mrb[0].mxu0
    %v4445 = vadd.f32 0.0, %v4444
    %v4446 = vpop.f32.mrb[0].mxu0
    %v4447 = vadd.f32 0.0, %v4446
    %v4448 = vpop.f32.mrb[0].mxu0
    %v4449 = vpop.f32.mrb[0].mxu0
    %4450 = vdwg.mxu0
    %4451 = vmatprep.subr.bf16.mxu0 0
    %4452 = vmatpush1.bf16.msra.mxu0 %v4360
    %4453 = vmatprep.subr.bf16.mxu0 0
    %4454 = vmatpush1.bf16.msra.mxu0 %v4363
    %4455 = vmatprep.subr.bf16.mxu0 0
    %4456 = vmatpush1.bf16.msra.mxu0 %v4366
    %4457 = vmatprep.subr.bf16.mxu0 0
    %4458 = vmatpush1.bf16.msra.mxu0 %v4369
    %4459 = vmatprep.subr.bf16.mxu0 0
    %4460 = vmatpush1.bf16.msra.mxu0 %v4372
    %4461 = vmatprep.subr.bf16.mxu0 0
    %4462 = vmatpush1.bf16.msra.mxu0 %v4375
    %4463 = vmatprep.subr.bf16.mxu0 0
    %4464 = vmatpush1.bf16.msra.mxu0 %v4378
    %4465 = vmatprep.subr.bf16.mxu0 0
    %4466 = vmatpush1.bf16.msra.mxu0 0
    %4467 = vmatprep.subr.bf16.mxu0 0
    %4468 = vmatpush1.bf16.msra.mxu0 0
    %4469 = vmatprep.subr.bf16.mxu0 0
    %4470 = vmatpush1.bf16.msra.mxu0 0
    %4471 = vmatprep.subr.bf16.mxu0 0
    %4472 = vmatpush1.bf16.msra.mxu0 0
    %4473 = vmatprep.subr.bf16.mxu0 0
    %4474 = vmatpush1.bf16.msra.mxu0 0
    %4475 = vmatprep.subr.bf16.mxu0 0
    %4476 = vmatpush1.bf16.msra.mxu0 0
    %4477 = vmatprep.subr.bf16.mxu0 0
    %4478 = vmatpush1.bf16.msra.mxu0 0
    %4479 = vmatprep.subr.bf16.mxu0 0
    %4480 = vmatpush1.bf16.msra.mxu0 0
    %4481 = vmatprep.subr.bf16.mxu0 0
    %4482 = vmatpush1.bf16.msra.mxu0 0
    %4483 = vmatprep.mubr.bf16.mxu0 0
    %4484 = vmatmul.mubr.bf16.gmra.mrb[0].mxu0 %v4147
    %v4485 = vpop.f32.mrb[0].mxu0
    %v4486 = vadd.f32 0.0, %v4485
    %v4487 = vpop.f32.mrb[0].mxu0
    %v4488 = vpop.f32.mrb[0].mxu0
    %v4489 = vadd.f32 0.0, %v4488
    %v4490 = vpop.f32.mrb[0].mxu0
    %4491 = vmatprep.mubr.bf16.mxu0 0
    %4492 = vmatmul.mubr.bf16.gmra.mrb[0].mxu0 %v4150
    %v4493 = vpop.f32.mrb[0].mxu0
    %v4494 = vadd.f32 0.0, %v4493
    %v4495 = vpop.f32.mrb[0].mxu0
    %v4496 = vpop.f32.mrb[0].mxu0
    %v4497 = vpop.f32.mrb[0].mxu0
    %4498 = vdwg.mxu0
    %v4499 = vadd.f32 %v3939, %v4435
    %v4500 = vadd.f32 %v3941, %v4437
    %v4501 = vadd.f32 %v3990, %v4486
    %v4502 = vadd.f32 %v3943, %v4439
    %v4503 = vadd.f32 %v3945, %v4441
    %v4504 = vadd.f32 %v3993, %v4489
    %v4505 = vadd.f32 %v3949, %v4445
    %v4506 = vadd.f32 %v3951, %v4447
    %v4507 = vadd.f32 %v3998, %v4494
    %v4508 = vld [vmem:[%s1577] sm:$0xff]
    %v4509 = vld [vmem:[%s1577 + $0x8] sm:$0xf]
    %v4510 = vld [vmem:[%s1577 + $0xc] sm:$0xff]
    %v4511 = vld [vmem:[%s1577 + $0x14] sm:$0xf]
    %v4512 = vld [vmem:[%s1577 + $0x18] sm:$0xff]
    %v4513 = vld [vmem:[%s1577 + $0x20] sm:$0xf]
    %v4514 = vld [vmem:[%s1577 + $0x24] sm:$0xff]
    %v4515 = vld [vmem:[%s1577 + $0x2c] sm:$0xf]
    %v4516 = vld [vmem:[%s1577 + $0x30] sm:$0xff]
    %v4517 = vld [vmem:[%s1577 + $0x38] sm:$0xf]
    %v4518 = vld [vmem:[%s1577 + $0x3c] sm:$0xff]
    %v4519 = vld [vmem:[%s1577 + $0x44] sm:$0xf]
    %v4520 = vld [vmem:[%s1577 + $0x48] sm:$0xff]
    %v4521 = vld [vmem:[%s1577 + $0x50] sm:$0xf]
    %v4522 = vld [vmem:[%s1577 + $0x54] sm:$0xff]
    %v4523 = vld [vmem:[%s1577 + $0x5c] sm:$0xf]
    %v4524 = vld [vmem:[%s1577 + $0x60] sm:$0xff]
    %v4525 = vld [vmem:[%s1577 + $0x68] sm:$0xf]
    %v4526 = vld [vmem:[%s1577 + $0x6c] sm:$0xff]
    %v4527 = vld [vmem:[%s1577 + $0x74] sm:$0xf]
    %v4528 = vld [vmem:[%s1577 + $0x78] sm:$0xff]
    %v4529 = vld [vmem:[%s1577 + $0x80] sm:$0xf]
    %v4530 = vld [vmem:[%s1577 + $0x84] sm:$0xff]
    %v4531 = vld [vmem:[%s1577 + $0x8c] sm:$0xf]
    %v4532 = vld [vmem:[%s1577 + $0x90] sm:$0xff]
    %v4533 = vld [vmem:[%s1577 + $0x98] sm:$0xf]
    %v4534 = vld [vmem:[%s1577 + $0x9c] sm:$0xff]
    %v4535 = vld [vmem:[%s1577 + $0xa4] sm:$0xf]
    %v4536 = vrot.slane %v3105, 1
    %v4537 = vrot.slane %v3107, 2
    %v4538 = vor.u32 %v4536, %v4537
    %v4539 = vrot.slane %v3116, 1
    %v4540 = vrot.slane %v3112, 2
    %v4541 = vor.u32 %v4539, %v4540
    %v4542 = vsel %vm1606, %v4538, %v4541
    %v4571 = vunpack.c.l.b16 %v4508
    %v4572 = vunpack.c.h.b16 %v4508
    %v4573 = vunpack.c.l.b16 %v4509
    %v4574 = vunpack.c.l.b16 %v4510
    %v4575 = vunpack.c.h.b16 %v4510
    %v4576 = vunpack.c.l.b16 %v4511
    %v4577 = vunpack.c.l.b16 %v4512
    %v4578 = vunpack.c.h.b16 %v4512
    %v4579 = vunpack.c.l.b16 %v4513
    %v4580 = vunpack.c.l.b16 %v4514
    %v4581 = vunpack.c.h.b16 %v4514
    %v4582 = vunpack.c.l.b16 %v4515
    %v4583 = vunpack.c.l.b16 %v4516
    %v4584 = vunpack.c.h.b16 %v4516
    %v4585 = vunpack.c.l.b16 %v4517
    %v4586 = vunpack.c.l.b16 %v4518
    %v4587 = vunpack.c.h.b16 %v4518
    %v4588 = vunpack.c.l.b16 %v4519
    %v4589 = vunpack.c.l.b16 %v4520
    %v4590 = vunpack.c.h.b16 %v4520
    %v4591 = vunpack.c.l.b16 %v4521
    %v4592 = vunpack.c.l.b16 %v4522
    %v4593 = vunpack.c.h.b16 %v4522
    %v4594 = vunpack.c.l.b16 %v4523
    %v4595 = vunpack.c.l.b16 %v4524
    %v4596 = vunpack.c.h.b16 %v4524
    %v4597 = vunpack.c.l.b16 %v4525
    %v4598 = vunpack.c.l.b16 %v4526
    %v4599 = vunpack.c.h.b16 %v4526
    %v4600 = vunpack.c.l.b16 %v4527
    %v4601 = vunpack.c.l.b16 %v4528
    %v4602 = vunpack.c.h.b16 %v4528
    %v4603 = vunpack.c.l.b16 %v4529
    %v4604 = vunpack.c.l.b16 %v4530
    %v4605 = vunpack.c.h.b16 %v4530
    %v4606 = vunpack.c.l.b16 %v4531
    %v4607 = vunpack.c.l.b16 %v4532
    %v4608 = vunpack.c.h.b16 %v4532
    %v4609 = vunpack.c.l.b16 %v4533
    %v4610 = vunpack.c.l.b16 %v4534
    %v4611 = vunpack.c.h.b16 %v4534
    %v4612 = vunpack.c.l.b16 %v4535
    %v4613 = vpack.c.b16 %v4574, %v4571
    %v4614 = vpack.c.b16 %v4575, %v4572
    %v4615 = vpack.c.b16 %v4576, %v4573
    %v4616 = vpack.c.b16 %v4580, %v4577
    %v4617 = vpack.c.b16 %v4581, %v4578
    %v4618 = vpack.c.b16 %v4582, %v4579
    %v4619 = vpack.c.b16 %v4586, %v4583
    %v4620 = vpack.c.b16 %v4587, %v4584
    %v4621 = vpack.c.b16 %v4588, %v4585
    %v4622 = vpack.c.b16 %v4592, %v4589
    %v4623 = vpack.c.b16 %v4593, %v4590
    %v4624 = vpack.c.b16 %v4594, %v4591
    %v4625 = vpack.c.b16 %v4598, %v4595
    %v4626 = vpack.c.b16 %v4599, %v4596
    %v4627 = vpack.c.b16 %v4600, %v4597
    %v4628 = vpack.c.b16 %v4604, %v4601
    %v4629 = vpack.c.b16 %v4605, %v4602
    %v4630 = vpack.c.b16 %v4606, %v4603
    %v4631 = vpack.c.b16 %v4610, %v4607
    %v4632 = vpack.c.b16 %v4611, %v4608
    %v4633 = vpack.c.b16 %v4612, %v4609
    %v4656 = vsel %vm295, %v4542, 0
    %v4659 = vsel %vm295, %v4541, 0
    %4661 = vmatprep.subr.bf16.mxu0 %v4614
    %4662 = vmatpush1.bf16.msra.mxu0 %v4613
    %4663 = vmatprep.subr.bf16.mxu0 %v4617
    %4664 = vmatpush1.bf16.msra.mxu0 %v4616
    %4665 = vmatprep.subr.bf16.mxu0 %v4620
    %4666 = vmatpush1.bf16.msra.mxu0 %v4619
    %4667 = vmatprep.subr.bf16.mxu0 %v4623
    %4668 = vmatpush1.bf16.msra.mxu0 %v4622
    %4669 = vmatprep.subr.bf16.mxu0 %v4626
    %4670 = vmatpush1.bf16.msra.mxu0 %v4625
    %4671 = vmatprep.subr.bf16.mxu0 %v4629
    %4672 = vmatpush1.bf16.msra.mxu0 %v4628
    %4673 = vmatprep.subr.bf16.mxu0 %v4632
    %4674 = vmatpush1.bf16.msra.mxu0 %v4631
    %4675 = vmatprep.subr.bf16.mxu0 0
    %4676 = vmatpush1.bf16.msra.mxu0 0
    %4677 = vmatprep.subr.bf16.mxu0 0
    %4678 = vmatpush1.bf16.msra.mxu0 0
    %4679 = vmatprep.subr.bf16.mxu0 0
    %4680 = vmatpush1.bf16.msra.mxu0 0
    %4681 = vmatprep.subr.bf16.mxu0 0
    %4682 = vmatpush1.bf16.msra.mxu0 0
    %4683 = vmatprep.subr.bf16.mxu0 0
    %4684 = vmatpush1.bf16.msra.mxu0 0
    %4685 = vmatprep.subr.bf16.mxu0 0
    %4686 = vmatpush1.bf16.msra.mxu0 0
    %4687 = vmatprep.subr.bf16.mxu0 0
    %4688 = vmatpush1.bf16.msra.mxu0 0
    %4689 = vmatprep.subr.bf16.mxu0 0
    %4690 = vmatpush1.bf16.msra.mxu0 0
    %4691 = vmatprep.subr.bf16.mxu0 0
    %4692 = vmatpush1.bf16.msra.mxu0 0
    %4693 = vmatprep.mubr.bf16.mxu0 0
    %4694 = vmatmul.mubr.bf16.gmra.mrb[0].mxu0 %v4656
    %v4695 = vpop.f32.mrb[0].mxu0
    %v4696 = vadd.f32 0.0, %v4695
    %v4697 = vpop.f32.mrb[0].mxu0
    %v4698 = vadd.f32 0.0, %v4697
    %v4699 = vpop.f32.mrb[0].mxu0
    %v4700 = vadd.f32 0.0, %v4699
    %v4701 = vpop.f32.mrb[0].mxu0
    %v4702 = vadd.f32 0.0, %v4701
    %4703 = vmatprep.mubr.bf16.mxu0 0
    %4704 = vmatmul.mubr.bf16.gmra.mrb[0].mxu0 %v4659
    %v4705 = vpop.f32.mrb[0].mxu0
    %v4706 = vadd.f32 0.0, %v4705
    %v4707 = vpop.f32.mrb[0].mxu0
    %v4708 = vadd.f32 0.0, %v4707
    %v4709 = vpop.f32.mrb[0].mxu0
    %v4710 = vpop.f32.mrb[0].mxu0
    %4711 = vdwg.mxu0
    %4712 = vmatprep.subr.bf16.mxu0 0
    %4713 = vmatpush1.bf16.msra.mxu0 %v4615
    %4714 = vmatprep.subr.bf16.mxu0 0
    %4715 = vmatpush1.bf16.msra.mxu0 %v4618
    %4716 = vmatprep.subr.bf16.mxu0 0
    %4717 = vmatpush1.bf16.msra.mxu0 %v4621
    %4718 = vmatprep.subr.bf16.mxu0 0
    %4719 = vmatpush1.bf16.msra.mxu0 %v4624
    %4720 = vmatprep.subr.bf16.mxu0 0
    %4721 = vmatpush1.bf16.msra.mxu0 %v4627
    %4722 = vmatprep.subr.bf16.mxu0 0
    %4723 = vmatpush1.bf16.msra.mxu0 %v4630
    %4724 = vmatprep.subr.bf16.mxu0 0
    %4725 = vmatpush1.bf16.msra.mxu0 %v4633
    %4726 = vmatprep.subr.bf16.mxu0 0
    %4727 = vmatpush1.bf16.msra.mxu0 0
    %4728 = vmatprep.subr.bf16.mxu0 0
    %4729 = vmatpush1.bf16.msra.mxu0 0
    %4730 = vmatprep.subr.bf16.mxu0 0
    %4731 = vmatpush1.bf16.msra.mxu0 0
    %4732 = vmatprep.subr.bf16.mxu0 0
    %4733 = vmatpush1.bf16.msra.mxu0 0
    %4734 = vmatprep.subr.bf16.mxu0 0
    %4735 = vmatpush1.bf16.msra.mxu0 0
    %4736 = vmatprep.subr.bf16.mxu0 0
    %4737 = vmatpush1.bf16.msra.mxu0 0
    %4738 = vmatprep.subr.bf16.mxu0 0
    %4739 = vmatpush1.bf16.msra.mxu0 0
    %4740 = vmatprep.subr.bf16.mxu0 0
    %4741 = vmatpush1.bf16.msra.mxu0 0
    %4742 = vmatprep.subr.bf16.mxu0 0
    %4743 = vmatpush1.bf16.msra.mxu0 0
    %4744 = vmatprep.mubr.bf16.mxu0 0
    %4745 = vmatmul.mubr.bf16.gmra.mrb[0].mxu0 %v4656
    %v4746 = vpop.f32.mrb[0].mxu0
    %v4747 = vadd.f32 0.0, %v4746
    %v4748 = vpop.f32.mrb[0].mxu0
    %v4749 = vpop.f32.mrb[0].mxu0
    %v4750 = vadd.f32 0.0, %v4749
    %v4751 = vpop.f32.mrb[0].mxu0
    %4752 = vmatprep.mubr.bf16.mxu0 0
    %4753 = vmatmul.mubr.bf16.gmra.mrb[0].mxu0 %v4659
    %v4754 = vpop.f32.mrb[0].mxu0
    %v4755 = vadd.f32 0.0, %v4754
    %v4756 = vpop.f32.mrb[0].mxu0
    %v4757 = vpop.f32.mrb[0].mxu0
    %v4758 = vpop.f32.mrb[0].mxu0
    %4759 = vdwg.mxu0
    %v4760 = vadd.f32 %v4251, %v4696
    %v4761 = vadd.f32 %v4252, %v4698
    %v4762 = vadd.f32 %v4253, %v4747
    %v4763 = vadd.f32 %v4254, %v4700
    %v4764 = vadd.f32 %v4255, %v4702
    %v4765 = vadd.f32 %v4256, %v4750
    %v4766 = vadd.f32 %v4257, %v4706
    %v4767 = vadd.f32 %v4258, %v4708
    %v4768 = vadd.f32 %v4259, %v4755
    %v4769 = vld [vmem:[%s1840] sm:$0xff]
    %v4770 = vld [vmem:[%s1840 + $0x8] sm:$0xf]
    %v4771 = vld [vmem:[%s1840 + $0xc] sm:$0xff]
    %v4772 = vld [vmem:[%s1840 + $0x14] sm:$0xf]
    %v4773 = vld [vmem:[%s1840 + $0x18] sm:$0xff]
    %v4774 = vld [vmem:[%s1840 + $0x20] sm:$0xf]
    %v4775 = vld [vmem:[%s1840 + $0x24] sm:$0xff]
    %v4776 = vld [vmem:[%s1840 + $0x2c] sm:$0xf]
    %v4777 = vld [vmem:[%s1840 + $0x30] sm:$0xff]
    %v4778 = vld [vmem:[%s1840 + $0x38] sm:$0xf]
    %v4779 = vld [vmem:[%s1840 + $0x3c] sm:$0xff]
    %v4780 = vld [vmem:[%s1840 + $0x44] sm:$0xf]
    %v4781 = vld [vmem:[%s1840 + $0x48] sm:$0xff]
    %v4782 = vld [vmem:[%s1840 + $0x50] sm:$0xf]
    %v4783 = vld [vmem:[%s1840 + $0x54] sm:$0xff]
    %v4784 = vld [vmem:[%s1840 + $0x5c] sm:$0xf]
    %v4785 = vld [vmem:[%s1840 + $0x60] sm:$0xff]
    %v4786 = vld [vmem:[%s1840 + $0x68] sm:$0xf]
    %v4787 = vld [vmem:[%s1840 + $0x6c] sm:$0xff]
    %v4788 = vld [vmem:[%s1840 + $0x74] sm:$0xf]
    %v4789 = vld [vmem:[%s1840 + $0x78] sm:$0xff]
    %v4790 = vld [vmem:[%s1840 + $0x80] sm:$0xf]
    %v4791 = vld [vmem:[%s1840 + $0x84] sm:$0xff]
    %v4792 = vld [vmem:[%s1840 + $0x8c] sm:$0xf]
    %v4793 = vld [vmem:[%s1840 + $0x90] sm:$0xff]
    %v4794 = vld [vmem:[%s1840 + $0x98] sm:$0xf]
    %v4795 = vld [vmem:[%s1840 + $0x9c] sm:$0xff]
    %v4796 = vld [vmem:[%s1840 + $0xa4] sm:$0xf]
    %v4825 = vunpack.c.l.b16 %v4769
    %v4826 = vunpack.c.h.b16 %v4769
    %v4827 = vunpack.c.l.b16 %v4770
    %v4828 = vunpack.c.l.b16 %v4771
    %v4829 = vunpack.c.h.b16 %v4771
    %v4830 = vunpack.c.l.b16 %v4772
    %v4831 = vunpack.c.l.b16 %v4773
    %v4832 = vunpack.c.h.b16 %v4773
    %v4833 = vunpack.c.l.b16 %v4774
    %v4834 = vunpack.c.l.b16 %v4775
    %v4835 = vunpack.c.h.b16 %v4775
    %v4836 = vunpack.c.l.b16 %v4776
    %v4837 = vunpack.c.l.b16 %v4777
    %v4838 = vunpack.c.h.b16 %v4777
    %v4839 = vunpack.c.l.b16 %v4778
    %v4840 = vunpack.c.l.b16 %v4779
    %v4841 = vunpack.c.h.b16 %v4779
    %v4842 = vunpack.c.l.b16 %v4780
    %v4843 = vunpack.c.l.b16 %v4781
    %v4844 = vunpack.c.h.b16 %v4781
    %v4845 = vunpack.c.l.b16 %v4782
    %v4846 = vunpack.c.l.b16 %v4783
    %v4847 = vunpack.c.h.b16 %v4783
    %v4848 = vunpack.c.l.b16 %v4784
    %v4849 = vunpack.c.l.b16 %v4785
    %v4850 = vunpack.c.h.b16 %v4785
    %v4851 = vunpack.c.l.b16 %v4786
    %v4852 = vunpack.c.l.b16 %v4787
    %v4853 = vunpack.c.h.b16 %v4787
    %v4854 = vunpack.c.l.b16 %v4788
    %v4855 = vunpack.c.l.b16 %v4789
    %v4856 = vunpack.c.h.b16 %v4789
    %v4857 = vunpack.c.l.b16 %v4790
    %v4858 = vunpack.c.l.b16 %v4791
    %v4859 = vunpack.c.h.b16 %v4791
    %v4860 = vunpack.c.l.b16 %v4792
    %v4861 = vunpack.c.l.b16 %v4793
    %v4862 = vunpack.c.h.b16 %v4793
    %v4863 = vunpack.c.l.b16 %v4794
    %v4864 = vunpack.c.l.b16 %v4795
    %v4865 = vunpack.c.h.b16 %v4795
    %v4866 = vunpack.c.l.b16 %v4796
    %v4867 = vpack.c.b16 %v4828, %v4825
    %v4868 = vpack.c.b16 %v4829, %v4826
    %v4869 = vpack.c.b16 %v4830, %v4827
    %v4870 = vpack.c.b16 %v4834, %v4831
    %v4871 = vpack.c.b16 %v4835, %v4832
    %v4872 = vpack.c.b16 %v4836, %v4833
    %v4873 = vpack.c.b16 %v4840, %v4837
    %v4874 = vpack.c.b16 %v4841, %v4838
    %v4875 = vpack.c.b16 %v4842, %v4839
    %v4876 = vpack.c.b16 %v4846, %v4843
    %v4877 = vpack.c.b16 %v4847, %v4844
    %v4878 = vpack.c.b16 %v4848, %v4845
    %v4879 = vpack.c.b16 %v4852, %v4849
    %v4880 = vpack.c.b16 %v4853, %v4850
    %v4881 = vpack.c.b16 %v4854, %v4851
    %v4882 = vpack.c.b16 %v4858, %v4855
    %v4883 = vpack.c.b16 %v4859, %v4856
    %v4884 = vpack.c.b16 %v4860, %v4857
    %v4885 = vpack.c.b16 %v4864, %v4861
    %v4886 = vpack.c.b16 %v4865, %v4862
    %v4887 = vpack.c.b16 %v4866, %v4863
    %4909 = vmatprep.subr.bf16.mxu0 %v4868
    %4910 = vmatpush1.bf16.msra.mxu0 %v4867
    %4911 = vmatprep.subr.bf16.mxu0 %v4871
    %4912 = vmatpush1.bf16.msra.mxu0 %v4870
    %4913 = vmatprep.subr.bf16.mxu0 %v4874
    %4914 = vmatpush1.bf16.msra.mxu0 %v4873
    %4915 = vmatprep.subr.bf16.mxu0 %v4877
    %4916 = vmatpush1.bf16.msra.mxu0 %v4876
    %4917 = vmatprep.subr.bf16.mxu0 %v4880
    %4918 = vmatpush1.bf16.msra.mxu0 %v4879
    %4919 = vmatprep.subr.bf16.mxu0 %v4883
    %4920 = vmatpush1.bf16.msra.mxu0 %v4882
    %4921 = vmatprep.subr.bf16.mxu0 %v4886
    %4922 = vmatpush1.bf16.msra.mxu0 %v4885
    %4923 = vmatprep.subr.bf16.mxu0 0
    %4924 = vmatpush1.bf16.msra.mxu0 0
    %4925 = vmatprep.subr.bf16.mxu0 0
    %4926 = vmatpush1.bf16.msra.mxu0 0
    %4927 = vmatprep.subr.bf16.mxu0 0
    %4928 = vmatpush1.bf16.msra.mxu0 0
    %4929 = vmatprep.subr.bf16.mxu0 0
    %4930 = vmatpush1.bf16.msra.mxu0 0
    %4931 = vmatprep.subr.bf16.mxu0 0
    %4932 = vmatpush1.bf16.msra.mxu0 0
    %4933 = vmatprep.subr.bf16.mxu0 0
    %4934 = vmatpush1.bf16.msra.mxu0 0
    %4935 = vmatprep.subr.bf16.mxu0 0
    %4936 = vmatpush1.bf16.msra.mxu0 0
    %4937 = vmatprep.subr.bf16.mxu0 0
    %4938 = vmatpush1.bf16.msra.mxu0 0
    %4939 = vmatprep.subr.bf16.mxu0 0
    %4940 = vmatpush1.bf16.msra.mxu0 0
    %4941 = vmatprep.mubr.bf16.mxu0 0
    %4942 = vmatmul.mubr.bf16.gmra.mrb[0].mxu0 %v4656
    %v4943 = vpop.f32.mrb[0].mxu0
    %v4944 = vadd.f32 0.0, %v4943
    %v4945 = vpop.f32.mrb[0].mxu0
    %v4946 = vadd.f32 0.0, %v4945
    %v4947 = vpop.f32.mrb[0].mxu0
    %v4948 = vadd.f32 0.0, %v4947
    %v4949 = vpop.f32.mrb[0].mxu0
    %v4950 = vadd.f32 0.0, %v4949
    %4951 = vmatprep.mubr.bf16.mxu0 0
    %4952 = vmatmul.mubr.bf16.gmra.mrb[0].mxu0 %v4659
    %v4953 = vpop.f32.mrb[0].mxu0
    %v4954 = vadd.f32 0.0, %v4953
    %v4955 = vpop.f32.mrb[0].mxu0
    %v4956 = vadd.f32 0.0, %v4955
    %v4957 = vpop.f32.mrb[0].mxu0
    %v4958 = vpop.f32.mrb[0].mxu0
    %4959 = vdwg.mxu0
    %4960 = vmatprep.subr.bf16.mxu0 0
    %4961 = vmatpush1.bf16.msra.mxu0 %v4869
    %4962 = vmatprep.subr.bf16.mxu0 0
    %4963 = vmatpush1.bf16.msra.mxu0 %v4872
    %4964 = vmatprep.subr.bf16.mxu0 0
    %4965 = vmatpush1.bf16.msra.mxu0 %v4875
    %4966 = vmatprep.subr.bf16.mxu0 0
    %4967 = vmatpush1.bf16.msra.mxu0 %v4878
    %4968 = vmatprep.subr.bf16.mxu0 0
    %4969 = vmatpush1.bf16.msra.mxu0 %v4881
    %4970 = vmatprep.subr.bf16.mxu0 0
    %4971 = vmatpush1.bf16.msra.mxu0 %v4884
    %4972 = vmatprep.subr.bf16.mxu0 0
    %4973 = vmatpush1.bf16.msra.mxu0 %v4887
    %4974 = vmatprep.subr.bf16.mxu0 0
    %4975 = vmatpush1.bf16.msra.mxu0 0
    %4976 = vmatprep.subr.bf16.mxu0 0
    %4977 = vmatpush1.bf16.msra.mxu0 0
    %4978 = vmatprep.subr.bf16.mxu0 0
    %4979 = vmatpush1.bf16.msra.mxu0 0
    %4980 = vmatprep.subr.bf16.mxu0 0
    %4981 = vmatpush1.bf16.msra.mxu0 0
    %4982 = vmatprep.subr.bf16.mxu0 0
    %4983 = vmatpush1.bf16.msra.mxu0 0
    %4984 = vmatprep.subr.bf16.mxu0 0
    %4985 = vmatpush1.bf16.msra.mxu0 0
    %4986 = vmatprep.subr.bf16.mxu0 0
    %4987 = vmatpush1.bf16.msra.mxu0 0
    %4988 = vmatprep.subr.bf16.mxu0 0
    %4989 = vmatpush1.bf16.msra.mxu0 0
    %4990 = vmatprep.subr.bf16.mxu0 0
    %4991 = vmatpush1.bf16.msra.mxu0 0
    %4992 = vmatprep.mubr.bf16.mxu0 0
    %4993 = vmatmul.mubr.bf16.gmra.mrb[0].mxu0 %v4656
    %v4994 = vpop.f32.mrb[0].mxu0
    %v4995 = vadd.f32 0.0, %v4994
    %v4996 = vpop.f32.mrb[0].mxu0
    %v4997 = vpop.f32.mrb[0].mxu0
    %v4998 = vadd.f32 0.0, %v4997
    %v4999 = vpop.f32.mrb[0].mxu0
    %5000 = vmatprep.mubr.bf16.mxu0 0
    %5001 = vmatmul.mubr.bf16.gmra.mrb[0].mxu0 %v4659
    %v5002 = vpop.f32.mrb[0].mxu0
    %v5003 = vadd.f32 0.0, %v5002
    %v5004 = vpop.f32.mrb[0].mxu0
    %v5005 = vpop.f32.mrb[0].mxu0
    %v5006 = vpop.f32.mrb[0].mxu0
    %5007 = vdwg.mxu0
    %v5008 = vadd.f32 %v4499, %v4944
    %v5009 = vadd.f32 %v4500, %v4946
    %v5010 = vadd.f32 %v4501, %v4995
    %v5011 = vadd.f32 %v4502, %v4948
    %v5012 = vadd.f32 %v4503, %v4950
    %v5013 = vadd.f32 %v4504, %v4998
    %v5014 = vadd.f32 %v4505, %v4954
    %v5015 = vadd.f32 %v4506, %v4956
    %v5016 = vadd.f32 %v4507, %v5003
    %v5017 = vld [vmem:[%s2089] sm:$0xff]
    %v5018 = vld [vmem:[%s2089 + $0x8] sm:$0xf]
    %v5019 = vld [vmem:[%s2089 + $0xc] sm:$0xff]
    %v5020 = vld [vmem:[%s2089 + $0x14] sm:$0xf]
    %v5021 = vld [vmem:[%s2089 + $0x18] sm:$0xff]
    %v5022 = vld [vmem:[%s2089 + $0x20] sm:$0xf]
    %v5023 = vld [vmem:[%s2089 + $0x24] sm:$0xff]
    %v5024 = vld [vmem:[%s2089 + $0x2c] sm:$0xf]
    %v5025 = vld [vmem:[%s2089 + $0x30] sm:$0xff]
    %v5026 = vld [vmem:[%s2089 + $0x38] sm:$0xf]
    %v5027 = vld [vmem:[%s2089 + $0x3c] sm:$0xff]
    %v5028 = vld [vmem:[%s2089 + $0x44] sm:$0xf]
    %v5029 = vld [vmem:[%s2089 + $0x48] sm:$0xff]
    %v5030 = vld [vmem:[%s2089 + $0x50] sm:$0xf]
    %v5031 = vld [vmem:[%s2089 + $0x54] sm:$0xff]
    %v5032 = vld [vmem:[%s2089 + $0x5c] sm:$0xf]
    %v5033 = vld [vmem:[%s2089 + $0x60] sm:$0xff]
    %v5034 = vld [vmem:[%s2089 + $0x68] sm:$0xf]
    %v5035 = vld [vmem:[%s2089 + $0x6c] sm:$0xff]
    %v5036 = vld [vmem:[%s2089 + $0x74] sm:$0xf]
    %v5037 = vld [vmem:[%s2089 + $0x78] sm:$0xff]
    %v5038 = vld [vmem:[%s2089 + $0x80] sm:$0xf]
    %v5039 = vld [vmem:[%s2089 + $0x84] sm:$0xff]
    %v5040 = vld [vmem:[%s2089 + $0x8c] sm:$0xf]
    %v5041 = vld [vmem:[%s2089 + $0x90] sm:$0xff]
    %v5042 = vld [vmem:[%s2089 + $0x98] sm:$0xf]
    %v5043 = vld [vmem:[%s2089 + $0x9c] sm:$0xff]
    %v5044 = vld [vmem:[%s2089 + $0xa4] sm:$0xf]
    %v5045 = vrot.slane %v3102, 2
    %v5046 = vrot.slane %v3103, 2
    %v5047 = vsel %vm2118, %v5045, %v5046
    %v5076 = vunpack.c.l.b16 %v5017
    %v5077 = vunpack.c.h.b16 %v5017
    %v5078 = vunpack.c.l.b16 %v5018
    %v5079 = vunpack.c.l.b16 %v5019
    %v5080 = vunpack.c.h.b16 %v5019
    %v5081 = vunpack.c.l.b16 %v5020
    %v5082 = vunpack.c.l.b16 %v5021
    %v5083 = vunpack.c.h.b16 %v5021
    %v5084 = vunpack.c.l.b16 %v5022
    %v5085 = vunpack.c.l.b16 %v5023
    %v5086 = vunpack.c.h.b16 %v5023
    %v5087 = vunpack.c.l.b16 %v5024
    %v5088 = vunpack.c.l.b16 %v5025
    %v5089 = vunpack.c.h.b16 %v5025
    %v5090 = vunpack.c.l.b16 %v5026
    %v5091 = vunpack.c.l.b16 %v5027
    %v5092 = vunpack.c.h.b16 %v5027
    %v5093 = vunpack.c.l.b16 %v5028
    %v5094 = vunpack.c.l.b16 %v5029
    %v5095 = vunpack.c.h.b16 %v5029
    %v5096 = vunpack.c.l.b16 %v5030
    %v5097 = vunpack.c.l.b16 %v5031
    %v5098 = vunpack.c.h.b16 %v5031
    %v5099 = vunpack.c.l.b16 %v5032
    %v5100 = vunpack.c.l.b16 %v5033
    %v5101 = vunpack.c.h.b16 %v5033
    %v5102 = vunpack.c.l.b16 %v5034
    %v5103 = vunpack.c.l.b16 %v5035
    %v5104 = vunpack.c.h.b16 %v5035
    %v5105 = vunpack.c.l.b16 %v5036
    %v5106 = vunpack.c.l.b16 %v5037
    %v5107 = vunpack.c.h.b16 %v5037
    %v5108 = vunpack.c.l.b16 %v5038
    %v5109 = vunpack.c.l.b16 %v5039
    %v5110 = vunpack.c.h.b16 %v5039
    %v5111 = vunpack.c.l.b16 %v5040
    %v5112 = vunpack.c.l.b16 %v5041
    %v5113 = vunpack.c.h.b16 %v5041
    %v5114 = vunpack.c.l.b16 %v5042
    %v5115 = vunpack.c.l.b16 %v5043
    %v5116 = vunpack.c.h.b16 %v5043
    %v5117 = vunpack.c.l.b16 %v5044
    %v5118 = vpack.c.b16 %v5079, %v5076
    %v5119 = vpack.c.b16 %v5080, %v5077
    %v5120 = vpack.c.b16 %v5081, %v5078
    %v5121 = vpack.c.b16 %v5085, %v5082
    %v5122 = vpack.c.b16 %v5086, %v5083
    %v5123 = vpack.c.b16 %v5087, %v5084
    %v5124 = vpack.c.b16 %v5091, %v5088
    %v5125 = vpack.c.b16 %v5092, %v5089
    %v5126 = vpack.c.b16 %v5093, %v5090
    %v5127 = vpack.c.b16 %v5097, %v5094
    %v5128 = vpack.c.b16 %v5098, %v5095
    %v5129 = vpack.c.b16 %v5099, %v5096
    %v5130 = vpack.c.b16 %v5103, %v5100
    %v5131 = vpack.c.b16 %v5104, %v5101
    %v5132 = vpack.c.b16 %v5105, %v5102
    %v5133 = vpack.c.b16 %v5109, %v5106
    %v5134 = vpack.c.b16 %v5110, %v5107
    %v5135 = vpack.c.b16 %v5111, %v5108
    %v5136 = vpack.c.b16 %v5115, %v5112
    %v5137 = vpack.c.b16 %v5116, %v5113
    %v5138 = vpack.c.b16 %v5117, %v5114
    %v5161 = vsel %vm295, %v5047, 0
    %v5164 = vsel %vm295, %v5046, 0
    %5166 = vmatprep.subr.bf16.mxu0 %v5119
    %5167 = vmatpush1.bf16.msra.mxu0 %v5118
    %5168 = vmatprep.subr.bf16.mxu0 %v5122
    %5169 = vmatpush1.bf16.msra.mxu0 %v5121
    %5170 = vmatprep.subr.bf16.mxu0 %v5125
    %5171 = vmatpush1.bf16.msra.mxu0 %v5124
    %5172 = vmatprep.subr.bf16.mxu0 %v5128
    %5173 = vmatpush1.bf16.msra.mxu0 %v5127
    %5174 = vmatprep.subr.bf16.mxu0 %v5131
    %5175 = vmatpush1.bf16.msra.mxu0 %v5130
    %5176 = vmatprep.subr.bf16.mxu0 %v5134
    %5177 = vmatpush1.bf16.msra.mxu0 %v5133
    %5178 = vmatprep.subr.bf16.mxu0 %v5137
    %5179 = vmatpush1.bf16.msra.mxu0 %v5136
    %5180 = vmatprep.subr.bf16.mxu0 0
    %5181 = vmatpush1.bf16.msra.mxu0 0
    %5182 = vmatprep.subr.bf16.mxu0 0
    %5183 = vmatpush1.bf16.msra.mxu0 0
    %5184 = vmatprep.subr.bf16.mxu0 0
    %5185 = vmatpush1.bf16.msra.mxu0 0
    %5186 = vmatprep.subr.bf16.mxu0 0
    %5187 = vmatpush1.bf16.msra.mxu0 0
    %5188 = vmatprep.subr.bf16.mxu0 0
    %5189 = vmatpush1.bf16.msra.mxu0 0
    %5190 = vmatprep.subr.bf16.mxu0 0
    %5191 = vmatpush1.bf16.msra.mxu0 0
    %5192 = vmatprep.subr.bf16.mxu0 0
    %5193 = vmatpush1.bf16.msra.mxu0 0
    %5194 = vmatprep.subr.bf16.mxu0 0
    %5195 = vmatpush1.bf16.msra.mxu0 0
    %5196 = vmatprep.subr.bf16.mxu0 0
    %5197 = vmatpush1.bf16.msra.mxu0 0
    %5198 = vmatprep.mubr.bf16.mxu0 0
    %5199 = vmatmul.mubr.bf16.gmra.mrb[0].mxu0 %v5161
    %v5200 = vpop.f32.mrb[0].mxu0
    %v5201 = vadd.f32 0.0, %v5200
    %v5202 = vpop.f32.mrb[0].mxu0
    %v5203 = vadd.f32 0.0, %v5202
    %v5204 = vpop.f32.mrb[0].mxu0
    %v5205 = vadd.f32 0.0, %v5204
    %v5206 = vpop.f32.mrb[0].mxu0
    %v5207 = vadd.f32 0.0, %v5206
    %5208 = vmatprep.mubr.bf16.mxu0 0
    %5209 = vmatmul.mubr.bf16.gmra.mrb[0].mxu0 %v5164
    %v5210 = vpop.f32.mrb[0].mxu0
    %v5211 = vadd.f32 0.0, %v5210
    %v5212 = vpop.f32.mrb[0].mxu0
    %v5213 = vadd.f32 0.0, %v5212
    %v5214 = vpop.f32.mrb[0].mxu0
    %v5215 = vpop.f32.mrb[0].mxu0
    %5216 = vdwg.mxu0
    %5217 = vmatprep.subr.bf16.mxu0 0
    %5218 = vmatpush1.bf16.msra.mxu0 %v5120
    %5219 = vmatprep.subr.bf16.mxu0 0
    %5220 = vmatpush1.bf16.msra.mxu0 %v5123
    %5221 = vmatprep.subr.bf16.mxu0 0
    %5222 = vmatpush1.bf16.msra.mxu0 %v5126
    %5223 = vmatprep.subr.bf16.mxu0 0
    %5224 = vmatpush1.bf16.msra.mxu0 %v5129
    %5225 = vmatprep.subr.bf16.mxu0 0
    %5226 = vmatpush1.bf16.msra.mxu0 %v5132
    %5227 = vmatprep.subr.bf16.mxu0 0
    %5228 = vmatpush1.bf16.msra.mxu0 %v5135
    %5229 = vmatprep.subr.bf16.mxu0 0
    %5230 = vmatpush1.bf16.msra.mxu0 %v5138
    %5231 = vmatprep.subr.bf16.mxu0 0
    %5232 = vmatpush1.bf16.msra.mxu0 0
    %5233 = vmatprep.subr.bf16.mxu0 0
    %5234 = vmatpush1.bf16.msra.mxu0 0
    %5235 = vmatprep.subr.bf16.mxu0 0
    %5236 = vmatpush1.bf16.msra.mxu0 0
    %5237 = vmatprep.subr.bf16.mxu0 0
    %5238 = vmatpush1.bf16.msra.mxu0 0
    %5239 = vmatprep.subr.bf16.mxu0 0
    %5240 = vmatpush1.bf16.msra.mxu0 0
    %5241 = vmatprep.subr.bf16.mxu0 0
    %5242 = vmatpush1.bf16.msra.mxu0 0
    %5243 = vmatprep.subr.bf16.mxu0 0
    %5244 = vmatpush1.bf16.msra.mxu0 0
    %5245 = vmatprep.subr.bf16.mxu0 0
    %5246 = vmatpush1.bf16.msra.mxu0 0
    %5247 = vmatprep.subr.bf16.mxu0 0
    %5248 = vmatpush1.bf16.msra.mxu0 0
    %5249 = vmatprep.mubr.bf16.mxu0 0
    %5250 = vmatmul.mubr.bf16.gmra.mrb[0].mxu0 %v5161
    %v5251 = vpop.f32.mrb[0].mxu0
    %v5252 = vadd.f32 0.0, %v5251
    %v5253 = vpop.f32.mrb[0].mxu0
    %v5254 = vpop.f32.mrb[0].mxu0
    %v5255 = vadd.f32 0.0, %v5254
    %v5256 = vpop.f32.mrb[0].mxu0
    %5257 = vmatprep.mubr.bf16.mxu0 0
    %5258 = vmatmul.mubr.bf16.gmra.mrb[0].mxu0 %v5164
    %v5259 = vpop.f32.mrb[0].mxu0
    %v5260 = vadd.f32 0.0, %v5259
    %v5261 = vpop.f32.mrb[0].mxu0
    %v5262 = vpop.f32.mrb[0].mxu0
    %v5263 = vpop.f32.mrb[0].mxu0
    %5264 = vdwg.mxu0
    %v5265 = vadd.f32 %v4760, %v5201
    %v5266 = vadd.f32 %v4761, %v5203
    %v5267 = vadd.f32 %v4762, %v5252
    %v5268 = vadd.f32 %v4763, %v5205
    %v5269 = vadd.f32 %v4764, %v5207
    %v5270 = vadd.f32 %v4765, %v5255
    %v5271 = vadd.f32 %v4766, %v5211
    %v5272 = vadd.f32 %v4767, %v5213
    %v5273 = vadd.f32 %v4768, %v5260
    %v5274 = vld [vmem:[%s2348] sm:$0xff]
    %v5275 = vld [vmem:[%s2348 + $0x8] sm:$0xf]
    %v5276 = vld [vmem:[%s2348 + $0xc] sm:$0xff]
    %v5277 = vld [vmem:[%s2348 + $0x14] sm:$0xf]
    %v5278 = vld [vmem:[%s2348 + $0x18] sm:$0xff]
    %v5279 = vld [vmem:[%s2348 + $0x20] sm:$0xf]
    %v5280 = vld [vmem:[%s2348 + $0x24] sm:$0xff]
    %v5281 = vld [vmem:[%s2348 + $0x2c] sm:$0xf]
    %v5282 = vld [vmem:[%s2348 + $0x30] sm:$0xff]
    %v5283 = vld [vmem:[%s2348 + $0x38] sm:$0xf]
    %v5284 = vld [vmem:[%s2348 + $0x3c] sm:$0xff]
    %v5285 = vld [vmem:[%s2348 + $0x44] sm:$0xf]
    %v5286 = vld [vmem:[%s2348 + $0x48] sm:$0xff]
    %v5287 = vld [vmem:[%s2348 + $0x50] sm:$0xf]
    %v5288 = vld [vmem:[%s2348 + $0x54] sm:$0xff]
    %v5289 = vld [vmem:[%s2348 + $0x5c] sm:$0xf]
    %v5290 = vld [vmem:[%s2348 + $0x60] sm:$0xff]
    %v5291 = vld [vmem:[%s2348 + $0x68] sm:$0xf]
    %v5292 = vld [vmem:[%s2348 + $0x6c] sm:$0xff]
    %v5293 = vld [vmem:[%s2348 + $0x74] sm:$0xf]
    %v5294 = vld [vmem:[%s2348 + $0x78] sm:$0xff]
    %v5295 = vld [vmem:[%s2348 + $0x80] sm:$0xf]
    %v5296 = vld [vmem:[%s2348 + $0x84] sm:$0xff]
    %v5297 = vld [vmem:[%s2348 + $0x8c] sm:$0xf]
    %v5298 = vld [vmem:[%s2348 + $0x90] sm:$0xff]
    %v5299 = vld [vmem:[%s2348 + $0x98] sm:$0xf]
    %v5300 = vld [vmem:[%s2348 + $0x9c] sm:$0xff]
    %v5301 = vld [vmem:[%s2348 + $0xa4] sm:$0xf]
    %v5330 = vunpack.c.l.b16 %v5274
    %v5331 = vunpack.c.h.b16 %v5274
    %v5332 = vunpack.c.l.b16 %v5275
    %v5333 = vunpack.c.l.b16 %v5276
    %v5334 = vunpack.c.h.b16 %v5276
    %v5335 = vunpack.c.l.b16 %v5277
    %v5336 = vunpack.c.l.b16 %v5278
    %v5337 = vunpack.c.h.b16 %v5278
    %v5338 = vunpack.c.l.b16 %v5279
    %v5339 = vunpack.c.l.b16 %v5280
    %v5340 = vunpack.c.h.b16 %v5280
    %v5341 = vunpack.c.l.b16 %v5281
    %v5342 = vunpack.c.l.b16 %v5282
    %v5343 = vunpack.c.h.b16 %v5282
    %v5344 = vunpack.c.l.b16 %v5283
    %v5345 = vunpack.c.l.b16 %v5284
    %v5346 = vunpack.c.h.b16 %v5284
    %v5347 = vunpack.c.l.b16 %v5285
    %v5348 = vunpack.c.l.b16 %v5286
    %v5349 = vunpack.c.h.b16 %v5286
    %v5350 = vunpack.c.l.b16 %v5287
    %v5351 = vunpack.c.l.b16 %v5288
    %v5352 = vunpack.c.h.b16 %v5288
    %v5353 = vunpack.c.l.b16 %v5289
    %v5354 = vunpack.c.l.b16 %v5290
    %v5355 = vunpack.c.h.b16 %v5290
    %v5356 = vunpack.c.l.b16 %v5291
    %v5357 = vunpack.c.l.b16 %v5292
    %v5358 = vunpack.c.h.b16 %v5292
    %v5359 = vunpack.c.l.b16 %v5293
    %v5360 = vunpack.c.l.b16 %v5294
    %v5361 = vunpack.c.h.b16 %v5294
    %v5362 = vunpack.c.l.b16 %v5295
    %v5363 = vunpack.c.l.b16 %v5296
    %v5364 = vunpack.c.h.b16 %v5296
    %v5365 = vunpack.c.l.b16 %v5297
    %v5366 = vunpack.c.l.b16 %v5298
    %v5367 = vunpack.c.h.b16 %v5298
    %v5368 = vunpack.c.l.b16 %v5299
    %v5369 = vunpack.c.l.b16 %v5300
    %v5370 = vunpack.c.h.b16 %v5300
    %v5371 = vunpack.c.l.b16 %v5301
    %v5372 = vpack.c.b16 %v5333, %v5330
    %v5373 = vpack.c.b16 %v5334, %v5331
    %v5374 = vpack.c.b16 %v5335, %v5332
    %v5375 = vpack.c.b16 %v5339, %v5336
    %v5376 = vpack.c.b16 %v5340, %v5337
    %v5377 = vpack.c.b16 %v5341, %v5338
    %v5378 = vpack.c.b16 %v5345, %v5342
    %v5379 = vpack.c.b16 %v5346, %v5343
    %v5380 = vpack.c.b16 %v5347, %v5344
    %v5381 = vpack.c.b16 %v5351, %v5348
    %v5382 = vpack.c.b16 %v5352, %v5349
    %v5383 = vpack.c.b16 %v5353, %v5350
    %v5384 = vpack.c.b16 %v5357, %v5354
    %v5385 = vpack.c.b16 %v5358, %v5355
    %v5386 = vpack.c.b16 %v5359, %v5356
    %v5387 = vpack.c.b16 %v5363, %v5360
    %v5388 = vpack.c.b16 %v5364, %v5361
    %v5389 = vpack.c.b16 %v5365, %v5362
    %v5390 = vpack.c.b16 %v5369, %v5366
    %v5391 = vpack.c.b16 %v5370, %v5367
    %v5392 = vpack.c.b16 %v5371, %v5368
    %5414 = vmatprep.subr.bf16.mxu0 %v5373
    %5415 = vmatpush1.bf16.msra.mxu0 %v5372
    %5416 = vmatprep.subr.bf16.mxu0 %v5376
    %5417 = vmatpush1.bf16.msra.mxu0 %v5375
    %5418 = vmatprep.subr.bf16.mxu0 %v5379
    %5419 = vmatpush1.bf16.msra.mxu0 %v5378
    %5420 = vmatprep.subr.bf16.mxu0 %v5382
    %5421 = vmatpush1.bf16.msra.mxu0 %v5381
    %5422 = vmatprep.subr.bf16.mxu0 %v5385
    %5423 = vmatpush1.bf16.msra.mxu0 %v5384
    %5424 = vmatprep.subr.bf16.mxu0 %v5388
    %5425 = vmatpush1.bf16.msra.mxu0 %v5387
    %5426 = vmatprep.subr.bf16.mxu0 %v5391
    %5427 = vmatpush1.bf16.msra.mxu0 %v5390
    %5428 = vmatprep.subr.bf16.mxu0 0
    %5429 = vmatpush1.bf16.msra.mxu0 0
    %5430 = vmatprep.subr.bf16.mxu0 0
    %5431 = vmatpush1.bf16.msra.mxu0 0
    %5432 = vmatprep.subr.bf16.mxu0 0
    %5433 = vmatpush1.bf16.msra.mxu0 0
    %5434 = vmatprep.subr.bf16.mxu0 0
    %5435 = vmatpush1.bf16.msra.mxu0 0
    %5436 = vmatprep.subr.bf16.mxu0 0
    %5437 = vmatpush1.bf16.msra.mxu0 0
    %5438 = vmatprep.subr.bf16.mxu0 0
    %5439 = vmatpush1.bf16.msra.mxu0 0
    %5440 = vmatprep.subr.bf16.mxu0 0
    %5441 = vmatpush1.bf16.msra.mxu0 0
    %5442 = vmatprep.subr.bf16.mxu0 0
    %5443 = vmatpush1.bf16.msra.mxu0 0
    %5444 = vmatprep.subr.bf16.mxu0 0
    %5445 = vmatpush1.bf16.msra.mxu0 0
    %5446 = vmatprep.mubr.bf16.mxu0 0
    %5447 = vmatmul.mubr.bf16.gmra.mrb[0].mxu0 %v5161
    %v5448 = vpop.f32.mrb[0].mxu0
    %v5449 = vadd.f32 0.0, %v5448
    %v5450 = vpop.f32.mrb[0].mxu0
    %v5451 = vadd.f32 0.0, %v5450
    %v5452 = vpop.f32.mrb[0].mxu0
    %v5453 = vadd.f32 0.0, %v5452
    %v5454 = vpop.f32.mrb[0].mxu0
    %v5455 = vadd.f32 0.0, %v5454
    %5456 = vmatprep.mubr.bf16.mxu0 0
    %5457 = vmatmul.mubr.bf16.gmra.mrb[0].mxu0 %v5164
    %v5458 = vpop.f32.mrb[0].mxu0
    %v5459 = vadd.f32 0.0, %v5458
    %v5460 = vpop.f32.mrb[0].mxu0
    %v5461 = vadd.f32 0.0, %v5460
    %v5462 = vpop.f32.mrb[0].mxu0
    %v5463 = vpop.f32.mrb[0].mxu0
    %5464 = vdwg.mxu0
    %5465 = vmatprep.subr.bf16.mxu0 0
    %5466 = vmatpush1.bf16.msra.mxu0 %v5374
    %5467 = vmatprep.subr.bf16.mxu0 0
    %5468 = vmatpush1.bf16.msra.mxu0 %v5377
    %5469 = vmatprep.subr.bf16.mxu0 0
    %5470 = vmatpush1.bf16.msra.mxu0 %v5380
    %5471 = vmatprep.subr.bf16.mxu0 0
    %5472 = vmatpush1.bf16.msra.mxu0 %v5383
    %5473 = vmatprep.subr.bf16.mxu0 0
    %5474 = vmatpush1.bf16.msra.mxu0 %v5386
    %5475 = vmatprep.subr.bf16.mxu0 0
    %5476 = vmatpush1.bf16.msra.mxu0 %v5389
    %5477 = vmatprep.subr.bf16.mxu0 0
    %5478 = vmatpush1.bf16.msra.mxu0 %v5392
    %5479 = vmatprep.subr.bf16.mxu0 0
    %5480 = vmatpush1.bf16.msra.mxu0 0
    %5481 = vmatprep.subr.bf16.mxu0 0
    %5482 = vmatpush1.bf16.msra.mxu0 0
    %5483 = vmatprep.subr.bf16.mxu0 0
    %5484 = vmatpush1.bf16.msra.mxu0 0
    %5485 = vmatprep.subr.bf16.mxu0 0
    %5486 = vmatpush1.bf16.msra.mxu0 0
    %5487 = vmatprep.subr.bf16.mxu0 0
    %5488 = vmatpush1.bf16.msra.mxu0 0
    %5489 = vmatprep.subr.bf16.mxu0 0
    %5490 = vmatpush1.bf16.msra.mxu0 0
    %5491 = vmatprep.subr.bf16.mxu0 0
    %5492 = vmatpush1.bf16.msra.mxu0 0
    %5493 = vmatprep.subr.bf16.mxu0 0
    %5494 = vmatpush1.bf16.msra.mxu0 0
    %5495 = vmatprep.subr.bf16.mxu0 0
    %5496 = vmatpush1.bf16.msra.mxu0 0
    %5497 = vmatprep.mubr.bf16.mxu0 0
    %5498 = vmatmul.mubr.bf16.gmra.mrb[0].mxu0 %v5161
    %v5499 = vpop.f32.mrb[0].mxu0
    %v5500 = vadd.f32 0.0, %v5499
    %v5501 = vpop.f32.mrb[0].mxu0
    %v5502 = vpop.f32.mrb[0].mxu0
    %v5503 = vadd.f32 0.0, %v5502
    %v5504 = vpop.f32.mrb[0].mxu0
    %5505 = vmatprep.mubr.bf16.mxu0 0
    %5506 = vmatmul.mubr.bf16.gmra.mrb[0].mxu0 %v5164
    %v5507 = vpop.f32.mrb[0].mxu0
    %v5508 = vadd.f32 0.0, %v5507
    %v5509 = vpop.f32.mrb[0].mxu0
    %v5510 = vpop.f32.mrb[0].mxu0
    %v5511 = vpop.f32.mrb[0].mxu0
    %5512 = vdwg.mxu0
    %v5513 = vadd.f32 %v5008, %v5449
    %v5514 = vadd.f32 %v5009, %v5451
    %v5515 = vadd.f32 %v5010, %v5500
    %v5516 = vadd.f32 %v5011, %v5453
    %v5517 = vadd.f32 %v5012, %v5455
    %v5518 = vadd.f32 %v5013, %v5503
    %v5519 = vadd.f32 %v5014, %v5459
    %v5520 = vadd.f32 %v5015, %v5461
    %v5521 = vadd.f32 %v5016, %v5508
    %v5522 = vadd.f32 %v5265, %v2601
    %v5523 = vadd.f32 %v5266, %v2605
    %v5524 = vadd.f32 %v5267, %v2609
    %v5525 = vadd.f32 %v5268, %v2601
    %v5526 = vadd.f32 %v5269, %v2605
    %v5527 = vadd.f32 %v5270, %v2609
    %v5528 = vadd.f32 %v5271, %v2601
    %v5529 = vadd.f32 %v5272, %v2605
    %v5530 = vadd.f32 %v5273, %v2609
    %v5531 = vmax.f32 %v5522, 0.0
    %v5532 = vmax.f32 %v5523, 0.0
    %v5533 = vmax.f32 %v5524, 0.0
    %v5534 = vmax.f32 %v5525, 0.0
    %v5535 = vmax.f32 %v5526, 0.0
    %v5536 = vmax.f32 %v5527, 0.0
    %v5537 = vmax.f32 %v5528, 0.0
    %v5538 = vmax.f32 %v5529, 0.0
    %v5539 = vmax.f32 %v5530, 0.0
    %v5540 = vadd.f32 %v5513, %v2601
    %v5541 = vadd.f32 %v5514, %v2605
    %v5542 = vadd.f32 %v5515, %v2609
    %v5543 = vadd.f32 %v5516, %v2601
    %v5544 = vadd.f32 %v5517, %v2605
    %v5545 = vadd.f32 %v5518, %v2609
    %v5546 = vadd.f32 %v5519, %v2601
    %v5547 = vadd.f32 %v5520, %v2605
    %v5548 = vadd.f32 %v5521, %v2609
    %v5549 = vmax.f32 %v5540, 0.0
    %v5550 = vmax.f32 %v5541, 0.0
    %v5551 = vmax.f32 %v5542, 0.0
    %v5552 = vmax.f32 %v5543, 0.0
    %v5553 = vmax.f32 %v5544, 0.0
    %v5554 = vmax.f32 %v5545, 0.0
    %v5555 = vmax.f32 %v5546, 0.0
    %v5556 = vmax.f32 %v5547, 0.0
    %v5557 = vmax.f32 %v5548, 0.0
    %v5558 = vmax.f32 %v5531, %v5549
    %v5559 = vmax.f32 %v5532, %v5550
    %v5560 = vmax.f32 %v5533, %v5551
    %v5561 = vmax.f32 %v5534, %v5552
    %v5562 = vmax.f32 %v5535, %v5553
    %v5563 = vmax.f32 %v5536, %v5554
    %v5564 = vmax.f32 %v5537, %v5555
    %v5565 = vmax.f32 %v5538, %v5556
    %v5566 = vmax.f32 %v5539, %v5557
    %5567 = vmatprep.subr.mxu0 %v5559
    %5568 = vmatpush1.msra.mxu0 %v5558
    %5569 = vmatprep.subr.mxu0 %v5562
    %5570 = vmatpush1.msra.mxu0 %v5561
    %5571 = vmatprep.subr.mxu0 %v5565
    %5572 = vmatpush1.msra.mxu0 %v5564
    %5573 = vmatprep.subr.mxu0 0.0
    %5574 = vmatpush1.msra.mxu0 0.0
    %5575 = vmatprep.subr.mxu0 0.0
    %5576 = vmatpush1.msra.mxu0 0.0
    %5577 = vmatprep.subr.mxu0 0.0
    %5578 = vmatpush1.msra.mxu0 0.0
    %5579 = vmatprep.subr.mxu0 0.0
    %5580 = vmatpush1.msra.mxu0 0.0
    %5581 = vmatprep.subr.mxu0 0.0
    %5582 = vmatpush1.msra.mxu0 0.0
    %5583 = vmatprep.subr.mxu0 0.0
    %5584 = vmatpush1.msra.mxu0 0.0
    %5585 = vmatprep.subr.mxu0 0.0
    %5586 = vmatpush1.msra.mxu0 0.0
    %5587 = vmatprep.subr.mxu0 0.0
    %5588 = vmatpush1.msra.mxu0 0.0
    %5589 = vmatprep.subr.mxu0 0.0
    %5590 = vmatpush1.msra.mxu0 0.0
    %5591 = vmatprep.subr.mxu0 0.0
    %5592 = vmatpush1.msra.mxu0 0.0
    %5593 = vmatprep.subr.mxu0 0.0
    %5594 = vmatpush1.msra.mxu0 0.0
    %5595 = vmatprep.subr.mxu0 0.0
    %5596 = vmatpush1.msra.mxu0 0.0
    %5597 = vmatprep.subr.mxu0 0.0
    %5598 = vmatpush1.msra.mxu0 0.0
    %5599 = vmatprep.subr.mxu0 0.0
    %5600 = vmatpush1.msra.mxu0 0.0
    %5601 = vmatprep.subr.mxu0 0.0
    %5602 = vmatpush1.msra.mxu0 0.0
    %5603 = vmatprep.subr.mxu0 0.0
    %5604 = vmatpush1.msra.mxu0 0.0
    %5605 = vmatprep.subr.mxu0 0.0
    %5606 = vmatpush1.msra.mxu0 0.0
    %5607 = vmatprep.subr.mxu0 0.0
    %5608 = vmatpush1.msra.mxu0 0.0
    %5609 = vmatprep.subr.mxu0 0.0
    %5610 = vmatpush1.msra.mxu0 0.0
    %5611 = vmatprep.subr.mxu0 0.0
    %5612 = vmatpush1.msra.mxu0 0.0
    %5613 = vmatprep.subr.mxu0 0.0
    %5614 = vmatpush1.msra.mxu0 0.0
    %5615 = vmatprep.subr.mxu0 0.0
    %5616 = vmatpush1.msra.mxu0 0.0
    %5617 = vmatprep.subr.mxu0 0.0
    %5618 = vmatpush1.msra.mxu0 0.0
    %5619 = vmatprep.subr.mxu0 0.0
    %5620 = vmatpush1.msra.mxu0 0.0
    %5621 = vmatprep.subr.mxu0 0.0
    %5622 = vmatpush1.msra.mxu0 0.0
    %5623 = vmatprep.subr.mxu0 0.0
    %5624 = vmatpush1.msra.mxu0 0.0
    %5625 = vmatprep.subr.mxu0 0.0
    %5626 = vmatpush1.msra.mxu0 0.0
    %5627 = vmatprep.subr.mxu0 0.0
    %5628 = vmatpush1.msra.mxu0 0.0
    %5629 = vmatprep.subr.mxu0 0.0
    %5630 = vmatpush1.msra.mxu0 0.0
    %5631 = vmatprep.mubr.f32.mxu0 0.0
    %5632 = vmatmul.mubr.f32.gmra.mrb[0].mxu0 %v2660
    %v5633 = vpop.f32.mrb[0].mxu0
    %v5634 = vadd.f32 0.0, %v5633
    %v5635 = vpop.f32.mrb[0].mxu0
    %v5636 = vadd.f32 0.0, %v5635
    %5637 = vmatprep.mubr.f32.mxu0 0.0
    %5638 = vmatmul.mubr.f32.gmra.mrb[0].mxu0 %v2663
    %v5639 = vpop.f32.mrb[0].mxu0
    %v5640 = vadd.f32 0.0, %v5639
    %v5641 = vpop.f32.mrb[0].mxu0
    %v5642 = vadd.f32 0.0, %v5641
    %5643 = vdwg.mxu0
    %5644 = vmatprep.subr.mxu0 0.0
    %5645 = vmatpush1.msra.mxu0 %v5560
    %5646 = vmatprep.subr.mxu0 0.0
    %5647 = vmatpush1.msra.mxu0 %v5563
    %5648 = vmatprep.subr.mxu0 0.0
    %5649 = vmatpush1.msra.mxu0 %v5566
    %5650 = vmatprep.subr.mxu0 0.0
    %5651 = vmatpush1.msra.mxu0 0.0
    %5652 = vmatprep.subr.mxu0 0.0
    %5653 = vmatpush1.msra.mxu0 0.0
    %5654 = vmatprep.subr.mxu0 0.0
    %5655 = vmatpush1.msra.mxu0 0.0
    %5656 = vmatprep.subr.mxu0 0.0
    %5657 = vmatpush1.msra.mxu0 0.0
    %5658 = vmatprep.subr.mxu0 0.0
    %5659 = vmatpush1.msra.mxu0 0.0
    %5660 = vmatprep.subr.mxu0 0.0
    %5661 = vmatpush1.msra.mxu0 0.0
    %5662 = vmatprep.subr.mxu0 0.0
    %5663 = vmatpush1.msra.mxu0 0.0
    %5664 = vmatprep.subr.mxu0 0.0
    %5665 = vmatpush1.msra.mxu0 0.0
    %5666 = vmatprep.subr.mxu0 0.0
    %5667 = vmatpush1.msra.mxu0 0.0
    %5668 = vmatprep.subr.mxu0 0.0
    %5669 = vmatpush1.msra.mxu0 0.0
    %5670 = vmatprep.subr.mxu0 0.0
    %5671 = vmatpush1.msra.mxu0 0.0
    %5672 = vmatprep.subr.mxu0 0.0
    %5673 = vmatpush1.msra.mxu0 0.0
    %5674 = vmatprep.subr.mxu0 0.0
    %5675 = vmatpush1.msra.mxu0 0.0
    %5676 = vmatprep.subr.mxu0 0.0
    %5677 = vmatpush1.msra.mxu0 0.0
    %5678 = vmatprep.subr.mxu0 0.0
    %5679 = vmatpush1.msra.mxu0 0.0
    %5680 = vmatprep.subr.mxu0 0.0
    %5681 = vmatpush1.msra.mxu0 0.0
    %5682 = vmatprep.subr.mxu0 0.0
    %5683 = vmatpush1.msra.mxu0 0.0
    %5684 = vmatprep.subr.mxu0 0.0
    %5685 = vmatpush1.msra.mxu0 0.0
    %5686 = vmatprep.subr.mxu0 0.0
    %5687 = vmatpush1.msra.mxu0 0.0
    %5688 = vmatprep.subr.mxu0 0.0
    %5689 = vmatpush1.msra.mxu0 0.0
    %5690 = vmatprep.subr.mxu0 0.0
    %5691 = vmatpush1.msra.mxu0 0.0
    %5692 = vmatprep.subr.mxu0 0.0
    %5693 = vmatpush1.msra.mxu0 0.0
    %5694 = vmatprep.subr.mxu0 0.0
    %5695 = vmatpush1.msra.mxu0 0.0
    %5696 = vmatprep.subr.mxu0 0.0
    %5697 = vmatpush1.msra.mxu0 0.0
    %5698 = vmatprep.subr.mxu0 0.0
    %5699 = vmatpush1.msra.mxu0 0.0
    %5700 = vmatprep.subr.mxu0 0.0
    %5701 = vmatpush1.msra.mxu0 0.0
    %5702 = vmatprep.subr.mxu0 0.0
    %5703 = vmatpush1.msra.mxu0 0.0
    %5704 = vmatprep.subr.mxu0 0.0
    %5705 = vmatpush1.msra.mxu0 0.0
    %5706 = vmatprep.subr.mxu0 0.0
    %5707 = vmatpush1.msra.mxu0 0.0
    %5708 = vmatprep.mubr.f32.mxu0 0.0
    %5709 = vmatmul.mubr.f32.gmra.mrb[0].mxu0 %v2660
    %v5710 = vpop.f32.mrb[0].mxu0
    %v5711 = vadd.f32 0.0, %v5710
    %v5712 = vpop.f32.mrb[0].mxu0
    %5713 = vmatprep.mubr.f32.mxu0 0.0
    %5714 = vmatmul.mubr.f32.gmra.mrb[0].mxu0 %v2663
    %v5715 = vpop.f32.mrb[0].mxu0
    %v5716 = vadd.f32 0.0, %v5715
    %v5717 = vpop.f32.mrb[0].mxu0
    %5718 = vdwg.mxu0
    %5719 = vmatprep.subr.mxu0 %v5559
    %5720 = vmatpush1.msra.mxu0 %v5558
    %5721 = vmatprep.subr.mxu0 %v5562
    %5722 = vmatpush1.msra.mxu0 %v5561
    %5723 = vmatprep.subr.mxu0 %v5565
    %5724 = vmatpush1.msra.mxu0 %v5564
    %5725 = vmatprep.subr.mxu0 0.0
    %5726 = vmatpush1.msra.mxu0 0.0
    %5727 = vmatprep.subr.mxu0 0.0
    %5728 = vmatpush1.msra.mxu0 0.0
    %5729 = vmatprep.subr.mxu0 0.0
    %5730 = vmatpush1.msra.mxu0 0.0
    %5731 = vmatprep.subr.mxu0 0.0
    %5732 = vmatpush1.msra.mxu0 0.0
    %5733 = vmatprep.subr.mxu0 0.0
    %5734 = vmatpush1.msra.mxu0 0.0
    %5735 = vmatprep.subr.mxu0 0.0
    %5736 = vmatpush1.msra.mxu0 0.0
    %5737 = vmatprep.subr.mxu0 0.0
    %5738 = vmatpush1.msra.mxu0 0.0
    %5739 = vmatprep.subr.mxu0 0.0
    %5740 = vmatpush1.msra.mxu0 0.0
    %5741 = vmatprep.subr.mxu0 0.0
    %5742 = vmatpush1.msra.mxu0 0.0
    %5743 = vmatprep.subr.mxu0 0.0
    %5744 = vmatpush1.msra.mxu0 0.0
    %5745 = vmatprep.subr.mxu0 0.0
    %5746 = vmatpush1.msra.mxu0 0.0
    %5747 = vmatprep.subr.mxu0 0.0
    %5748 = vmatpush1.msra.mxu0 0.0
    %5749 = vmatprep.subr.mxu0 0.0
    %5750 = vmatpush1.msra.mxu0 0.0
    %5751 = vmatprep.subr.mxu0 0.0
    %5752 = vmatpush1.msra.mxu0 0.0
    %5753 = vmatprep.subr.mxu0 0.0
    %5754 = vmatpush1.msra.mxu0 0.0
    %5755 = vmatprep.subr.mxu0 0.0
    %5756 = vmatpush1.msra.mxu0 0.0
    %5757 = vmatprep.subr.mxu0 0.0
    %5758 = vmatpush1.msra.mxu0 0.0
    %5759 = vmatprep.subr.mxu0 0.0
    %5760 = vmatpush1.msra.mxu0 0.0
    %5761 = vmatprep.subr.mxu0 0.0
    %5762 = vmatpush1.msra.mxu0 0.0
    %5763 = vmatprep.subr.mxu0 0.0
    %5764 = vmatpush1.msra.mxu0 0.0
    %5765 = vmatprep.subr.mxu0 0.0
    %5766 = vmatpush1.msra.mxu0 0.0
    %5767 = vmatprep.subr.mxu0 0.0
    %5768 = vmatpush1.msra.mxu0 0.0
    %5769 = vmatprep.subr.mxu0 0.0
    %5770 = vmatpush1.msra.mxu0 0.0
    %5771 = vmatprep.subr.mxu0 0.0
    %5772 = vmatpush1.msra.mxu0 0.0
    %5773 = vmatprep.subr.mxu0 0.0
    %5774 = vmatpush1.msra.mxu0 0.0
    %5775 = vmatprep.subr.mxu0 0.0
    %5776 = vmatpush1.msra.mxu0 0.0
    %5777 = vmatprep.subr.mxu0 0.0
    %5778 = vmatpush1.msra.mxu0 0.0
    %5779 = vmatprep.subr.mxu0 0.0
    %5780 = vmatpush1.msra.mxu0 0.0
    %5781 = vmatprep.subr.mxu0 0.0
    %5782 = vmatpush1.msra.mxu0 0.0
    %5783 = vmatprep.mubr.f32.mxu0 0.0
    %5784 = vmatmul.mubr.f32.gmra.mrb[0].mxu0 %v2818
    %v5785 = vpop.f32.mrb[0].mxu0
    %v5786 = vadd.f32 0.0, %v5785
    %v5787 = vpop.f32.mrb[0].mxu0
    %v5788 = vadd.f32 0.0, %v5787
    %5789 = vmatprep.mubr.f32.mxu0 0.0
    %5790 = vmatmul.mubr.f32.gmra.mrb[0].mxu0 %v2821
    %v5791 = vpop.f32.mrb[0].mxu0
    %v5792 = vadd.f32 0.0, %v5791
    %v5793 = vpop.f32.mrb[0].mxu0
    %v5794 = vadd.f32 0.0, %v5793
    %5795 = vdwg.mxu0
    %5796 = vmatprep.subr.mxu0 0.0
    %5797 = vmatpush1.msra.mxu0 %v5560
    %5798 = vmatprep.subr.mxu0 0.0
    %5799 = vmatpush1.msra.mxu0 %v5563
    %5800 = vmatprep.subr.mxu0 0.0
    %5801 = vmatpush1.msra.mxu0 %v5566
    %5802 = vmatprep.subr.mxu0 0.0
    %5803 = vmatpush1.msra.mxu0 0.0
    %5804 = vmatprep.subr.mxu0 0.0
    %5805 = vmatpush1.msra.mxu0 0.0
    %5806 = vmatprep.subr.mxu0 0.0
    %5807 = vmatpush1.msra.mxu0 0.0
    %5808 = vmatprep.subr.mxu0 0.0
    %5809 = vmatpush1.msra.mxu0 0.0
    %5810 = vmatprep.subr.mxu0 0.0
    %5811 = vmatpush1.msra.mxu0 0.0
    %5812 = vmatprep.subr.mxu0 0.0
    %5813 = vmatpush1.msra.mxu0 0.0
    %5814 = vmatprep.subr.mxu0 0.0
    %5815 = vmatpush1.msra.mxu0 0.0
    %5816 = vmatprep.subr.mxu0 0.0
    %5817 = vmatpush1.msra.mxu0 0.0
    %5818 = vmatprep.subr.mxu0 0.0
    %5819 = vmatpush1.msra.mxu0 0.0
    %5820 = vmatprep.subr.mxu0 0.0
    %5821 = vmatpush1.msra.mxu0 0.0
    %5822 = vmatprep.subr.mxu0 0.0
    %5823 = vmatpush1.msra.mxu0 0.0
    %5824 = vmatprep.subr.mxu0 0.0
    %5825 = vmatpush1.msra.mxu0 0.0
    %5826 = vmatprep.subr.mxu0 0.0
    %5827 = vmatpush1.msra.mxu0 0.0
    %5828 = vmatprep.subr.mxu0 0.0
    %5829 = vmatpush1.msra.mxu0 0.0
    %5830 = vmatprep.subr.mxu0 0.0
    %5831 = vmatpush1.msra.mxu0 0.0
    %5832 = vmatprep.subr.mxu0 0.0
    %5833 = vmatpush1.msra.mxu0 0.0
    %5834 = vmatprep.subr.mxu0 0.0
    %5835 = vmatpush1.msra.mxu0 0.0
    %5836 = vmatprep.subr.mxu0 0.0
    %5837 = vmatpush1.msra.mxu0 0.0
    %5838 = vmatprep.subr.mxu0 0.0
    %5839 = vmatpush1.msra.mxu0 0.0
    %5840 = vmatprep.subr.mxu0 0.0
    %5841 = vmatpush1.msra.mxu0 0.0
    %5842 = vmatprep.subr.mxu0 0.0
    %5843 = vmatpush1.msra.mxu0 0.0
    %5844 = vmatprep.subr.mxu0 0.0
    %5845 = vmatpush1.msra.mxu0 0.0
    %5846 = vmatprep.subr.mxu0 0.0
    %5847 = vmatpush1.msra.mxu0 0.0
    %5848 = vmatprep.subr.mxu0 0.0
    %5849 = vmatpush1.msra.mxu0 0.0
    %5850 = vmatprep.subr.mxu0 0.0
    %5851 = vmatpush1.msra.mxu0 0.0
    %5852 = vmatprep.subr.mxu0 0.0
    %5853 = vmatpush1.msra.mxu0 0.0
    %5854 = vmatprep.subr.mxu0 0.0
    %5855 = vmatpush1.msra.mxu0 0.0
    %5856 = vmatprep.subr.mxu0 0.0
    %5857 = vmatpush1.msra.mxu0 0.0
    %5858 = vmatprep.subr.mxu0 0.0
    %5859 = vmatpush1.msra.mxu0 0.0
    %5860 = vmatprep.mubr.f32.mxu0 0.0
    %5861 = vmatmul.mubr.f32.gmra.mrb[0].mxu0 %v2818
    %v5862 = vpop.f32.mrb[0].mxu0
    %v5863 = vadd.f32 0.0, %v5862
    %v5864 = vpop.f32.mrb[0].mxu0
    %5865 = vmatprep.mubr.f32.mxu0 0.0
    %5866 = vmatmul.mubr.f32.gmra.mrb[0].mxu0 %v2821
    %v5867 = vpop.f32.mrb[0].mxu0
    %v5868 = vadd.f32 0.0, %v5867
    %v5869 = vpop.f32.mrb[0].mxu0
    %5870 = vdwg.mxu0
    %v5871 = vmax.f32 %v5634, %v5786
    %v5872 = vmax.f32 %v5636, %v5788
    %v5873 = vmax.f32 %v5711, %v5863
    %v5874 = vmax.f32 %v5640, %v5792
    %v5875 = vmax.f32 %v5642, %v5794
    %v5876 = vmax.f32 %v5716, %v5868
    %v5877 = vpack.c.bf16 %v5874, %v5871
    %v5878 = vpack.c.bf16 %v5875, %v5872
    %v5879 = vpack.c.bf16 %v5876, %v5873
    %v5883 = vunpack.c.l.b16 %v5877
    %v5884 = vunpack.c.l.b16 %v5878
    %v5885 = vunpack.c.l.b16 %v5879
    %v5886 = vunpack.c.h.b16 %v5877
    %v5887 = vunpack.c.h.b16 %v5878
    %v5888 = vunpack.c.h.b16 %v5879
    %v5889 = vpack.c.b16 %v5884, %v5883
    %v5890 = vpack.c.b16 %v5885, %v5885
    %v5891 = vpack.c.b16 %v5887, %v5886
    %v5892 = vpack.c.b16 %v5888, %v5888
    %s5897 = scalar_lea.vmem %s4, 24
    %5898 = vst [vmem:[%s5897] sm:$0xff] %v5889
    %5899 = vst [vmem:[%s5897 + $0x8] sm:$0xf] %v5890
    %5900 = vst [vmem:[%s5897 + $0xc] sm:$0x33] %v5891
    %5901 = vst [vmem:[%s5897 + $0x14] sm:$0x3] %v5892
    // Predicated region
    $region26: #{forward.4} parent=1 // pred_check
      _
    $region27: #{forward.4} parent=1 // pred_check_branch
      %5903 = sbr.rel (0) target = $region29
    $region28: #{forward.4} parent=1 // pred_region
      _
    $region29: #{forward.4} parent=1 // pred_fallthru
      _
    // Predicated region
    $region30: #{forward.4} parent=1 // pred_check
      _
    $region31: #{forward.4} parent=1 // pred_check_branch
      %5905 = sbr.rel (0) target = $region33
    $region32: #{forward.4} parent=1 // pred_region
      _
    $region33: #{forward.4} parent=1 // pred_fallthru
      _
    %5906 = vsyncpa [#allocation3], 1
    %5907 = vsyncpa [#allocation5], 1

// kernel: forward.5
$region0: #{forward.5}
  #allocation0 [shape = 'u32[]', space=smem, size = 0x4, offset = 0x4, fixed_abs, tag = 'smem constant byte address 0x4 - core index']
  #allocation1 [shape = 'u32[144,128]{1,0:T(1,128)}', space=vmem, size = 0x12000, scoped, tag = 'internal scratch']
  %s0 = inlined_call_operand.vmem [shape: bf16[2,12,384], index: 0, kind: input, shape index: {}]
  %s1 = inlined_call_operand.vmem [shape: bf16[5,384,128], index: 1, kind: input, shape index: {}]
  %s2 = inlined_call_operand.vmem [shape: bf16[5,384,128], index: 2, kind: input, shape index: {}]
  %s3 = inlined_call_operand.vmem [shape: f32[1,128], index: 3, kind: input, shape index: {}]
  %s4 = inlined_call_operand.vmem [shape: bf16[2,4,128], index: 4, kind: output, shape index: {}]
  %s5 = sld [smem:[#allocation0]]
  $region26: #{forward.5} parent=0
    _
  %s7 = ssub.s32 1, %s5
  %s8 = scalar_select 0, %s7, %s5
  // Predicated region
  $region2: #{forward.5} parent=0 // pred_check
    _
  $region3: #{forward.5} parent=0 // pred_check_branch
    %10 = sbr.rel (0) target = $region5
  $region4: #{forward.5} parent=0 // pred_region
    _
  $region5: #{forward.5} parent=0 // pred_fallthru
    _
  // Predicated region
  $region6: #{forward.5} parent=0 // pred_check
    _
  $region7: #{forward.5} parent=0 // pred_check_branch
    %12 = sbr.rel (0) target = $region9
  $region8: #{forward.5} parent=0 // pred_region
    _
  $region9: #{forward.5} parent=0 // pred_fallthru
    _
  // Predicated region
  $region10: #{forward.5} parent=0 // pred_check
    _
  $region11: #{forward.5} parent=0 // pred_check_branch
    %14 = sbr.rel (0) target = $region13
  $region12: #{forward.5} parent=0 // pred_region
    _
  $region13: #{forward.5} parent=0 // pred_fallthru
    _
  // Predicated region
  $region14: #{forward.5} parent=0 // pred_check
    _
  $region15: #{forward.5} parent=0 // pred_check_branch
    %16 = sbr.rel (0) target = $region17
  $region16: #{forward.5} parent=0 // pred_region
    _
  $region17: #{forward.5} parent=0 // pred_fallthru
    _
  %v18 = vld [vmem:[%s3] sm:$0x1]
  %v19 = vlaneseq
  %v20 = vshrl.u32 %v19, 7
  %v21 = vlaneseq
  %v22 = vand.u32 %v21, 127
  %v23 = vmul.u32 %v20, 2
  %vm24 = vcmp.eq.s32.totalorder %v22, %v23
  %v25 = vsel %vm24, 1, 0
  %v26 = vcvt.s32.f32 %v25
  %v27 = vadd.s32 %v23, 1
  %vm28 = vcmp.eq.s32.totalorder %v22, %v27
  %v29 = vsel %vm28, 1, 0
  %v30 = vcvt.s32.f32 %v29
  %v31 = vld [vmem:[%s0] sm:$0xff]
  %v32 = vld [vmem:[%s0 + $0x8] sm:$0xf]
  %v33 = vld [vmem:[%s0 + $0xc] sm:$0x33]
  %v34 = vld [vmem:[%s0 + $0x14] sm:$0x3]
  %v35 = vld [vmem:[%s1] sm:$0xf]
  %v36 = vld [vmem:[%s1 + $0x4] sm:$0xf]
  %v37 = vld [vmem:[%s1 + $0x8] sm:$0xf]
  %v38 = vld [vmem:[%s1 + $0xc] sm:$0xf]
  %v39 = vld [vmem:[%s1 + $0x10] sm:$0xf]
  %v40 = vld [vmem:[%s1 + $0x14] sm:$0xf]
  %v41 = vld [vmem:[%s1 + $0x18] sm:$0xf]
  %v42 = vld [vmem:[%s1 + $0x1c] sm:$0xf]
  %v43 = vld [vmem:[%s1 + $0x20] sm:$0xf]
  %v44 = vld [vmem:[%s1 + $0x24] sm:$0xf]
  %v45 = vld [vmem:[%s1 + $0x28] sm:$0xf]
  %v46 = vld [vmem:[%s1 + $0x2c] sm:$0xf]
  %v47 = vld [vmem:[%s1 + $0x30] sm:$0xf]
  %v48 = vld [vmem:[%s1 + $0x34] sm:$0xf]
  %v49 = vld [vmem:[%s1 + $0x38] sm:$0xf]
  %v50 = vld [vmem:[%s1 + $0x3c] sm:$0xf]
  %v51 = vld [vmem:[%s1 + $0x40] sm:$0xf]
  %v52 = vld [vmem:[%s1 + $0x44] sm:$0xf]
  %v53 = vld [vmem:[%s1 + $0x48] sm:$0xf]
  %v54 = vld [vmem:[%s1 + $0x4c] sm:$0xf]
  %v55 = vld [vmem:[%s1 + $0x50] sm:$0xf]
  %v56 = vld [vmem:[%s1 + $0x54] sm:$0xf]
  %v57 = vld [vmem:[%s1 + $0x58] sm:$0xf]
  %v58 = vld [vmem:[%s1 + $0x5c] sm:$0xf]
  %v59 = vld [vmem:[%s1 + $0x60] sm:$0xf]
  %v60 = vld [vmem:[%s1 + $0x64] sm:$0xf]
  %v61 = vld [vmem:[%s1 + $0x68] sm:$0xf]
  %v62 = vld [vmem:[%s1 + $0x6c] sm:$0xf]
  %v63 = vld [vmem:[%s1 + $0x70] sm:$0xf]
  %v64 = vld [vmem:[%s1 + $0x74] sm:$0xf]
  %v65 = vld [vmem:[%s1 + $0x78] sm:$0xf]
  %v66 = vld [vmem:[%s1 + $0x7c] sm:$0xf]
  %v67 = vld [vmem:[%s1 + $0x80] sm:$0xf]
  %v68 = vld [vmem:[%s1 + $0x84] sm:$0xf]
  %v69 = vld [vmem:[%s1 + $0x88] sm:$0xf]
  %v70 = vld [vmem:[%s1 + $0x8c] sm:$0xf]
  %v71 = vld [vmem:[%s1 + $0x90] sm:$0xf]
  %v72 = vld [vmem:[%s1 + $0x94] sm:$0xf]
  %v73 = vld [vmem:[%s1 + $0x98] sm:$0xf]
  %v74 = vld [vmem:[%s1 + $0x9c] sm:$0xf]
  %v75 = vld [vmem:[%s1 + $0xa0] sm:$0xf]
  %v76 = vld [vmem:[%s1 + $0xa4] sm:$0xf]
  %v77 = vld [vmem:[%s1 + $0xa8] sm:$0xf]
  %v78 = vld [vmem:[%s1 + $0xac] sm:$0xf]
  %v79 = vld [vmem:[%s1 + $0xb0] sm:$0xf]
  %v80 = vld [vmem:[%s1 + $0xb4] sm:$0xf]
  %v81 = vld [vmem:[%s1 + $0xb8] sm:$0xf]
  %v82 = vld [vmem:[%s1 + $0xbc] sm:$0xf]
  %v83 = vld [vmem:[%s2] sm:$0xf]
  %v84 = vld [vmem:[%s2 + $0x4] sm:$0xf]
  %v85 = vld [vmem:[%s2 + $0x8] sm:$0xf]
  %v86 = vld [vmem:[%s2 + $0xc] sm:$0xf]
  %v87 = vld [vmem:[%s2 + $0x10] sm:$0xf]
  %v88 = vld [vmem:[%s2 + $0x14] sm:$0xf]
  %v89 = vld [vmem:[%s2 + $0x18] sm:$0xf]
  %v90 = vld [vmem:[%s2 + $0x1c] sm:$0xf]
  %v91 = vld [vmem:[%s2 + $0x20] sm:$0xf]
  %v92 = vld [vmem:[%s2 + $0x24] sm:$0xf]
  %v93 = vld [vmem:[%s2 + $0x28] sm:$0xf]
  %v94 = vld [vmem:[%s2 + $0x2c] sm:$0xf]
  %v95 = vld [vmem:[%s2 + $0x30] sm:$0xf]
  %v96 = vld [vmem:[%s2 + $0x34] sm:$0xf]
  %v97 = vld [vmem:[%s2 + $0x38] sm:$0xf]
  %v98 = vld [vmem:[%s2 + $0x3c] sm:$0xf]
  %v99 = vld [vmem:[%s2 + $0x40] sm:$0xf]
  %v100 = vld [vmem:[%s2 + $0x44] sm:$0xf]
  %v101 = vld [vmem:[%s2 + $0x48] sm:$0xf]
  %v102 = vld [vmem:[%s2 + $0x4c] sm:$0xf]
  %v103 = vld [vmem:[%s2 + $0x50] sm:$0xf]
  %v104 = vld [vmem:[%s2 + $0x54] sm:$0xf]
  %v105 = vld [vmem:[%s2 + $0x58] sm:$0xf]
  %v106 = vld [vmem:[%s2 + $0x5c] sm:$0xf]
  %v107 = vld [vmem:[%s2 + $0x60] sm:$0xf]
  %v108 = vld [vmem:[%s2 + $0x64] sm:$0xf]
  %v109 = vld [vmem:[%s2 + $0x68] sm:$0xf]
  %v110 = vld [vmem:[%s2 + $0x6c] sm:$0xf]
  %v111 = vld [vmem:[%s2 + $0x70] sm:$0xf]
  %v112 = vld [vmem:[%s2 + $0x74] sm:$0xf]
  %v113 = vld [vmem:[%s2 + $0x78] sm:$0xf]
  %v114 = vld [vmem:[%s2 + $0x7c] sm:$0xf]
  %v115 = vld [vmem:[%s2 + $0x80] sm:$0xf]
  %v116 = vld [vmem:[%s2 + $0x84] sm:$0xf]
  %v117 = vld [vmem:[%s2 + $0x88] sm:$0xf]
  %v118 = vld [vmem:[%s2 + $0x8c] sm:$0xf]
  %v119 = vld [vmem:[%s2 + $0x90] sm:$0xf]
  %v120 = vld [vmem:[%s2 + $0x94] sm:$0xf]
  %v121 = vld [vmem:[%s2 + $0x98] sm:$0xf]
  %v122 = vld [vmem:[%s2 + $0x9c] sm:$0xf]
  %v123 = vld [vmem:[%s2 + $0xa0] sm:$0xf]
  %v124 = vld [vmem:[%s2 + $0xa4] sm:$0xf]
  %v125 = vld [vmem:[%s2 + $0xa8] sm:$0xf]
  %v126 = vld [vmem:[%s2 + $0xac] sm:$0xf]
  %v127 = vld [vmem:[%s2 + $0xb0] sm:$0xf]
  %v128 = vld [vmem:[%s2 + $0xb4] sm:$0xf]
  %v129 = vld [vmem:[%s2 + $0xb8] sm:$0xf]
  %v130 = vld [vmem:[%s2 + $0xbc] sm:$0xf]
  %s131 = scalar_lea.vmem %s1, 192
  %v132 = vld [vmem:[%s131] sm:$0xf]
  %v133 = vld [vmem:[%s131 + $0x4] sm:$0xf]
  %v134 = vld [vmem:[%s131 + $0x8] sm:$0xf]
  %v135 = vld [vmem:[%s131 + $0xc] sm:$0xf]
  %v136 = vld [vmem:[%s131 + $0x10] sm:$0xf]
  %v137 = vld [vmem:[%s131 + $0x14] sm:$0xf]
  %v138 = vld [vmem:[%s131 + $0x18] sm:$0xf]
  %v139 = vld [vmem:[%s131 + $0x1c] sm:$0xf]
  %v140 = vld [vmem:[%s131 + $0x20] sm:$0xf]
  %v141 = vld [vmem:[%s131 + $0x24] sm:$0xf]
  %v142 = vld [vmem:[%s131 + $0x28] sm:$0xf]
  %v143 = vld [vmem:[%s131 + $0x2c] sm:$0xf]
  %v144 = vld [vmem:[%s131 + $0x30] sm:$0xf]
  %v145 = vld [vmem:[%s131 + $0x34] sm:$0xf]
  %v146 = vld [vmem:[%s131 + $0x38] sm:$0xf]
  %v147 = vld [vmem:[%s131 + $0x3c] sm:$0xf]
  %v148 = vld [vmem:[%s131 + $0x40] sm:$0xf]
  %v149 = vld [vmem:[%s131 + $0x44] sm:$0xf]
  %v150 = vld [vmem:[%s131 + $0x48] sm:$0xf]
  %v151 = vld [vmem:[%s131 + $0x4c] sm:$0xf]
  %v152 = vld [vmem:[%s131 + $0x50] sm:$0xf]
  %v153 = vld [vmem:[%s131 + $0x54] sm:$0xf]
  %v154 = vld [vmem:[%s131 + $0x58] sm:$0xf]
  %v155 = vld [vmem:[%s131 + $0x5c] sm:$0xf]
  %v156 = vld [vmem:[%s131 + $0x60] sm:$0xf]
  %v157 = vld [vmem:[%s131 + $0x64] sm:$0xf]
  %v158 = vld [vmem:[%s131 + $0x68] sm:$0xf]
  %v159 = vld [vmem:[%s131 + $0x6c] sm:$0xf]
  %v160 = vld [vmem:[%s131 + $0x70] sm:$0xf]
  %v161 = vld [vmem:[%s131 + $0x74] sm:$0xf]
  %v162 = vld [vmem:[%s131 + $0x78] sm:$0xf]
  %v163 = vld [vmem:[%s131 + $0x7c] sm:$0xf]
  %v164 = vld [vmem:[%s131 + $0x80] sm:$0xf]
  %v165 = vld [vmem:[%s131 + $0x84] sm:$0xf]
  %v166 = vld [vmem:[%s131 + $0x88] sm:$0xf]
  %v167 = vld [vmem:[%s131 + $0x8c] sm:$0xf]
  %v168 = vld [vmem:[%s131 + $0x90] sm:$0xf]
  %v169 = vld [vmem:[%s131 + $0x94] sm:$0xf]
  %v170 = vld [vmem:[%s131 + $0x98] sm:$0xf]
  %v171 = vld [vmem:[%s131 + $0x9c] sm:$0xf]
  %v172 = vld [vmem:[%s131 + $0xa0] sm:$0xf]
  %v173 = vld [vmem:[%s131 + $0xa4] sm:$0xf]
  %v174 = vld [vmem:[%s131 + $0xa8] sm:$0xf]
  %v175 = vld [vmem:[%s131 + $0xac] sm:$0xf]
  %v176 = vld [vmem:[%s131 + $0xb0] sm:$0xf]
  %v177 = vld [vmem:[%s131 + $0xb4] sm:$0xf]
  %v178 = vld [vmem:[%s131 + $0xb8] sm:$0xf]
  %v179 = vld [vmem:[%s131 + $0xbc] sm:$0xf]
  %v184 = vunpack.c.l.b16 %v31
  %v185 = vunpack.c.h.b16 %v31
  %v186 = vunpack.c.l.b16 %v32
  %v187 = vunpack.c.l.b16 %v33
  %v188 = vunpack.c.h.b16 %v33
  %v189 = vunpack.c.l.b16 %v34
  %v190 = vpack.c.b16 %v187, %v184
  %v191 = vpack.c.b16 %v188, %v185
  %v192 = vpack.c.b16 %v189, %v186
  %v194 = vshrl.u32 %v190, 16
  %v196 = vshll.u32 %v190, 16
  %v198 = vrot.slane %v196, 1
  %v199 = vor.u32 %v194, %v198
  %v201 = vshrl.u32 %v191, 16
  %v203 = vshll.u32 %v191, 16
  %v205 = vrot.slane %v203, 1
  %v206 = vor.u32 %v201, %v205
  %v208 = vshrl.u32 %v192, 16
  %v210 = vshll.u32 %v192, 16
  %v212 = vrot.slane %v210, 1
  %v213 = vor.u32 %v208, %v212
  %v265 = vunpack.c.l.b16 %v132
  %v266 = vunpack.c.l.b16 %v133
  %v267 = vunpack.c.l.b16 %v134
  %v268 = vunpack.c.l.b16 %v135
  %v269 = vunpack.c.l.b16 %v136
  %v270 = vunpack.c.l.b16 %v137
  %v271 = vunpack.c.l.b16 %v138
  %v272 = vunpack.c.l.b16 %v139
  %v273 = vunpack.c.l.b16 %v140
  %v274 = vunpack.c.l.b16 %v141
  %v275 = vunpack.c.l.b16 %v142
  %v276 = vunpack.c.l.b16 %v143
  %v277 = vunpack.c.l.b16 %v144
  %v278 = vunpack.c.l.b16 %v145
  %v279 = vunpack.c.l.b16 %v146
  %v280 = vunpack.c.l.b16 %v147
  %v281 = vunpack.c.l.b16 %v148
  %v282 = vunpack.c.l.b16 %v149
  %v283 = vunpack.c.l.b16 %v150
  %v284 = vunpack.c.l.b16 %v151
  %v285 = vunpack.c.l.b16 %v152
  %v286 = vunpack.c.l.b16 %v153
  %v287 = vunpack.c.l.b16 %v154
  %v288 = vunpack.c.l.b16 %v155
  %v289 = vunpack.c.l.b16 %v156
  %v290 = vunpack.c.l.b16 %v157
  %v291 = vunpack.c.l.b16 %v158
  %v292 = vunpack.c.l.b16 %v159
  %v293 = vunpack.c.l.b16 %v160
  %v294 = vunpack.c.l.b16 %v161
  %v295 = vunpack.c.l.b16 %v162
  %v296 = vunpack.c.l.b16 %v163
  %v297 = vunpack.c.l.b16 %v164
  %v298 = vunpack.c.l.b16 %v165
  %v299 = vunpack.c.l.b16 %v166
  %v300 = vunpack.c.l.b16 %v167
  %v301 = vunpack.c.l.b16 %v168
  %v302 = vunpack.c.l.b16 %v169
  %v303 = vunpack.c.l.b16 %v170
  %v304 = vunpack.c.l.b16 %v171
  %v305 = vunpack.c.l.b16 %v172
  %v306 = vunpack.c.l.b16 %v173
  %v307 = vunpack.c.l.b16 %v174
  %v308 = vunpack.c.l.b16 %v175
  %v309 = vunpack.c.l.b16 %v176
  %v310 = vunpack.c.l.b16 %v177
  %v311 = vunpack.c.l.b16 %v178
  %v312 = vunpack.c.l.b16 %v179
  %v313 = vpack.c.b16 %v266, %v265
  %v314 = vpack.c.b16 %v268, %v267
  %v315 = vpack.c.b16 %v270, %v269
  %v316 = vpack.c.b16 %v272, %v271
  %v317 = vpack.c.b16 %v274, %v273
  %v318 = vpack.c.b16 %v276, %v275
  %v319 = vpack.c.b16 %v278, %v277
  %v320 = vpack.c.b16 %v280, %v279
  %v321 = vpack.c.b16 %v282, %v281
  %v322 = vpack.c.b16 %v284, %v283
  %v323 = vpack.c.b16 %v286, %v285
  %v324 = vpack.c.b16 %v288, %v287
  %v325 = vpack.c.b16 %v290, %v289
  %v326 = vpack.c.b16 %v292, %v291
  %v327 = vpack.c.b16 %v294, %v293
  %v328 = vpack.c.b16 %v296, %v295
  %v329 = vpack.c.b16 %v298, %v297
  %v330 = vpack.c.b16 %v300, %v299
  %v331 = vpack.c.b16 %v302, %v301
  %v332 = vpack.c.b16 %v304, %v303
  %v333 = vpack.c.b16 %v306, %v305
  %v334 = vpack.c.b16 %v308, %v307
  %v335 = vpack.c.b16 %v310, %v309
  %v336 = vpack.c.b16 %v312, %v311
  %361 = vmatprep.subr.bf16.mxu0 0
  %362 = vmatpush1.bf16.msra.mxu0 %v313
  %363 = vmatprep.subr.bf16.mxu0 0
  %364 = vmatpush1.bf16.msra.mxu0 %v314
  %365 = vmatprep.subr.bf16.mxu0 0
  %366 = vmatpush1.bf16.msra.mxu0 %v315
  %367 = vmatprep.subr.bf16.mxu0 0
  %368 = vmatpush1.bf16.msra.mxu0 %v316
  %369 = vmatprep.subr.bf16.mxu0 0
  %370 = vmatpush1.bf16.msra.mxu0 %v317
  %371 = vmatprep.subr.bf16.mxu0 0
  %372 = vmatpush1.bf16.msra.mxu0 %v318
  %373 = vmatprep.subr.bf16.mxu0 0
  %374 = vmatpush1.bf16.msra.mxu0 %v319
  %375 = vmatprep.subr.bf16.mxu0 0
  %376 = vmatpush1.bf16.msra.mxu0 %v320
  %377 = vmatprep.subr.bf16.mxu0 0
  %378 = vmatpush1.bf16.msra.mxu0 %v321
  %379 = vmatprep.subr.bf16.mxu0 0
  %380 = vmatpush1.bf16.msra.mxu0 %v322
  %381 = vmatprep.subr.bf16.mxu0 0
  %382 = vmatpush1.bf16.msra.mxu0 %v323
  %383 = vmatprep.subr.bf16.mxu0 0
  %384 = vmatpush1.bf16.msra.mxu0 %v324
  %385 = vmatprep.subr.bf16.mxu0 0
  %386 = vmatpush1.bf16.msra.mxu0 %v325
  %387 = vmatprep.subr.bf16.mxu0 0
  %388 = vmatpush1.bf16.msra.mxu0 %v326
  %389 = vmatprep.subr.bf16.mxu0 0
  %390 = vmatpush1.bf16.msra.mxu0 %v327
  %391 = vmatprep.subr.bf16.mxu0 0
  %392 = vmatpush1.bf16.msra.mxu0 %v328
  %393 = vmatprep.mubr.bf16.mxu0 %v206
  %394 = vmatmul.mubr.bf16.gmra.mrb[0].mxu0 %v199
  %v395 = vpop.f32.mrb[0].mxu0
  %v396 = vadd.f32 0.0, %v395
  %v397 = vpop.f32.mrb[0].mxu0
  %v398 = vpop.f32.mrb[0].mxu0
  %v399 = vpop.f32.mrb[0].mxu0
  %400 = vdwg.mxu0
  %401 = vmatprep.subr.bf16.mxu0 0
  %402 = vmatpush1.bf16.msra.mxu0 %v329
  %403 = vmatprep.subr.bf16.mxu0 0
  %404 = vmatpush1.bf16.msra.mxu0 %v330
  %405 = vmatprep.subr.bf16.mxu0 0
  %406 = vmatpush1.bf16.msra.mxu0 %v331
  %407 = vmatprep.subr.bf16.mxu0 0
  %408 = vmatpush1.bf16.msra.mxu0 %v332
  %409 = vmatprep.subr.bf16.mxu0 0
  %410 = vmatpush1.bf16.msra.mxu0 %v333
  %411 = vmatprep.subr.bf16.mxu0 0
  %412 = vmatpush1.bf16.msra.mxu0 %v334
  %413 = vmatprep.subr.bf16.mxu0 0
  %414 = vmatpush1.bf16.msra.mxu0 %v335
  %415 = vmatprep.subr.bf16.mxu0 0
  %416 = vmatpush1.bf16.msra.mxu0 %v336
  %417 = vmatprep.subr.bf16.mxu0 0
  %418 = vmatpush1.bf16.msra.mxu0 0
  %419 = vmatprep.subr.bf16.mxu0 0
  %420 = vmatpush1.bf16.msra.mxu0 0
  %421 = vmatprep.subr.bf16.mxu0 0
  %422 = vmatpush1.bf16.msra.mxu0 0
  %423 = vmatprep.subr.bf16.mxu0 0
  %424 = vmatpush1.bf16.msra.mxu0 0
  %425 = vmatprep.subr.bf16.mxu0 0
  %426 = vmatpush1.bf16.msra.mxu0 0
  %427 = vmatprep.subr.bf16.mxu0 0
  %428 = vmatpush1.bf16.msra.mxu0 0
  %429 = vmatprep.subr.bf16.mxu0 0
  %430 = vmatpush1.bf16.msra.mxu0 0
  %431 = vmatprep.subr.bf16.mxu0 0
  %432 = vmatpush1.bf16.msra.mxu0 0
  %433 = vmatprep.mubr.bf16.mxu0 0
  %434 = vmatmul.mubr.bf16.gmra.mrb[0].mxu0 %v213
  %v435 = vpop.f32.mrb[0].mxu0
  %v436 = vadd.f32 %v396, %v435
  %v437 = vpop.f32.mrb[0].mxu0
  %v438 = vpop.f32.mrb[0].mxu0
  %v439 = vpop.f32.mrb[0].mxu0
  %440 = vdwg.mxu0
  %v441 = vpack.c.b16 %v184, %v184
  %v442 = vpack.c.b16 %v185, %v185
  %v443 = vpack.c.b16 %v186, %v186
  %v495 = vunpack.c.l.b16 %v35
  %v496 = vunpack.c.l.b16 %v36
  %v497 = vunpack.c.l.b16 %v37
  %v498 = vunpack.c.l.b16 %v38
  %v499 = vunpack.c.l.b16 %v39
  %v500 = vunpack.c.l.b16 %v40
  %v501 = vunpack.c.l.b16 %v41
  %v502 = vunpack.c.l.b16 %v42
  %v503 = vunpack.c.l.b16 %v43
  %v504 = vunpack.c.l.b16 %v44
  %v505 = vunpack.c.l.b16 %v45
  %v506 = vunpack.c.l.b16 %v46
  %v507 = vunpack.c.l.b16 %v47
  %v508 = vunpack.c.l.b16 %v48
  %v509 = vunpack.c.l.b16 %v49
  %v510 = vunpack.c.l.b16 %v50
  %v511 = vunpack.c.l.b16 %v51
  %v512 = vunpack.c.l.b16 %v52
  %v513 = vunpack.c.l.b16 %v53
  %v514 = vunpack.c.l.b16 %v54
  %v515 = vunpack.c.l.b16 %v55
  %v516 = vunpack.c.l.b16 %v56
  %v517 = vunpack.c.l.b16 %v57
  %v518 = vunpack.c.l.b16 %v58
  %v519 = vunpack.c.l.b16 %v59
  %v520 = vunpack.c.l.b16 %v60
  %v521 = vunpack.c.l.b16 %v61
  %v522 = vunpack.c.l.b16 %v62
  %v523 = vunpack.c.l.b16 %v63
  %v524 = vunpack.c.l.b16 %v64
  %v525 = vunpack.c.l.b16 %v65
  %v526 = vunpack.c.l.b16 %v66
  %v527 = vunpack.c.l.b16 %v67
  %v528 = vunpack.c.l.b16 %v68
  %v529 = vunpack.c.l.b16 %v69
  %v530 = vunpack.c.l.b16 %v70
  %v531 = vunpack.c.l.b16 %v71
  %v532 = vunpack.c.l.b16 %v72
  %v533 = vunpack.c.l.b16 %v73
  %v534 = vunpack.c.l.b16 %v74
  %v535 = vunpack.c.l.b16 %v75
  %v536 = vunpack.c.l.b16 %v76
  %v537 = vunpack.c.l.b16 %v77
  %v538 = vunpack.c.l.b16 %v78
  %v539 = vunpack.c.l.b16 %v79
  %v540 = vunpack.c.l.b16 %v80
  %v541 = vunpack.c.l.b16 %v81
  %v542 = vunpack.c.l.b16 %v82
  %v543 = vpack.c.b16 %v496, %v495
  %v544 = vpack.c.b16 %v498, %v497
  %v545 = vpack.c.b16 %v500, %v499
  %v546 = vpack.c.b16 %v502, %v501
  %v547 = vpack.c.b16 %v504, %v503
  %v548 = vpack.c.b16 %v506, %v505
  %v549 = vpack.c.b16 %v508, %v507
  %v550 = vpack.c.b16 %v510, %v509
  %v551 = vpack.c.b16 %v512, %v511
  %v552 = vpack.c.b16 %v514, %v513
  %v553 = vpack.c.b16 %v516, %v515
  %v554 = vpack.c.b16 %v518, %v517
  %v555 = vpack.c.b16 %v520, %v519
  %v556 = vpack.c.b16 %v522, %v521
  %v557 = vpack.c.b16 %v524, %v523
  %v558 = vpack.c.b16 %v526, %v525
  %v559 = vpack.c.b16 %v528, %v527
  %v560 = vpack.c.b16 %v530, %v529
  %v561 = vpack.c.b16 %v532, %v531
  %v562 = vpack.c.b16 %v534, %v533
  %v563 = vpack.c.b16 %v536, %v535
  %v564 = vpack.c.b16 %v538, %v537
  %v565 = vpack.c.b16 %v540, %v539
  %v566 = vpack.c.b16 %v542, %v541
  %591 = vmatprep.subr.bf16.mxu0 0
  %592 = vmatpush1.bf16.msra.mxu0 %v543
  %593 = vmatprep.subr.bf16.mxu0 0
  %594 = vmatpush1.bf16.msra.mxu0 %v544
  %595 = vmatprep.subr.bf16.mxu0 0
  %596 = vmatpush1.bf16.msra.mxu0 %v545
  %597 = vmatprep.subr.bf16.mxu0 0
  %598 = vmatpush1.bf16.msra.mxu0 %v546
  %599 = vmatprep.subr.bf16.mxu0 0
  %600 = vmatpush1.bf16.msra.mxu0 %v547
  %601 = vmatprep.subr.bf16.mxu0 0
  %602 = vmatpush1.bf16.msra.mxu0 %v548
  %603 = vmatprep.subr.bf16.mxu0 0
  %604 = vmatpush1.bf16.msra.mxu0 %v549
  %605 = vmatprep.subr.bf16.mxu0 0
  %606 = vmatpush1.bf16.msra.mxu0 %v550
  %607 = vmatprep.subr.bf16.mxu0 0
  %608 = vmatpush1.bf16.msra.mxu0 %v551
  %609 = vmatprep.subr.bf16.mxu0 0
  %610 = vmatpush1.bf16.msra.mxu0 %v552
  %611 = vmatprep.subr.bf16.mxu0 0
  %612 = vmatpush1.bf16.msra.mxu0 %v553
  %613 = vmatprep.subr.bf16.mxu0 0
  %614 = vmatpush1.bf16.msra.mxu0 %v554
  %615 = vmatprep.subr.bf16.mxu0 0
  %616 = vmatpush1.bf16.msra.mxu0 %v555
  %617 = vmatprep.subr.bf16.mxu0 0
  %618 = vmatpush1.bf16.msra.mxu0 %v556
  %619 = vmatprep.subr.bf16.mxu0 0
  %620 = vmatpush1.bf16.msra.mxu0 %v557
  %621 = vmatprep.subr.bf16.mxu0 0
  %622 = vmatpush1.bf16.msra.mxu0 %v558
  %623 = vmatprep.mubr.bf16.mxu0 %v442
  %624 = vmatmul.mubr.bf16.gmra.mrb[0].mxu0 %v441
  %v625 = vpop.f32.mrb[0].mxu0
  %v626 = vadd.f32 %v436, %v625
  %v627 = vpop.f32.mrb[0].mxu0
  %v628 = vpop.f32.mrb[0].mxu0
  %v629 = vpop.f32.mrb[0].mxu0
  %630 = vdwg.mxu0
  %631 = vmatprep.subr.bf16.mxu0 0
  %632 = vmatpush1.bf16.msra.mxu0 %v559
  %633 = vmatprep.subr.bf16.mxu0 0
  %634 = vmatpush1.bf16.msra.mxu0 %v560
  %635 = vmatprep.subr.bf16.mxu0 0
  %636 = vmatpush1.bf16.msra.mxu0 %v561
  %637 = vmatprep.subr.bf16.mxu0 0
  %638 = vmatpush1.bf16.msra.mxu0 %v562
  %639 = vmatprep.subr.bf16.mxu0 0
  %640 = vmatpush1.bf16.msra.mxu0 %v563
  %641 = vmatprep.subr.bf16.mxu0 0
  %642 = vmatpush1.bf16.msra.mxu0 %v564
  %643 = vmatprep.subr.bf16.mxu0 0
  %644 = vmatpush1.bf16.msra.mxu0 %v565
  %645 = vmatprep.subr.bf16.mxu0 0
  %646 = vmatpush1.bf16.msra.mxu0 %v566
  %647 = vmatprep.subr.bf16.mxu0 0
  %648 = vmatpush1.bf16.msra.mxu0 0
  %649 = vmatprep.subr.bf16.mxu0 0
  %650 = vmatpush1.bf16.msra.mxu0 0
  %651 = vmatprep.subr.bf16.mxu0 0
  %652 = vmatpush1.bf16.msra.mxu0 0
  %653 = vmatprep.subr.bf16.mxu0 0
  %654 = vmatpush1.bf16.msra.mxu0 0
  %655 = vmatprep.subr.bf16.mxu0 0
  %656 = vmatpush1.bf16.msra.mxu0 0
  %657 = vmatprep.subr.bf16.mxu0 0
  %658 = vmatpush1.bf16.msra.mxu0 0
  %659 = vmatprep.subr.bf16.mxu0 0
  %660 = vmatpush1.bf16.msra.mxu0 0
  %661 = vmatprep.subr.bf16.mxu0 0
  %662 = vmatpush1.bf16.msra.mxu0 0
  %663 = vmatprep.mubr.bf16.mxu0 0
  %664 = vmatmul.mubr.bf16.gmra.mrb[0].mxu0 %v443
  %v665 = vpop.f32.mrb[0].mxu0
  %v666 = vadd.f32 %v626, %v665
  %v667 = vpop.f32.mrb[0].mxu0
  %v668 = vpop.f32.mrb[0].mxu0
  %v669 = vpop.f32.mrb[0].mxu0
  %670 = vdwg.mxu0
  %s671 = scalar_lea.vmem %s2, 192
  %v672 = vld [vmem:[%s671] sm:$0xf]
  %v673 = vld [vmem:[%s671 + $0x4] sm:$0xf]
  %v674 = vld [vmem:[%s671 + $0x8] sm:$0xf]
  %v675 = vld [vmem:[%s671 + $0xc] sm:$0xf]
  %v676 = vld [vmem:[%s671 + $0x10] sm:$0xf]
  %v677 = vld [vmem:[%s671 + $0x14] sm:$0xf]
  %v678 = vld [vmem:[%s671 + $0x18] sm:$0xf]
  %v679 = vld [vmem:[%s671 + $0x1c] sm:$0xf]
  %v680 = vld [vmem:[%s671 + $0x20] sm:$0xf]
  %v681 = vld [vmem:[%s671 + $0x24] sm:$0xf]
  %v682 = vld [vmem:[%s671 + $0x28] sm:$0xf]
  %v683 = vld [vmem:[%s671 + $0x2c] sm:$0xf]
  %v684 = vld [vmem:[%s671 + $0x30] sm:$0xf]
  %v685 = vld [vmem:[%s671 + $0x34] sm:$0xf]
  %v686 = vld [vmem:[%s671 + $0x38] sm:$0xf]
  %v687 = vld [vmem:[%s671 + $0x3c] sm:$0xf]
  %v688 = vld [vmem:[%s671 + $0x40] sm:$0xf]
  %v689 = vld [vmem:[%s671 + $0x44] sm:$0xf]
  %v690 = vld [vmem:[%s671 + $0x48] sm:$0xf]
  %v691 = vld [vmem:[%s671 + $0x4c] sm:$0xf]
  %v692 = vld [vmem:[%s671 + $0x50] sm:$0xf]
  %v693 = vld [vmem:[%s671 + $0x54] sm:$0xf]
  %v694 = vld [vmem:[%s671 + $0x58] sm:$0xf]
  %v695 = vld [vmem:[%s671 + $0x5c] sm:$0xf]
  %v696 = vld [vmem:[%s671 + $0x60] sm:$0xf]
  %v697 = vld [vmem:[%s671 + $0x64] sm:$0xf]
  %v698 = vld [vmem:[%s671 + $0x68] sm:$0xf]
  %v699 = vld [vmem:[%s671 + $0x6c] sm:$0xf]
  %v700 = vld [vmem:[%s671 + $0x70] sm:$0xf]
  %v701 = vld [vmem:[%s671 + $0x74] sm:$0xf]
  %v702 = vld [vmem:[%s671 + $0x78] sm:$0xf]
  %v703 = vld [vmem:[%s671 + $0x7c] sm:$0xf]
  %v704 = vld [vmem:[%s671 + $0x80] sm:$0xf]
  %v705 = vld [vmem:[%s671 + $0x84] sm:$0xf]
  %v706 = vld [vmem:[%s671 + $0x88] sm:$0xf]
  %v707 = vld [vmem:[%s671 + $0x8c] sm:$0xf]
  %v708 = vld [vmem:[%s671 + $0x90] sm:$0xf]
  %v709 = vld [vmem:[%s671 + $0x94] sm:$0xf]
  %v710 = vld [vmem:[%s671 + $0x98] sm:$0xf]
  %v711 = vld [vmem:[%s671 + $0x9c] sm:$0xf]
  %v712 = vld [vmem:[%s671 + $0xa0] sm:$0xf]
  %v713 = vld [vmem:[%s671 + $0xa4] sm:$0xf]
  %v714 = vld [vmem:[%s671 + $0xa8] sm:$0xf]
  %v715 = vld [vmem:[%s671 + $0xac] sm:$0xf]
  %v716 = vld [vmem:[%s671 + $0xb0] sm:$0xf]
  %v717 = vld [vmem:[%s671 + $0xb4] sm:$0xf]
  %v718 = vld [vmem:[%s671 + $0xb8] sm:$0xf]
  %v719 = vld [vmem:[%s671 + $0xbc] sm:$0xf]
  %v768 = vunpack.c.l.b16 %v672
  %v769 = vunpack.c.l.b16 %v673
  %v770 = vunpack.c.l.b16 %v674
  %v771 = vunpack.c.l.b16 %v675
  %v772 = vunpack.c.l.b16 %v676
  %v773 = vunpack.c.l.b16 %v677
  %v774 = vunpack.c.l.b16 %v678
  %v775 = vunpack.c.l.b16 %v679
  %v776 = vunpack.c.l.b16 %v680
  %v777 = vunpack.c.l.b16 %v681
  %v778 = vunpack.c.l.b16 %v682
  %v779 = vunpack.c.l.b16 %v683
  %v780 = vunpack.c.l.b16 %v684
  %v781 = vunpack.c.l.b16 %v685
  %v782 = vunpack.c.l.b16 %v686
  %v783 = vunpack.c.l.b16 %v687
  %v784 = vunpack.c.l.b16 %v688
  %v785 = vunpack.c.l.b16 %v689
  %v786 = vunpack.c.l.b16 %v690
  %v787 = vunpack.c.l.b16 %v691
  %v788 = vunpack.c.l.b16 %v692
  %v789 = vunpack.c.l.b16 %v693
  %v790 = vunpack.c.l.b16 %v694
  %v791 = vunpack.c.l.b16 %v695
  %v792 = vunpack.c.l.b16 %v696
  %v793 = vunpack.c.l.b16 %v697
  %v794 = vunpack.c.l.b16 %v698
  %v795 = vunpack.c.l.b16 %v699
  %v796 = vunpack.c.l.b16 %v700
  %v797 = vunpack.c.l.b16 %v701
  %v798 = vunpack.c.l.b16 %v702
  %v799 = vunpack.c.l.b16 %v703
  %v800 = vunpack.c.l.b16 %v704
  %v801 = vunpack.c.l.b16 %v705
  %v802 = vunpack.c.l.b16 %v706
  %v803 = vunpack.c.l.b16 %v707
  %v804 = vunpack.c.l.b16 %v708
  %v805 = vunpack.c.l.b16 %v709
  %v806 = vunpack.c.l.b16 %v710
  %v807 = vunpack.c.l.b16 %v711
  %v808 = vunpack.c.l.b16 %v712
  %v809 = vunpack.c.l.b16 %v713
  %v810 = vunpack.c.l.b16 %v714
  %v811 = vunpack.c.l.b16 %v715
  %v812 = vunpack.c.l.b16 %v716
  %v813 = vunpack.c.l.b16 %v717
  %v814 = vunpack.c.l.b16 %v718
  %v815 = vunpack.c.l.b16 %v719
  %v816 = vpack.c.b16 %v769, %v768
  %v817 = vpack.c.b16 %v771, %v770
  %v818 = vpack.c.b16 %v773, %v772
  %v819 = vpack.c.b16 %v775, %v774
  %v820 = vpack.c.b16 %v777, %v776
  %v821 = vpack.c.b16 %v779, %v778
  %v822 = vpack.c.b16 %v781, %v780
  %v823 = vpack.c.b16 %v783, %v782
  %v824 = vpack.c.b16 %v785, %v784
  %v825 = vpack.c.b16 %v787, %v786
  %v826 = vpack.c.b16 %v789, %v788
  %v827 = vpack.c.b16 %v791, %v790
  %v828 = vpack.c.b16 %v793, %v792
  %v829 = vpack.c.b16 %v795, %v794
  %v830 = vpack.c.b16 %v797, %v796
  %v831 = vpack.c.b16 %v799, %v798
  %v832 = vpack.c.b16 %v801, %v800
  %v833 = vpack.c.b16 %v803, %v802
  %v834 = vpack.c.b16 %v805, %v804
  %v835 = vpack.c.b16 %v807, %v806
  %v836 = vpack.c.b16 %v809, %v808
  %v837 = vpack.c.b16 %v811, %v810
  %v838 = vpack.c.b16 %v813, %v812
  %v839 = vpack.c.b16 %v815, %v814
  %864 = vmatprep.subr.bf16.mxu0 0
  %865 = vmatpush1.bf16.msra.mxu0 %v816
  %866 = vmatprep.subr.bf16.mxu0 0
  %867 = vmatpush1.bf16.msra.mxu0 %v817
  %868 = vmatprep.subr.bf16.mxu0 0
  %869 = vmatpush1.bf16.msra.mxu0 %v818
  %870 = vmatprep.subr.bf16.mxu0 0
  %871 = vmatpush1.bf16.msra.mxu0 %v819
  %872 = vmatprep.subr.bf16.mxu0 0
  %873 = vmatpush1.bf16.msra.mxu0 %v820
  %874 = vmatprep.subr.bf16.mxu0 0
  %875 = vmatpush1.bf16.msra.mxu0 %v821
  %876 = vmatprep.subr.bf16.mxu0 0
  %877 = vmatpush1.bf16.msra.mxu0 %v822
  %878 = vmatprep.subr.bf16.mxu0 0
  %879 = vmatpush1.bf16.msra.mxu0 %v823
  %880 = vmatprep.subr.bf16.mxu0 0
  %881 = vmatpush1.bf16.msra.mxu0 %v824
  %882 = vmatprep.subr.bf16.mxu0 0
  %883 = vmatpush1.bf16.msra.mxu0 %v825
  %884 = vmatprep.subr.bf16.mxu0 0
  %885 = vmatpush1.bf16.msra.mxu0 %v826
  %886 = vmatprep.subr.bf16.mxu0 0
  %887 = vmatpush1.bf16.msra.mxu0 %v827
  %888 = vmatprep.subr.bf16.mxu0 0
  %889 = vmatpush1.bf16.msra.mxu0 %v828
  %890 = vmatprep.subr.bf16.mxu0 0
  %891 = vmatpush1.bf16.msra.mxu0 %v829
  %892 = vmatprep.subr.bf16.mxu0 0
  %893 = vmatpush1.bf16.msra.mxu0 %v830
  %894 = vmatprep.subr.bf16.mxu0 0
  %895 = vmatpush1.bf16.msra.mxu0 %v831
  %896 = vmatprep.mubr.bf16.mxu0 %v206
  %897 = vmatmul.mubr.bf16.gmra.mrb[0].mxu0 %v199
  %v898 = vpop.f32.mrb[0].mxu0
  %v899 = vadd.f32 0.0, %v898
  %v900 = vpop.f32.mrb[0].mxu0
  %v901 = vpop.f32.mrb[0].mxu0
  %v902 = vpop.f32.mrb[0].mxu0
  %903 = vdwg.mxu0
  %904 = vmatprep.subr.bf16.mxu0 0
  %905 = vmatpush1.bf16.msra.mxu0 %v832
  %906 = vmatprep.subr.bf16.mxu0 0
  %907 = vmatpush1.bf16.msra.mxu0 %v833
  %908 = vmatprep.subr.bf16.mxu0 0
  %909 = vmatpush1.bf16.msra.mxu0 %v834
  %910 = vmatprep.subr.bf16.mxu0 0
  %911 = vmatpush1.bf16.msra.mxu0 %v835
  %912 = vmatprep.subr.bf16.mxu0 0
  %913 = vmatpush1.bf16.msra.mxu0 %v836
  %914 = vmatprep.subr.bf16.mxu0 0
  %915 = vmatpush1.bf16.msra.mxu0 %v837
  %916 = vmatprep.subr.bf16.mxu0 0
  %917 = vmatpush1.bf16.msra.mxu0 %v838
  %918 = vmatprep.subr.bf16.mxu0 0
  %919 = vmatpush1.bf16.msra.mxu0 %v839
  %920 = vmatprep.subr.bf16.mxu0 0
  %921 = vmatpush1.bf16.msra.mxu0 0
  %922 = vmatprep.subr.bf16.mxu0 0
  %923 = vmatpush1.bf16.msra.mxu0 0
  %924 = vmatprep.subr.bf16.mxu0 0
  %925 = vmatpush1.bf16.msra.mxu0 0
  %926 = vmatprep.subr.bf16.mxu0 0
  %927 = vmatpush1.bf16.msra.mxu0 0
  %928 = vmatprep.subr.bf16.mxu0 0
  %929 = vmatpush1.bf16.msra.mxu0 0
  %930 = vmatprep.subr.bf16.mxu0 0
  %931 = vmatpush1.bf16.msra.mxu0 0
  %932 = vmatprep.subr.bf16.mxu0 0
  %933 = vmatpush1.bf16.msra.mxu0 0
  %934 = vmatprep.subr.bf16.mxu0 0
  %935 = vmatpush1.bf16.msra.mxu0 0
  %936 = vmatprep.mubr.bf16.mxu0 0
  %937 = vmatmul.mubr.bf16.gmra.mrb[0].mxu0 %v213
  %v938 = vpop.f32.mrb[0].mxu0
  %v939 = vadd.f32 %v899, %v938
  %v940 = vpop.f32.mrb[0].mxu0
  %v941 = vpop.f32.mrb[0].mxu0
  %v942 = vpop.f32.mrb[0].mxu0
  %943 = vdwg.mxu0
  %v992 = vunpack.c.l.b16 %v83
  %v993 = vunpack.c.l.b16 %v84
  %v994 = vunpack.c.l.b16 %v85
  %v995 = vunpack.c.l.b16 %v86
  %v996 = vunpack.c.l.b16 %v87
  %v997 = vunpack.c.l.b16 %v88
  %v998 = vunpack.c.l.b16 %v89
  %v999 = vunpack.c.l.b16 %v90
  %v1000 = vunpack.c.l.b16 %v91
  %v1001 = vunpack.c.l.b16 %v92
  %v1002 = vunpack.c.l.b16 %v93
  %v1003 = vunpack.c.l.b16 %v94
  %v1004 = vunpack.c.l.b16 %v95
  %v1005 = vunpack.c.l.b16 %v96
  %v1006 = vunpack.c.l.b16 %v97
  %v1007 = vunpack.c.l.b16 %v98
  %v1008 = vunpack.c.l.b16 %v99
  %v1009 = vunpack.c.l.b16 %v100
  %v1010 = vunpack.c.l.b16 %v101
  %v1011 = vunpack.c.l.b16 %v102
  %v1012 = vunpack.c.l.b16 %v103
  %v1013 = vunpack.c.l.b16 %v104
  %v1014 = vunpack.c.l.b16 %v105
  %v1015 = vunpack.c.l.b16 %v106
  %v1016 = vunpack.c.l.b16 %v107
  %v1017 = vunpack.c.l.b16 %v108
  %v1018 = vunpack.c.l.b16 %v109
  %v1019 = vunpack.c.l.b16 %v110
  %v1020 = vunpack.c.l.b16 %v111
  %v1021 = vunpack.c.l.b16 %v112
  %v1022 = vunpack.c.l.b16 %v113
  %v1023 = vunpack.c.l.b16 %v114
  %v1024 = vunpack.c.l.b16 %v115
  %v1025 = vunpack.c.l.b16 %v116
  %v1026 = vunpack.c.l.b16 %v117
  %v1027 = vunpack.c.l.b16 %v118
  %v1028 = vunpack.c.l.b16 %v119
  %v1029 = vunpack.c.l.b16 %v120
  %v1030 = vunpack.c.l.b16 %v121
  %v1031 = vunpack.c.l.b16 %v122
  %v1032 = vunpack.c.l.b16 %v123
  %v1033 = vunpack.c.l.b16 %v124
  %v1034 = vunpack.c.l.b16 %v125
  %v1035 = vunpack.c.l.b16 %v126
  %v1036 = vunpack.c.l.b16 %v127
  %v1037 = vunpack.c.l.b16 %v128
  %v1038 = vunpack.c.l.b16 %v129
  %v1039 = vunpack.c.l.b16 %v130
  %v1040 = vpack.c.b16 %v993, %v992
  %v1041 = vpack.c.b16 %v995, %v994
  %v1042 = vpack.c.b16 %v997, %v996
  %v1043 = vpack.c.b16 %v999, %v998
  %v1044 = vpack.c.b16 %v1001, %v1000
  %v1045 = vpack.c.b16 %v1003, %v1002
  %v1046 = vpack.c.b16 %v1005, %v1004
  %v1047 = vpack.c.b16 %v1007, %v1006
  %v1048 = vpack.c.b16 %v1009, %v1008
  %v1049 = vpack.c.b16 %v1011, %v1010
  %v1050 = vpack.c.b16 %v1013, %v1012
  %v1051 = vpack.c.b16 %v1015, %v1014
  %v1052 = vpack.c.b16 %v1017, %v1016
  %v1053 = vpack.c.b16 %v1019, %v1018
  %v1054 = vpack.c.b16 %v1021, %v1020
  %v1055 = vpack.c.b16 %v1023, %v1022
  %v1056 = vpack.c.b16 %v1025, %v1024
  %v1057 = vpack.c.b16 %v1027, %v1026
  %v1058 = vpack.c.b16 %v1029, %v1028
  %v1059 = vpack.c.b16 %v1031, %v1030
  %v1060 = vpack.c.b16 %v1033, %v1032
  %v1061 = vpack.c.b16 %v1035, %v1034
  %v1062 = vpack.c.b16 %v1037, %v1036
  %v1063 = vpack.c.b16 %v1039, %v1038
  %1088 = vmatprep.subr.bf16.mxu0 0
  %1089 = vmatpush1.bf16.msra.mxu0 %v1040
  %1090 = vmatprep.subr.bf16.mxu0 0
  %1091 = vmatpush1.bf16.msra.mxu0 %v1041
  %1092 = vmatprep.subr.bf16.mxu0 0
  %1093 = vmatpush1.bf16.msra.mxu0 %v1042
  %1094 = vmatprep.subr.bf16.mxu0 0
  %1095 = vmatpush1.bf16.msra.mxu0 %v1043
  %1096 = vmatprep.subr.bf16.mxu0 0
  %1097 = vmatpush1.bf16.msra.mxu0 %v1044
  %1098 = vmatprep.subr.bf16.mxu0 0
  %1099 = vmatpush1.bf16.msra.mxu0 %v1045
  %1100 = vmatprep.subr.bf16.mxu0 0
  %1101 = vmatpush1.bf16.msra.mxu0 %v1046
  %1102 = vmatprep.subr.bf16.mxu0 0
  %1103 = vmatpush1.bf16.msra.mxu0 %v1047
  %1104 = vmatprep.subr.bf16.mxu0 0
  %1105 = vmatpush1.bf16.msra.mxu0 %v1048
  %1106 = vmatprep.subr.bf16.mxu0 0
  %1107 = vmatpush1.bf16.msra.mxu0 %v1049
  %1108 = vmatprep.subr.bf16.mxu0 0
  %1109 = vmatpush1.bf16.msra.mxu0 %v1050
  %1110 = vmatprep.subr.bf16.mxu0 0
  %1111 = vmatpush1.bf16.msra.mxu0 %v1051
  %1112 = vmatprep.subr.bf16.mxu0 0
  %1113 = vmatpush1.bf16.msra.mxu0 %v1052
  %1114 = vmatprep.subr.bf16.mxu0 0
  %1115 = vmatpush1.bf16.msra.mxu0 %v1053
  %1116 = vmatprep.subr.bf16.mxu0 0
  %1117 = vmatpush1.bf16.msra.mxu0 %v1054
  %1118 = vmatprep.subr.bf16.mxu0 0
  %1119 = vmatpush1.bf16.msra.mxu0 %v1055
  %1120 = vmatprep.mubr.bf16.mxu0 %v442
  %1121 = vmatmul.mubr.bf16.gmra.mrb[0].mxu0 %v441
  %v1122 = vpop.f32.mrb[0].mxu0
  %v1123 = vadd.f32 %v939, %v1122
  %v1124 = vpop.f32.mrb[0].mxu0
  %v1125 = vpop.f32.mrb[0].mxu0
  %v1126 = vpop.f32.mrb[0].mxu0
  %1127 = vdwg.mxu0
  %1128 = vmatprep.subr.bf16.mxu0 0
  %1129 = vmatpush1.bf16.msra.mxu0 %v1056
  %1130 = vmatprep.subr.bf16.mxu0 0
  %1131 = vmatpush1.bf16.msra.mxu0 %v1057
  %1132 = vmatprep.subr.bf16.mxu0 0
  %1133 = vmatpush1.bf16.msra.mxu0 %v1058
  %1134 = vmatprep.subr.bf16.mxu0 0
  %1135 = vmatpush1.bf16.msra.mxu0 %v1059
  %1136 = vmatprep.subr.bf16.mxu0 0
  %1137 = vmatpush1.bf16.msra.mxu0 %v1060
  %1138 = vmatprep.subr.bf16.mxu0 0
  %1139 = vmatpush1.bf16.msra.mxu0 %v1061
  %1140 = vmatprep.subr.bf16.mxu0 0
  %1141 = vmatpush1.bf16.msra.mxu0 %v1062
  %1142 = vmatprep.subr.bf16.mxu0 0
  %1143 = vmatpush1.bf16.msra.mxu0 %v1063
  %1144 = vmatprep.subr.bf16.mxu0 0
  %1145 = vmatpush1.bf16.msra.mxu0 0
  %1146 = vmatprep.subr.bf16.mxu0 0
  %1147 = vmatpush1.bf16.msra.mxu0 0
  %1148 = vmatprep.subr.bf16.mxu0 0
  %1149 = vmatpush1.bf16.msra.mxu0 0
  %1150 = vmatprep.subr.bf16.mxu0 0
  %1151 = vmatpush1.bf16.msra.mxu0 0
  %1152 = vmatprep.subr.bf16.mxu0 0
  %1153 = vmatpush1.bf16.msra.mxu0 0
  %1154 = vmatprep.subr.bf16.mxu0 0
  %1155 = vmatpush1.bf16.msra.mxu0 0
  %1156 = vmatprep.subr.bf16.mxu0 0
  %1157 = vmatpush1.bf16.msra.mxu0 0
  %1158 = vmatprep.subr.bf16.mxu0 0
  %1159 = vmatpush1.bf16.msra.mxu0 0
  %1160 = vmatprep.mubr.bf16.mxu0 0
  %1161 = vmatmul.mubr.bf16.gmra.mrb[0].mxu0 %v443
  %v1162 = vpop.f32.mrb[0].mxu0
  %v1163 = vadd.f32 %v1123, %v1162
  %v1164 = vpop.f32.mrb[0].mxu0
  %v1165 = vpop.f32.mrb[0].mxu0
  %v1166 = vpop.f32.mrb[0].mxu0
  %1167 = vdwg.mxu0
  %s1168 = scalar_lea.vmem %s1, 384
  %v1169 = vld [vmem:[%s1168] sm:$0xf]
  %v1170 = vld [vmem:[%s1168 + $0x4] sm:$0xf]
  %v1171 = vld [vmem:[%s1168 + $0x8] sm:$0xf]
  %v1172 = vld [vmem:[%s1168 + $0xc] sm:$0xf]
  %v1173 = vld [vmem:[%s1168 + $0x10] sm:$0xf]
  %v1174 = vld [vmem:[%s1168 + $0x14] sm:$0xf]
  %v1175 = vld [vmem:[%s1168 + $0x18] sm:$0xf]
  %v1176 = vld [vmem:[%s1168 + $0x1c] sm:$0xf]
  %v1177 = vld [vmem:[%s1168 + $0x20] sm:$0xf]
  %v1178 = vld [vmem:[%s1168 + $0x24] sm:$0xf]
  %v1179 = vld [vmem:[%s1168 + $0x28] sm:$0xf]
  %v1180 = vld [vmem:[%s1168 + $0x2c] sm:$0xf]
  %v1181 = vld [vmem:[%s1168 + $0x30] sm:$0xf]
  %v1182 = vld [vmem:[%s1168 + $0x34] sm:$0xf]
  %v1183 = vld [vmem:[%s1168 + $0x38] sm:$0xf]
  %v1184 = vld [vmem:[%s1168 + $0x3c] sm:$0xf]
  %v1185 = vld [vmem:[%s1168 + $0x40] sm:$0xf]
  %v1186 = vld [vmem:[%s1168 + $0x44] sm:$0xf]
  %v1187 = vld [vmem:[%s1168 + $0x48] sm:$0xf]
  %v1188 = vld [vmem:[%s1168 + $0x4c] sm:$0xf]
  %v1189 = vld [vmem:[%s1168 + $0x50] sm:$0xf]
  %v1190 = vld [vmem:[%s1168 + $0x54] sm:$0xf]
  %v1191 = vld [vmem:[%s1168 + $0x58] sm:$0xf]
  %v1192 = vld [vmem:[%s1168 + $0x5c] sm:$0xf]
  %v1193 = vld [vmem:[%s1168 + $0x60] sm:$0xf]
  %v1194 = vld [vmem:[%s1168 + $0x64] sm:$0xf]
  %v1195 = vld [vmem:[%s1168 + $0x68] sm:$0xf]
  %v1196 = vld [vmem:[%s1168 + $0x6c] sm:$0xf]
  %v1197 = vld [vmem:[%s1168 + $0x70] sm:$0xf]
  %v1198 = vld [vmem:[%s1168 + $0x74] sm:$0xf]
  %v1199 = vld [vmem:[%s1168 + $0x78] sm:$0xf]
  %v1200 = vld [vmem:[%s1168 + $0x7c] sm:$0xf]
  %v1201 = vld [vmem:[%s1168 + $0x80] sm:$0xf]
  %v1202 = vld [vmem:[%s1168 + $0x84] sm:$0xf]
  %v1203 = vld [vmem:[%s1168 + $0x88] sm:$0xf]
  %v1204 = vld [vmem:[%s1168 + $0x8c] sm:$0xf]
  %v1205 = vld [vmem:[%s1168 + $0x90] sm:$0xf]
  %v1206 = vld [vmem:[%s1168 + $0x94] sm:$0xf]
  %v1207 = vld [vmem:[%s1168 + $0x98] sm:$0xf]
  %v1208 = vld [vmem:[%s1168 + $0x9c] sm:$0xf]
  %v1209 = vld [vmem:[%s1168 + $0xa0] sm:$0xf]
  %v1210 = vld [vmem:[%s1168 + $0xa4] sm:$0xf]
  %v1211 = vld [vmem:[%s1168 + $0xa8] sm:$0xf]
  %v1212 = vld [vmem:[%s1168 + $0xac] sm:$0xf]
  %v1213 = vld [vmem:[%s1168 + $0xb0] sm:$0xf]
  %v1214 = vld [vmem:[%s1168 + $0xb4] sm:$0xf]
  %v1215 = vld [vmem:[%s1168 + $0xb8] sm:$0xf]
  %v1216 = vld [vmem:[%s1168 + $0xbc] sm:$0xf]
  %v1217 = vrot.slane %v190, 1
  %v1218 = vrot.slane %v191, 1
  %v1219 = vrot.slane %v192, 1
  %v1271 = vunpack.c.l.b16 %v1169
  %v1272 = vunpack.c.l.b16 %v1170
  %v1273 = vunpack.c.l.b16 %v1171
  %v1274 = vunpack.c.l.b16 %v1172
  %v1275 = vunpack.c.l.b16 %v1173
  %v1276 = vunpack.c.l.b16 %v1174
  %v1277 = vunpack.c.l.b16 %v1175
  %v1278 = vunpack.c.l.b16 %v1176
  %v1279 = vunpack.c.l.b16 %v1177
  %v1280 = vunpack.c.l.b16 %v1178
  %v1281 = vunpack.c.l.b16 %v1179
  %v1282 = vunpack.c.l.b16 %v1180
  %v1283 = vunpack.c.l.b16 %v1181
  %v1284 = vunpack.c.l.b16 %v1182
  %v1285 = vunpack.c.l.b16 %v1183
  %v1286 = vunpack.c.l.b16 %v1184
  %v1287 = vunpack.c.l.b16 %v1185
  %v1288 = vunpack.c.l.b16 %v1186
  %v1289 = vunpack.c.l.b16 %v1187
  %v1290 = vunpack.c.l.b16 %v1188
  %v1291 = vunpack.c.l.b16 %v1189
  %v1292 = vunpack.c.l.b16 %v1190
  %v1293 = vunpack.c.l.b16 %v1191
  %v1294 = vunpack.c.l.b16 %v1192
  %v1295 = vunpack.c.l.b16 %v1193
  %v1296 = vunpack.c.l.b16 %v1194
  %v1297 = vunpack.c.l.b16 %v1195
  %v1298 = vunpack.c.l.b16 %v1196
  %v1299 = vunpack.c.l.b16 %v1197
  %v1300 = vunpack.c.l.b16 %v1198
  %v1301 = vunpack.c.l.b16 %v1199
  %v1302 = vunpack.c.l.b16 %v1200
  %v1303 = vunpack.c.l.b16 %v1201
  %v1304 = vunpack.c.l.b16 %v1202
  %v1305 = vunpack.c.l.b16 %v1203
  %v1306 = vunpack.c.l.b16 %v1204
  %v1307 = vunpack.c.l.b16 %v1205
  %v1308 = vunpack.c.l.b16 %v1206
  %v1309 = vunpack.c.l.b16 %v1207
  %v1310 = vunpack.c.l.b16 %v1208
  %v1311 = vunpack.c.l.b16 %v1209
  %v1312 = vunpack.c.l.b16 %v1210
  %v1313 = vunpack.c.l.b16 %v1211
  %v1314 = vunpack.c.l.b16 %v1212
  %v1315 = vunpack.c.l.b16 %v1213
  %v1316 = vunpack.c.l.b16 %v1214
  %v1317 = vunpack.c.l.b16 %v1215
  %v1318 = vunpack.c.l.b16 %v1216
  %v1319 = vpack.c.b16 %v1272, %v1271
  %v1320 = vpack.c.b16 %v1274, %v1273
  %v1321 = vpack.c.b16 %v1276, %v1275
  %v1322 = vpack.c.b16 %v1278, %v1277
  %v1323 = vpack.c.b16 %v1280, %v1279
  %v1324 = vpack.c.b16 %v1282, %v1281
  %v1325 = vpack.c.b16 %v1284, %v1283
  %v1326 = vpack.c.b16 %v1286, %v1285
  %v1327 = vpack.c.b16 %v1288, %v1287
  %v1328 = vpack.c.b16 %v1290, %v1289
  %v1329 = vpack.c.b16 %v1292, %v1291
  %v1330 = vpack.c.b16 %v1294, %v1293
  %v1331 = vpack.c.b16 %v1296, %v1295
  %v1332 = vpack.c.b16 %v1298, %v1297
  %v1333 = vpack.c.b16 %v1300, %v1299
  %v1334 = vpack.c.b16 %v1302, %v1301
  %v1335 = vpack.c.b16 %v1304, %v1303
  %v1336 = vpack.c.b16 %v1306, %v1305
  %v1337 = vpack.c.b16 %v1308, %v1307
  %v1338 = vpack.c.b16 %v1310, %v1309
  %v1339 = vpack.c.b16 %v1312, %v1311
  %v1340 = vpack.c.b16 %v1314, %v1313
  %v1341 = vpack.c.b16 %v1316, %v1315
  %v1342 = vpack.c.b16 %v1318, %v1317
  %1367 = vmatprep.subr.bf16.mxu0 0
  %1368 = vmatpush1.bf16.msra.mxu0 %v1319
  %1369 = vmatprep.subr.bf16.mxu0 0
  %1370 = vmatpush1.bf16.msra.mxu0 %v1320
  %1371 = vmatprep.subr.bf16.mxu0 0
  %1372 = vmatpush1.bf16.msra.mxu0 %v1321
  %1373 = vmatprep.subr.bf16.mxu0 0
  %1374 = vmatpush1.bf16.msra.mxu0 %v1322
  %1375 = vmatprep.subr.bf16.mxu0 0
  %1376 = vmatpush1.bf16.msra.mxu0 %v1323
  %1377 = vmatprep.subr.bf16.mxu0 0
  %1378 = vmatpush1.bf16.msra.mxu0 %v1324
  %1379 = vmatprep.subr.bf16.mxu0 0
  %1380 = vmatpush1.bf16.msra.mxu0 %v1325
  %1381 = vmatprep.subr.bf16.mxu0 0
  %1382 = vmatpush1.bf16.msra.mxu0 %v1326
  %1383 = vmatprep.subr.bf16.mxu0 0
  %1384 = vmatpush1.bf16.msra.mxu0 %v1327
  %1385 = vmatprep.subr.bf16.mxu0 0
  %1386 = vmatpush1.bf16.msra.mxu0 %v1328
  %1387 = vmatprep.subr.bf16.mxu0 0
  %1388 = vmatpush1.bf16.msra.mxu0 %v1329
  %1389 = vmatprep.subr.bf16.mxu0 0
  %1390 = vmatpush1.bf16.msra.mxu0 %v1330
  %1391 = vmatprep.subr.bf16.mxu0 0
  %1392 = vmatpush1.bf16.msra.mxu0 %v1331
  %1393 = vmatprep.subr.bf16.mxu0 0
  %1394 = vmatpush1.bf16.msra.mxu0 %v1332
  %1395 = vmatprep.subr.bf16.mxu0 0
  %1396 = vmatpush1.bf16.msra.mxu0 %v1333
  %1397 = vmatprep.subr.bf16.mxu0 0
  %1398 = vmatpush1.bf16.msra.mxu0 %v1334
  %1399 = vmatprep.mubr.bf16.mxu0 %v1218
  %1400 = vmatmul.mubr.bf16.gmra.mrb[0].mxu0 %v1217
  %v1401 = vpop.f32.mrb[0].mxu0
  %v1402 = vadd.f32 0.0, %v1401
  %v1403 = vpop.f32.mrb[0].mxu0
  %v1404 = vpop.f32.mrb[0].mxu0
  %v1405 = vpop.f32.mrb[0].mxu0
  %1406 = vdwg.mxu0
  %1407 = vmatprep.subr.bf16.mxu0 0
  %1408 = vmatpush1.bf16.msra.mxu0 %v1335
  %1409 = vmatprep.subr.bf16.mxu0 0
  %1410 = vmatpush1.bf16.msra.mxu0 %v1336
  %1411 = vmatprep.subr.bf16.mxu0 0
  %1412 = vmatpush1.bf16.msra.mxu0 %v1337
  %1413 = vmatprep.subr.bf16.mxu0 0
  %1414 = vmatpush1.bf16.msra.mxu0 %v1338
  %1415 = vmatprep.subr.bf16.mxu0 0
  %1416 = vmatpush1.bf16.msra.mxu0 %v1339
  %1417 = vmatprep.subr.bf16.mxu0 0
  %1418 = vmatpush1.bf16.msra.mxu0 %v1340
  %1419 = vmatprep.subr.bf16.mxu0 0
  %1420 = vmatpush1.bf16.msra.mxu0 %v1341
  %1421 = vmatprep.subr.bf16.mxu0 0
  %1422 = vmatpush1.bf16.msra.mxu0 %v1342
  %1423 = vmatprep.subr.bf16.mxu0 0
  %1424 = vmatpush1.bf16.msra.mxu0 0
  %1425 = vmatprep.subr.bf16.mxu0 0
  %1426 = vmatpush1.bf16.msra.mxu0 0
  %1427 = vmatprep.subr.bf16.mxu0 0
  %1428 = vmatpush1.bf16.msra.mxu0 0
  %1429 = vmatprep.subr.bf16.mxu0 0
  %1430 = vmatpush1.bf16.msra.mxu0 0
  %1431 = vmatprep.subr.bf16.mxu0 0
  %1432 = vmatpush1.bf16.msra.mxu0 0
  %1433 = vmatprep.subr.bf16.mxu0 0
  %1434 = vmatpush1.bf16.msra.mxu0 0
  %1435 = vmatprep.subr.bf16.mxu0 0
  %1436 = vmatpush1.bf16.msra.mxu0 0
  %1437 = vmatprep.subr.bf16.mxu0 0
  %1438 = vmatpush1.bf16.msra.mxu0 0
  %1439 = vmatprep.mubr.bf16.mxu0 0
  %1440 = vmatmul.mubr.bf16.gmra.mrb[0].mxu0 %v1219
  %v1441 = vpop.f32.mrb[0].mxu0
  %v1442 = vadd.f32 %v1402, %v1441
  %v1443 = vpop.f32.mrb[0].mxu0
  %v1444 = vpop.f32.mrb[0].mxu0
  %v1445 = vpop.f32.mrb[0].mxu0
  %1446 = vdwg.mxu0
  %v1447 = vadd.f32 %v666, %v1442
  %s1448 = scalar_lea.vmem %s2, 384
  %v1449 = vld [vmem:[%s1448] sm:$0xf]
  %v1450 = vld [vmem:[%s1448 + $0x4] sm:$0xf]
  %v1451 = vld [vmem:[%s1448 + $0x8] sm:$0xf]
  %v1452 = vld [vmem:[%s1448 + $0xc] sm:$0xf]
  %v1453 = vld [vmem:[%s1448 + $0x10] sm:$0xf]
  %v1454 = vld [vmem:[%s1448 + $0x14] sm:$0xf]
  %v1455 = vld [vmem:[%s1448 + $0x18] sm:$0xf]
  %v1456 = vld [vmem:[%s1448 + $0x1c] sm:$0xf]
  %v1457 = vld [vmem:[%s1448 + $0x20] sm:$0xf]
  %v1458 = vld [vmem:[%s1448 + $0x24] sm:$0xf]
  %v1459 = vld [vmem:[%s1448 + $0x28] sm:$0xf]
  %v1460 = vld [vmem:[%s1448 + $0x2c] sm:$0xf]
  %v1461 = vld [vmem:[%s1448 + $0x30] sm:$0xf]
  %v1462 = vld [vmem:[%s1448 + $0x34] sm:$0xf]
  %v1463 = vld [vmem:[%s1448 + $0x38] sm:$0xf]
  %v1464 = vld [vmem:[%s1448 + $0x3c] sm:$0xf]
  %v1465 = vld [vmem:[%s1448 + $0x40] sm:$0xf]
  %v1466 = vld [vmem:[%s1448 + $0x44] sm:$0xf]
  %v1467 = vld [vmem:[%s1448 + $0x48] sm:$0xf]
  %v1468 = vld [vmem:[%s1448 + $0x4c] sm:$0xf]
  %v1469 = vld [vmem:[%s1448 + $0x50] sm:$0xf]
  %v1470 = vld [vmem:[%s1448 + $0x54] sm:$0xf]
  %v1471 = vld [vmem:[%s1448 + $0x58] sm:$0xf]
  %v1472 = vld [vmem:[%s1448 + $0x5c] sm:$0xf]
  %v1473 = vld [vmem:[%s1448 + $0x60] sm:$0xf]
  %v1474 = vld [vmem:[%s1448 + $0x64] sm:$0xf]
  %v1475 = vld [vmem:[%s1448 + $0x68] sm:$0xf]
  %v1476 = vld [vmem:[%s1448 + $0x6c] sm:$0xf]
  %v1477 = vld [vmem:[%s1448 + $0x70] sm:$0xf]
  %v1478 = vld [vmem:[%s1448 + $0x74] sm:$0xf]
  %v1479 = vld [vmem:[%s1448 + $0x78] sm:$0xf]
  %v1480 = vld [vmem:[%s1448 + $0x7c] sm:$0xf]
  %v1481 = vld [vmem:[%s1448 + $0x80] sm:$0xf]
  %v1482 = vld [vmem:[%s1448 + $0x84] sm:$0xf]
  %v1483 = vld [vmem:[%s1448 + $0x88] sm:$0xf]
  %v1484 = vld [vmem:[%s1448 + $0x8c] sm:$0xf]
  %v1485 = vld [vmem:[%s1448 + $0x90] sm:$0xf]
  %v1486 = vld [vmem:[%s1448 + $0x94] sm:$0xf]
  %v1487 = vld [vmem:[%s1448 + $0x98] sm:$0xf]
  %v1488 = vld [vmem:[%s1448 + $0x9c] sm:$0xf]
  %v1489 = vld [vmem:[%s1448 + $0xa0] sm:$0xf]
  %v1490 = vld [vmem:[%s1448 + $0xa4] sm:$0xf]
  %v1491 = vld [vmem:[%s1448 + $0xa8] sm:$0xf]
  %v1492 = vld [vmem:[%s1448 + $0xac] sm:$0xf]
  %v1493 = vld [vmem:[%s1448 + $0xb0] sm:$0xf]
  %v1494 = vld [vmem:[%s1448 + $0xb4] sm:$0xf]
  %v1495 = vld [vmem:[%s1448 + $0xb8] sm:$0xf]
  %v1496 = vld [vmem:[%s1448 + $0xbc] sm:$0xf]
  %v1545 = vunpack.c.l.b16 %v1449
  %v1546 = vunpack.c.l.b16 %v1450
  %v1547 = vunpack.c.l.b16 %v1451
  %v1548 = vunpack.c.l.b16 %v1452
  %v1549 = vunpack.c.l.b16 %v1453
  %v1550 = vunpack.c.l.b16 %v1454
  %v1551 = vunpack.c.l.b16 %v1455
  %v1552 = vunpack.c.l.b16 %v1456
  %v1553 = vunpack.c.l.b16 %v1457
  %v1554 = vunpack.c.l.b16 %v1458
  %v1555 = vunpack.c.l.b16 %v1459
  %v1556 = vunpack.c.l.b16 %v1460
  %v1557 = vunpack.c.l.b16 %v1461
  %v1558 = vunpack.c.l.b16 %v1462
  %v1559 = vunpack.c.l.b16 %v1463
  %v1560 = vunpack.c.l.b16 %v1464
  %v1561 = vunpack.c.l.b16 %v1465
  %v1562 = vunpack.c.l.b16 %v1466
  %v1563 = vunpack.c.l.b16 %v1467
  %v1564 = vunpack.c.l.b16 %v1468
  %v1565 = vunpack.c.l.b16 %v1469
  %v1566 = vunpack.c.l.b16 %v1470
  %v1567 = vunpack.c.l.b16 %v1471
  %v1568 = vunpack.c.l.b16 %v1472
  %v1569 = vunpack.c.l.b16 %v1473
  %v1570 = vunpack.c.l.b16 %v1474
  %v1571 = vunpack.c.l.b16 %v1475
  %v1572 = vunpack.c.l.b16 %v1476
  %v1573 = vunpack.c.l.b16 %v1477
  %v1574 = vunpack.c.l.b16 %v1478
  %v1575 = vunpack.c.l.b16 %v1479
  %v1576 = vunpack.c.l.b16 %v1480
  %v1577 = vunpack.c.l.b16 %v1481
  %v1578 = vunpack.c.l.b16 %v1482
  %v1579 = vunpack.c.l.b16 %v1483
  %v1580 = vunpack.c.l.b16 %v1484
  %v1581 = vunpack.c.l.b16 %v1485
  %v1582 = vunpack.c.l.b16 %v1486
  %v1583 = vunpack.c.l.b16 %v1487
  %v1584 = vunpack.c.l.b16 %v1488
  %v1585 = vunpack.c.l.b16 %v1489
  %v1586 = vunpack.c.l.b16 %v1490
  %v1587 = vunpack.c.l.b16 %v1491
  %v1588 = vunpack.c.l.b16 %v1492
  %v1589 = vunpack.c.l.b16 %v1493
  %v1590 = vunpack.c.l.b16 %v1494
  %v1591 = vunpack.c.l.b16 %v1495
  %v1592 = vunpack.c.l.b16 %v1496
  %v1593 = vpack.c.b16 %v1546, %v1545
  %v1594 = vpack.c.b16 %v1548, %v1547
  %v1595 = vpack.c.b16 %v1550, %v1549
  %v1596 = vpack.c.b16 %v1552, %v1551
  %v1597 = vpack.c.b16 %v1554, %v1553
  %v1598 = vpack.c.b16 %v1556, %v1555
  %v1599 = vpack.c.b16 %v1558, %v1557
  %v1600 = vpack.c.b16 %v1560, %v1559
  %v1601 = vpack.c.b16 %v1562, %v1561
  %v1602 = vpack.c.b16 %v1564, %v1563
  %v1603 = vpack.c.b16 %v1566, %v1565
  %v1604 = vpack.c.b16 %v1568, %v1567
  %v1605 = vpack.c.b16 %v1570, %v1569
  %v1606 = vpack.c.b16 %v1572, %v1571
  %v1607 = vpack.c.b16 %v1574, %v1573
  %v1608 = vpack.c.b16 %v1576, %v1575
  %v1609 = vpack.c.b16 %v1578, %v1577
  %v1610 = vpack.c.b16 %v1580, %v1579
  %v1611 = vpack.c.b16 %v1582, %v1581
  %v1612 = vpack.c.b16 %v1584, %v1583
  %v1613 = vpack.c.b16 %v1586, %v1585
  %v1614 = vpack.c.b16 %v1588, %v1587
  %v1615 = vpack.c.b16 %v1590, %v1589
  %v1616 = vpack.c.b16 %v1592, %v1591
  %1641 = vmatprep.subr.bf16.mxu0 0
  %1642 = vmatpush1.bf16.msra.mxu0 %v1593
  %1643 = vmatprep.subr.bf16.mxu0 0
  %1644 = vmatpush1.bf16.msra.mxu0 %v1594
  %1645 = vmatprep.subr.bf16.mxu0 0
  %1646 = vmatpush1.bf16.msra.mxu0 %v1595
  %1647 = vmatprep.subr.bf16.mxu0 0
  %1648 = vmatpush1.bf16.msra.mxu0 %v1596
  %1649 = vmatprep.subr.bf16.mxu0 0
  %1650 = vmatpush1.bf16.msra.mxu0 %v1597
  %1651 = vmatprep.subr.bf16.mxu0 0
  %1652 = vmatpush1.bf16.msra.mxu0 %v1598
  %1653 = vmatprep.subr.bf16.mxu0 0
  %1654 = vmatpush1.bf16.msra.mxu0 %v1599
  %1655 = vmatprep.subr.bf16.mxu0 0
  %1656 = vmatpush1.bf16.msra.mxu0 %v1600
  %1657 = vmatprep.subr.bf16.mxu0 0
  %1658 = vmatpush1.bf16.msra.mxu0 %v1601
  %1659 = vmatprep.subr.bf16.mxu0 0
  %1660 = vmatpush1.bf16.msra.mxu0 %v1602
  %1661 = vmatprep.subr.bf16.mxu0 0
  %1662 = vmatpush1.bf16.msra.mxu0 %v1603
  %1663 = vmatprep.subr.bf16.mxu0 0
  %1664 = vmatpush1.bf16.msra.mxu0 %v1604
  %1665 = vmatprep.subr.bf16.mxu0 0
  %1666 = vmatpush1.bf16.msra.mxu0 %v1605
  %1667 = vmatprep.subr.bf16.mxu0 0
  %1668 = vmatpush1.bf16.msra.mxu0 %v1606
  %1669 = vmatprep.subr.bf16.mxu0 0
  %1670 = vmatpush1.bf16.msra.mxu0 %v1607
  %1671 = vmatprep.subr.bf16.mxu0 0
  %1672 = vmatpush1.bf16.msra.mxu0 %v1608
  %1673 = vmatprep.mubr.bf16.mxu0 %v1218
  %1674 = vmatmul.mubr.bf16.gmra.mrb[0].mxu0 %v1217
  %v1675 = vpop.f32.mrb[0].mxu0
  %v1676 = vadd.f32 0.0, %v1675
  %v1677 = vpop.f32.mrb[0].mxu0
  %v1678 = vpop.f32.mrb[0].mxu0
  %v1679 = vpop.f32.mrb[0].mxu0
  %1680 = vdwg.mxu0
  %1681 = vmatprep.subr.bf16.mxu0 0
  %1682 = vmatpush1.bf16.msra.mxu0 %v1609
  %1683 = vmatprep.subr.bf16.mxu0 0
  %1684 = vmatpush1.bf16.msra.mxu0 %v1610
  %1685 = vmatprep.subr.bf16.mxu0 0
  %1686 = vmatpush1.bf16.msra.mxu0 %v1611
  %1687 = vmatprep.subr.bf16.mxu0 0
  %1688 = vmatpush1.bf16.msra.mxu0 %v1612
  %1689 = vmatprep.subr.bf16.mxu0 0
  %1690 = vmatpush1.bf16.msra.mxu0 %v1613
  %1691 = vmatprep.subr.bf16.mxu0 0
  %1692 = vmatpush1.bf16.msra.mxu0 %v1614
  %1693 = vmatprep.subr.bf16.mxu0 0
  %1694 = vmatpush1.bf16.msra.mxu0 %v1615
  %1695 = vmatprep.subr.bf16.mxu0 0
  %1696 = vmatpush1.bf16.msra.mxu0 %v1616
  %1697 = vmatprep.subr.bf16.mxu0 0
  %1698 = vmatpush1.bf16.msra.mxu0 0
  %1699 = vmatprep.subr.bf16.mxu0 0
  %1700 = vmatpush1.bf16.msra.mxu0 0
  %1701 = vmatprep.subr.bf16.mxu0 0
  %1702 = vmatpush1.bf16.msra.mxu0 0
  %1703 = vmatprep.subr.bf16.mxu0 0
  %1704 = vmatpush1.bf16.msra.mxu0 0
  %1705 = vmatprep.subr.bf16.mxu0 0
  %1706 = vmatpush1.bf16.msra.mxu0 0
  %1707 = vmatprep.subr.bf16.mxu0 0
  %1708 = vmatpush1.bf16.msra.mxu0 0
  %1709 = vmatprep.subr.bf16.mxu0 0
  %1710 = vmatpush1.bf16.msra.mxu0 0
  %1711 = vmatprep.subr.bf16.mxu0 0
  %1712 = vmatpush1.bf16.msra.mxu0 0
  %1713 = vmatprep.mubr.bf16.mxu0 0
  %1714 = vmatmul.mubr.bf16.gmra.mrb[0].mxu0 %v1219
  %v1715 = vpop.f32.mrb[0].mxu0
  %v1716 = vadd.f32 %v1676, %v1715
  %v1717 = vpop.f32.mrb[0].mxu0
  %v1718 = vpop.f32.mrb[0].mxu0
  %v1719 = vpop.f32.mrb[0].mxu0
  %1720 = vdwg.mxu0
  %v1721 = vadd.f32 %v1163, %v1716
  %s1722 = scalar_lea.vmem %s1, 576
  %v1723 = vld [vmem:[%s1722] sm:$0xf]
  %v1724 = vld [vmem:[%s1722 + $0x4] sm:$0xf]
  %v1725 = vld [vmem:[%s1722 + $0x8] sm:$0xf]
  %v1726 = vld [vmem:[%s1722 + $0xc] sm:$0xf]
  %v1727 = vld [vmem:[%s1722 + $0x10] sm:$0xf]
  %v1728 = vld [vmem:[%s1722 + $0x14] sm:$0xf]
  %v1729 = vld [vmem:[%s1722 + $0x18] sm:$0xf]
  %v1730 = vld [vmem:[%s1722 + $0x1c] sm:$0xf]
  %v1731 = vld [vmem:[%s1722 + $0x20] sm:$0xf]
  %v1732 = vld [vmem:[%s1722 + $0x24] sm:$0xf]
  %v1733 = vld [vmem:[%s1722 + $0x28] sm:$0xf]
  %v1734 = vld [vmem:[%s1722 + $0x2c] sm:$0xf]
  %v1735 = vld [vmem:[%s1722 + $0x30] sm:$0xf]
  %v1736 = vld [vmem:[%s1722 + $0x34] sm:$0xf]
  %v1737 = vld [vmem:[%s1722 + $0x38] sm:$0xf]
  %v1738 = vld [vmem:[%s1722 + $0x3c] sm:$0xf]
  %v1739 = vld [vmem:[%s1722 + $0x40] sm:$0xf]
  %v1740 = vld [vmem:[%s1722 + $0x44] sm:$0xf]
  %v1741 = vld [vmem:[%s1722 + $0x48] sm:$0xf]
  %v1742 = vld [vmem:[%s1722 + $0x4c] sm:$0xf]
  %v1743 = vld [vmem:[%s1722 + $0x50] sm:$0xf]
  %v1744 = vld [vmem:[%s1722 + $0x54] sm:$0xf]
  %v1745 = vld [vmem:[%s1722 + $0x58] sm:$0xf]
  %v1746 = vld [vmem:[%s1722 + $0x5c] sm:$0xf]
  %v1747 = vld [vmem:[%s1722 + $0x60] sm:$0xf]
  %v1748 = vld [vmem:[%s1722 + $0x64] sm:$0xf]
  %v1749 = vld [vmem:[%s1722 + $0x68] sm:$0xf]
  %v1750 = vld [vmem:[%s1722 + $0x6c] sm:$0xf]
  %v1751 = vld [vmem:[%s1722 + $0x70] sm:$0xf]
  %v1752 = vld [vmem:[%s1722 + $0x74] sm:$0xf]
  %v1753 = vld [vmem:[%s1722 + $0x78] sm:$0xf]
  %v1754 = vld [vmem:[%s1722 + $0x7c] sm:$0xf]
  %v1755 = vld [vmem:[%s1722 + $0x80] sm:$0xf]
  %v1756 = vld [vmem:[%s1722 + $0x84] sm:$0xf]
  %v1757 = vld [vmem:[%s1722 + $0x88] sm:$0xf]
  %v1758 = vld [vmem:[%s1722 + $0x8c] sm:$0xf]
  %v1759 = vld [vmem:[%s1722 + $0x90] sm:$0xf]
  %v1760 = vld [vmem:[%s1722 + $0x94] sm:$0xf]
  %v1761 = vld [vmem:[%s1722 + $0x98] sm:$0xf]
  %v1762 = vld [vmem:[%s1722 + $0x9c] sm:$0xf]
  %v1763 = vld [vmem:[%s1722 + $0xa0] sm:$0xf]
  %v1764 = vld [vmem:[%s1722 + $0xa4] sm:$0xf]
  %v1765 = vld [vmem:[%s1722 + $0xa8] sm:$0xf]
  %v1766 = vld [vmem:[%s1722 + $0xac] sm:$0xf]
  %v1767 = vld [vmem:[%s1722 + $0xb0] sm:$0xf]
  %v1768 = vld [vmem:[%s1722 + $0xb4] sm:$0xf]
  %v1769 = vld [vmem:[%s1722 + $0xb8] sm:$0xf]
  %v1770 = vld [vmem:[%s1722 + $0xbc] sm:$0xf]
  %v1771 = vrot.slane %v194, 1
  %v1772 = vrot.slane %v196, 2
  %v1773 = vor.u32 %v1771, %v1772
  %v1774 = vrot.slane %v201, 1
  %v1775 = vrot.slane %v203, 2
  %v1776 = vor.u32 %v1774, %v1775
  %v1777 = vrot.slane %v208, 1
  %v1778 = vrot.slane %v210, 2
  %v1779 = vor.u32 %v1777, %v1778
  %v1831 = vunpack.c.l.b16 %v1723
  %v1832 = vunpack.c.l.b16 %v1724
  %v1833 = vunpack.c.l.b16 %v1725
  %v1834 = vunpack.c.l.b16 %v1726
  %v1835 = vunpack.c.l.b16 %v1727
  %v1836 = vunpack.c.l.b16 %v1728
  %v1837 = vunpack.c.l.b16 %v1729
  %v1838 = vunpack.c.l.b16 %v1730
  %v1839 = vunpack.c.l.b16 %v1731
  %v1840 = vunpack.c.l.b16 %v1732
  %v1841 = vunpack.c.l.b16 %v1733
  %v1842 = vunpack.c.l.b16 %v1734
  %v1843 = vunpack.c.l.b16 %v1735
  %v1844 = vunpack.c.l.b16 %v1736
  %v1845 = vunpack.c.l.b16 %v1737
  %v1846 = vunpack.c.l.b16 %v1738
  %v1847 = vunpack.c.l.b16 %v1739
  %v1848 = vunpack.c.l.b16 %v1740
  %v1849 = vunpack.c.l.b16 %v1741
  %v1850 = vunpack.c.l.b16 %v1742
  %v1851 = vunpack.c.l.b16 %v1743
  %v1852 = vunpack.c.l.b16 %v1744
  %v1853 = vunpack.c.l.b16 %v1745
  %v1854 = vunpack.c.l.b16 %v1746
  %v1855 = vunpack.c.l.b16 %v1747
  %v1856 = vunpack.c.l.b16 %v1748
  %v1857 = vunpack.c.l.b16 %v1749
  %v1858 = vunpack.c.l.b16 %v1750
  %v1859 = vunpack.c.l.b16 %v1751
  %v1860 = vunpack.c.l.b16 %v1752
  %v1861 = vunpack.c.l.b16 %v1753
  %v1862 = vunpack.c.l.b16 %v1754
  %v1863 = vunpack.c.l.b16 %v1755
  %v1864 = vunpack.c.l.b16 %v1756
  %v1865 = vunpack.c.l.b16 %v1757
  %v1866 = vunpack.c.l.b16 %v1758
  %v1867 = vunpack.c.l.b16 %v1759
  %v1868 = vunpack.c.l.b16 %v1760
  %v1869 = vunpack.c.l.b16 %v1761
  %v1870 = vunpack.c.l.b16 %v1762
  %v1871 = vunpack.c.l.b16 %v1763
  %v1872 = vunpack.c.l.b16 %v1764
  %v1873 = vunpack.c.l.b16 %v1765
  %v1874 = vunpack.c.l.b16 %v1766
  %v1875 = vunpack.c.l.b16 %v1767
  %v1876 = vunpack.c.l.b16 %v1768
  %v1877 = vunpack.c.l.b16 %v1769
  %v1878 = vunpack.c.l.b16 %v1770
  %v1879 = vpack.c.b16 %v1832, %v1831
  %v1880 = vpack.c.b16 %v1834, %v1833
  %v1881 = vpack.c.b16 %v1836, %v1835
  %v1882 = vpack.c.b16 %v1838, %v1837
  %v1883 = vpack.c.b16 %v1840, %v1839
  %v1884 = vpack.c.b16 %v1842, %v1841
  %v1885 = vpack.c.b16 %v1844, %v1843
  %v1886 = vpack.c.b16 %v1846, %v1845
  %v1887 = vpack.c.b16 %v1848, %v1847
  %v1888 = vpack.c.b16 %v1850, %v1849
  %v1889 = vpack.c.b16 %v1852, %v1851
  %v1890 = vpack.c.b16 %v1854, %v1853
  %v1891 = vpack.c.b16 %v1856, %v1855
  %v1892 = vpack.c.b16 %v1858, %v1857
  %v1893 = vpack.c.b16 %v1860, %v1859
  %v1894 = vpack.c.b16 %v1862, %v1861
  %v1895 = vpack.c.b16 %v1864, %v1863
  %v1896 = vpack.c.b16 %v1866, %v1865
  %v1897 = vpack.c.b16 %v1868, %v1867
  %v1898 = vpack.c.b16 %v1870, %v1869
  %v1899 = vpack.c.b16 %v1872, %v1871
  %v1900 = vpack.c.b16 %v1874, %v1873
  %v1901 = vpack.c.b16 %v1876, %v1875
  %v1902 = vpack.c.b16 %v1878, %v1877
  %1927 = vmatprep.subr.bf16.mxu0 0
  %1928 = vmatpush1.bf16.msra.mxu0 %v1879
  %1929 = vmatprep.subr.bf16.mxu0 0
  %1930 = vmatpush1.bf16.msra.mxu0 %v1880
  %1931 = vmatprep.subr.bf16.mxu0 0
  %1932 = vmatpush1.bf16.msra.mxu0 %v1881
  %1933 = vmatprep.subr.bf16.mxu0 0
  %1934 = vmatpush1.bf16.msra.mxu0 %v1882
  %1935 = vmatprep.subr.bf16.mxu0 0
  %1936 = vmatpush1.bf16.msra.mxu0 %v1883
  %1937 = vmatprep.subr.bf16.mxu0 0
  %1938 = vmatpush1.bf16.msra.mxu0 %v1884
  %1939 = vmatprep.subr.bf16.mxu0 0
  %1940 = vmatpush1.bf16.msra.mxu0 %v1885
  %1941 = vmatprep.subr.bf16.mxu0 0
  %1942 = vmatpush1.bf16.msra.mxu0 %v1886
  %1943 = vmatprep.subr.bf16.mxu0 0
  %1944 = vmatpush1.bf16.msra.mxu0 %v1887
  %1945 = vmatprep.subr.bf16.mxu0 0
  %1946 = vmatpush1.bf16.msra.mxu0 %v1888
  %1947 = vmatprep.subr.bf16.mxu0 0
  %1948 = vmatpush1.bf16.msra.mxu0 %v1889
  %1949 = vmatprep.subr.bf16.mxu0 0
  %1950 = vmatpush1.bf16.msra.mxu0 %v1890
  %1951 = vmatprep.subr.bf16.mxu0 0
  %1952 = vmatpush1.bf16.msra.mxu0 %v1891
  %1953 = vmatprep.subr.bf16.mxu0 0
  %1954 = vmatpush1.bf16.msra.mxu0 %v1892
  %1955 = vmatprep.subr.bf16.mxu0 0
  %1956 = vmatpush1.bf16.msra.mxu0 %v1893
  %1957 = vmatprep.subr.bf16.mxu0 0
  %1958 = vmatpush1.bf16.msra.mxu0 %v1894
  %1959 = vmatprep.mubr.bf16.mxu0 %v1776
  %1960 = vmatmul.mubr.bf16.gmra.mrb[0].mxu0 %v1773
  %v1961 = vpop.f32.mrb[0].mxu0
  %v1962 = vadd.f32 0.0, %v1961
  %v1963 = vpop.f32.mrb[0].mxu0
  %v1964 = vpop.f32.mrb[0].mxu0
  %v1965 = vpop.f32.mrb[0].mxu0
  %1966 = vdwg.mxu0
  %1967 = vmatprep.subr.bf16.mxu0 0
  %1968 = vmatpush1.bf16.msra.mxu0 %v1895
  %1969 = vmatprep.subr.bf16.mxu0 0
  %1970 = vmatpush1.bf16.msra.mxu0 %v1896
  %1971 = vmatprep.subr.bf16.mxu0 0
  %1972 = vmatpush1.bf16.msra.mxu0 %v1897
  %1973 = vmatprep.subr.bf16.mxu0 0
  %1974 = vmatpush1.bf16.msra.mxu0 %v1898
  %1975 = vmatprep.subr.bf16.mxu0 0
  %1976 = vmatpush1.bf16.msra.mxu0 %v1899
  %1977 = vmatprep.subr.bf16.mxu0 0
  %1978 = vmatpush1.bf16.msra.mxu0 %v1900
  %1979 = vmatprep.subr.bf16.mxu0 0
  %1980 = vmatpush1.bf16.msra.mxu0 %v1901
  %1981 = vmatprep.subr.bf16.mxu0 0
  %1982 = vmatpush1.bf16.msra.mxu0 %v1902
  %1983 = vmatprep.subr.bf16.mxu0 0
  %1984 = vmatpush1.bf16.msra.mxu0 0
  %1985 = vmatprep.subr.bf16.mxu0 0
  %1986 = vmatpush1.bf16.msra.mxu0 0
  %1987 = vmatprep.subr.bf16.mxu0 0
  %1988 = vmatpush1.bf16.msra.mxu0 0
  %1989 = vmatprep.subr.bf16.mxu0 0
  %1990 = vmatpush1.bf16.msra.mxu0 0
  %1991 = vmatprep.subr.bf16.mxu0 0
  %1992 = vmatpush1.bf16.msra.mxu0 0
  %1993 = vmatprep.subr.bf16.mxu0 0
  %1994 = vmatpush1.bf16.msra.mxu0 0
  %1995 = vmatprep.subr.bf16.mxu0 0
  %1996 = vmatpush1.bf16.msra.mxu0 0
  %1997 = vmatprep.subr.bf16.mxu0 0
  %1998 = vmatpush1.bf16.msra.mxu0 0
  %1999 = vmatprep.mubr.bf16.mxu0 0
  %2000 = vmatmul.mubr.bf16.gmra.mrb[0].mxu0 %v1779
  %v2001 = vpop.f32.mrb[0].mxu0
  %v2002 = vadd.f32 %v1962, %v2001
  %v2003 = vpop.f32.mrb[0].mxu0
  %v2004 = vpop.f32.mrb[0].mxu0
  %v2005 = vpop.f32.mrb[0].mxu0
  %2006 = vdwg.mxu0
  %v2007 = vadd.f32 %v1447, %v2002
  %s2008 = scalar_lea.vmem %s2, 576
  %v2009 = vld [vmem:[%s2008] sm:$0xf]
  %v2010 = vld [vmem:[%s2008 + $0x4] sm:$0xf]
  %v2011 = vld [vmem:[%s2008 + $0x8] sm:$0xf]
  %v2012 = vld [vmem:[%s2008 + $0xc] sm:$0xf]
  %v2013 = vld [vmem:[%s2008 + $0x10] sm:$0xf]
  %v2014 = vld [vmem:[%s2008 + $0x14] sm:$0xf]
  %v2015 = vld [vmem:[%s2008 + $0x18] sm:$0xf]
  %v2016 = vld [vmem:[%s2008 + $0x1c] sm:$0xf]
  %v2017 = vld [vmem:[%s2008 + $0x20] sm:$0xf]
  %v2018 = vld [vmem:[%s2008 + $0x24] sm:$0xf]
  %v2019 = vld [vmem:[%s2008 + $0x28] sm:$0xf]
  %v2020 = vld [vmem:[%s2008 + $0x2c] sm:$0xf]
  %v2021 = vld [vmem:[%s2008 + $0x30] sm:$0xf]
  %v2022 = vld [vmem:[%s2008 + $0x34] sm:$0xf]
  %v2023 = vld [vmem:[%s2008 + $0x38] sm:$0xf]
  %v2024 = vld [vmem:[%s2008 + $0x3c] sm:$0xf]
  %v2025 = vld [vmem:[%s2008 + $0x40] sm:$0xf]
  %v2026 = vld [vmem:[%s2008 + $0x44] sm:$0xf]
  %v2027 = vld [vmem:[%s2008 + $0x48] sm:$0xf]
  %v2028 = vld [vmem:[%s2008 + $0x4c] sm:$0xf]
  %v2029 = vld [vmem:[%s2008 + $0x50] sm:$0xf]
  %v2030 = vld [vmem:[%s2008 + $0x54] sm:$0xf]
  %v2031 = vld [vmem:[%s2008 + $0x58] sm:$0xf]
  %v2032 = vld [vmem:[%s2008 + $0x5c] sm:$0xf]
  %v2033 = vld [vmem:[%s2008 + $0x60] sm:$0xf]
  %v2034 = vld [vmem:[%s2008 + $0x64] sm:$0xf]
  %v2035 = vld [vmem:[%s2008 + $0x68] sm:$0xf]
  %v2036 = vld [vmem:[%s2008 + $0x6c] sm:$0xf]
  %v2037 = vld [vmem:[%s2008 + $0x70] sm:$0xf]
  %v2038 = vld [vmem:[%s2008 + $0x74] sm:$0xf]
  %v2039 = vld [vmem:[%s2008 + $0x78] sm:$0xf]
  %v2040 = vld [vmem:[%s2008 + $0x7c] sm:$0xf]
  %v2041 = vld [vmem:[%s2008 + $0x80] sm:$0xf]
  %v2042 = vld [vmem:[%s2008 + $0x84] sm:$0xf]
  %v2043 = vld [vmem:[%s2008 + $0x88] sm:$0xf]
  %v2044 = vld [vmem:[%s2008 + $0x8c] sm:$0xf]
  %v2045 = vld [vmem:[%s2008 + $0x90] sm:$0xf]
  %v2046 = vld [vmem:[%s2008 + $0x94] sm:$0xf]
  %v2047 = vld [vmem:[%s2008 + $0x98] sm:$0xf]
  %v2048 = vld [vmem:[%s2008 + $0x9c] sm:$0xf]
  %v2049 = vld [vmem:[%s2008 + $0xa0] sm:$0xf]
  %v2050 = vld [vmem:[%s2008 + $0xa4] sm:$0xf]
  %v2051 = vld [vmem:[%s2008 + $0xa8] sm:$0xf]
  %v2052 = vld [vmem:[%s2008 + $0xac] sm:$0xf]
  %v2053 = vld [vmem:[%s2008 + $0xb0] sm:$0xf]
  %v2054 = vld [vmem:[%s2008 + $0xb4] sm:$0xf]
  %v2055 = vld [vmem:[%s2008 + $0xb8] sm:$0xf]
  %v2056 = vld [vmem:[%s2008 + $0xbc] sm:$0xf]
  %v2105 = vunpack.c.l.b16 %v2009
  %v2106 = vunpack.c.l.b16 %v2010
  %v2107 = vunpack.c.l.b16 %v2011
  %v2108 = vunpack.c.l.b16 %v2012
  %v2109 = vunpack.c.l.b16 %v2013
  %v2110 = vunpack.c.l.b16 %v2014
  %v2111 = vunpack.c.l.b16 %v2015
  %v2112 = vunpack.c.l.b16 %v2016
  %v2113 = vunpack.c.l.b16 %v2017
  %v2114 = vunpack.c.l.b16 %v2018
  %v2115 = vunpack.c.l.b16 %v2019
  %v2116 = vunpack.c.l.b16 %v2020
  %v2117 = vunpack.c.l.b16 %v2021
  %v2118 = vunpack.c.l.b16 %v2022
  %v2119 = vunpack.c.l.b16 %v2023
  %v2120 = vunpack.c.l.b16 %v2024
  %v2121 = vunpack.c.l.b16 %v2025
  %v2122 = vunpack.c.l.b16 %v2026
  %v2123 = vunpack.c.l.b16 %v2027
  %v2124 = vunpack.c.l.b16 %v2028
  %v2125 = vunpack.c.l.b16 %v2029
  %v2126 = vunpack.c.l.b16 %v2030
  %v2127 = vunpack.c.l.b16 %v2031
  %v2128 = vunpack.c.l.b16 %v2032
  %v2129 = vunpack.c.l.b16 %v2033
  %v2130 = vunpack.c.l.b16 %v2034
  %v2131 = vunpack.c.l.b16 %v2035
  %v2132 = vunpack.c.l.b16 %v2036
  %v2133 = vunpack.c.l.b16 %v2037
  %v2134 = vunpack.c.l.b16 %v2038
  %v2135 = vunpack.c.l.b16 %v2039
  %v2136 = vunpack.c.l.b16 %v2040
  %v2137 = vunpack.c.l.b16 %v2041
  %v2138 = vunpack.c.l.b16 %v2042
  %v2139 = vunpack.c.l.b16 %v2043
  %v2140 = vunpack.c.l.b16 %v2044
  %v2141 = vunpack.c.l.b16 %v2045
  %v2142 = vunpack.c.l.b16 %v2046
  %v2143 = vunpack.c.l.b16 %v2047
  %v2144 = vunpack.c.l.b16 %v2048
  %v2145 = vunpack.c.l.b16 %v2049
  %v2146 = vunpack.c.l.b16 %v2050
  %v2147 = vunpack.c.l.b16 %v2051
  %v2148 = vunpack.c.l.b16 %v2052
  %v2149 = vunpack.c.l.b16 %v2053
  %v2150 = vunpack.c.l.b16 %v2054
  %v2151 = vunpack.c.l.b16 %v2055
  %v2152 = vunpack.c.l.b16 %v2056
  %v2153 = vpack.c.b16 %v2106, %v2105
  %v2154 = vpack.c.b16 %v2108, %v2107
  %v2155 = vpack.c.b16 %v2110, %v2109
  %v2156 = vpack.c.b16 %v2112, %v2111
  %v2157 = vpack.c.b16 %v2114, %v2113
  %v2158 = vpack.c.b16 %v2116, %v2115
  %v2159 = vpack.c.b16 %v2118, %v2117
  %v2160 = vpack.c.b16 %v2120, %v2119
  %v2161 = vpack.c.b16 %v2122, %v2121
  %v2162 = vpack.c.b16 %v2124, %v2123
  %v2163 = vpack.c.b16 %v2126, %v2125
  %v2164 = vpack.c.b16 %v2128, %v2127
  %v2165 = vpack.c.b16 %v2130, %v2129
  %v2166 = vpack.c.b16 %v2132, %v2131
  %v2167 = vpack.c.b16 %v2134, %v2133
  %v2168 = vpack.c.b16 %v2136, %v2135
  %v2169 = vpack.c.b16 %v2138, %v2137
  %v2170 = vpack.c.b16 %v2140, %v2139
  %v2171 = vpack.c.b16 %v2142, %v2141
  %v2172 = vpack.c.b16 %v2144, %v2143
  %v2173 = vpack.c.b16 %v2146, %v2145
  %v2174 = vpack.c.b16 %v2148, %v2147
  %v2175 = vpack.c.b16 %v2150, %v2149
  %v2176 = vpack.c.b16 %v2152, %v2151
  %2201 = vmatprep.subr.bf16.mxu0 0
  %2202 = vmatpush1.bf16.msra.mxu0 %v2153
  %2203 = vmatprep.subr.bf16.mxu0 0
  %2204 = vmatpush1.bf16.msra.mxu0 %v2154
  %2205 = vmatprep.subr.bf16.mxu0 0
  %2206 = vmatpush1.bf16.msra.mxu0 %v2155
  %2207 = vmatprep.subr.bf16.mxu0 0
  %2208 = vmatpush1.bf16.msra.mxu0 %v2156
  %2209 = vmatprep.subr.bf16.mxu0 0
  %2210 = vmatpush1.bf16.msra.mxu0 %v2157
  %2211 = vmatprep.subr.bf16.mxu0 0
  %2212 = vmatpush1.bf16.msra.mxu0 %v2158
  %2213 = vmatprep.subr.bf16.mxu0 0
  %2214 = vmatpush1.bf16.msra.mxu0 %v2159
  %2215 = vmatprep.subr.bf16.mxu0 0
  %2216 = vmatpush1.bf16.msra.mxu0 %v2160
  %2217 = vmatprep.subr.bf16.mxu0 0
  %2218 = vmatpush1.bf16.msra.mxu0 %v2161
  %2219 = vmatprep.subr.bf16.mxu0 0
  %2220 = vmatpush1.bf16.msra.mxu0 %v2162
  %2221 = vmatprep.subr.bf16.mxu0 0
  %2222 = vmatpush1.bf16.msra.mxu0 %v2163
  %2223 = vmatprep.subr.bf16.mxu0 0
  %2224 = vmatpush1.bf16.msra.mxu0 %v2164
  %2225 = vmatprep.subr.bf16.mxu0 0
  %2226 = vmatpush1.bf16.msra.mxu0 %v2165
  %2227 = vmatprep.subr.bf16.mxu0 0
  %2228 = vmatpush1.bf16.msra.mxu0 %v2166
  %2229 = vmatprep.subr.bf16.mxu0 0
  %2230 = vmatpush1.bf16.msra.mxu0 %v2167
  %2231 = vmatprep.subr.bf16.mxu0 0
  %2232 = vmatpush1.bf16.msra.mxu0 %v2168
  %2233 = vmatprep.mubr.bf16.mxu0 %v1776
  %2234 = vmatmul.mubr.bf16.gmra.mrb[0].mxu0 %v1773
  %v2235 = vpop.f32.mrb[0].mxu0
  %v2236 = vadd.f32 0.0, %v2235
  %v2237 = vpop.f32.mrb[0].mxu0
  %v2238 = vpop.f32.mrb[0].mxu0
  %v2239 = vpop.f32.mrb[0].mxu0
  %2240 = vdwg.mxu0
  %2241 = vmatprep.subr.bf16.mxu0 0
  %2242 = vmatpush1.bf16.msra.mxu0 %v2169
  %2243 = vmatprep.subr.bf16.mxu0 0
  %2244 = vmatpush1.bf16.msra.mxu0 %v2170
  %2245 = vmatprep.subr.bf16.mxu0 0
  %2246 = vmatpush1.bf16.msra.mxu0 %v2171
  %2247 = vmatprep.subr.bf16.mxu0 0
  %2248 = vmatpush1.bf16.msra.mxu0 %v2172
  %2249 = vmatprep.subr.bf16.mxu0 0
  %2250 = vmatpush1.bf16.msra.mxu0 %v2173
  %2251 = vmatprep.subr.bf16.mxu0 0
  %2252 = vmatpush1.bf16.msra.mxu0 %v2174
  %2253 = vmatprep.subr.bf16.mxu0 0
  %2254 = vmatpush1.bf16.msra.mxu0 %v2175
  %2255 = vmatprep.subr.bf16.mxu0 0
  %2256 = vmatpush1.bf16.msra.mxu0 %v2176
  %2257 = vmatprep.subr.bf16.mxu0 0
  %2258 = vmatpush1.bf16.msra.mxu0 0
  %2259 = vmatprep.subr.bf16.mxu0 0
  %2260 = vmatpush1.bf16.msra.mxu0 0
  %2261 = vmatprep.subr.bf16.mxu0 0
  %2262 = vmatpush1.bf16.msra.mxu0 0
  %2263 = vmatprep.subr.bf16.mxu0 0
  %2264 = vmatpush1.bf16.msra.mxu0 0
  %2265 = vmatprep.subr.bf16.mxu0 0
  %2266 = vmatpush1.bf16.msra.mxu0 0
  %2267 = vmatprep.subr.bf16.mxu0 0
  %2268 = vmatpush1.bf16.msra.mxu0 0
  %2269 = vmatprep.subr.bf16.mxu0 0
  %2270 = vmatpush1.bf16.msra.mxu0 0
  %2271 = vmatprep.subr.bf16.mxu0 0
  %2272 = vmatpush1.bf16.msra.mxu0 0
  %2273 = vmatprep.mubr.bf16.mxu0 0
  %2274 = vmatmul.mubr.bf16.gmra.mrb[0].mxu0 %v1779
  %v2275 = vpop.f32.mrb[0].mxu0
  %v2276 = vadd.f32 %v2236, %v2275
  %v2277 = vpop.f32.mrb[0].mxu0
  %v2278 = vpop.f32.mrb[0].mxu0
  %v2279 = vpop.f32.mrb[0].mxu0
  %2280 = vdwg.mxu0
  %v2281 = vadd.f32 %v1721, %v2276
  %s2282 = scalar_lea.vmem %s1, 768
  %v2283 = vld [vmem:[%s2282] sm:$0xf]
  %v2284 = vld [vmem:[%s2282 + $0x4] sm:$0xf]
  %v2285 = vld [vmem:[%s2282 + $0x8] sm:$0xf]
  %v2286 = vld [vmem:[%s2282 + $0xc] sm:$0xf]
  %v2287 = vld [vmem:[%s2282 + $0x10] sm:$0xf]
  %v2288 = vld [vmem:[%s2282 + $0x14] sm:$0xf]
  %v2289 = vld [vmem:[%s2282 + $0x18] sm:$0xf]
  %v2290 = vld [vmem:[%s2282 + $0x1c] sm:$0xf]
  %v2291 = vld [vmem:[%s2282 + $0x20] sm:$0xf]
  %v2292 = vld [vmem:[%s2282 + $0x24] sm:$0xf]
  %v2293 = vld [vmem:[%s2282 + $0x28] sm:$0xf]
  %v2294 = vld [vmem:[%s2282 + $0x2c] sm:$0xf]
  %v2295 = vld [vmem:[%s2282 + $0x30] sm:$0xf]
  %v2296 = vld [vmem:[%s2282 + $0x34] sm:$0xf]
  %v2297 = vld [vmem:[%s2282 + $0x38] sm:$0xf]
  %v2298 = vld [vmem:[%s2282 + $0x3c] sm:$0xf]
  %v2299 = vld [vmem:[%s2282 + $0x40] sm:$0xf]
  %v2300 = vld [vmem:[%s2282 + $0x44] sm:$0xf]
  %v2301 = vld [vmem:[%s2282 + $0x48] sm:$0xf]
  %v2302 = vld [vmem:[%s2282 + $0x4c] sm:$0xf]
  %v2303 = vld [vmem:[%s2282 + $0x50] sm:$0xf]
  %v2304 = vld [vmem:[%s2282 + $0x54] sm:$0xf]
  %v2305 = vld [vmem:[%s2282 + $0x58] sm:$0xf]
  %v2306 = vld [vmem:[%s2282 + $0x5c] sm:$0xf]
  %v2307 = vld [vmem:[%s2282 + $0x60] sm:$0xf]
  %v2308 = vld [vmem:[%s2282 + $0x64] sm:$0xf]
  %v2309 = vld [vmem:[%s2282 + $0x68] sm:$0xf]
  %v2310 = vld [vmem:[%s2282 + $0x6c] sm:$0xf]
  %v2311 = vld [vmem:[%s2282 + $0x70] sm:$0xf]
  %v2312 = vld [vmem:[%s2282 + $0x74] sm:$0xf]
  %v2313 = vld [vmem:[%s2282 + $0x78] sm:$0xf]
  %v2314 = vld [vmem:[%s2282 + $0x7c] sm:$0xf]
  %v2315 = vld [vmem:[%s2282 + $0x80] sm:$0xf]
  %v2316 = vld [vmem:[%s2282 + $0x84] sm:$0xf]
  %v2317 = vld [vmem:[%s2282 + $0x88] sm:$0xf]
  %v2318 = vld [vmem:[%s2282 + $0x8c] sm:$0xf]
  %v2319 = vld [vmem:[%s2282 + $0x90] sm:$0xf]
  %v2320 = vld [vmem:[%s2282 + $0x94] sm:$0xf]
  %v2321 = vld [vmem:[%s2282 + $0x98] sm:$0xf]
  %v2322 = vld [vmem:[%s2282 + $0x9c] sm:$0xf]
  %v2323 = vld [vmem:[%s2282 + $0xa0] sm:$0xf]
  %v2324 = vld [vmem:[%s2282 + $0xa4] sm:$0xf]
  %v2325 = vld [vmem:[%s2282 + $0xa8] sm:$0xf]
  %v2326 = vld [vmem:[%s2282 + $0xac] sm:$0xf]
  %v2327 = vld [vmem:[%s2282 + $0xb0] sm:$0xf]
  %v2328 = vld [vmem:[%s2282 + $0xb4] sm:$0xf]
  %v2329 = vld [vmem:[%s2282 + $0xb8] sm:$0xf]
  %v2330 = vld [vmem:[%s2282 + $0xbc] sm:$0xf]
  %v2331 = vrot.slane %v190, 2
  %v2332 = vrot.slane %v191, 2
  %v2333 = vrot.slane %v192, 2
  %v2385 = vunpack.c.l.b16 %v2283
  %v2386 = vunpack.c.l.b16 %v2284
  %v2387 = vunpack.c.l.b16 %v2285
  %v2388 = vunpack.c.l.b16 %v2286
  %v2389 = vunpack.c.l.b16 %v2287
  %v2390 = vunpack.c.l.b16 %v2288
  %v2391 = vunpack.c.l.b16 %v2289
  %v2392 = vunpack.c.l.b16 %v2290
  %v2393 = vunpack.c.l.b16 %v2291
  %v2394 = vunpack.c.l.b16 %v2292
  %v2395 = vunpack.c.l.b16 %v2293
  %v2396 = vunpack.c.l.b16 %v2294
  %v2397 = vunpack.c.l.b16 %v2295
  %v2398 = vunpack.c.l.b16 %v2296
  %v2399 = vunpack.c.l.b16 %v2297
  %v2400 = vunpack.c.l.b16 %v2298
  %v2401 = vunpack.c.l.b16 %v2299
  %v2402 = vunpack.c.l.b16 %v2300
  %v2403 = vunpack.c.l.b16 %v2301
  %v2404 = vunpack.c.l.b16 %v2302
  %v2405 = vunpack.c.l.b16 %v2303
  %v2406 = vunpack.c.l.b16 %v2304
  %v2407 = vunpack.c.l.b16 %v2305
  %v2408 = vunpack.c.l.b16 %v2306
  %v2409 = vunpack.c.l.b16 %v2307
  %v2410 = vunpack.c.l.b16 %v2308
  %v2411 = vunpack.c.l.b16 %v2309
  %v2412 = vunpack.c.l.b16 %v2310
  %v2413 = vunpack.c.l.b16 %v2311
  %v2414 = vunpack.c.l.b16 %v2312
  %v2415 = vunpack.c.l.b16 %v2313
  %v2416 = vunpack.c.l.b16 %v2314
  %v2417 = vunpack.c.l.b16 %v2315
  %v2418 = vunpack.c.l.b16 %v2316
  %v2419 = vunpack.c.l.b16 %v2317
  %v2420 = vunpack.c.l.b16 %v2318
  %v2421 = vunpack.c.l.b16 %v2319
  %v2422 = vunpack.c.l.b16 %v2320
  %v2423 = vunpack.c.l.b16 %v2321
  %v2424 = vunpack.c.l.b16 %v2322
  %v2425 = vunpack.c.l.b16 %v2323
  %v2426 = vunpack.c.l.b16 %v2324
  %v2427 = vunpack.c.l.b16 %v2325
  %v2428 = vunpack.c.l.b16 %v2326
  %v2429 = vunpack.c.l.b16 %v2327
  %v2430 = vunpack.c.l.b16 %v2328
  %v2431 = vunpack.c.l.b16 %v2329
  %v2432 = vunpack.c.l.b16 %v2330
  %v2433 = vpack.c.b16 %v2386, %v2385
  %v2434 = vpack.c.b16 %v2388, %v2387
  %v2435 = vpack.c.b16 %v2390, %v2389
  %v2436 = vpack.c.b16 %v2392, %v2391
  %v2437 = vpack.c.b16 %v2394, %v2393
  %v2438 = vpack.c.b16 %v2396, %v2395
  %v2439 = vpack.c.b16 %v2398, %v2397
  %v2440 = vpack.c.b16 %v2400, %v2399
  %v2441 = vpack.c.b16 %v2402, %v2401
  %v2442 = vpack.c.b16 %v2404, %v2403
  %v2443 = vpack.c.b16 %v2406, %v2405
  %v2444 = vpack.c.b16 %v2408, %v2407
  %v2445 = vpack.c.b16 %v2410, %v2409
  %v2446 = vpack.c.b16 %v2412, %v2411
  %v2447 = vpack.c.b16 %v2414, %v2413
  %v2448 = vpack.c.b16 %v2416, %v2415
  %v2449 = vpack.c.b16 %v2418, %v2417
  %v2450 = vpack.c.b16 %v2420, %v2419
  %v2451 = vpack.c.b16 %v2422, %v2421
  %v2452 = vpack.c.b16 %v2424, %v2423
  %v2453 = vpack.c.b16 %v2426, %v2425
  %v2454 = vpack.c.b16 %v2428, %v2427
  %v2455 = vpack.c.b16 %v2430, %v2429
  %v2456 = vpack.c.b16 %v2432, %v2431
  %2481 = vmatprep.subr.bf16.mxu0 0
  %2482 = vmatpush1.bf16.msra.mxu0 %v2433
  %2483 = vmatprep.subr.bf16.mxu0 0
  %2484 = vmatpush1.bf16.msra.mxu0 %v2434
  %2485 = vmatprep.subr.bf16.mxu0 0
  %2486 = vmatpush1.bf16.msra.mxu0 %v2435
  %2487 = vmatprep.subr.bf16.mxu0 0
  %2488 = vmatpush1.bf16.msra.mxu0 %v2436
  %2489 = vmatprep.subr.bf16.mxu0 0
  %2490 = vmatpush1.bf16.msra.mxu0 %v2437
  %2491 = vmatprep.subr.bf16.mxu0 0
  %2492 = vmatpush1.bf16.msra.mxu0 %v2438
  %2493 = vmatprep.subr.bf16.mxu0 0
  %2494 = vmatpush1.bf16.msra.mxu0 %v2439
  %2495 = vmatprep.subr.bf16.mxu0 0
  %2496 = vmatpush1.bf16.msra.mxu0 %v2440
  %2497 = vmatprep.subr.bf16.mxu0 0
  %2498 = vmatpush1.bf16.msra.mxu0 %v2441
  %2499 = vmatprep.subr.bf16.mxu0 0
  %2500 = vmatpush1.bf16.msra.mxu0 %v2442
  %2501 = vmatprep.subr.bf16.mxu0 0
  %2502 = vmatpush1.bf16.msra.mxu0 %v2443
  %2503 = vmatprep.subr.bf16.mxu0 0
  %2504 = vmatpush1.bf16.msra.mxu0 %v2444
  %2505 = vmatprep.subr.bf16.mxu0 0
  %2506 = vmatpush1.bf16.msra.mxu0 %v2445
  %2507 = vmatprep.subr.bf16.mxu0 0
  %2508 = vmatpush1.bf16.msra.mxu0 %v2446
  %2509 = vmatprep.subr.bf16.mxu0 0
  %2510 = vmatpush1.bf16.msra.mxu0 %v2447
  %2511 = vmatprep.subr.bf16.mxu0 0
  %2512 = vmatpush1.bf16.msra.mxu0 %v2448
  %2513 = vmatprep.mubr.bf16.mxu0 %v2332
  %2514 = vmatmul.mubr.bf16.gmra.mrb[0].mxu0 %v2331
  %v2515 = vpop.f32.mrb[0].mxu0
  %v2516 = vadd.f32 0.0, %v2515
  %v2517 = vpop.f32.mrb[0].mxu0
  %v2518 = vpop.f32.mrb[0].mxu0
  %v2519 = vpop.f32.mrb[0].mxu0
  %2520 = vdwg.mxu0
  %2521 = vmatprep.subr.bf16.mxu0 0
  %2522 = vmatpush1.bf16.msra.mxu0 %v2449
  %2523 = vmatprep.subr.bf16.mxu0 0
  %2524 = vmatpush1.bf16.msra.mxu0 %v2450
  %2525 = vmatprep.subr.bf16.mxu0 0
  %2526 = vmatpush1.bf16.msra.mxu0 %v2451
  %2527 = vmatprep.subr.bf16.mxu0 0
  %2528 = vmatpush1.bf16.msra.mxu0 %v2452
  %2529 = vmatprep.subr.bf16.mxu0 0
  %2530 = vmatpush1.bf16.msra.mxu0 %v2453
  %2531 = vmatprep.subr.bf16.mxu0 0
  %2532 = vmatpush1.bf16.msra.mxu0 %v2454
  %2533 = vmatprep.subr.bf16.mxu0 0
  %2534 = vmatpush1.bf16.msra.mxu0 %v2455
  %2535 = vmatprep.subr.bf16.mxu0 0
  %2536 = vmatpush1.bf16.msra.mxu0 %v2456
  %2537 = vmatprep.subr.bf16.mxu0 0
  %2538 = vmatpush1.bf16.msra.mxu0 0
  %2539 = vmatprep.subr.bf16.mxu0 0
  %2540 = vmatpush1.bf16.msra.mxu0 0
  %2541 = vmatprep.subr.bf16.mxu0 0
  %2542 = vmatpush1.bf16.msra.mxu0 0
  %2543 = vmatprep.subr.bf16.mxu0 0
  %2544 = vmatpush1.bf16.msra.mxu0 0
  %2545 = vmatprep.subr.bf16.mxu0 0
  %2546 = vmatpush1.bf16.msra.mxu0 0
  %2547 = vmatprep.subr.bf16.mxu0 0
  %2548 = vmatpush1.bf16.msra.mxu0 0
  %2549 = vmatprep.subr.bf16.mxu0 0
  %2550 = vmatpush1.bf16.msra.mxu0 0
  %2551 = vmatprep.subr.bf16.mxu0 0
  %2552 = vmatpush1.bf16.msra.mxu0 0
  %2553 = vmatprep.mubr.bf16.mxu0 0
  %2554 = vmatmul.mubr.bf16.gmra.mrb[0].mxu0 %v2333
  %v2555 = vpop.f32.mrb[0].mxu0
  %v2556 = vadd.f32 %v2516, %v2555
  %v2557 = vpop.f32.mrb[0].mxu0
  %v2558 = vpop.f32.mrb[0].mxu0
  %v2559 = vpop.f32.mrb[0].mxu0
  %2560 = vdwg.mxu0
  %v2561 = vadd.f32 %v2007, %v2556
  %s2562 = scalar_lea.vmem %s2, 768
  %v2563 = vld [vmem:[%s2562] sm:$0xf]
  %v2564 = vld [vmem:[%s2562 + $0x4] sm:$0xf]
  %v2565 = vld [vmem:[%s2562 + $0x8] sm:$0xf]
  %v2566 = vld [vmem:[%s2562 + $0xc] sm:$0xf]
  %v2567 = vld [vmem:[%s2562 + $0x10] sm:$0xf]
  %v2568 = vld [vmem:[%s2562 + $0x14] sm:$0xf]
  %v2569 = vld [vmem:[%s2562 + $0x18] sm:$0xf]
  %v2570 = vld [vmem:[%s2562 + $0x1c] sm:$0xf]
  %v2571 = vld [vmem:[%s2562 + $0x20] sm:$0xf]
  %v2572 = vld [vmem:[%s2562 + $0x24] sm:$0xf]
  %v2573 = vld [vmem:[%s2562 + $0x28] sm:$0xf]
  %v2574 = vld [vmem:[%s2562 + $0x2c] sm:$0xf]
  %v2575 = vld [vmem:[%s2562 + $0x30] sm:$0xf]
  %v2576 = vld [vmem:[%s2562 + $0x34] sm:$0xf]
  %v2577 = vld [vmem:[%s2562 + $0x38] sm:$0xf]
  %v2578 = vld [vmem:[%s2562 + $0x3c] sm:$0xf]
  %v2579 = vld [vmem:[%s2562 + $0x40] sm:$0xf]
  %v2580 = vld [vmem:[%s2562 + $0x44] sm:$0xf]
  %v2581 = vld [vmem:[%s2562 + $0x48] sm:$0xf]
  %v2582 = vld [vmem:[%s2562 + $0x4c] sm:$0xf]
  %v2583 = vld [vmem:[%s2562 + $0x50] sm:$0xf]
  %v2584 = vld [vmem:[%s2562 + $0x54] sm:$0xf]
  %v2585 = vld [vmem:[%s2562 + $0x58] sm:$0xf]
  %v2586 = vld [vmem:[%s2562 + $0x5c] sm:$0xf]
  %v2587 = vld [vmem:[%s2562 + $0x60] sm:$0xf]
  %v2588 = vld [vmem:[%s2562 + $0x64] sm:$0xf]
  %v2589 = vld [vmem:[%s2562 + $0x68] sm:$0xf]
  %v2590 = vld [vmem:[%s2562 + $0x6c] sm:$0xf]
  %v2591 = vld [vmem:[%s2562 + $0x70] sm:$0xf]
  %v2592 = vld [vmem:[%s2562 + $0x74] sm:$0xf]
  %v2593 = vld [vmem:[%s2562 + $0x78] sm:$0xf]
  %v2594 = vld [vmem:[%s2562 + $0x7c] sm:$0xf]
  %v2595 = vld [vmem:[%s2562 + $0x80] sm:$0xf]
  %v2596 = vld [vmem:[%s2562 + $0x84] sm:$0xf]
  %v2597 = vld [vmem:[%s2562 + $0x88] sm:$0xf]
  %v2598 = vld [vmem:[%s2562 + $0x8c] sm:$0xf]
  %v2599 = vld [vmem:[%s2562 + $0x90] sm:$0xf]
  %v2600 = vld [vmem:[%s2562 + $0x94] sm:$0xf]
  %v2601 = vld [vmem:[%s2562 + $0x98] sm:$0xf]
  %v2602 = vld [vmem:[%s2562 + $0x9c] sm:$0xf]
  %v2603 = vld [vmem:[%s2562 + $0xa0] sm:$0xf]
  %v2604 = vld [vmem:[%s2562 + $0xa4] sm:$0xf]
  %v2605 = vld [vmem:[%s2562 + $0xa8] sm:$0xf]
  %v2606 = vld [vmem:[%s2562 + $0xac] sm:$0xf]
  %v2607 = vld [vmem:[%s2562 + $0xb0] sm:$0xf]
  %v2608 = vld [vmem:[%s2562 + $0xb4] sm:$0xf]
  %v2609 = vld [vmem:[%s2562 + $0xb8] sm:$0xf]
  %v2610 = vld [vmem:[%s2562 + $0xbc] sm:$0xf]
  %v2659 = vunpack.c.l.b16 %v2563
  %v2660 = vunpack.c.l.b16 %v2564
  %v2661 = vunpack.c.l.b16 %v2565
  %v2662 = vunpack.c.l.b16 %v2566
  %v2663 = vunpack.c.l.b16 %v2567
  %v2664 = vunpack.c.l.b16 %v2568
  %v2665 = vunpack.c.l.b16 %v2569
  %v2666 = vunpack.c.l.b16 %v2570
  %v2667 = vunpack.c.l.b16 %v2571
  %v2668 = vunpack.c.l.b16 %v2572
  %v2669 = vunpack.c.l.b16 %v2573
  %v2670 = vunpack.c.l.b16 %v2574
  %v2671 = vunpack.c.l.b16 %v2575
  %v2672 = vunpack.c.l.b16 %v2576
  %v2673 = vunpack.c.l.b16 %v2577
  %v2674 = vunpack.c.l.b16 %v2578
  %v2675 = vunpack.c.l.b16 %v2579
  %v2676 = vunpack.c.l.b16 %v2580
  %v2677 = vunpack.c.l.b16 %v2581
  %v2678 = vunpack.c.l.b16 %v2582
  %v2679 = vunpack.c.l.b16 %v2583
  %v2680 = vunpack.c.l.b16 %v2584
  %v2681 = vunpack.c.l.b16 %v2585
  %v2682 = vunpack.c.l.b16 %v2586
  %v2683 = vunpack.c.l.b16 %v2587
  %v2684 = vunpack.c.l.b16 %v2588
  %v2685 = vunpack.c.l.b16 %v2589
  %v2686 = vunpack.c.l.b16 %v2590
  %v2687 = vunpack.c.l.b16 %v2591
  %v2688 = vunpack.c.l.b16 %v2592
  %v2689 = vunpack.c.l.b16 %v2593
  %v2690 = vunpack.c.l.b16 %v2594
  %v2691 = vunpack.c.l.b16 %v2595
  %v2692 = vunpack.c.l.b16 %v2596
  %v2693 = vunpack.c.l.b16 %v2597
  %v2694 = vunpack.c.l.b16 %v2598
  %v2695 = vunpack.c.l.b16 %v2599
  %v2696 = vunpack.c.l.b16 %v2600
  %v2697 = vunpack.c.l.b16 %v2601
  %v2698 = vunpack.c.l.b16 %v2602
  %v2699 = vunpack.c.l.b16 %v2603
  %v2700 = vunpack.c.l.b16 %v2604
  %v2701 = vunpack.c.l.b16 %v2605
  %v2702 = vunpack.c.l.b16 %v2606
  %v2703 = vunpack.c.l.b16 %v2607
  %v2704 = vunpack.c.l.b16 %v2608
  %v2705 = vunpack.c.l.b16 %v2609
  %v2706 = vunpack.c.l.b16 %v2610
  %v2707 = vpack.c.b16 %v2660, %v2659
  %v2708 = vpack.c.b16 %v2662, %v2661
  %v2709 = vpack.c.b16 %v2664, %v2663
  %v2710 = vpack.c.b16 %v2666, %v2665
  %v2711 = vpack.c.b16 %v2668, %v2667
  %v2712 = vpack.c.b16 %v2670, %v2669
  %v2713 = vpack.c.b16 %v2672, %v2671
  %v2714 = vpack.c.b16 %v2674, %v2673
  %v2715 = vpack.c.b16 %v2676, %v2675
  %v2716 = vpack.c.b16 %v2678, %v2677
  %v2717 = vpack.c.b16 %v2680, %v2679
  %v2718 = vpack.c.b16 %v2682, %v2681
  %v2719 = vpack.c.b16 %v2684, %v2683
  %v2720 = vpack.c.b16 %v2686, %v2685
  %v2721 = vpack.c.b16 %v2688, %v2687
  %v2722 = vpack.c.b16 %v2690, %v2689
  %v2723 = vpack.c.b16 %v2692, %v2691
  %v2724 = vpack.c.b16 %v2694, %v2693
  %v2725 = vpack.c.b16 %v2696, %v2695
  %v2726 = vpack.c.b16 %v2698, %v2697
  %v2727 = vpack.c.b16 %v2700, %v2699
  %v2728 = vpack.c.b16 %v2702, %v2701
  %v2729 = vpack.c.b16 %v2704, %v2703
  %v2730 = vpack.c.b16 %v2706, %v2705
  %2755 = vmatprep.subr.bf16.mxu0 0
  %2756 = vmatpush1.bf16.msra.mxu0 %v2707
  %2757 = vmatprep.subr.bf16.mxu0 0
  %2758 = vmatpush1.bf16.msra.mxu0 %v2708
  %2759 = vmatprep.subr.bf16.mxu0 0
  %2760 = vmatpush1.bf16.msra.mxu0 %v2709
  %2761 = vmatprep.subr.bf16.mxu0 0
  %2762 = vmatpush1.bf16.msra.mxu0 %v2710
  %2763 = vmatprep.subr.bf16.mxu0 0
  %2764 = vmatpush1.bf16.msra.mxu0 %v2711
  %2765 = vmatprep.subr.bf16.mxu0 0
  %2766 = vmatpush1.bf16.msra.mxu0 %v2712
  %2767 = vmatprep.subr.bf16.mxu0 0
  %2768 = vmatpush1.bf16.msra.mxu0 %v2713
  %2769 = vmatprep.subr.bf16.mxu0 0
  %2770 = vmatpush1.bf16.msra.mxu0 %v2714
  %2771 = vmatprep.subr.bf16.mxu0 0
  %2772 = vmatpush1.bf16.msra.mxu0 %v2715
  %2773 = vmatprep.subr.bf16.mxu0 0
  %2774 = vmatpush1.bf16.msra.mxu0 %v2716
  %2775 = vmatprep.subr.bf16.mxu0 0
  %2776 = vmatpush1.bf16.msra.mxu0 %v2717
  %2777 = vmatprep.subr.bf16.mxu0 0
  %2778 = vmatpush1.bf16.msra.mxu0 %v2718
  %2779 = vmatprep.subr.bf16.mxu0 0
  %2780 = vmatpush1.bf16.msra.mxu0 %v2719
  %2781 = vmatprep.subr.bf16.mxu0 0
  %2782 = vmatpush1.bf16.msra.mxu0 %v2720
  %2783 = vmatprep.subr.bf16.mxu0 0
  %2784 = vmatpush1.bf16.msra.mxu0 %v2721
  %2785 = vmatprep.subr.bf16.mxu0 0
  %2786 = vmatpush1.bf16.msra.mxu0 %v2722
  %2787 = vmatprep.mubr.bf16.mxu0 %v2332
  %2788 = vmatmul.mubr.bf16.gmra.mrb[0].mxu0 %v2331
  %v2789 = vpop.f32.mrb[0].mxu0
  %v2790 = vadd.f32 0.0, %v2789
  %v2791 = vpop.f32.mrb[0].mxu0
  %v2792 = vpop.f32.mrb[0].mxu0
  %v2793 = vpop.f32.mrb[0].mxu0
  %2794 = vdwg.mxu0
  %2795 = vmatprep.subr.bf16.mxu0 0
  %2796 = vmatpush1.bf16.msra.mxu0 %v2723
  %2797 = vmatprep.subr.bf16.mxu0 0
  %2798 = vmatpush1.bf16.msra.mxu0 %v2724
  %2799 = vmatprep.subr.bf16.mxu0 0
  %2800 = vmatpush1.bf16.msra.mxu0 %v2725
  %2801 = vmatprep.subr.bf16.mxu0 0
  %2802 = vmatpush1.bf16.msra.mxu0 %v2726
  %2803 = vmatprep.subr.bf16.mxu0 0
  %2804 = vmatpush1.bf16.msra.mxu0 %v2727
  %2805 = vmatprep.subr.bf16.mxu0 0
  %2806 = vmatpush1.bf16.msra.mxu0 %v2728
  %2807 = vmatprep.subr.bf16.mxu0 0
  %2808 = vmatpush1.bf16.msra.mxu0 %v2729
  %2809 = vmatprep.subr.bf16.mxu0 0
  %2810 = vmatpush1.bf16.msra.mxu0 %v2730
  %2811 = vmatprep.subr.bf16.mxu0 0
  %2812 = vmatpush1.bf16.msra.mxu0 0
  %2813 = vmatprep.subr.bf16.mxu0 0
  %2814 = vmatpush1.bf16.msra.mxu0 0
  %2815 = vmatprep.subr.bf16.mxu0 0
  %2816 = vmatpush1.bf16.msra.mxu0 0
  %2817 = vmatprep.subr.bf16.mxu0 0
  %2818 = vmatpush1.bf16.msra.mxu0 0
  %2819 = vmatprep.subr.bf16.mxu0 0
  %2820 = vmatpush1.bf16.msra.mxu0 0
  %2821 = vmatprep.subr.bf16.mxu0 0
  %2822 = vmatpush1.bf16.msra.mxu0 0
  %2823 = vmatprep.subr.bf16.mxu0 0
  %2824 = vmatpush1.bf16.msra.mxu0 0
  %2825 = vmatprep.subr.bf16.mxu0 0
  %2826 = vmatpush1.bf16.msra.mxu0 0
  %2827 = vmatprep.mubr.bf16.mxu0 0
  %2828 = vmatmul.mubr.bf16.gmra.mrb[0].mxu0 %v2333
  %v2829 = vpop.f32.mrb[0].mxu0
  %v2830 = vadd.f32 %v2790, %v2829
  %v2831 = vpop.f32.mrb[0].mxu0
  %v2832 = vpop.f32.mrb[0].mxu0
  %v2833 = vpop.f32.mrb[0].mxu0
  %2834 = vdwg.mxu0
  %v2835 = vadd.f32 %v2281, %v2830
  %v2837 = vlaneseq
  %v2838 = vshrl.u32 %v2837, 7
  %v2839 = vsub.s32 0, %v2838
  %v2840 = vrot.slane %v18, %v2839
  %v2842 = vadd.f32 %v2561, %v2840
  %v2843 = vmax.f32 %v2842, 0.0
  %v2844 = vadd.f32 %v2835, %v2840
  %v2845 = vmax.f32 %v2844, 0.0
  %v2846 = vmax.f32 %v2843, %v2845
  %vm2847 = vcmask 64512
  %v2849 = vsel %vm2847, %v26, 0
  %2851 = vmatprep.subr.mxu0 0.0
  %2852 = vmatpush1.msra.mxu0 %v2846
  %2853 = vmatprep.subr.mxu0 0.0
  %2854 = vmatpush1.msra.mxu0 0.0
  %2855 = vmatprep.subr.mxu0 0.0
  %2856 = vmatpush1.msra.mxu0 0.0
  %2857 = vmatprep.subr.mxu0 0.0
  %2858 = vmatpush1.msra.mxu0 0.0
  %2859 = vmatprep.subr.mxu0 0.0
  %2860 = vmatpush1.msra.mxu0 0.0
  %2861 = vmatprep.subr.mxu0 0.0
  %2862 = vmatpush1.msra.mxu0 0.0
  %2863 = vmatprep.subr.mxu0 0.0
  %2864 = vmatpush1.msra.mxu0 0.0
  %2865 = vmatprep.subr.mxu0 0.0
  %2866 = vmatpush1.msra.mxu0 0.0
  %2867 = vmatprep.subr.mxu0 0.0
  %2868 = vmatpush1.msra.mxu0 0.0
  %2869 = vmatprep.subr.mxu0 0.0
  %2870 = vmatpush1.msra.mxu0 0.0
  %2871 = vmatprep.subr.mxu0 0.0
  %2872 = vmatpush1.msra.mxu0 0.0
  %2873 = vmatprep.subr.mxu0 0.0
  %2874 = vmatpush1.msra.mxu0 0.0
  %2875 = vmatprep.subr.mxu0 0.0
  %2876 = vmatpush1.msra.mxu0 0.0
  %2877 = vmatprep.subr.mxu0 0.0
  %2878 = vmatpush1.msra.mxu0 0.0
  %2879 = vmatprep.subr.mxu0 0.0
  %2880 = vmatpush1.msra.mxu0 0.0
  %2881 = vmatprep.subr.mxu0 0.0
  %2882 = vmatpush1.msra.mxu0 0.0
  %2883 = vmatprep.subr.mxu0 0.0
  %2884 = vmatpush1.msra.mxu0 0.0
  %2885 = vmatprep.subr.mxu0 0.0
  %2886 = vmatpush1.msra.mxu0 0.0
  %2887 = vmatprep.subr.mxu0 0.0
  %2888 = vmatpush1.msra.mxu0 0.0
  %2889 = vmatprep.subr.mxu0 0.0
  %2890 = vmatpush1.msra.mxu0 0.0
  %2891 = vmatprep.subr.mxu0 0.0
  %2892 = vmatpush1.msra.mxu0 0.0
  %2893 = vmatprep.subr.mxu0 0.0
  %2894 = vmatpush1.msra.mxu0 0.0
  %2895 = vmatprep.subr.mxu0 0.0
  %2896 = vmatpush1.msra.mxu0 0.0
  %2897 = vmatprep.subr.mxu0 0.0
  %2898 = vmatpush1.msra.mxu0 0.0
  %2899 = vmatprep.subr.mxu0 0.0
  %2900 = vmatpush1.msra.mxu0 0.0
  %2901 = vmatprep.subr.mxu0 0.0
  %2902 = vmatpush1.msra.mxu0 0.0
  %2903 = vmatprep.subr.mxu0 0.0
  %2904 = vmatpush1.msra.mxu0 0.0
  %2905 = vmatprep.subr.mxu0 0.0
  %2906 = vmatpush1.msra.mxu0 0.0
  %2907 = vmatprep.subr.mxu0 0.0
  %2908 = vmatpush1.msra.mxu0 0.0
  %2909 = vmatprep.subr.mxu0 0.0
  %2910 = vmatpush1.msra.mxu0 0.0
  %2911 = vmatprep.subr.mxu0 0.0
  %2912 = vmatpush1.msra.mxu0 0.0
  %2913 = vmatprep.subr.mxu0 0.0
  %2914 = vmatpush1.msra.mxu0 0.0
  %2915 = vmatprep.mubr.f32.mxu0 0.0
  %2916 = vmatmul.mubr.f32.gmra.mrb[0].mxu0 %v2849
  %v2917 = vpop.f32.mrb[0].mxu0
  %v2918 = vadd.f32 0.0, %v2917
  %v2919 = vpop.f32.mrb[0].mxu0
  %2920 = vdwg.mxu0
  %v2922 = vsel %vm2847, %v30, 0
  %2924 = vmatprep.subr.mxu0 0.0
  %2925 = vmatpush1.msra.mxu0 %v2846
  %2926 = vmatprep.subr.mxu0 0.0
  %2927 = vmatpush1.msra.mxu0 0.0
  %2928 = vmatprep.subr.mxu0 0.0
  %2929 = vmatpush1.msra.mxu0 0.0
  %2930 = vmatprep.subr.mxu0 0.0
  %2931 = vmatpush1.msra.mxu0 0.0
  %2932 = vmatprep.subr.mxu0 0.0
  %2933 = vmatpush1.msra.mxu0 0.0
  %2934 = vmatprep.subr.mxu0 0.0
  %2935 = vmatpush1.msra.mxu0 0.0
  %2936 = vmatprep.subr.mxu0 0.0
  %2937 = vmatpush1.msra.mxu0 0.0
  %2938 = vmatprep.subr.mxu0 0.0
  %2939 = vmatpush1.msra.mxu0 0.0
  %2940 = vmatprep.subr.mxu0 0.0
  %2941 = vmatpush1.msra.mxu0 0.0
  %2942 = vmatprep.subr.mxu0 0.0
  %2943 = vmatpush1.msra.mxu0 0.0
  %2944 = vmatprep.subr.mxu0 0.0
  %2945 = vmatpush1.msra.mxu0 0.0
  %2946 = vmatprep.subr.mxu0 0.0
  %2947 = vmatpush1.msra.mxu0 0.0
  %2948 = vmatprep.subr.mxu0 0.0
  %2949 = vmatpush1.msra.mxu0 0.0
  %2950 = vmatprep.subr.mxu0 0.0
  %2951 = vmatpush1.msra.mxu0 0.0
  %2952 = vmatprep.subr.mxu0 0.0
  %2953 = vmatpush1.msra.mxu0 0.0
  %2954 = vmatprep.subr.mxu0 0.0
  %2955 = vmatpush1.msra.mxu0 0.0
  %2956 = vmatprep.subr.mxu0 0.0
  %2957 = vmatpush1.msra.mxu0 0.0
  %2958 = vmatprep.subr.mxu0 0.0
  %2959 = vmatpush1.msra.mxu0 0.0
  %2960 = vmatprep.subr.mxu0 0.0
  %2961 = vmatpush1.msra.mxu0 0.0
  %2962 = vmatprep.subr.mxu0 0.0
  %2963 = vmatpush1.msra.mxu0 0.0
  %2964 = vmatprep.subr.mxu0 0.0
  %2965 = vmatpush1.msra.mxu0 0.0
  %2966 = vmatprep.subr.mxu0 0.0
  %2967 = vmatpush1.msra.mxu0 0.0
  %2968 = vmatprep.subr.mxu0 0.0
  %2969 = vmatpush1.msra.mxu0 0.0
  %2970 = vmatprep.subr.mxu0 0.0
  %2971 = vmatpush1.msra.mxu0 0.0
  %2972 = vmatprep.subr.mxu0 0.0
  %2973 = vmatpush1.msra.mxu0 0.0
  %2974 = vmatprep.subr.mxu0 0.0
  %2975 = vmatpush1.msra.mxu0 0.0
  %2976 = vmatprep.subr.mxu0 0.0
  %2977 = vmatpush1.msra.mxu0 0.0
  %2978 = vmatprep.subr.mxu0 0.0
  %2979 = vmatpush1.msra.mxu0 0.0
  %2980 = vmatprep.subr.mxu0 0.0
  %2981 = vmatpush1.msra.mxu0 0.0
  %2982 = vmatprep.subr.mxu0 0.0
  %2983 = vmatpush1.msra.mxu0 0.0
  %2984 = vmatprep.subr.mxu0 0.0
  %2985 = vmatpush1.msra.mxu0 0.0
  %2986 = vmatprep.subr.mxu0 0.0
  %2987 = vmatpush1.msra.mxu0 0.0
  %2988 = vmatprep.mubr.f32.mxu0 0.0
  %2989 = vmatmul.mubr.f32.gmra.mrb[0].mxu0 %v2922
  %v2990 = vpop.f32.mrb[0].mxu0
  %v2991 = vadd.f32 0.0, %v2990
  %v2992 = vpop.f32.mrb[0].mxu0
  %2993 = vdwg.mxu0
  %v2994 = vmax.f32 %v2918, %v2991
  %v2995 = vpack.c.bf16 %v2994, %v2994
  %2996 = vst [vmem:[%s4] sm:$0x3] %v2995
  %s2997 = scalar_lea.vmem %s0, 24
  %v2998 = vld [vmem:[%s2997] sm:$0xff]
  %v2999 = vld [vmem:[%s2997 + $0x8] sm:$0xf]
  %v3000 = vld [vmem:[%s2997 + $0xc] sm:$0x33]
  %v3001 = vld [vmem:[%s2997 + $0x14] sm:$0x3]
  %v3002 = vld [vmem:[%s1] sm:$0xf]
  %v3003 = vld [vmem:[%s1 + $0x4] sm:$0xf]
  %v3004 = vld [vmem:[%s1 + $0x8] sm:$0xf]
  %v3005 = vld [vmem:[%s1 + $0xc] sm:$0xf]
  %v3006 = vld [vmem:[%s1 + $0x10] sm:$0xf]
  %v3007 = vld [vmem:[%s1 + $0x14] sm:$0xf]
  %v3008 = vld [vmem:[%s1 + $0x18] sm:$0xf]
  %v3009 = vld [vmem:[%s1 + $0x1c] sm:$0xf]
  %v3010 = vld [vmem:[%s1 + $0x20] sm:$0xf]
  %v3011 = vld [vmem:[%s1 + $0x24] sm:$0xf]
  %v3012 = vld [vmem:[%s1 + $0x28] sm:$0xf]
  %v3013 = vld [vmem:[%s1 + $0x2c] sm:$0xf]
  %v3014 = vld [vmem:[%s1 + $0x30] sm:$0xf]
  %v3015 = vld [vmem:[%s1 + $0x34] sm:$0xf]
  %v3016 = vld [vmem:[%s1 + $0x38] sm:$0xf]
  %v3017 = vld [vmem:[%s1 + $0x3c] sm:$0xf]
  %v3018 = vld [vmem:[%s1 + $0x40] sm:$0xf]
  %v3019 = vld [vmem:[%s1 + $0x44] sm:$0xf]
  %v3020 = vld [vmem:[%s1 + $0x48] sm:$0xf]
  %v3021 = vld [vmem:[%s1 + $0x4c] sm:$0xf]
  %v3022 = vld [vmem:[%s1 + $0x50] sm:$0xf]
  %v3023 = vld [vmem:[%s1 + $0x54] sm:$0xf]
  %v3024 = vld [vmem:[%s1 + $0x58] sm:$0xf]
  %v3025 = vld [vmem:[%s1 + $0x5c] sm:$0xf]
  %v3026 = vld [vmem:[%s1 + $0x60] sm:$0xf]
  %v3027 = vld [vmem:[%s1 + $0x64] sm:$0xf]
  %v3028 = vld [vmem:[%s1 + $0x68] sm:$0xf]
  %v3029 = vld [vmem:[%s1 + $0x6c] sm:$0xf]
  %v3030 = vld [vmem:[%s1 + $0x70] sm:$0xf]
  %v3031 = vld [vmem:[%s1 + $0x74] sm:$0xf]
  %v3032 = vld [vmem:[%s1 + $0x78] sm:$0xf]
  %v3033 = vld [vmem:[%s1 + $0x7c] sm:$0xf]
  %v3034 = vld [vmem:[%s1 + $0x80] sm:$0xf]
  %v3035 = vld [vmem:[%s1 + $0x84] sm:$0xf]
  %v3036 = vld [vmem:[%s1 + $0x88] sm:$0xf]
  %v3037 = vld [vmem:[%s1 + $0x8c] sm:$0xf]
  %v3038 = vld [vmem:[%s1 + $0x90] sm:$0xf]
  %v3039 = vld [vmem:[%s1 + $0x94] sm:$0xf]
  %v3040 = vld [vmem:[%s1 + $0x98] sm:$0xf]
  %v3041 = vld [vmem:[%s1 + $0x9c] sm:$0xf]
  %v3042 = vld [vmem:[%s1 + $0xa0] sm:$0xf]
  %v3043 = vld [vmem:[%s1 + $0xa4] sm:$0xf]
  %v3044 = vld [vmem:[%s1 + $0xa8] sm:$0xf]
  %v3045 = vld [vmem:[%s1 + $0xac] sm:$0xf]
  %v3046 = vld [vmem:[%s1 + $0xb0] sm:$0xf]
  %v3047 = vld [vmem:[%s1 + $0xb4] sm:$0xf]
  %v3048 = vld [vmem:[%s1 + $0xb8] sm:$0xf]
  %v3049 = vld [vmem:[%s1 + $0xbc] sm:$0xf]
  %v3050 = vld [vmem:[%s2] sm:$0xf]
  %v3051 = vld [vmem:[%s2 + $0x4] sm:$0xf]
  %v3052 = vld [vmem:[%s2 + $0x8] sm:$0xf]
  %v3053 = vld [vmem:[%s2 + $0xc] sm:$0xf]
  %v3054 = vld [vmem:[%s2 + $0x10] sm:$0xf]
  %v3055 = vld [vmem:[%s2 + $0x14] sm:$0xf]
  %v3056 = vld [vmem:[%s2 + $0x18] sm:$0xf]
  %v3057 = vld [vmem:[%s2 + $0x1c] sm:$0xf]
  %v3058 = vld [vmem:[%s2 + $0x20] sm:$0xf]
  %v3059 = vld [vmem:[%s2 + $0x24] sm:$0xf]
  %v3060 = vld [vmem:[%s2 + $0x28] sm:$0xf]
  %v3061 = vld [vmem:[%s2 + $0x2c] sm:$0xf]
  %v3062 = vld [vmem:[%s2 + $0x30] sm:$0xf]
  %v3063 = vld [vmem:[%s2 + $0x34] sm:$0xf]
  %v3064 = vld [vmem:[%s2 + $0x38] sm:$0xf]
  %v3065 = vld [vmem:[%s2 + $0x3c] sm:$0xf]
  %v3066 = vld [vmem:[%s2 + $0x40] sm:$0xf]
  %v3067 = vld [vmem:[%s2 + $0x44] sm:$0xf]
  %v3068 = vld [vmem:[%s2 + $0x48] sm:$0xf]
  %v3069 = vld [vmem:[%s2 + $0x4c] sm:$0xf]
  %v3070 = vld [vmem:[%s2 + $0x50] sm:$0xf]
  %v3071 = vld [vmem:[%s2 + $0x54] sm:$0xf]
  %v3072 = vld [vmem:[%s2 + $0x58] sm:$0xf]
  %v3073 = vld [vmem:[%s2 + $0x5c] sm:$0xf]
  %v3074 = vld [vmem:[%s2 + $0x60] sm:$0xf]
  %v3075 = vld [vmem:[%s2 + $0x64] sm:$0xf]
  %v3076 = vld [vmem:[%s2 + $0x68] sm:$0xf]
  %v3077 = vld [vmem:[%s2 + $0x6c] sm:$0xf]
  %v3078 = vld [vmem:[%s2 + $0x70] sm:$0xf]
  %v3079 = vld [vmem:[%s2 + $0x74] sm:$0xf]
  %v3080 = vld [vmem:[%s2 + $0x78] sm:$0xf]
  %v3081 = vld [vmem:[%s2 + $0x7c] sm:$0xf]
  %v3082 = vld [vmem:[%s2 + $0x80] sm:$0xf]
  %v3083 = vld [vmem:[%s2 + $0x84] sm:$0xf]
  %v3084 = vld [vmem:[%s2 + $0x88] sm:$0xf]
  %v3085 = vld [vmem:[%s2 + $0x8c] sm:$0xf]
  %v3086 = vld [vmem:[%s2 + $0x90] sm:$0xf]
  %v3087 = vld [vmem:[%s2 + $0x94] sm:$0xf]
  %v3088 = vld [vmem:[%s2 + $0x98] sm:$0xf]
  %v3089 = vld [vmem:[%s2 + $0x9c] sm:$0xf]
  %v3090 = vld [vmem:[%s2 + $0xa0] sm:$0xf]
  %v3091 = vld [vmem:[%s2 + $0xa4] sm:$0xf]
  %v3092 = vld [vmem:[%s2 + $0xa8] sm:$0xf]
  %v3093 = vld [vmem:[%s2 + $0xac] sm:$0xf]
  %v3094 = vld [vmem:[%s2 + $0xb0] sm:$0xf]
  %v3095 = vld [vmem:[%s2 + $0xb4] sm:$0xf]
  %v3096 = vld [vmem:[%s2 + $0xb8] sm:$0xf]
  %v3097 = vld [vmem:[%s2 + $0xbc] sm:$0xf]
  %v3098 = vld [vmem:[%s131] sm:$0xf]
  %v3099 = vld [vmem:[%s131 + $0x4] sm:$0xf]
  %v3100 = vld [vmem:[%s131 + $0x8] sm:$0xf]
  %v3101 = vld [vmem:[%s131 + $0xc] sm:$0xf]
  %v3102 = vld [vmem:[%s131 + $0x10] sm:$0xf]
  %v3103 = vld [vmem:[%s131 + $0x14] sm:$0xf]
  %v3104 = vld [vmem:[%s131 + $0x18] sm:$0xf]
  %v3105 = vld [vmem:[%s131 + $0x1c] sm:$0xf]
  %v3106 = vld [vmem:[%s131 + $0x20] sm:$0xf]
  %v3107 = vld [vmem:[%s131 + $0x24] sm:$0xf]
  %v3108 = vld [vmem:[%s131 + $0x28] sm:$0xf]
  %v3109 = vld [vmem:[%s131 + $0x2c] sm:$0xf]
  %v3110 = vld [vmem:[%s131 + $0x30] sm:$0xf]
  %v3111 = vld [vmem:[%s131 + $0x34] sm:$0xf]
  %v3112 = vld [vmem:[%s131 + $0x38] sm:$0xf]
  %v3113 = vld [vmem:[%s131 + $0x3c] sm:$0xf]
  %v3114 = vld [vmem:[%s131 + $0x40] sm:$0xf]
  %v3115 = vld [vmem:[%s131 + $0x44] sm:$0xf]
  %v3116 = vld [vmem:[%s131 + $0x48] sm:$0xf]
  %v3117 = vld [vmem:[%s131 + $0x4c] sm:$0xf]
  %v3118 = vld [vmem:[%s131 + $0x50] sm:$0xf]
  %v3119 = vld [vmem:[%s131 + $0x54] sm:$0xf]
  %v3120 = vld [vmem:[%s131 + $0x58] sm:$0xf]
  %v3121 = vld [vmem:[%s131 + $0x5c] sm:$0xf]
  %v3122 = vld [vmem:[%s131 + $0x60] sm:$0xf]
  %v3123 = vld [vmem:[%s131 + $0x64] sm:$0xf]
  %v3124 = vld [vmem:[%s131 + $0x68] sm:$0xf]
  %v3125 = vld [vmem:[%s131 + $0x6c] sm:$0xf]
  %v3126 = vld [vmem:[%s131 + $0x70] sm:$0xf]
  %v3127 = vld [vmem:[%s131 + $0x74] sm:$0xf]
  %v3128 = vld [vmem:[%s131 + $0x78] sm:$0xf]
  %v3129 = vld [vmem:[%s131 + $0x7c] sm:$0xf]
  %v3130 = vld [vmem:[%s131 + $0x80] sm:$0xf]
  %v3131 = vld [vmem:[%s131 + $0x84] sm:$0xf]
  %v3132 = vld [vmem:[%s131 + $0x88] sm:$0xf]
  %v3133 = vld [vmem:[%s131 + $0x8c] sm:$0xf]
  %v3134 = vld [vmem:[%s131 + $0x90] sm:$0xf]
  %v3135 = vld [vmem:[%s131 + $0x94] sm:$0xf]
  %v3136 = vld [vmem:[%s131 + $0x98] sm:$0xf]
  %v3137 = vld [vmem:[%s131 + $0x9c] sm:$0xf]
  %v3138 = vld [vmem:[%s131 + $0xa0] sm:$0xf]
  %v3139 = vld [vmem:[%s131 + $0xa4] sm:$0xf]
  %v3140 = vld [vmem:[%s131 + $0xa8] sm:$0xf]
  %v3141 = vld [vmem:[%s131 + $0xac] sm:$0xf]
  %v3142 = vld [vmem:[%s131 + $0xb0] sm:$0xf]
  %v3143 = vld [vmem:[%s131 + $0xb4] sm:$0xf]
  %v3144 = vld [vmem:[%s131 + $0xb8] sm:$0xf]
  %v3145 = vld [vmem:[%s131 + $0xbc] sm:$0xf]
  %v3150 = vunpack.c.l.b16 %v2998
  %v3151 = vunpack.c.h.b16 %v2998
  %v3152 = vunpack.c.l.b16 %v2999
  %v3153 = vunpack.c.l.b16 %v3000
  %v3154 = vunpack.c.h.b16 %v3000
  %v3155 = vunpack.c.l.b16 %v3001
  %v3156 = vpack.c.b16 %v3153, %v3150
  %v3157 = vpack.c.b16 %v3154, %v3151
  %v3158 = vpack.c.b16 %v3155, %v3152
  %v3160 = vshrl.u32 %v3156, 16
  %v3162 = vshll.u32 %v3156, 16
  %v3164 = vrot.slane %v3162, 1
  %v3165 = vor.u32 %v3160, %v3164
  %v3167 = vshrl.u32 %v3157, 16
  %v3169 = vshll.u32 %v3157, 16
  %v3171 = vrot.slane %v3169, 1
  %v3172 = vor.u32 %v3167, %v3171
  %v3174 = vshrl.u32 %v3158, 16
  %v3176 = vshll.u32 %v3158, 16
  %v3178 = vrot.slane %v3176, 1
  %v3179 = vor.u32 %v3174, %v3178
  %v3231 = vunpack.c.l.b16 %v3098
  %v3232 = vunpack.c.l.b16 %v3099
  %v3233 = vunpack.c.l.b16 %v3100
  %v3234 = vunpack.c.l.b16 %v3101
  %v3235 = vunpack.c.l.b16 %v3102
  %v3236 = vunpack.c.l.b16 %v3103
  %v3237 = vunpack.c.l.b16 %v3104
  %v3238 = vunpack.c.l.b16 %v3105
  %v3239 = vunpack.c.l.b16 %v3106
  %v3240 = vunpack.c.l.b16 %v3107
  %v3241 = vunpack.c.l.b16 %v3108
  %v3242 = vunpack.c.l.b16 %v3109
  %v3243 = vunpack.c.l.b16 %v3110
  %v3244 = vunpack.c.l.b16 %v3111
  %v3245 = vunpack.c.l.b16 %v3112
  %v3246 = vunpack.c.l.b16 %v3113
  %v3247 = vunpack.c.l.b16 %v3114
  %v3248 = vunpack.c.l.b16 %v3115
  %v3249 = vunpack.c.l.b16 %v3116
  %v3250 = vunpack.c.l.b16 %v3117
  %v3251 = vunpack.c.l.b16 %v3118
  %v3252 = vunpack.c.l.b16 %v3119
  %v3253 = vunpack.c.l.b16 %v3120
  %v3254 = vunpack.c.l.b16 %v3121
  %v3255 = vunpack.c.l.b16 %v3122
  %v3256 = vunpack.c.l.b16 %v3123
  %v3257 = vunpack.c.l.b16 %v3124
  %v3258 = vunpack.c.l.b16 %v3125
  %v3259 = vunpack.c.l.b16 %v3126
  %v3260 = vunpack.c.l.b16 %v3127
  %v3261 = vunpack.c.l.b16 %v3128
  %v3262 = vunpack.c.l.b16 %v3129
  %v3263 = vunpack.c.l.b16 %v3130
  %v3264 = vunpack.c.l.b16 %v3131
  %v3265 = vunpack.c.l.b16 %v3132
  %v3266 = vunpack.c.l.b16 %v3133
  %v3267 = vunpack.c.l.b16 %v3134
  %v3268 = vunpack.c.l.b16 %v3135
  %v3269 = vunpack.c.l.b16 %v3136
  %v3270 = vunpack.c.l.b16 %v3137
  %v3271 = vunpack.c.l.b16 %v3138
  %v3272 = vunpack.c.l.b16 %v3139
  %v3273 = vunpack.c.l.b16 %v3140
  %v3274 = vunpack.c.l.b16 %v3141
  %v3275 = vunpack.c.l.b16 %v3142
  %v3276 = vunpack.c.l.b16 %v3143
  %v3277 = vunpack.c.l.b16 %v3144
  %v3278 = vunpack.c.l.b16 %v3145
  %v3279 = vpack.c.b16 %v3232, %v3231
  %v3280 = vpack.c.b16 %v3234, %v3233
  %v3281 = vpack.c.b16 %v3236, %v3235
  %v3282 = vpack.c.b16 %v3238, %v3237
  %v3283 = vpack.c.b16 %v3240, %v3239
  %v3284 = vpack.c.b16 %v3242, %v3241
  %v3285 = vpack.c.b16 %v3244, %v3243
  %v3286 = vpack.c.b16 %v3246, %v3245
  %v3287 = vpack.c.b16 %v3248, %v3247
  %v3288 = vpack.c.b16 %v3250, %v3249
  %v3289 = vpack.c.b16 %v3252, %v3251
  %v3290 = vpack.c.b16 %v3254, %v3253
  %v3291 = vpack.c.b16 %v3256, %v3255
  %v3292 = vpack.c.b16 %v3258, %v3257
  %v3293 = vpack.c.b16 %v3260, %v3259
  %v3294 = vpack.c.b16 %v3262, %v3261
  %v3295 = vpack.c.b16 %v3264, %v3263
  %v3296 = vpack.c.b16 %v3266, %v3265
  %v3297 = vpack.c.b16 %v3268, %v3267
  %v3298 = vpack.c.b16 %v3270, %v3269
  %v3299 = vpack.c.b16 %v3272, %v3271
  %v3300 = vpack.c.b16 %v3274, %v3273
  %v3301 = vpack.c.b16 %v3276, %v3275
  %v3302 = vpack.c.b16 %v3278, %v3277
  %3327 = vmatprep.subr.bf16.mxu0 0
  %3328 = vmatpush1.bf16.msra.mxu0 %v3279
  %3329 = vmatprep.subr.bf16.mxu0 0
  %3330 = vmatpush1.bf16.msra.mxu0 %v3280
  %3331 = vmatprep.subr.bf16.mxu0 0
  %3332 = vmatpush1.bf16.msra.mxu0 %v3281
  %3333 = vmatprep.subr.bf16.mxu0 0
  %3334 = vmatpush1.bf16.msra.mxu0 %v3282
  %3335 = vmatprep.subr.bf16.mxu0 0
  %3336 = vmatpush1.bf16.msra.mxu0 %v3283
  %3337 = vmatprep.subr.bf16.mxu0 0
  %3338 = vmatpush1.bf16.msra.mxu0 %v3284
  %3339 = vmatprep.subr.bf16.mxu0 0
  %3340 = vmatpush1.bf16.msra.mxu0 %v3285
  %3341 = vmatprep.subr.bf16.mxu0 0
  %3342 = vmatpush1.bf16.msra.mxu0 %v3286
  %3343 = vmatprep.subr.bf16.mxu0 0
  %3344 = vmatpush1.bf16.msra.mxu0 %v3287
  %3345 = vmatprep.subr.bf16.mxu0 0
  %3346 = vmatpush1.bf16.msra.mxu0 %v3288
  %3347 = vmatprep.subr.bf16.mxu0 0
  %3348 = vmatpush1.bf16.msra.mxu0 %v3289
  %3349 = vmatprep.subr.bf16.mxu0 0
  %3350 = vmatpush1.bf16.msra.mxu0 %v3290
  %3351 = vmatprep.subr.bf16.mxu0 0
  %3352 = vmatpush1.bf16.msra.mxu0 %v3291
  %3353 = vmatprep.subr.bf16.mxu0 0
  %3354 = vmatpush1.bf16.msra.mxu0 %v3292
  %3355 = vmatprep.subr.bf16.mxu0 0
  %3356 = vmatpush1.bf16.msra.mxu0 %v3293
  %3357 = vmatprep.subr.bf16.mxu0 0
  %3358 = vmatpush1.bf16.msra.mxu0 %v3294
  %3359 = vmatprep.mubr.bf16.mxu0 %v3172
  %3360 = vmatmul.mubr.bf16.gmra.mrb[0].mxu0 %v3165
  %v3361 = vpop.f32.mrb[0].mxu0
  %v3362 = vadd.f32 0.0, %v3361
  %v3363 = vpop.f32.mrb[0].mxu0
  %v3364 = vpop.f32.mrb[0].mxu0
  %v3365 = vpop.f32.mrb[0].mxu0
  %3366 = vdwg.mxu0
  %3367 = vmatprep.subr.bf16.mxu0 0
  %3368 = vmatpush1.bf16.msra.mxu0 %v3295
  %3369 = vmatprep.subr.bf16.mxu0 0
  %3370 = vmatpush1.bf16.msra.mxu0 %v3296
  %3371 = vmatprep.subr.bf16.mxu0 0
  %3372 = vmatpush1.bf16.msra.mxu0 %v3297
  %3373 = vmatprep.subr.bf16.mxu0 0
  %3374 = vmatpush1.bf16.msra.mxu0 %v3298
  %3375 = vmatprep.subr.bf16.mxu0 0
  %3376 = vmatpush1.bf16.msra.mxu0 %v3299
  %3377 = vmatprep.subr.bf16.mxu0 0
  %3378 = vmatpush1.bf16.msra.mxu0 %v3300
  %3379 = vmatprep.subr.bf16.mxu0 0
  %3380 = vmatpush1.bf16.msra.mxu0 %v3301
  %3381 = vmatprep.subr.bf16.mxu0 0
  %3382 = vmatpush1.bf16.msra.mxu0 %v3302
  %3383 = vmatprep.subr.bf16.mxu0 0
  %3384 = vmatpush1.bf16.msra.mxu0 0
  %3385 = vmatprep.subr.bf16.mxu0 0
  %3386 = vmatpush1.bf16.msra.mxu0 0
  %3387 = vmatprep.subr.bf16.mxu0 0
  %3388 = vmatpush1.bf16.msra.mxu0 0
  %3389 = vmatprep.subr.bf16.mxu0 0
  %3390 = vmatpush1.bf16.msra.mxu0 0
  %3391 = vmatprep.subr.bf16.mxu0 0
  %3392 = vmatpush1.bf16.msra.mxu0 0
  %3393 = vmatprep.subr.bf16.mxu0 0
  %3394 = vmatpush1.bf16.msra.mxu0 0
  %3395 = vmatprep.subr.bf16.mxu0 0
  %3396 = vmatpush1.bf16.msra.mxu0 0
  %3397 = vmatprep.subr.bf16.mxu0 0
  %3398 = vmatpush1.bf16.msra.mxu0 0
  %3399 = vmatprep.mubr.bf16.mxu0 0
  %3400 = vmatmul.mubr.bf16.gmra.mrb[0].mxu0 %v3179
  %v3401 = vpop.f32.mrb[0].mxu0
  %v3402 = vadd.f32 %v3362, %v3401
  %v3403 = vpop.f32.mrb[0].mxu0
  %v3404 = vpop.f32.mrb[0].mxu0
  %v3405 = vpop.f32.mrb[0].mxu0
  %3406 = vdwg.mxu0
  %v3407 = vpack.c.b16 %v3150, %v3150
  %v3408 = vpack.c.b16 %v3151, %v3151
  %v3409 = vpack.c.b16 %v3152, %v3152
  %v3461 = vunpack.c.l.b16 %v3002
  %v3462 = vunpack.c.l.b16 %v3003
  %v3463 = vunpack.c.l.b16 %v3004
  %v3464 = vunpack.c.l.b16 %v3005
  %v3465 = vunpack.c.l.b16 %v3006
  %v3466 = vunpack.c.l.b16 %v3007
  %v3467 = vunpack.c.l.b16 %v3008
  %v3468 = vunpack.c.l.b16 %v3009
  %v3469 = vunpack.c.l.b16 %v3010
  %v3470 = vunpack.c.l.b16 %v3011
  %v3471 = vunpack.c.l.b16 %v3012
  %v3472 = vunpack.c.l.b16 %v3013
  %v3473 = vunpack.c.l.b16 %v3014
  %v3474 = vunpack.c.l.b16 %v3015
  %v3475 = vunpack.c.l.b16 %v3016
  %v3476 = vunpack.c.l.b16 %v3017
  %v3477 = vunpack.c.l.b16 %v3018
  %v3478 = vunpack.c.l.b16 %v3019
  %v3479 = vunpack.c.l.b16 %v3020
  %v3480 = vunpack.c.l.b16 %v3021
  %v3481 = vunpack.c.l.b16 %v3022
  %v3482 = vunpack.c.l.b16 %v3023
  %v3483 = vunpack.c.l.b16 %v3024
  %v3484 = vunpack.c.l.b16 %v3025
  %v3485 = vunpack.c.l.b16 %v3026
  %v3486 = vunpack.c.l.b16 %v3027
  %v3487 = vunpack.c.l.b16 %v3028
  %v3488 = vunpack.c.l.b16 %v3029
  %v3489 = vunpack.c.l.b16 %v3030
  %v3490 = vunpack.c.l.b16 %v3031
  %v3491 = vunpack.c.l.b16 %v3032
  %v3492 = vunpack.c.l.b16 %v3033
  %v3493 = vunpack.c.l.b16 %v3034
  %v3494 = vunpack.c.l.b16 %v3035
  %v3495 = vunpack.c.l.b16 %v3036
  %v3496 = vunpack.c.l.b16 %v3037
  %v3497 = vunpack.c.l.b16 %v3038
  %v3498 = vunpack.c.l.b16 %v3039
  %v3499 = vunpack.c.l.b16 %v3040
  %v3500 = vunpack.c.l.b16 %v3041
  %v3501 = vunpack.c.l.b16 %v3042
  %v3502 = vunpack.c.l.b16 %v3043
  %v3503 = vunpack.c.l.b16 %v3044
  %v3504 = vunpack.c.l.b16 %v3045
  %v3505 = vunpack.c.l.b16 %v3046
  %v3506 = vunpack.c.l.b16 %v3047
  %v3507 = vunpack.c.l.b16 %v3048
  %v3508 = vunpack.c.l.b16 %v3049
  %v3509 = vpack.c.b16 %v3462, %v3461
  %v3510 = vpack.c.b16 %v3464, %v3463
  %v3511 = vpack.c.b16 %v3466, %v3465
  %v3512 = vpack.c.b16 %v3468, %v3467
  %v3513 = vpack.c.b16 %v3470, %v3469
  %v3514 = vpack.c.b16 %v3472, %v3471
  %v3515 = vpack.c.b16 %v3474, %v3473
  %v3516 = vpack.c.b16 %v3476, %v3475
  %v3517 = vpack.c.b16 %v3478, %v3477
  %v3518 = vpack.c.b16 %v3480, %v3479
  %v3519 = vpack.c.b16 %v3482, %v3481
  %v3520 = vpack.c.b16 %v3484, %v3483
  %v3521 = vpack.c.b16 %v3486, %v3485
  %v3522 = vpack.c.b16 %v3488, %v3487
  %v3523 = vpack.c.b16 %v3490, %v3489
  %v3524 = vpack.c.b16 %v3492, %v3491
  %v3525 = vpack.c.b16 %v3494, %v3493
  %v3526 = vpack.c.b16 %v3496, %v3495
  %v3527 = vpack.c.b16 %v3498, %v3497
  %v3528 = vpack.c.b16 %v3500, %v3499
  %v3529 = vpack.c.b16 %v3502, %v3501
  %v3530 = vpack.c.b16 %v3504, %v3503
  %v3531 = vpack.c.b16 %v3506, %v3505
  %v3532 = vpack.c.b16 %v3508, %v3507
  %3557 = vmatprep.subr.bf16.mxu0 0
  %3558 = vmatpush1.bf16.msra.mxu0 %v3509
  %3559 = vmatprep.subr.bf16.mxu0 0
  %3560 = vmatpush1.bf16.msra.mxu0 %v3510
  %3561 = vmatprep.subr.bf16.mxu0 0
  %3562 = vmatpush1.bf16.msra.mxu0 %v3511
  %3563 = vmatprep.subr.bf16.mxu0 0
  %3564 = vmatpush1.bf16.msra.mxu0 %v3512
  %3565 = vmatprep.subr.bf16.mxu0 0
  %3566 = vmatpush1.bf16.msra.mxu0 %v3513
  %3567 = vmatprep.subr.bf16.mxu0 0
  %3568 = vmatpush1.bf16.msra.mxu0 %v3514
  %3569 = vmatprep.subr.bf16.mxu0 0
  %3570 = vmatpush1.bf16.msra.mxu0 %v3515
  %3571 = vmatprep.subr.bf16.mxu0 0
  %3572 = vmatpush1.bf16.msra.mxu0 %v3516
  %3573 = vmatprep.subr.bf16.mxu0 0
  %3574 = vmatpush1.bf16.msra.mxu0 %v3517
  %3575 = vmatprep.subr.bf16.mxu0 0
  %3576 = vmatpush1.bf16.msra.mxu0 %v3518
  %3577 = vmatprep.subr.bf16.mxu0 0
  %3578 = vmatpush1.bf16.msra.mxu0 %v3519
  %3579 = vmatprep.subr.bf16.mxu0 0
  %3580 = vmatpush1.bf16.msra.mxu0 %v3520
  %3581 = vmatprep.subr.bf16.mxu0 0
  %3582 = vmatpush1.bf16.msra.mxu0 %v3521
  %3583 = vmatprep.subr.bf16.mxu0 0
  %3584 = vmatpush1.bf16.msra.mxu0 %v3522
  %3585 = vmatprep.subr.bf16.mxu0 0
  %3586 = vmatpush1.bf16.msra.mxu0 %v3523
  %3587 = vmatprep.subr.bf16.mxu0 0
  %3588 = vmatpush1.bf16.msra.mxu0 %v3524
  %3589 = vmatprep.mubr.bf16.mxu0 %v3408
  %3590 = vmatmul.mubr.bf16.gmra.mrb[0].mxu0 %v3407
  %v3591 = vpop.f32.mrb[0].mxu0
  %v3592 = vadd.f32 %v3402, %v3591
  %v3593 = vpop.f32.mrb[0].mxu0
  %v3594 = vpop.f32.mrb[0].mxu0
  %v3595 = vpop.f32.mrb[0].mxu0
  %3596 = vdwg.mxu0
  %3597 = vmatprep.subr.bf16.mxu0 0
  %3598 = vmatpush1.bf16.msra.mxu0 %v3525
  %3599 = vmatprep.subr.bf16.mxu0 0
  %3600 = vmatpush1.bf16.msra.mxu0 %v3526
  %3601 = vmatprep.subr.bf16.mxu0 0
  %3602 = vmatpush1.bf16.msra.mxu0 %v3527
  %3603 = vmatprep.subr.bf16.mxu0 0
  %3604 = vmatpush1.bf16.msra.mxu0 %v3528
  %3605 = vmatprep.subr.bf16.mxu0 0
  %3606 = vmatpush1.bf16.msra.mxu0 %v3529
  %3607 = vmatprep.subr.bf16.mxu0 0
  %3608 = vmatpush1.bf16.msra.mxu0 %v3530
  %3609 = vmatprep.subr.bf16.mxu0 0
  %3610 = vmatpush1.bf16.msra.mxu0 %v3531
  %3611 = vmatprep.subr.bf16.mxu0 0
  %3612 = vmatpush1.bf16.msra.mxu0 %v3532
  %3613 = vmatprep.subr.bf16.mxu0 0
  %3614 = vmatpush1.bf16.msra.mxu0 0
  %3615 = vmatprep.subr.bf16.mxu0 0
  %3616 = vmatpush1.bf16.msra.mxu0 0
  %3617 = vmatprep.subr.bf16.mxu0 0
  %3618 = vmatpush1.bf16.msra.mxu0 0
  %3619 = vmatprep.subr.bf16.mxu0 0
  %3620 = vmatpush1.bf16.msra.mxu0 0
  %3621 = vmatprep.subr.bf16.mxu0 0
  %3622 = vmatpush1.bf16.msra.mxu0 0
  %3623 = vmatprep.subr.bf16.mxu0 0
  %3624 = vmatpush1.bf16.msra.mxu0 0
  %3625 = vmatprep.subr.bf16.mxu0 0
  %3626 = vmatpush1.bf16.msra.mxu0 0
  %3627 = vmatprep.subr.bf16.mxu0 0
  %3628 = vmatpush1.bf16.msra.mxu0 0
  %3629 = vmatprep.mubr.bf16.mxu0 0
  %3630 = vmatmul.mubr.bf16.gmra.mrb[0].mxu0 %v3409
  %v3631 = vpop.f32.mrb[0].mxu0
  %v3632 = vadd.f32 %v3592, %v3631
  %v3633 = vpop.f32.mrb[0].mxu0
  %v3634 = vpop.f32.mrb[0].mxu0
  %v3635 = vpop.f32.mrb[0].mxu0
  %3636 = vdwg.mxu0
  %v3637 = vld [vmem:[%s671] sm:$0xf]
  %v3638 = vld [vmem:[%s671 + $0x4] sm:$0xf]
  %v3639 = vld [vmem:[%s671 + $0x8] sm:$0xf]
  %v3640 = vld [vmem:[%s671 + $0xc] sm:$0xf]
  %v3641 = vld [vmem:[%s671 + $0x10] sm:$0xf]
  %v3642 = vld [vmem:[%s671 + $0x14] sm:$0xf]
  %v3643 = vld [vmem:[%s671 + $0x18] sm:$0xf]
  %v3644 = vld [vmem:[%s671 + $0x1c] sm:$0xf]
  %v3645 = vld [vmem:[%s671 + $0x20] sm:$0xf]
  %v3646 = vld [vmem:[%s671 + $0x24] sm:$0xf]
  %v3647 = vld [vmem:[%s671 + $0x28] sm:$0xf]
  %v3648 = vld [vmem:[%s671 + $0x2c] sm:$0xf]
  %v3649 = vld [vmem:[%s671 + $0x30] sm:$0xf]
  %v3650 = vld [vmem:[%s671 + $0x34] sm:$0xf]
  %v3651 = vld [vmem:[%s671 + $0x38] sm:$0xf]
  %v3652 = vld [vmem:[%s671 + $0x3c] sm:$0xf]
  %v3653 = vld [vmem:[%s671 + $0x40] sm:$0xf]
  %v3654 = vld [vmem:[%s671 + $0x44] sm:$0xf]
  %v3655 = vld [vmem:[%s671 + $0x48] sm:$0xf]
  %v3656 = vld [vmem:[%s671 + $0x4c] sm:$0xf]
  %v3657 = vld [vmem:[%s671 + $0x50] sm:$0xf]
  %v3658 = vld [vmem:[%s671 + $0x54] sm:$0xf]
  %v3659 = vld [vmem:[%s671 + $0x58] sm:$0xf]
  %v3660 = vld [vmem:[%s671 + $0x5c] sm:$0xf]
  %v3661 = vld [vmem:[%s671 + $0x60] sm:$0xf]
  %v3662 = vld [vmem:[%s671 + $0x64] sm:$0xf]
  %v3663 = vld [vmem:[%s671 + $0x68] sm:$0xf]
  %v3664 = vld [vmem:[%s671 + $0x6c] sm:$0xf]
  %v3665 = vld [vmem:[%s671 + $0x70] sm:$0xf]
  %v3666 = vld [vmem:[%s671 + $0x74] sm:$0xf]
  %v3667 = vld [vmem:[%s671 + $0x78] sm:$0xf]
  %v3668 = vld [vmem:[%s671 + $0x7c] sm:$0xf]
  %v3669 = vld [vmem:[%s671 + $0x80] sm:$0xf]
  %v3670 = vld [vmem:[%s671 + $0x84] sm:$0xf]
  %v3671 = vld [vmem:[%s671 + $0x88] sm:$0xf]
  %v3672 = vld [vmem:[%s671 + $0x8c] sm:$0xf]
  %v3673 = vld [vmem:[%s671 + $0x90] sm:$0xf]
  %v3674 = vld [vmem:[%s671 + $0x94] sm:$0xf]
  %v3675 = vld [vmem:[%s671 + $0x98] sm:$0xf]
  %v3676 = vld [vmem:[%s671 + $0x9c] sm:$0xf]
  %v3677 = vld [vmem:[%s671 + $0xa0] sm:$0xf]
  %v3678 = vld [vmem:[%s671 + $0xa4] sm:$0xf]
  %v3679 = vld [vmem:[%s671 + $0xa8] sm:$0xf]
  %v3680 = vld [vmem:[%s671 + $0xac] sm:$0xf]
  %v3681 = vld [vmem:[%s671 + $0xb0] sm:$0xf]
  %v3682 = vld [vmem:[%s671 + $0xb4] sm:$0xf]
  %v3683 = vld [vmem:[%s671 + $0xb8] sm:$0xf]
  %v3684 = vld [vmem:[%s671 + $0xbc] sm:$0xf]
  %v3733 = vunpack.c.l.b16 %v3637
  %v3734 = vunpack.c.l.b16 %v3638
  %v3735 = vunpack.c.l.b16 %v3639
  %v3736 = vunpack.c.l.b16 %v3640
  %v3737 = vunpack.c.l.b16 %v3641
  %v3738 = vunpack.c.l.b16 %v3642
  %v3739 = vunpack.c.l.b16 %v3643
  %v3740 = vunpack.c.l.b16 %v3644
  %v3741 = vunpack.c.l.b16 %v3645
  %v3742 = vunpack.c.l.b16 %v3646
  %v3743 = vunpack.c.l.b16 %v3647
  %v3744 = vunpack.c.l.b16 %v3648
  %v3745 = vunpack.c.l.b16 %v3649
  %v3746 = vunpack.c.l.b16 %v3650
  %v3747 = vunpack.c.l.b16 %v3651
  %v3748 = vunpack.c.l.b16 %v3652
  %v3749 = vunpack.c.l.b16 %v3653
  %v3750 = vunpack.c.l.b16 %v3654
  %v3751 = vunpack.c.l.b16 %v3655
  %v3752 = vunpack.c.l.b16 %v3656
  %v3753 = vunpack.c.l.b16 %v3657
  %v3754 = vunpack.c.l.b16 %v3658
  %v3755 = vunpack.c.l.b16 %v3659
  %v3756 = vunpack.c.l.b16 %v3660
  %v3757 = vunpack.c.l.b16 %v3661
  %v3758 = vunpack.c.l.b16 %v3662
  %v3759 = vunpack.c.l.b16 %v3663
  %v3760 = vunpack.c.l.b16 %v3664
  %v3761 = vunpack.c.l.b16 %v3665
  %v3762 = vunpack.c.l.b16 %v3666
  %v3763 = vunpack.c.l.b16 %v3667
  %v3764 = vunpack.c.l.b16 %v3668
  %v3765 = vunpack.c.l.b16 %v3669
  %v3766 = vunpack.c.l.b16 %v3670
  %v3767 = vunpack.c.l.b16 %v3671
  %v3768 = vunpack.c.l.b16 %v3672
  %v3769 = vunpack.c.l.b16 %v3673
  %v3770 = vunpack.c.l.b16 %v3674
  %v3771 = vunpack.c.l.b16 %v3675
  %v3772 = vunpack.c.l.b16 %v3676
  %v3773 = vunpack.c.l.b16 %v3677
  %v3774 = vunpack.c.l.b16 %v3678
  %v3775 = vunpack.c.l.b16 %v3679
  %v3776 = vunpack.c.l.b16 %v3680
  %v3777 = vunpack.c.l.b16 %v3681
  %v3778 = vunpack.c.l.b16 %v3682
  %v3779 = vunpack.c.l.b16 %v3683
  %v3780 = vunpack.c.l.b16 %v3684
  %v3781 = vpack.c.b16 %v3734, %v3733
  %v3782 = vpack.c.b16 %v3736, %v3735
  %v3783 = vpack.c.b16 %v3738, %v3737
  %v3784 = vpack.c.b16 %v3740, %v3739
  %v3785 = vpack.c.b16 %v3742, %v3741
  %v3786 = vpack.c.b16 %v3744, %v3743
  %v3787 = vpack.c.b16 %v3746, %v3745
  %v3788 = vpack.c.b16 %v3748, %v3747
  %v3789 = vpack.c.b16 %v3750, %v3749
  %v3790 = vpack.c.b16 %v3752, %v3751
  %v3791 = vpack.c.b16 %v3754, %v3753
  %v3792 = vpack.c.b16 %v3756, %v3755
  %v3793 = vpack.c.b16 %v3758, %v3757
  %v3794 = vpack.c.b16 %v3760, %v3759
  %v3795 = vpack.c.b16 %v3762, %v3761
  %v3796 = vpack.c.b16 %v3764, %v3763
  %v3797 = vpack.c.b16 %v3766, %v3765
  %v3798 = vpack.c.b16 %v3768, %v3767
  %v3799 = vpack.c.b16 %v3770, %v3769
  %v3800 = vpack.c.b16 %v3772, %v3771
  %v3801 = vpack.c.b16 %v3774, %v3773
  %v3802 = vpack.c.b16 %v3776, %v3775
  %v3803 = vpack.c.b16 %v3778, %v3777
  %v3804 = vpack.c.b16 %v3780, %v3779
  %3829 = vmatprep.subr.bf16.mxu0 0
  %3830 = vmatpush1.bf16.msra.mxu0 %v3781
  %3831 = vmatprep.subr.bf16.mxu0 0
  %3832 = vmatpush1.bf16.msra.mxu0 %v3782
  %3833 = vmatprep.subr.bf16.mxu0 0
  %3834 = vmatpush1.bf16.msra.mxu0 %v3783
  %3835 = vmatprep.subr.bf16.mxu0 0
  %3836 = vmatpush1.bf16.msra.mxu0 %v3784
  %3837 = vmatprep.subr.bf16.mxu0 0
  %3838 = vmatpush1.bf16.msra.mxu0 %v3785
  %3839 = vmatprep.subr.bf16.mxu0 0
  %3840 = vmatpush1.bf16.msra.mxu0 %v3786
  %3841 = vmatprep.subr.bf16.mxu0 0
  %3842 = vmatpush1.bf16.msra.mxu0 %v3787
  %3843 = vmatprep.subr.bf16.mxu0 0
  %3844 = vmatpush1.bf16.msra.mxu0 %v3788
  %3845 = vmatprep.subr.bf16.mxu0 0
  %3846 = vmatpush1.bf16.msra.mxu0 %v3789
  %3847 = vmatprep.subr.bf16.mxu0 0
  %3848 = vmatpush1.bf16.msra.mxu0 %v3790
  %3849 = vmatprep.subr.bf16.mxu0 0
  %3850 = vmatpush1.bf16.msra.mxu0 %v3791
  %3851 = vmatprep.subr.bf16.mxu0 0
  %3852 = vmatpush1.bf16.msra.mxu0 %v3792
  %3853 = vmatprep.subr.bf16.mxu0 0
  %3854 = vmatpush1.bf16.msra.mxu0 %v3793
  %3855 = vmatprep.subr.bf16.mxu0 0
  %3856 = vmatpush1.bf16.msra.mxu0 %v3794
  %3857 = vmatprep.subr.bf16.mxu0 0
  %3858 = vmatpush1.bf16.msra.mxu0 %v3795
  %3859 = vmatprep.subr.bf16.mxu0 0
  %3860 = vmatpush1.bf16.msra.mxu0 %v3796
  %3861 = vmatprep.mubr.bf16.mxu0 %v3172
  %3862 = vmatmul.mubr.bf16.gmra.mrb[0].mxu0 %v3165
  %v3863 = vpop.f32.mrb[0].mxu0
  %v3864 = vadd.f32 0.0, %v3863
  %v3865 = vpop.f32.mrb[0].mxu0
  %v3866 = vpop.f32.mrb[0].mxu0
  %v3867 = vpop.f32.mrb[0].mxu0
  %3868 = vdwg.mxu0
  %3869 = vmatprep.subr.bf16.mxu0 0
  %3870 = vmatpush1.bf16.msra.mxu0 %v3797
  %3871 = vmatprep.subr.bf16.mxu0 0
  %3872 = vmatpush1.bf16.msra.mxu0 %v3798
  %3873 = vmatprep.subr.bf16.mxu0 0
  %3874 = vmatpush1.bf16.msra.mxu0 %v3799
  %3875 = vmatprep.subr.bf16.mxu0 0
  %3876 = vmatpush1.bf16.msra.mxu0 %v3800
  %3877 = vmatprep.subr.bf16.mxu0 0
  %3878 = vmatpush1.bf16.msra.mxu0 %v3801
  %3879 = vmatprep.subr.bf16.mxu0 0
  %3880 = vmatpush1.bf16.msra.mxu0 %v3802
  %3881 = vmatprep.subr.bf16.mxu0 0
  %3882 = vmatpush1.bf16.msra.mxu0 %v3803
  %3883 = vmatprep.subr.bf16.mxu0 0
  %3884 = vmatpush1.bf16.msra.mxu0 %v3804
  %3885 = vmatprep.subr.bf16.mxu0 0
  %3886 = vmatpush1.bf16.msra.mxu0 0
  %3887 = vmatprep.subr.bf16.mxu0 0
  %3888 = vmatpush1.bf16.msra.mxu0 0
  %3889 = vmatprep.subr.bf16.mxu0 0
  %3890 = vmatpush1.bf16.msra.mxu0 0
  %3891 = vmatprep.subr.bf16.mxu0 0
  %3892 = vmatpush1.bf16.msra.mxu0 0
  %3893 = vmatprep.subr.bf16.mxu0 0
  %3894 = vmatpush1.bf16.msra.mxu0 0
  %3895 = vmatprep.subr.bf16.mxu0 0
  %3896 = vmatpush1.bf16.msra.mxu0 0
  %3897 = vmatprep.subr.bf16.mxu0 0
  %3898 = vmatpush1.bf16.msra.mxu0 0
  %3899 = vmatprep.subr.bf16.mxu0 0
  %3900 = vmatpush1.bf16.msra.mxu0 0
  %3901 = vmatprep.mubr.bf16.mxu0 0
  %3902 = vmatmul.mubr.bf16.gmra.mrb[0].mxu0 %v3179
  %v3903 = vpop.f32.mrb[0].mxu0
  %v3904 = vadd.f32 %v3864, %v3903
  %v3905 = vpop.f32.mrb[0].mxu0
  %v3906 = vpop.f32.mrb[0].mxu0
  %v3907 = vpop.f32.mrb[0].mxu0
  %3908 = vdwg.mxu0
  %v3957 = vunpack.c.l.b16 %v3050
  %v3958 = vunpack.c.l.b16 %v3051
  %v3959 = vunpack.c.l.b16 %v3052
  %v3960 = vunpack.c.l.b16 %v3053
  %v3961 = vunpack.c.l.b16 %v3054
  %v3962 = vunpack.c.l.b16 %v3055
  %v3963 = vunpack.c.l.b16 %v3056
  %v3964 = vunpack.c.l.b16 %v3057
  %v3965 = vunpack.c.l.b16 %v3058
  %v3966 = vunpack.c.l.b16 %v3059
  %v3967 = vunpack.c.l.b16 %v3060
  %v3968 = vunpack.c.l.b16 %v3061
  %v3969 = vunpack.c.l.b16 %v3062
  %v3970 = vunpack.c.l.b16 %v3063
  %v3971 = vunpack.c.l.b16 %v3064
  %v3972 = vunpack.c.l.b16 %v3065
  %v3973 = vunpack.c.l.b16 %v3066
  %v3974 = vunpack.c.l.b16 %v3067
  %v3975 = vunpack.c.l.b16 %v3068
  %v3976 = vunpack.c.l.b16 %v3069
  %v3977 = vunpack.c.l.b16 %v3070
  %v3978 = vunpack.c.l.b16 %v3071
  %v3979 = vunpack.c.l.b16 %v3072
  %v3980 = vunpack.c.l.b16 %v3073
  %v3981 = vunpack.c.l.b16 %v3074
  %v3982 = vunpack.c.l.b16 %v3075
  %v3983 = vunpack.c.l.b16 %v3076
  %v3984 = vunpack.c.l.b16 %v3077
  %v3985 = vunpack.c.l.b16 %v3078
  %v3986 = vunpack.c.l.b16 %v3079
  %v3987 = vunpack.c.l.b16 %v3080
  %v3988 = vunpack.c.l.b16 %v3081
  %v3989 = vunpack.c.l.b16 %v3082
  %v3990 = vunpack.c.l.b16 %v3083
  %v3991 = vunpack.c.l.b16 %v3084
  %v3992 = vunpack.c.l.b16 %v3085
  %v3993 = vunpack.c.l.b16 %v3086
  %v3994 = vunpack.c.l.b16 %v3087
  %v3995 = vunpack.c.l.b16 %v3088
  %v3996 = vunpack.c.l.b16 %v3089
  %v3997 = vunpack.c.l.b16 %v3090
  %v3998 = vunpack.c.l.b16 %v3091
  %v3999 = vunpack.c.l.b16 %v3092
  %v4000 = vunpack.c.l.b16 %v3093
  %v4001 = vunpack.c.l.b16 %v3094
  %v4002 = vunpack.c.l.b16 %v3095
  %v4003 = vunpack.c.l.b16 %v3096
  %v4004 = vunpack.c.l.b16 %v3097
  %v4005 = vpack.c.b16 %v3958, %v3957
  %v4006 = vpack.c.b16 %v3960, %v3959
  %v4007 = vpack.c.b16 %v3962, %v3961
  %v4008 = vpack.c.b16 %v3964, %v3963
  %v4009 = vpack.c.b16 %v3966, %v3965
  %v4010 = vpack.c.b16 %v3968, %v3967
  %v4011 = vpack.c.b16 %v3970, %v3969
  %v4012 = vpack.c.b16 %v3972, %v3971
  %v4013 = vpack.c.b16 %v3974, %v3973
  %v4014 = vpack.c.b16 %v3976, %v3975
  %v4015 = vpack.c.b16 %v3978, %v3977
  %v4016 = vpack.c.b16 %v3980, %v3979
  %v4017 = vpack.c.b16 %v3982, %v3981
  %v4018 = vpack.c.b16 %v3984, %v3983
  %v4019 = vpack.c.b16 %v3986, %v3985
  %v4020 = vpack.c.b16 %v3988, %v3987
  %v4021 = vpack.c.b16 %v3990, %v3989
  %v4022 = vpack.c.b16 %v3992, %v3991
  %v4023 = vpack.c.b16 %v3994, %v3993
  %v4024 = vpack.c.b16 %v3996, %v3995
  %v4025 = vpack.c.b16 %v3998, %v3997
  %v4026 = vpack.c.b16 %v4000, %v3999
  %v4027 = vpack.c.b16 %v4002, %v4001
  %v4028 = vpack.c.b16 %v4004, %v4003
  %4053 = vmatprep.subr.bf16.mxu0 0
  %4054 = vmatpush1.bf16.msra.mxu0 %v4005
  %4055 = vmatprep.subr.bf16.mxu0 0
  %4056 = vmatpush1.bf16.msra.mxu0 %v4006
  %4057 = vmatprep.subr.bf16.mxu0 0
  %4058 = vmatpush1.bf16.msra.mxu0 %v4007
  %4059 = vmatprep.subr.bf16.mxu0 0
  %4060 = vmatpush1.bf16.msra.mxu0 %v4008
  %4061 = vmatprep.subr.bf16.mxu0 0
  %4062 = vmatpush1.bf16.msra.mxu0 %v4009
  %4063 = vmatprep.subr.bf16.mxu0 0
  %4064 = vmatpush1.bf16.msra.mxu0 %v4010
  %4065 = vmatprep.subr.bf16.mxu0 0
  %4066 = vmatpush1.bf16.msra.mxu0 %v4011
  %4067 = vmatprep.subr.bf16.mxu0 0
  %4068 = vmatpush1.bf16.msra.mxu0 %v4012
  %4069 = vmatprep.subr.bf16.mxu0 0
  %4070 = vmatpush1.bf16.msra.mxu0 %v4013
  %4071 = vmatprep.subr.bf16.mxu0 0
  %4072 = vmatpush1.bf16.msra.mxu0 %v4014
  %4073 = vmatprep.subr.bf16.mxu0 0
  %4074 = vmatpush1.bf16.msra.mxu0 %v4015
  %4075 = vmatprep.subr.bf16.mxu0 0
  %4076 = vmatpush1.bf16.msra.mxu0 %v4016
  %4077 = vmatprep.subr.bf16.mxu0 0
  %4078 = vmatpush1.bf16.msra.mxu0 %v4017
  %4079 = vmatprep.subr.bf16.mxu0 0
  %4080 = vmatpush1.bf16.msra.mxu0 %v4018
  %4081 = vmatprep.subr.bf16.mxu0 0
  %4082 = vmatpush1.bf16.msra.mxu0 %v4019
  %4083 = vmatprep.subr.bf16.mxu0 0
  %4084 = vmatpush1.bf16.msra.mxu0 %v4020
  %4085 = vmatprep.mubr.bf16.mxu0 %v3408
  %4086 = vmatmul.mubr.bf16.gmra.mrb[0].mxu0 %v3407
  %v4087 = vpop.f32.mrb[0].mxu0
  %v4088 = vadd.f32 %v3904, %v4087
  %v4089 = vpop.f32.mrb[0].mxu0
  %v4090 = vpop.f32.mrb[0].mxu0
  %v4091 = vpop.f32.mrb[0].mxu0
  %4092 = vdwg.mxu0
  %4093 = vmatprep.subr.bf16.mxu0 0
  %4094 = vmatpush1.bf16.msra.mxu0 %v4021
  %4095 = vmatprep.subr.bf16.mxu0 0
  %4096 = vmatpush1.bf16.msra.mxu0 %v4022
  %4097 = vmatprep.subr.bf16.mxu0 0
  %4098 = vmatpush1.bf16.msra.mxu0 %v4023
  %4099 = vmatprep.subr.bf16.mxu0 0
  %4100 = vmatpush1.bf16.msra.mxu0 %v4024
  %4101 = vmatprep.subr.bf16.mxu0 0
  %4102 = vmatpush1.bf16.msra.mxu0 %v4025
  %4103 = vmatprep.subr.bf16.mxu0 0
  %4104 = vmatpush1.bf16.msra.mxu0 %v4026
  %4105 = vmatprep.subr.bf16.mxu0 0
  %4106 = vmatpush1.bf16.msra.mxu0 %v4027
  %4107 = vmatprep.subr.bf16.mxu0 0
  %4108 = vmatpush1.bf16.msra.mxu0 %v4028
  %4109 = vmatprep.subr.bf16.mxu0 0
  %4110 = vmatpush1.bf16.msra.mxu0 0
  %4111 = vmatprep.subr.bf16.mxu0 0
  %4112 = vmatpush1.bf16.msra.mxu0 0
  %4113 = vmatprep.subr.bf16.mxu0 0
  %4114 = vmatpush1.bf16.msra.mxu0 0
  %4115 = vmatprep.subr.bf16.mxu0 0
  %4116 = vmatpush1.bf16.msra.mxu0 0
  %4117 = vmatprep.subr.bf16.mxu0 0
  %4118 = vmatpush1.bf16.msra.mxu0 0
  %4119 = vmatprep.subr.bf16.mxu0 0
  %4120 = vmatpush1.bf16.msra.mxu0 0
  %4121 = vmatprep.subr.bf16.mxu0 0
  %4122 = vmatpush1.bf16.msra.mxu0 0
  %4123 = vmatprep.subr.bf16.mxu0 0
  %4124 = vmatpush1.bf16.msra.mxu0 0
  %4125 = vmatprep.mubr.bf16.mxu0 0
  %4126 = vmatmul.mubr.bf16.gmra.mrb[0].mxu0 %v3409
  %v4127 = vpop.f32.mrb[0].mxu0
  %v4128 = vadd.f32 %v4088, %v4127
  %v4129 = vpop.f32.mrb[0].mxu0
  %v4130 = vpop.f32.mrb[0].mxu0
  %v4131 = vpop.f32.mrb[0].mxu0
  %4132 = vdwg.mxu0
  %v4133 = vld [vmem:[%s1168] sm:$0xf]
  %v4134 = vld [vmem:[%s1168 + $0x4] sm:$0xf]
  %v4135 = vld [vmem:[%s1168 + $0x8] sm:$0xf]
  %v4136 = vld [vmem:[%s1168 + $0xc] sm:$0xf]
  %v4137 = vld [vmem:[%s1168 + $0x10] sm:$0xf]
  %v4138 = vld [vmem:[%s1168 + $0x14] sm:$0xf]
  %v4139 = vld [vmem:[%s1168 + $0x18] sm:$0xf]
  %v4140 = vld [vmem:[%s1168 + $0x1c] sm:$0xf]
  %v4141 = vld [vmem:[%s1168 + $0x20] sm:$0xf]
  %v4142 = vld [vmem:[%s1168 + $0x24] sm:$0xf]
  %v4143 = vld [vmem:[%s1168 + $0x28] sm:$0xf]
  %v4144 = vld [vmem:[%s1168 + $0x2c] sm:$0xf]
  %v4145 = vld [vmem:[%s1168 + $0x30] sm:$0xf]
  %v4146 = vld [vmem:[%s1168 + $0x34] sm:$0xf]
  %v4147 = vld [vmem:[%s1168 + $0x38] sm:$0xf]
  %v4148 = vld [vmem:[%s1168 + $0x3c] sm:$0xf]
  %v4149 = vld [vmem:[%s1168 + $0x40] sm:$0xf]
  %v4150 = vld [vmem:[%s1168 + $0x44] sm:$0xf]
  %v4151 = vld [vmem:[%s1168 + $0x48] sm:$0xf]
  %v4152 = vld [vmem:[%s1168 + $0x4c] sm:$0xf]
  %v4153 = vld [vmem:[%s1168 + $0x50] sm:$0xf]
  %v4154 = vld [vmem:[%s1168 + $0x54] sm:$0xf]
  %v4155 = vld [vmem:[%s1168 + $0x58] sm:$0xf]
  %v4156 = vld [vmem:[%s1168 + $0x5c] sm:$0xf]
  %v4157 = vld [vmem:[%s1168 + $0x60] sm:$0xf]
  %v4158 = vld [vmem:[%s1168 + $0x64] sm:$0xf]
  %v4159 = vld [vmem:[%s1168 + $0x68] sm:$0xf]
  %v4160 = vld [vmem:[%s1168 + $0x6c] sm:$0xf]
  %v4161 = vld [vmem:[%s1168 + $0x70] sm:$0xf]
  %v4162 = vld [vmem:[%s1168 + $0x74] sm:$0xf]
  %v4163 = vld [vmem:[%s1168 + $0x78] sm:$0xf]
  %v4164 = vld [vmem:[%s1168 + $0x7c] sm:$0xf]
  %v4165 = vld [vmem:[%s1168 + $0x80] sm:$0xf]
  %v4166 = vld [vmem:[%s1168 + $0x84] sm:$0xf]
  %v4167 = vld [vmem:[%s1168 + $0x88] sm:$0xf]
  %v4168 = vld [vmem:[%s1168 + $0x8c] sm:$0xf]
  %v4169 = vld [vmem:[%s1168 + $0x90] sm:$0xf]
  %v4170 = vld [vmem:[%s1168 + $0x94] sm:$0xf]
  %v4171 = vld [vmem:[%s1168 + $0x98] sm:$0xf]
  %v4172 = vld [vmem:[%s1168 + $0x9c] sm:$0xf]
  %v4173 = vld [vmem:[%s1168 + $0xa0] sm:$0xf]
  %v4174 = vld [vmem:[%s1168 + $0xa4] sm:$0xf]
  %v4175 = vld [vmem:[%s1168 + $0xa8] sm:$0xf]
  %v4176 = vld [vmem:[%s1168 + $0xac] sm:$0xf]
  %v4177 = vld [vmem:[%s1168 + $0xb0] sm:$0xf]
  %v4178 = vld [vmem:[%s1168 + $0xb4] sm:$0xf]
  %v4179 = vld [vmem:[%s1168 + $0xb8] sm:$0xf]
  %v4180 = vld [vmem:[%s1168 + $0xbc] sm:$0xf]
  %v4181 = vrot.slane %v3156, 1
  %v4182 = vrot.slane %v3157, 1
  %v4183 = vrot.slane %v3158, 1
  %v4235 = vunpack.c.l.b16 %v4133
  %v4236 = vunpack.c.l.b16 %v4134
  %v4237 = vunpack.c.l.b16 %v4135
  %v4238 = vunpack.c.l.b16 %v4136
  %v4239 = vunpack.c.l.b16 %v4137
  %v4240 = vunpack.c.l.b16 %v4138
  %v4241 = vunpack.c.l.b16 %v4139
  %v4242 = vunpack.c.l.b16 %v4140
  %v4243 = vunpack.c.l.b16 %v4141
  %v4244 = vunpack.c.l.b16 %v4142
  %v4245 = vunpack.c.l.b16 %v4143
  %v4246 = vunpack.c.l.b16 %v4144
  %v4247 = vunpack.c.l.b16 %v4145
  %v4248 = vunpack.c.l.b16 %v4146
  %v4249 = vunpack.c.l.b16 %v4147
  %v4250 = vunpack.c.l.b16 %v4148
  %v4251 = vunpack.c.l.b16 %v4149
  %v4252 = vunpack.c.l.b16 %v4150
  %v4253 = vunpack.c.l.b16 %v4151
  %v4254 = vunpack.c.l.b16 %v4152
  %v4255 = vunpack.c.l.b16 %v4153
  %v4256 = vunpack.c.l.b16 %v4154
  %v4257 = vunpack.c.l.b16 %v4155
  %v4258 = vunpack.c.l.b16 %v4156
  %v4259 = vunpack.c.l.b16 %v4157
  %v4260 = vunpack.c.l.b16 %v4158
  %v4261 = vunpack.c.l.b16 %v4159
  %v4262 = vunpack.c.l.b16 %v4160
  %v4263 = vunpack.c.l.b16 %v4161
  %v4264 = vunpack.c.l.b16 %v4162
  %v4265 = vunpack.c.l.b16 %v4163
  %v4266 = vunpack.c.l.b16 %v4164
  %v4267 = vunpack.c.l.b16 %v4165
  %v4268 = vunpack.c.l.b16 %v4166
  %v4269 = vunpack.c.l.b16 %v4167
  %v4270 = vunpack.c.l.b16 %v4168
  %v4271 = vunpack.c.l.b16 %v4169
  %v4272 = vunpack.c.l.b16 %v4170
  %v4273 = vunpack.c.l.b16 %v4171
  %v4274 = vunpack.c.l.b16 %v4172
  %v4275 = vunpack.c.l.b16 %v4173
  %v4276 = vunpack.c.l.b16 %v4174
  %v4277 = vunpack.c.l.b16 %v4175
  %v4278 = vunpack.c.l.b16 %v4176
  %v4279 = vunpack.c.l.b16 %v4177
  %v4280 = vunpack.c.l.b16 %v4178
  %v4281 = vunpack.c.l.b16 %v4179
  %v4282 = vunpack.c.l.b16 %v4180
  %v4283 = vpack.c.b16 %v4236, %v4235
  %v4284 = vpack.c.b16 %v4238, %v4237
  %v4285 = vpack.c.b16 %v4240, %v4239
  %v4286 = vpack.c.b16 %v4242, %v4241
  %v4287 = vpack.c.b16 %v4244, %v4243
  %v4288 = vpack.c.b16 %v4246, %v4245
  %v4289 = vpack.c.b16 %v4248, %v4247
  %v4290 = vpack.c.b16 %v4250, %v4249
  %v4291 = vpack.c.b16 %v4252, %v4251
  %v4292 = vpack.c.b16 %v4254, %v4253
  %v4293 = vpack.c.b16 %v4256, %v4255
  %v4294 = vpack.c.b16 %v4258, %v4257
  %v4295 = vpack.c.b16 %v4260, %v4259
  %v4296 = vpack.c.b16 %v4262, %v4261
  %v4297 = vpack.c.b16 %v4264, %v4263
  %v4298 = vpack.c.b16 %v4266, %v4265
  %v4299 = vpack.c.b16 %v4268, %v4267
  %v4300 = vpack.c.b16 %v4270, %v4269
  %v4301 = vpack.c.b16 %v4272, %v4271
  %v4302 = vpack.c.b16 %v4274, %v4273
  %v4303 = vpack.c.b16 %v4276, %v4275
  %v4304 = vpack.c.b16 %v4278, %v4277
  %v4305 = vpack.c.b16 %v4280, %v4279
  %v4306 = vpack.c.b16 %v4282, %v4281
  %4331 = vmatprep.subr.bf16.mxu0 0
  %4332 = vmatpush1.bf16.msra.mxu0 %v4283
  %4333 = vmatprep.subr.bf16.mxu0 0
  %4334 = vmatpush1.bf16.msra.mxu0 %v4284
  %4335 = vmatprep.subr.bf16.mxu0 0
  %4336 = vmatpush1.bf16.msra.mxu0 %v4285
  %4337 = vmatprep.subr.bf16.mxu0 0
  %4338 = vmatpush1.bf16.msra.mxu0 %v4286
  %4339 = vmatprep.subr.bf16.mxu0 0
  %4340 = vmatpush1.bf16.msra.mxu0 %v4287
  %4341 = vmatprep.subr.bf16.mxu0 0
  %4342 = vmatpush1.bf16.msra.mxu0 %v4288
  %4343 = vmatprep.subr.bf16.mxu0 0
  %4344 = vmatpush1.bf16.msra.mxu0 %v4289
  %4345 = vmatprep.subr.bf16.mxu0 0
  %4346 = vmatpush1.bf16.msra.mxu0 %v4290
  %4347 = vmatprep.subr.bf16.mxu0 0
  %4348 = vmatpush1.bf16.msra.mxu0 %v4291
  %4349 = vmatprep.subr.bf16.mxu0 0
  %4350 = vmatpush1.bf16.msra.mxu0 %v4292
  %4351 = vmatprep.subr.bf16.mxu0 0
  %4352 = vmatpush1.bf16.msra.mxu0 %v4293
  %4353 = vmatprep.subr.bf16.mxu0 0
  %4354 = vmatpush1.bf16.msra.mxu0 %v4294
  %4355 = vmatprep.subr.bf16.mxu0 0
  %4356 = vmatpush1.bf16.msra.mxu0 %v4295
  %4357 = vmatprep.subr.bf16.mxu0 0
  %4358 = vmatpush1.bf16.msra.mxu0 %v4296
  %4359 = vmatprep.subr.bf16.mxu0 0
  %4360 = vmatpush1.bf16.msra.mxu0 %v4297
  %4361 = vmatprep.subr.bf16.mxu0 0
  %4362 = vmatpush1.bf16.msra.mxu0 %v4298
  %4363 = vmatprep.mubr.bf16.mxu0 %v4182
  %4364 = vmatmul.mubr.bf16.gmra.mrb[0].mxu0 %v4181
  %v4365 = vpop.f32.mrb[0].mxu0
  %v4366 = vadd.f32 0.0, %v4365
  %v4367 = vpop.f32.mrb[0].mxu0
  %v4368 = vpop.f32.mrb[0].mxu0
  %v4369 = vpop.f32.mrb[0].mxu0
  %4370 = vdwg.mxu0
  %4371 = vmatprep.subr.bf16.mxu0 0
  %4372 = vmatpush1.bf16.msra.mxu0 %v4299
  %4373 = vmatprep.subr.bf16.mxu0 0
  %4374 = vmatpush1.bf16.msra.mxu0 %v4300
  %4375 = vmatprep.subr.bf16.mxu0 0
  %4376 = vmatpush1.bf16.msra.mxu0 %v4301
  %4377 = vmatprep.subr.bf16.mxu0 0
  %4378 = vmatpush1.bf16.msra.mxu0 %v4302
  %4379 = vmatprep.subr.bf16.mxu0 0
  %4380 = vmatpush1.bf16.msra.mxu0 %v4303
  %4381 = vmatprep.subr.bf16.mxu0 0
  %4382 = vmatpush1.bf16.msra.mxu0 %v4304
  %4383 = vmatprep.subr.bf16.mxu0 0
  %4384 = vmatpush1.bf16.msra.mxu0 %v4305
  %4385 = vmatprep.subr.bf16.mxu0 0
  %4386 = vmatpush1.bf16.msra.mxu0 %v4306
  %4387 = vmatprep.subr.bf16.mxu0 0
  %4388 = vmatpush1.bf16.msra.mxu0 0
  %4389 = vmatprep.subr.bf16.mxu0 0
  %4390 = vmatpush1.bf16.msra.mxu0 0
  %4391 = vmatprep.subr.bf16.mxu0 0
  %4392 = vmatpush1.bf16.msra.mxu0 0
  %4393 = vmatprep.subr.bf16.mxu0 0
  %4394 = vmatpush1.bf16.msra.mxu0 0
  %4395 = vmatprep.subr.bf16.mxu0 0
  %4396 = vmatpush1.bf16.msra.mxu0 0
  %4397 = vmatprep.subr.bf16.mxu0 0
  %4398 = vmatpush1.bf16.msra.mxu0 0
  %4399 = vmatprep.subr.bf16.mxu0 0
  %4400 = vmatpush1.bf16.msra.mxu0 0
  %4401 = vmatprep.subr.bf16.mxu0 0
  %4402 = vmatpush1.bf16.msra.mxu0 0
  %4403 = vmatprep.mubr.bf16.mxu0 0
  %4404 = vmatmul.mubr.bf16.gmra.mrb[0].mxu0 %v4183
  %v4405 = vpop.f32.mrb[0].mxu0
  %v4406 = vadd.f32 %v4366, %v4405
  %v4407 = vpop.f32.mrb[0].mxu0
  %v4408 = vpop.f32.mrb[0].mxu0
  %v4409 = vpop.f32.mrb[0].mxu0
  %4410 = vdwg.mxu0
  %v4411 = vadd.f32 %v3632, %v4406
  %v4412 = vld [vmem:[%s1448] sm:$0xf]
  %v4413 = vld [vmem:[%s1448 + $0x4] sm:$0xf]
  %v4414 = vld [vmem:[%s1448 + $0x8] sm:$0xf]
  %v4415 = vld [vmem:[%s1448 + $0xc] sm:$0xf]
  %v4416 = vld [vmem:[%s1448 + $0x10] sm:$0xf]
  %v4417 = vld [vmem:[%s1448 + $0x14] sm:$0xf]
  %v4418 = vld [vmem:[%s1448 + $0x18] sm:$0xf]
  %v4419 = vld [vmem:[%s1448 + $0x1c] sm:$0xf]
  %v4420 = vld [vmem:[%s1448 + $0x20] sm:$0xf]
  %v4421 = vld [vmem:[%s1448 + $0x24] sm:$0xf]
  %v4422 = vld [vmem:[%s1448 + $0x28] sm:$0xf]
  %v4423 = vld [vmem:[%s1448 + $0x2c] sm:$0xf]
  %v4424 = vld [vmem:[%s1448 + $0x30] sm:$0xf]
  %v4425 = vld [vmem:[%s1448 + $0x34] sm:$0xf]
  %v4426 = vld [vmem:[%s1448 + $0x38] sm:$0xf]
  %v4427 = vld [vmem:[%s1448 + $0x3c] sm:$0xf]
  %v4428 = vld [vmem:[%s1448 + $0x40] sm:$0xf]
  %v4429 = vld [vmem:[%s1448 + $0x44] sm:$0xf]
  %v4430 = vld [vmem:[%s1448 + $0x48] sm:$0xf]
  %v4431 = vld [vmem:[%s1448 + $0x4c] sm:$0xf]
  %v4432 = vld [vmem:[%s1448 + $0x50] sm:$0xf]
  %v4433 = vld [vmem:[%s1448 + $0x54] sm:$0xf]
  %v4434 = vld [vmem:[%s1448 + $0x58] sm:$0xf]
  %v4435 = vld [vmem:[%s1448 + $0x5c] sm:$0xf]
  %v4436 = vld [vmem:[%s1448 + $0x60] sm:$0xf]
  %v4437 = vld [vmem:[%s1448 + $0x64] sm:$0xf]
  %v4438 = vld [vmem:[%s1448 + $0x68] sm:$0xf]
  %v4439 = vld [vmem:[%s1448 + $0x6c] sm:$0xf]
  %v4440 = vld [vmem:[%s1448 + $0x70] sm:$0xf]
  %v4441 = vld [vmem:[%s1448 + $0x74] sm:$0xf]
  %v4442 = vld [vmem:[%s1448 + $0x78] sm:$0xf]
  %v4443 = vld [vmem:[%s1448 + $0x7c] sm:$0xf]
  %v4444 = vld [vmem:[%s1448 + $0x80] sm:$0xf]
  %v4445 = vld [vmem:[%s1448 + $0x84] sm:$0xf]
  %v4446 = vld [vmem:[%s1448 + $0x88] sm:$0xf]
  %v4447 = vld [vmem:[%s1448 + $0x8c] sm:$0xf]
  %v4448 = vld [vmem:[%s1448 + $0x90] sm:$0xf]
  %v4449 = vld [vmem:[%s1448 + $0x94] sm:$0xf]
  %v4450 = vld [vmem:[%s1448 + $0x98] sm:$0xf]
  %v4451 = vld [vmem:[%s1448 + $0x9c] sm:$0xf]
  %v4452 = vld [vmem:[%s1448 + $0xa0] sm:$0xf]
  %v4453 = vld [vmem:[%s1448 + $0xa4] sm:$0xf]
  %v4454 = vld [vmem:[%s1448 + $0xa8] sm:$0xf]
  %v4455 = vld [vmem:[%s1448 + $0xac] sm:$0xf]
  %v4456 = vld [vmem:[%s1448 + $0xb0] sm:$0xf]
  %v4457 = vld [vmem:[%s1448 + $0xb4] sm:$0xf]
  %v4458 = vld [vmem:[%s1448 + $0xb8] sm:$0xf]
  %v4459 = vld [vmem:[%s1448 + $0xbc] sm:$0xf]
  %v4508 = vunpack.c.l.b16 %v4412
  %v4509 = vunpack.c.l.b16 %v4413
  %v4510 = vunpack.c.l.b16 %v4414
  %v4511 = vunpack.c.l.b16 %v4415
  %v4512 = vunpack.c.l.b16 %v4416
  %v4513 = vunpack.c.l.b16 %v4417
  %v4514 = vunpack.c.l.b16 %v4418
  %v4515 = vunpack.c.l.b16 %v4419
  %v4516 = vunpack.c.l.b16 %v4420
  %v4517 = vunpack.c.l.b16 %v4421
  %v4518 = vunpack.c.l.b16 %v4422
  %v4519 = vunpack.c.l.b16 %v4423
  %v4520 = vunpack.c.l.b16 %v4424
  %v4521 = vunpack.c.l.b16 %v4425
  %v4522 = vunpack.c.l.b16 %v4426
  %v4523 = vunpack.c.l.b16 %v4427
  %v4524 = vunpack.c.l.b16 %v4428
  %v4525 = vunpack.c.l.b16 %v4429
  %v4526 = vunpack.c.l.b16 %v4430
  %v4527 = vunpack.c.l.b16 %v4431
  %v4528 = vunpack.c.l.b16 %v4432
  %v4529 = vunpack.c.l.b16 %v4433
  %v4530 = vunpack.c.l.b16 %v4434
  %v4531 = vunpack.c.l.b16 %v4435
  %v4532 = vunpack.c.l.b16 %v4436
  %v4533 = vunpack.c.l.b16 %v4437
  %v4534 = vunpack.c.l.b16 %v4438
  %v4535 = vunpack.c.l.b16 %v4439
  %v4536 = vunpack.c.l.b16 %v4440
  %v4537 = vunpack.c.l.b16 %v4441
  %v4538 = vunpack.c.l.b16 %v4442
  %v4539 = vunpack.c.l.b16 %v4443
  %v4540 = vunpack.c.l.b16 %v4444
  %v4541 = vunpack.c.l.b16 %v4445
  %v4542 = vunpack.c.l.b16 %v4446
  %v4543 = vunpack.c.l.b16 %v4447
  %v4544 = vunpack.c.l.b16 %v4448
  %v4545 = vunpack.c.l.b16 %v4449
  %v4546 = vunpack.c.l.b16 %v4450
  %v4547 = vunpack.c.l.b16 %v4451
  %v4548 = vunpack.c.l.b16 %v4452
  %v4549 = vunpack.c.l.b16 %v4453
  %v4550 = vunpack.c.l.b16 %v4454
  %v4551 = vunpack.c.l.b16 %v4455
  %v4552 = vunpack.c.l.b16 %v4456
  %v4553 = vunpack.c.l.b16 %v4457
  %v4554 = vunpack.c.l.b16 %v4458
  %v4555 = vunpack.c.l.b16 %v4459
  %v4556 = vpack.c.b16 %v4509, %v4508
  %v4557 = vpack.c.b16 %v4511, %v4510
  %v4558 = vpack.c.b16 %v4513, %v4512
  %v4559 = vpack.c.b16 %v4515, %v4514
  %v4560 = vpack.c.b16 %v4517, %v4516
  %v4561 = vpack.c.b16 %v4519, %v4518
  %v4562 = vpack.c.b16 %v4521, %v4520
  %v4563 = vpack.c.b16 %v4523, %v4522
  %v4564 = vpack.c.b16 %v4525, %v4524
  %v4565 = vpack.c.b16 %v4527, %v4526
  %v4566 = vpack.c.b16 %v4529, %v4528
  %v4567 = vpack.c.b16 %v4531, %v4530
  %v4568 = vpack.c.b16 %v4533, %v4532
  %v4569 = vpack.c.b16 %v4535, %v4534
  %v4570 = vpack.c.b16 %v4537, %v4536
  %v4571 = vpack.c.b16 %v4539, %v4538
  %v4572 = vpack.c.b16 %v4541, %v4540
  %v4573 = vpack.c.b16 %v4543, %v4542
  %v4574 = vpack.c.b16 %v4545, %v4544
  %v4575 = vpack.c.b16 %v4547, %v4546
  %v4576 = vpack.c.b16 %v4549, %v4548
  %v4577 = vpack.c.b16 %v4551, %v4550
  %v4578 = vpack.c.b16 %v4553, %v4552
  %v4579 = vpack.c.b16 %v4555, %v4554
  %4604 = vmatprep.subr.bf16.mxu0 0
  %4605 = vmatpush1.bf16.msra.mxu0 %v4556
  %4606 = vmatprep.subr.bf16.mxu0 0
  %4607 = vmatpush1.bf16.msra.mxu0 %v4557
  %4608 = vmatprep.subr.bf16.mxu0 0
  %4609 = vmatpush1.bf16.msra.mxu0 %v4558
  %4610 = vmatprep.subr.bf16.mxu0 0
  %4611 = vmatpush1.bf16.msra.mxu0 %v4559
  %4612 = vmatprep.subr.bf16.mxu0 0
  %4613 = vmatpush1.bf16.msra.mxu0 %v4560
  %4614 = vmatprep.subr.bf16.mxu0 0
  %4615 = vmatpush1.bf16.msra.mxu0 %v4561
  %4616 = vmatprep.subr.bf16.mxu0 0
  %4617 = vmatpush1.bf16.msra.mxu0 %v4562
  %4618 = vmatprep.subr.bf16.mxu0 0
  %4619 = vmatpush1.bf16.msra.mxu0 %v4563
  %4620 = vmatprep.subr.bf16.mxu0 0
  %4621 = vmatpush1.bf16.msra.mxu0 %v4564
  %4622 = vmatprep.subr.bf16.mxu0 0
  %4623 = vmatpush1.bf16.msra.mxu0 %v4565
  %4624 = vmatprep.subr.bf16.mxu0 0
  %4625 = vmatpush1.bf16.msra.mxu0 %v4566
  %4626 = vmatprep.subr.bf16.mxu0 0
  %4627 = vmatpush1.bf16.msra.mxu0 %v4567
  %4628 = vmatprep.subr.bf16.mxu0 0
  %4629 = vmatpush1.bf16.msra.mxu0 %v4568
  %4630 = vmatprep.subr.bf16.mxu0 0
  %4631 = vmatpush1.bf16.msra.mxu0 %v4569
  %4632 = vmatprep.subr.bf16.mxu0 0
  %4633 = vmatpush1.bf16.msra.mxu0 %v4570
  %4634 = vmatprep.subr.bf16.mxu0 0
  %4635 = vmatpush1.bf16.msra.mxu0 %v4571
  %4636 = vmatprep.mubr.bf16.mxu0 %v4182
  %4637 = vmatmul.mubr.bf16.gmra.mrb[0].mxu0 %v4181
  %v4638 = vpop.f32.mrb[0].mxu0
  %v4639 = vadd.f32 0.0, %v4638
  %v4640 = vpop.f32.mrb[0].mxu0
  %v4641 = vpop.f32.mrb[0].mxu0
  %v4642 = vpop.f32.mrb[0].mxu0
  %4643 = vdwg.mxu0
  %4644 = vmatprep.subr.bf16.mxu0 0
  %4645 = vmatpush1.bf16.msra.mxu0 %v4572
  %4646 = vmatprep.subr.bf16.mxu0 0
  %4647 = vmatpush1.bf16.msra.mxu0 %v4573
  %4648 = vmatprep.subr.bf16.mxu0 0
  %4649 = vmatpush1.bf16.msra.mxu0 %v4574
  %4650 = vmatprep.subr.bf16.mxu0 0
  %4651 = vmatpush1.bf16.msra.mxu0 %v4575
  %4652 = vmatprep.subr.bf16.mxu0 0
  %4653 = vmatpush1.bf16.msra.mxu0 %v4576
  %4654 = vmatprep.subr.bf16.mxu0 0
  %4655 = vmatpush1.bf16.msra.mxu0 %v4577
  %4656 = vmatprep.subr.bf16.mxu0 0
  %4657 = vmatpush1.bf16.msra.mxu0 %v4578
  %4658 = vmatprep.subr.bf16.mxu0 0
  %4659 = vmatpush1.bf16.msra.mxu0 %v4579
  %4660 = vmatprep.subr.bf16.mxu0 0
  %4661 = vmatpush1.bf16.msra.mxu0 0
  %4662 = vmatprep.subr.bf16.mxu0 0
  %4663 = vmatpush1.bf16.msra.mxu0 0
  %4664 = vmatprep.subr.bf16.mxu0 0
  %4665 = vmatpush1.bf16.msra.mxu0 0
  %4666 = vmatprep.subr.bf16.mxu0 0
  %4667 = vmatpush1.bf16.msra.mxu0 0
  %4668 = vmatprep.subr.bf16.mxu0 0
  %4669 = vmatpush1.bf16.msra.mxu0 0
  %4670 = vmatprep.subr.bf16.mxu0 0
  %4671 = vmatpush1.bf16.msra.mxu0 0
  %4672 = vmatprep.subr.bf16.mxu0 0
  %4673 = vmatpush1.bf16.msra.mxu0 0
  %4674 = vmatprep.subr.bf16.mxu0 0
  %4675 = vmatpush1.bf16.msra.mxu0 0
  %4676 = vmatprep.mubr.bf16.mxu0 0
  %4677 = vmatmul.mubr.bf16.gmra.mrb[0].mxu0 %v4183
  %v4678 = vpop.f32.mrb[0].mxu0
  %v4679 = vadd.f32 %v4639, %v4678
  %v4680 = vpop.f32.mrb[0].mxu0
  %v4681 = vpop.f32.mrb[0].mxu0
  %v4682 = vpop.f32.mrb[0].mxu0
  %4683 = vdwg.mxu0
  %v4684 = vadd.f32 %v4128, %v4679
  %v4685 = vld [vmem:[%s1722] sm:$0xf]
  %v4686 = vld [vmem:[%s1722 + $0x4] sm:$0xf]
  %v4687 = vld [vmem:[%s1722 + $0x8] sm:$0xf]
  %v4688 = vld [vmem:[%s1722 + $0xc] sm:$0xf]
  %v4689 = vld [vmem:[%s1722 + $0x10] sm:$0xf]
  %v4690 = vld [vmem:[%s1722 + $0x14] sm:$0xf]
  %v4691 = vld [vmem:[%s1722 + $0x18] sm:$0xf]
  %v4692 = vld [vmem:[%s1722 + $0x1c] sm:$0xf]
  %v4693 = vld [vmem:[%s1722 + $0x20] sm:$0xf]
  %v4694 = vld [vmem:[%s1722 + $0x24] sm:$0xf]
  %v4695 = vld [vmem:[%s1722 + $0x28] sm:$0xf]
  %v4696 = vld [vmem:[%s1722 + $0x2c] sm:$0xf]
  %v4697 = vld [vmem:[%s1722 + $0x30] sm:$0xf]
  %v4698 = vld [vmem:[%s1722 + $0x34] sm:$0xf]
  %v4699 = vld [vmem:[%s1722 + $0x38] sm:$0xf]
  %v4700 = vld [vmem:[%s1722 + $0x3c] sm:$0xf]
  %v4701 = vld [vmem:[%s1722 + $0x40] sm:$0xf]
  %v4702 = vld [vmem:[%s1722 + $0x44] sm:$0xf]
  %v4703 = vld [vmem:[%s1722 + $0x48] sm:$0xf]
  %v4704 = vld [vmem:[%s1722 + $0x4c] sm:$0xf]
  %v4705 = vld [vmem:[%s1722 + $0x50] sm:$0xf]
  %v4706 = vld [vmem:[%s1722 + $0x54] sm:$0xf]
  %v4707 = vld [vmem:[%s1722 + $0x58] sm:$0xf]
  %v4708 = vld [vmem:[%s1722 + $0x5c] sm:$0xf]
  %v4709 = vld [vmem:[%s1722 + $0x60] sm:$0xf]
  %v4710 = vld [vmem:[%s1722 + $0x64] sm:$0xf]
  %v4711 = vld [vmem:[%s1722 + $0x68] sm:$0xf]
  %v4712 = vld [vmem:[%s1722 + $0x6c] sm:$0xf]
  %v4713 = vld [vmem:[%s1722 + $0x70] sm:$0xf]
  %v4714 = vld [vmem:[%s1722 + $0x74] sm:$0xf]
  %v4715 = vld [vmem:[%s1722 + $0x78] sm:$0xf]
  %v4716 = vld [vmem:[%s1722 + $0x7c] sm:$0xf]
  %v4717 = vld [vmem:[%s1722 + $0x80] sm:$0xf]
  %v4718 = vld [vmem:[%s1722 + $0x84] sm:$0xf]
  %v4719 = vld [vmem:[%s1722 + $0x88] sm:$0xf]
  %v4720 = vld [vmem:[%s1722 + $0x8c] sm:$0xf]
  %v4721 = vld [vmem:[%s1722 + $0x90] sm:$0xf]
  %v4722 = vld [vmem:[%s1722 + $0x94] sm:$0xf]
  %v4723 = vld [vmem:[%s1722 + $0x98] sm:$0xf]
  %v4724 = vld [vmem:[%s1722 + $0x9c] sm:$0xf]
  %v4725 = vld [vmem:[%s1722 + $0xa0] sm:$0xf]
  %v4726 = vld [vmem:[%s1722 + $0xa4] sm:$0xf]
  %v4727 = vld [vmem:[%s1722 + $0xa8] sm:$0xf]
  %v4728 = vld [vmem:[%s1722 + $0xac] sm:$0xf]
  %v4729 = vld [vmem:[%s1722 + $0xb0] sm:$0xf]
  %v4730 = vld [vmem:[%s1722 + $0xb4] sm:$0xf]
  %v4731 = vld [vmem:[%s1722 + $0xb8] sm:$0xf]
  %v4732 = vld [vmem:[%s1722 + $0xbc] sm:$0xf]
  %v4733 = vrot.slane %v3160, 1
  %v4734 = vrot.slane %v3162, 2
  %v4735 = vor.u32 %v4733, %v4734
  %v4736 = vrot.slane %v3167, 1
  %v4737 = vrot.slane %v3169, 2
  %v4738 = vor.u32 %v4736, %v4737
  %v4739 = vrot.slane %v3174, 1
  %v4740 = vrot.slane %v3176, 2
  %v4741 = vor.u32 %v4739, %v4740
  %v4793 = vunpack.c.l.b16 %v4685
  %v4794 = vunpack.c.l.b16 %v4686
  %v4795 = vunpack.c.l.b16 %v4687
  %v4796 = vunpack.c.l.b16 %v4688
  %v4797 = vunpack.c.l.b16 %v4689
  %v4798 = vunpack.c.l.b16 %v4690
  %v4799 = vunpack.c.l.b16 %v4691
  %v4800 = vunpack.c.l.b16 %v4692
  %v4801 = vunpack.c.l.b16 %v4693
  %v4802 = vunpack.c.l.b16 %v4694
  %v4803 = vunpack.c.l.b16 %v4695
  %v4804 = vunpack.c.l.b16 %v4696
  %v4805 = vunpack.c.l.b16 %v4697
  %v4806 = vunpack.c.l.b16 %v4698
  %v4807 = vunpack.c.l.b16 %v4699
  %v4808 = vunpack.c.l.b16 %v4700
  %v4809 = vunpack.c.l.b16 %v4701
  %v4810 = vunpack.c.l.b16 %v4702
  %v4811 = vunpack.c.l.b16 %v4703
  %v4812 = vunpack.c.l.b16 %v4704
  %v4813 = vunpack.c.l.b16 %v4705
  %v4814 = vunpack.c.l.b16 %v4706
  %v4815 = vunpack.c.l.b16 %v4707
  %v4816 = vunpack.c.l.b16 %v4708
  %v4817 = vunpack.c.l.b16 %v4709
  %v4818 = vunpack.c.l.b16 %v4710
  %v4819 = vunpack.c.l.b16 %v4711
  %v4820 = vunpack.c.l.b16 %v4712
  %v4821 = vunpack.c.l.b16 %v4713
  %v4822 = vunpack.c.l.b16 %v4714
  %v4823 = vunpack.c.l.b16 %v4715
  %v4824 = vunpack.c.l.b16 %v4716
  %v4825 = vunpack.c.l.b16 %v4717
  %v4826 = vunpack.c.l.b16 %v4718
  %v4827 = vunpack.c.l.b16 %v4719
  %v4828 = vunpack.c.l.b16 %v4720
  %v4829 = vunpack.c.l.b16 %v4721
  %v4830 = vunpack.c.l.b16 %v4722
  %v4831 = vunpack.c.l.b16 %v4723
  %v4832 = vunpack.c.l.b16 %v4724
  %v4833 = vunpack.c.l.b16 %v4725
  %v4834 = vunpack.c.l.b16 %v4726
  %v4835 = vunpack.c.l.b16 %v4727
  %v4836 = vunpack.c.l.b16 %v4728
  %v4837 = vunpack.c.l.b16 %v4729
  %v4838 = vunpack.c.l.b16 %v4730
  %v4839 = vunpack.c.l.b16 %v4731
  %v4840 = vunpack.c.l.b16 %v4732
  %v4841 = vpack.c.b16 %v4794, %v4793
  %v4842 = vpack.c.b16 %v4796, %v4795
  %v4843 = vpack.c.b16 %v4798, %v4797
  %v4844 = vpack.c.b16 %v4800, %v4799
  %v4845 = vpack.c.b16 %v4802, %v4801
  %v4846 = vpack.c.b16 %v4804, %v4803
  %v4847 = vpack.c.b16 %v4806, %v4805
  %v4848 = vpack.c.b16 %v4808, %v4807
  %v4849 = vpack.c.b16 %v4810, %v4809
  %v4850 = vpack.c.b16 %v4812, %v4811
  %v4851 = vpack.c.b16 %v4814, %v4813
  %v4852 = vpack.c.b16 %v4816, %v4815
  %v4853 = vpack.c.b16 %v4818, %v4817
  %v4854 = vpack.c.b16 %v4820, %v4819
  %v4855 = vpack.c.b16 %v4822, %v4821
  %v4856 = vpack.c.b16 %v4824, %v4823
  %v4857 = vpack.c.b16 %v4826, %v4825
  %v4858 = vpack.c.b16 %v4828, %v4827
  %v4859 = vpack.c.b16 %v4830, %v4829
  %v4860 = vpack.c.b16 %v4832, %v4831
  %v4861 = vpack.c.b16 %v4834, %v4833
  %v4862 = vpack.c.b16 %v4836, %v4835
  %v4863 = vpack.c.b16 %v4838, %v4837
  %v4864 = vpack.c.b16 %v4840, %v4839
  %4889 = vmatprep.subr.bf16.mxu0 0
  %4890 = vmatpush1.bf16.msra.mxu0 %v4841
  %4891 = vmatprep.subr.bf16.mxu0 0
  %4892 = vmatpush1.bf16.msra.mxu0 %v4842
  %4893 = vmatprep.subr.bf16.mxu0 0
  %4894 = vmatpush1.bf16.msra.mxu0 %v4843
  %4895 = vmatprep.subr.bf16.mxu0 0
  %4896 = vmatpush1.bf16.msra.mxu0 %v4844
  %4897 = vmatprep.subr.bf16.mxu0 0
  %4898 = vmatpush1.bf16.msra.mxu0 %v4845
  %4899 = vmatprep.subr.bf16.mxu0 0
  %4900 = vmatpush1.bf16.msra.mxu0 %v4846
  %4901 = vmatprep.subr.bf16.mxu0 0
  %4902 = vmatpush1.bf16.msra.mxu0 %v4847
  %4903 = vmatprep.subr.bf16.mxu0 0
  %4904 = vmatpush1.bf16.msra.mxu0 %v4848
  %4905 = vmatprep.subr.bf16.mxu0 0
  %4906 = vmatpush1.bf16.msra.mxu0 %v4849
  %4907 = vmatprep.subr.bf16.mxu0 0
  %4908 = vmatpush1.bf16.msra.mxu0 %v4850
  %4909 = vmatprep.subr.bf16.mxu0 0
  %4910 = vmatpush1.bf16.msra.mxu0 %v4851
  %4911 = vmatprep.subr.bf16.mxu0 0
  %4912 = vmatpush1.bf16.msra.mxu0 %v4852
  %4913 = vmatprep.subr.bf16.mxu0 0
  %4914 = vmatpush1.bf16.msra.mxu0 %v4853
  %4915 = vmatprep.subr.bf16.mxu0 0
  %4916 = vmatpush1.bf16.msra.mxu0 %v4854
  %4917 = vmatprep.subr.bf16.mxu0 0
  %4918 = vmatpush1.bf16.msra.mxu0 %v4855
  %4919 = vmatprep.subr.bf16.mxu0 0
  %4920 = vmatpush1.bf16.msra.mxu0 %v4856
  %4921 = vmatprep.mubr.bf16.mxu0 %v4738
  %4922 = vmatmul.mubr.bf16.gmra.mrb[0].mxu0 %v4735
  %v4923 = vpop.f32.mrb[0].mxu0
  %v4924 = vadd.f32 0.0, %v4923
  %v4925 = vpop.f32.mrb[0].mxu0
  %v4926 = vpop.f32.mrb[0].mxu0
  %v4927 = vpop.f32.mrb[0].mxu0
  %4928 = vdwg.mxu0
  %4929 = vmatprep.subr.bf16.mxu0 0
  %4930 = vmatpush1.bf16.msra.mxu0 %v4857
  %4931 = vmatprep.subr.bf16.mxu0 0
  %4932 = vmatpush1.bf16.msra.mxu0 %v4858
  %4933 = vmatprep.subr.bf16.mxu0 0
  %4934 = vmatpush1.bf16.msra.mxu0 %v4859
  %4935 = vmatprep.subr.bf16.mxu0 0
  %4936 = vmatpush1.bf16.msra.mxu0 %v4860
  %4937 = vmatprep.subr.bf16.mxu0 0
  %4938 = vmatpush1.bf16.msra.mxu0 %v4861
  %4939 = vmatprep.subr.bf16.mxu0 0
  %4940 = vmatpush1.bf16.msra.mxu0 %v4862
  %4941 = vmatprep.subr.bf16.mxu0 0
  %4942 = vmatpush1.bf16.msra.mxu0 %v4863
  %4943 = vmatprep.subr.bf16.mxu0 0
  %4944 = vmatpush1.bf16.msra.mxu0 %v4864
  %4945 = vmatprep.subr.bf16.mxu0 0
  %4946 = vmatpush1.bf16.msra.mxu0 0
  %4947 = vmatprep.subr.bf16.mxu0 0
  %4948 = vmatpush1.bf16.msra.mxu0 0
  %4949 = vmatprep.subr.bf16.mxu0 0
  %4950 = vmatpush1.bf16.msra.mxu0 0
  %4951 = vmatprep.subr.bf16.mxu0 0
  %4952 = vmatpush1.bf16.msra.mxu0 0
  %4953 = vmatprep.subr.bf16.mxu0 0
  %4954 = vmatpush1.bf16.msra.mxu0 0
  %4955 = vmatprep.subr.bf16.mxu0 0
  %4956 = vmatpush1.bf16.msra.mxu0 0
  %4957 = vmatprep.subr.bf16.mxu0 0
  %4958 = vmatpush1.bf16.msra.mxu0 0
  %4959 = vmatprep.subr.bf16.mxu0 0
  %4960 = vmatpush1.bf16.msra.mxu0 0
  %4961 = vmatprep.mubr.bf16.mxu0 0
  %4962 = vmatmul.mubr.bf16.gmra.mrb[0].mxu0 %v4741
  %v4963 = vpop.f32.mrb[0].mxu0
  %v4964 = vadd.f32 %v4924, %v4963
  %v4965 = vpop.f32.mrb[0].mxu0
  %v4966 = vpop.f32.mrb[0].mxu0
  %v4967 = vpop.f32.mrb[0].mxu0
  %4968 = vdwg.mxu0
  %v4969 = vadd.f32 %v4411, %v4964
  %v4970 = vld [vmem:[%s2008] sm:$0xf]
  %v4971 = vld [vmem:[%s2008 + $0x4] sm:$0xf]
  %v4972 = vld [vmem:[%s2008 + $0x8] sm:$0xf]
  %v4973 = vld [vmem:[%s2008 + $0xc] sm:$0xf]
  %v4974 = vld [vmem:[%s2008 + $0x10] sm:$0xf]
  %v4975 = vld [vmem:[%s2008 + $0x14] sm:$0xf]
  %v4976 = vld [vmem:[%s2008 + $0x18] sm:$0xf]
  %v4977 = vld [vmem:[%s2008 + $0x1c] sm:$0xf]
  %v4978 = vld [vmem:[%s2008 + $0x20] sm:$0xf]
  %v4979 = vld [vmem:[%s2008 + $0x24] sm:$0xf]
  %v4980 = vld [vmem:[%s2008 + $0x28] sm:$0xf]
  %v4981 = vld [vmem:[%s2008 + $0x2c] sm:$0xf]
  %v4982 = vld [vmem:[%s2008 + $0x30] sm:$0xf]
  %v4983 = vld [vmem:[%s2008 + $0x34] sm:$0xf]
  %v4984 = vld [vmem:[%s2008 + $0x38] sm:$0xf]
  %v4985 = vld [vmem:[%s2008 + $0x3c] sm:$0xf]
  %v4986 = vld [vmem:[%s2008 + $0x40] sm:$0xf]
  %v4987 = vld [vmem:[%s2008 + $0x44] sm:$0xf]
  %v4988 = vld [vmem:[%s2008 + $0x48] sm:$0xf]
  %v4989 = vld [vmem:[%s2008 + $0x4c] sm:$0xf]
  %v4990 = vld [vmem:[%s2008 + $0x50] sm:$0xf]
  %v4991 = vld [vmem:[%s2008 + $0x54] sm:$0xf]
  %v4992 = vld [vmem:[%s2008 + $0x58] sm:$0xf]
  %v4993 = vld [vmem:[%s2008 + $0x5c] sm:$0xf]
  %v4994 = vld [vmem:[%s2008 + $0x60] sm:$0xf]
  %v4995 = vld [vmem:[%s2008 + $0x64] sm:$0xf]
  %v4996 = vld [vmem:[%s2008 + $0x68] sm:$0xf]
  %v4997 = vld [vmem:[%s2008 + $0x6c] sm:$0xf]
  %v4998 = vld [vmem:[%s2008 + $0x70] sm:$0xf]
  %v4999 = vld [vmem:[%s2008 + $0x74] sm:$0xf]
  %v5000 = vld [vmem:[%s2008 + $0x78] sm:$0xf]
  %v5001 = vld [vmem:[%s2008 + $0x7c] sm:$0xf]
  %v5002 = vld [vmem:[%s2008 + $0x80] sm:$0xf]
  %v5003 = vld [vmem:[%s2008 + $0x84] sm:$0xf]
  %v5004 = vld [vmem:[%s2008 + $0x88] sm:$0xf]
  %v5005 = vld [vmem:[%s2008 + $0x8c] sm:$0xf]
  %v5006 = vld [vmem:[%s2008 + $0x90] sm:$0xf]
  %v5007 = vld [vmem:[%s2008 + $0x94] sm:$0xf]
  %v5008 = vld [vmem:[%s2008 + $0x98] sm:$0xf]
  %v5009 = vld [vmem:[%s2008 + $0x9c] sm:$0xf]
  %v5010 = vld [vmem:[%s2008 + $0xa0] sm:$0xf]
  %v5011 = vld [vmem:[%s2008 + $0xa4] sm:$0xf]
  %v5012 = vld [vmem:[%s2008 + $0xa8] sm:$0xf]
  %v5013 = vld [vmem:[%s2008 + $0xac] sm:$0xf]
  %v5014 = vld [vmem:[%s2008 + $0xb0] sm:$0xf]
  %v5015 = vld [vmem:[%s2008 + $0xb4] sm:$0xf]
  %v5016 = vld [vmem:[%s2008 + $0xb8] sm:$0xf]
  %v5017 = vld [vmem:[%s2008 + $0xbc] sm:$0xf]
  %v5066 = vunpack.c.l.b16 %v4970
  %v5067 = vunpack.c.l.b16 %v4971
  %v5068 = vunpack.c.l.b16 %v4972
  %v5069 = vunpack.c.l.b16 %v4973
  %v5070 = vunpack.c.l.b16 %v4974
  %v5071 = vunpack.c.l.b16 %v4975
  %v5072 = vunpack.c.l.b16 %v4976
  %v5073 = vunpack.c.l.b16 %v4977
  %v5074 = vunpack.c.l.b16 %v4978
  %v5075 = vunpack.c.l.b16 %v4979
  %v5076 = vunpack.c.l.b16 %v4980
  %v5077 = vunpack.c.l.b16 %v4981
  %v5078 = vunpack.c.l.b16 %v4982
  %v5079 = vunpack.c.l.b16 %v4983
  %v5080 = vunpack.c.l.b16 %v4984
  %v5081 = vunpack.c.l.b16 %v4985
  %v5082 = vunpack.c.l.b16 %v4986
  %v5083 = vunpack.c.l.b16 %v4987
  %v5084 = vunpack.c.l.b16 %v4988
  %v5085 = vunpack.c.l.b16 %v4989
  %v5086 = vunpack.c.l.b16 %v4990
  %v5087 = vunpack.c.l.b16 %v4991
  %v5088 = vunpack.c.l.b16 %v4992
  %v5089 = vunpack.c.l.b16 %v4993
  %v5090 = vunpack.c.l.b16 %v4994
  %v5091 = vunpack.c.l.b16 %v4995
  %v5092 = vunpack.c.l.b16 %v4996
  %v5093 = vunpack.c.l.b16 %v4997
  %v5094 = vunpack.c.l.b16 %v4998
  %v5095 = vunpack.c.l.b16 %v4999
  %v5096 = vunpack.c.l.b16 %v5000
  %v5097 = vunpack.c.l.b16 %v5001
  %v5098 = vunpack.c.l.b16 %v5002
  %v5099 = vunpack.c.l.b16 %v5003
  %v5100 = vunpack.c.l.b16 %v5004
  %v5101 = vunpack.c.l.b16 %v5005
  %v5102 = vunpack.c.l.b16 %v5006
  %v5103 = vunpack.c.l.b16 %v5007
  %v5104 = vunpack.c.l.b16 %v5008
  %v5105 = vunpack.c.l.b16 %v5009
  %v5106 = vunpack.c.l.b16 %v5010
  %v5107 = vunpack.c.l.b16 %v5011
  %v5108 = vunpack.c.l.b16 %v5012
  %v5109 = vunpack.c.l.b16 %v5013
  %v5110 = vunpack.c.l.b16 %v5014
  %v5111 = vunpack.c.l.b16 %v5015
  %v5112 = vunpack.c.l.b16 %v5016
  %v5113 = vunpack.c.l.b16 %v5017
  %v5114 = vpack.c.b16 %v5067, %v5066
  %v5115 = vpack.c.b16 %v5069, %v5068
  %v5116 = vpack.c.b16 %v5071, %v5070
  %v5117 = vpack.c.b16 %v5073, %v5072
  %v5118 = vpack.c.b16 %v5075, %v5074
  %v5119 = vpack.c.b16 %v5077, %v5076
  %v5120 = vpack.c.b16 %v5079, %v5078
  %v5121 = vpack.c.b16 %v5081, %v5080
  %v5122 = vpack.c.b16 %v5083, %v5082
  %v5123 = vpack.c.b16 %v5085, %v5084
  %v5124 = vpack.c.b16 %v5087, %v5086
  %v5125 = vpack.c.b16 %v5089, %v5088
  %v5126 = vpack.c.b16 %v5091, %v5090
  %v5127 = vpack.c.b16 %v5093, %v5092
  %v5128 = vpack.c.b16 %v5095, %v5094
  %v5129 = vpack.c.b16 %v5097, %v5096
  %v5130 = vpack.c.b16 %v5099, %v5098
  %v5131 = vpack.c.b16 %v5101, %v5100
  %v5132 = vpack.c.b16 %v5103, %v5102
  %v5133 = vpack.c.b16 %v5105, %v5104
  %v5134 = vpack.c.b16 %v5107, %v5106
  %v5135 = vpack.c.b16 %v5109, %v5108
  %v5136 = vpack.c.b16 %v5111, %v5110
  %v5137 = vpack.c.b16 %v5113, %v5112
  %5162 = vmatprep.subr.bf16.mxu0 0
  %5163 = vmatpush1.bf16.msra.mxu0 %v5114
  %5164 = vmatprep.subr.bf16.mxu0 0
  %5165 = vmatpush1.bf16.msra.mxu0 %v5115
  %5166 = vmatprep.subr.bf16.mxu0 0
  %5167 = vmatpush1.bf16.msra.mxu0 %v5116
  %5168 = vmatprep.subr.bf16.mxu0 0
  %5169 = vmatpush1.bf16.msra.mxu0 %v5117
  %5170 = vmatprep.subr.bf16.mxu0 0
  %5171 = vmatpush1.bf16.msra.mxu0 %v5118
  %5172 = vmatprep.subr.bf16.mxu0 0
  %5173 = vmatpush1.bf16.msra.mxu0 %v5119
  %5174 = vmatprep.subr.bf16.mxu0 0
  %5175 = vmatpush1.bf16.msra.mxu0 %v5120
  %5176 = vmatprep.subr.bf16.mxu0 0
  %5177 = vmatpush1.bf16.msra.mxu0 %v5121
  %5178 = vmatprep.subr.bf16.mxu0 0
  %5179 = vmatpush1.bf16.msra.mxu0 %v5122
  %5180 = vmatprep.subr.bf16.mxu0 0
  %5181 = vmatpush1.bf16.msra.mxu0 %v5123
  %5182 = vmatprep.subr.bf16.mxu0 0
  %5183 = vmatpush1.bf16.msra.mxu0 %v5124
  %5184 = vmatprep.subr.bf16.mxu0 0
  %5185 = vmatpush1.bf16.msra.mxu0 %v5125
  %5186 = vmatprep.subr.bf16.mxu0 0
  %5187 = vmatpush1.bf16.msra.mxu0 %v5126
  %5188 = vmatprep.subr.bf16.mxu0 0
  %5189 = vmatpush1.bf16.msra.mxu0 %v5127
  %5190 = vmatprep.subr.bf16.mxu0 0
  %5191 = vmatpush1.bf16.msra.mxu0 %v5128
  %5192 = vmatprep.subr.bf16.mxu0 0
  %5193 = vmatpush1.bf16.msra.mxu0 %v5129
  %5194 = vmatprep.mubr.bf16.mxu0 %v4738
  %5195 = vmatmul.mubr.bf16.gmra.mrb[0].mxu0 %v4735
  %v5196 = vpop.f32.mrb[0].mxu0
  %v5197 = vadd.f32 0.0, %v5196
  %v5198 = vpop.f32.mrb[0].mxu0
  %v5199 = vpop.f32.mrb[0].mxu0
  %v5200 = vpop.f32.mrb[0].mxu0
  %5201 = vdwg.mxu0
  %5202 = vmatprep.subr.bf16.mxu0 0
  %5203 = vmatpush1.bf16.msra.mxu0 %v5130
  %5204 = vmatprep.subr.bf16.mxu0 0
  %5205 = vmatpush1.bf16.msra.mxu0 %v5131
  %5206 = vmatprep.subr.bf16.mxu0 0
  %5207 = vmatpush1.bf16.msra.mxu0 %v5132
  %5208 = vmatprep.subr.bf16.mxu0 0
  %5209 = vmatpush1.bf16.msra.mxu0 %v5133
  %5210 = vmatprep.subr.bf16.mxu0 0
  %5211 = vmatpush1.bf16.msra.mxu0 %v5134
  %5212 = vmatprep.subr.bf16.mxu0 0
  %5213 = vmatpush1.bf16.msra.mxu0 %v5135
  %5214 = vmatprep.subr.bf16.mxu0 0
  %5215 = vmatpush1.bf16.msra.mxu0 %v5136
  %5216 = vmatprep.subr.bf16.mxu0 0
  %5217 = vmatpush1.bf16.msra.mxu0 %v5137
  %5218 = vmatprep.subr.bf16.mxu0 0
  %5219 = vmatpush1.bf16.msra.mxu0 0
  %5220 = vmatprep.subr.bf16.mxu0 0
  %5221 = vmatpush1.bf16.msra.mxu0 0
  %5222 = vmatprep.subr.bf16.mxu0 0
  %5223 = vmatpush1.bf16.msra.mxu0 0
  %5224 = vmatprep.subr.bf16.mxu0 0
  %5225 = vmatpush1.bf16.msra.mxu0 0
  %5226 = vmatprep.subr.bf16.mxu0 0
  %5227 = vmatpush1.bf16.msra.mxu0 0
  %5228 = vmatprep.subr.bf16.mxu0 0
  %5229 = vmatpush1.bf16.msra.mxu0 0
  %5230 = vmatprep.subr.bf16.mxu0 0
  %5231 = vmatpush1.bf16.msra.mxu0 0
  %5232 = vmatprep.subr.bf16.mxu0 0
  %5233 = vmatpush1.bf16.msra.mxu0 0
  %5234 = vmatprep.mubr.bf16.mxu0 0
  %5235 = vmatmul.mubr.bf16.gmra.mrb[0].mxu0 %v4741
  %v5236 = vpop.f32.mrb[0].mxu0
  %v5237 = vadd.f32 %v5197, %v5236
  %v5238 = vpop.f32.mrb[0].mxu0
  %v5239 = vpop.f32.mrb[0].mxu0
  %v5240 = vpop.f32.mrb[0].mxu0
  %5241 = vdwg.mxu0
  %v5242 = vadd.f32 %v4684, %v5237
  %v5243 = vld [vmem:[%s2282] sm:$0xf]
  %v5244 = vld [vmem:[%s2282 + $0x4] sm:$0xf]
  %v5245 = vld [vmem:[%s2282 + $0x8] sm:$0xf]
  %v5246 = vld [vmem:[%s2282 + $0xc] sm:$0xf]
  %v5247 = vld [vmem:[%s2282 + $0x10] sm:$0xf]
  %v5248 = vld [vmem:[%s2282 + $0x14] sm:$0xf]
  %v5249 = vld [vmem:[%s2282 + $0x18] sm:$0xf]
  %v5250 = vld [vmem:[%s2282 + $0x1c] sm:$0xf]
  %v5251 = vld [vmem:[%s2282 + $0x20] sm:$0xf]
  %v5252 = vld [vmem:[%s2282 + $0x24] sm:$0xf]
  %v5253 = vld [vmem:[%s2282 + $0x28] sm:$0xf]
  %v5254 = vld [vmem:[%s2282 + $0x2c] sm:$0xf]
  %v5255 = vld [vmem:[%s2282 + $0x30] sm:$0xf]
  %v5256 = vld [vmem:[%s2282 + $0x34] sm:$0xf]
  %v5257 = vld [vmem:[%s2282 + $0x38] sm:$0xf]
  %v5258 = vld [vmem:[%s2282 + $0x3c] sm:$0xf]
  %v5259 = vld [vmem:[%s2282 + $0x40] sm:$0xf]
  %v5260 = vld [vmem:[%s2282 + $0x44] sm:$0xf]
  %v5261 = vld [vmem:[%s2282 + $0x48] sm:$0xf]
  %v5262 = vld [vmem:[%s2282 + $0x4c] sm:$0xf]
  %v5263 = vld [vmem:[%s2282 + $0x50] sm:$0xf]
  %v5264 = vld [vmem:[%s2282 + $0x54] sm:$0xf]
  %v5265 = vld [vmem:[%s2282 + $0x58] sm:$0xf]
  %v5266 = vld [vmem:[%s2282 + $0x5c] sm:$0xf]
  %v5267 = vld [vmem:[%s2282 + $0x60] sm:$0xf]
  %v5268 = vld [vmem:[%s2282 + $0x64] sm:$0xf]
  %v5269 = vld [vmem:[%s2282 + $0x68] sm:$0xf]
  %v5270 = vld [vmem:[%s2282 + $0x6c] sm:$0xf]
  %v5271 = vld [vmem:[%s2282 + $0x70] sm:$0xf]
  %v5272 = vld [vmem:[%s2282 + $0x74] sm:$0xf]
  %v5273 = vld [vmem:[%s2282 + $0x78] sm:$0xf]
  %v5274 = vld [vmem:[%s2282 + $0x7c] sm:$0xf]
  %v5275 = vld [vmem:[%s2282 + $0x80] sm:$0xf]
  %v5276 = vld [vmem:[%s2282 + $0x84] sm:$0xf]
  %v5277 = vld [vmem:[%s2282 + $0x88] sm:$0xf]
  %v5278 = vld [vmem:[%s2282 + $0x8c] sm:$0xf]
  %v5279 = vld [vmem:[%s2282 + $0x90] sm:$0xf]
  %v5280 = vld [vmem:[%s2282 + $0x94] sm:$0xf]
  %v5281 = vld [vmem:[%s2282 + $0x98] sm:$0xf]
  %v5282 = vld [vmem:[%s2282 + $0x9c] sm:$0xf]
  %v5283 = vld [vmem:[%s2282 + $0xa0] sm:$0xf]
  %v5284 = vld [vmem:[%s2282 + $0xa4] sm:$0xf]
  %v5285 = vld [vmem:[%s2282 + $0xa8] sm:$0xf]
  %v5286 = vld [vmem:[%s2282 + $0xac] sm:$0xf]
  %v5287 = vld [vmem:[%s2282 + $0xb0] sm:$0xf]
  %v5288 = vld [vmem:[%s2282 + $0xb4] sm:$0xf]
  %v5289 = vld [vmem:[%s2282 + $0xb8] sm:$0xf]
  %v5290 = vld [vmem:[%s2282 + $0xbc] sm:$0xf]
  %v5291 = vrot.slane %v3156, 2
  %v5292 = vrot.slane %v3157, 2
  %v5293 = vrot.slane %v3158, 2
  %v5345 = vunpack.c.l.b16 %v5243
  %v5346 = vunpack.c.l.b16 %v5244
  %v5347 = vunpack.c.l.b16 %v5245
  %v5348 = vunpack.c.l.b16 %v5246
  %v5349 = vunpack.c.l.b16 %v5247
  %v5350 = vunpack.c.l.b16 %v5248
  %v5351 = vunpack.c.l.b16 %v5249
  %v5352 = vunpack.c.l.b16 %v5250
  %v5353 = vunpack.c.l.b16 %v5251
  %v5354 = vunpack.c.l.b16 %v5252
  %v5355 = vunpack.c.l.b16 %v5253
  %v5356 = vunpack.c.l.b16 %v5254
  %v5357 = vunpack.c.l.b16 %v5255
  %v5358 = vunpack.c.l.b16 %v5256
  %v5359 = vunpack.c.l.b16 %v5257
  %v5360 = vunpack.c.l.b16 %v5258
  %v5361 = vunpack.c.l.b16 %v5259
  %v5362 = vunpack.c.l.b16 %v5260
  %v5363 = vunpack.c.l.b16 %v5261
  %v5364 = vunpack.c.l.b16 %v5262
  %v5365 = vunpack.c.l.b16 %v5263
  %v5366 = vunpack.c.l.b16 %v5264
  %v5367 = vunpack.c.l.b16 %v5265
  %v5368 = vunpack.c.l.b16 %v5266
  %v5369 = vunpack.c.l.b16 %v5267
  %v5370 = vunpack.c.l.b16 %v5268
  %v5371 = vunpack.c.l.b16 %v5269
  %v5372 = vunpack.c.l.b16 %v5270
  %v5373 = vunpack.c.l.b16 %v5271
  %v5374 = vunpack.c.l.b16 %v5272
  %v5375 = vunpack.c.l.b16 %v5273
  %v5376 = vunpack.c.l.b16 %v5274
  %v5377 = vunpack.c.l.b16 %v5275
  %v5378 = vunpack.c.l.b16 %v5276
  %v5379 = vunpack.c.l.b16 %v5277
  %v5380 = vunpack.c.l.b16 %v5278
  %v5381 = vunpack.c.l.b16 %v5279
  %v5382 = vunpack.c.l.b16 %v5280
  %v5383 = vunpack.c.l.b16 %v5281
  %v5384 = vunpack.c.l.b16 %v5282
  %v5385 = vunpack.c.l.b16 %v5283
  %v5386 = vunpack.c.l.b16 %v5284
  %v5387 = vunpack.c.l.b16 %v5285
  %v5388 = vunpack.c.l.b16 %v5286
  %v5389 = vunpack.c.l.b16 %v5287
  %v5390 = vunpack.c.l.b16 %v5288
  %v5391 = vunpack.c.l.b16 %v5289
  %v5392 = vunpack.c.l.b16 %v5290
  %v5393 = vpack.c.b16 %v5346, %v5345
  %v5394 = vpack.c.b16 %v5348, %v5347
  %v5395 = vpack.c.b16 %v5350, %v5349
  %v5396 = vpack.c.b16 %v5352, %v5351
  %v5397 = vpack.c.b16 %v5354, %v5353
  %v5398 = vpack.c.b16 %v5356, %v5355
  %v5399 = vpack.c.b16 %v5358, %v5357
  %v5400 = vpack.c.b16 %v5360, %v5359
  %v5401 = vpack.c.b16 %v5362, %v5361
  %v5402 = vpack.c.b16 %v5364, %v5363
  %v5403 = vpack.c.b16 %v5366, %v5365
  %v5404 = vpack.c.b16 %v5368, %v5367
  %v5405 = vpack.c.b16 %v5370, %v5369
  %v5406 = vpack.c.b16 %v5372, %v5371
  %v5407 = vpack.c.b16 %v5374, %v5373
  %v5408 = vpack.c.b16 %v5376, %v5375
  %v5409 = vpack.c.b16 %v5378, %v5377
  %v5410 = vpack.c.b16 %v5380, %v5379
  %v5411 = vpack.c.b16 %v5382, %v5381
  %v5412 = vpack.c.b16 %v5384, %v5383
  %v5413 = vpack.c.b16 %v5386, %v5385
  %v5414 = vpack.c.b16 %v5388, %v5387
  %v5415 = vpack.c.b16 %v5390, %v5389
  %v5416 = vpack.c.b16 %v5392, %v5391
  %5441 = vmatprep.subr.bf16.mxu0 0
  %5442 = vmatpush1.bf16.msra.mxu0 %v5393
  %5443 = vmatprep.subr.bf16.mxu0 0
  %5444 = vmatpush1.bf16.msra.mxu0 %v5394
  %5445 = vmatprep.subr.bf16.mxu0 0
  %5446 = vmatpush1.bf16.msra.mxu0 %v5395
  %5447 = vmatprep.subr.bf16.mxu0 0
  %5448 = vmatpush1.bf16.msra.mxu0 %v5396
  %5449 = vmatprep.subr.bf16.mxu0 0
  %5450 = vmatpush1.bf16.msra.mxu0 %v5397
  %5451 = vmatprep.subr.bf16.mxu0 0
  %5452 = vmatpush1.bf16.msra.mxu0 %v5398
  %5453 = vmatprep.subr.bf16.mxu0 0
  %5454 = vmatpush1.bf16.msra.mxu0 %v5399
  %5455 = vmatprep.subr.bf16.mxu0 0
  %5456 = vmatpush1.bf16.msra.mxu0 %v5400
  %5457 = vmatprep.subr.bf16.mxu0 0
  %5458 = vmatpush1.bf16.msra.mxu0 %v5401
  %5459 = vmatprep.subr.bf16.mxu0 0
  %5460 = vmatpush1.bf16.msra.mxu0 %v5402
  %5461 = vmatprep.subr.bf16.mxu0 0
  %5462 = vmatpush1.bf16.msra.mxu0 %v5403
  %5463 = vmatprep.subr.bf16.mxu0 0
  %5464 = vmatpush1.bf16.msra.mxu0 %v5404
  %5465 = vmatprep.subr.bf16.mxu0 0
  %5466 = vmatpush1.bf16.msra.mxu0 %v5405
  %5467 = vmatprep.subr.bf16.mxu0 0
  %5468 = vmatpush1.bf16.msra.mxu0 %v5406
  %5469 = vmatprep.subr.bf16.mxu0 0
  %5470 = vmatpush1.bf16.msra.mxu0 %v5407
  %5471 = vmatprep.subr.bf16.mxu0 0
  %5472 = vmatpush1.bf16.msra.mxu0 %v5408
  %5473 = vmatprep.mubr.bf16.mxu0 %v5292
  %5474 = vmatmul.mubr.bf16.gmra.mrb[0].mxu0 %v5291
  %v5475 = vpop.f32.mrb[0].mxu0
  %v5476 = vadd.f32 0.0, %v5475
  %v5477 = vpop.f32.mrb[0].mxu0
  %v5478 = vpop.f32.mrb[0].mxu0
  %v5479 = vpop.f32.mrb[0].mxu0
  %5480 = vdwg.mxu0
  %5481 = vmatprep.subr.bf16.mxu0 0
  %5482 = vmatpush1.bf16.msra.mxu0 %v5409
  %5483 = vmatprep.subr.bf16.mxu0 0
  %5484 = vmatpush1.bf16.msra.mxu0 %v5410
  %5485 = vmatprep.subr.bf16.mxu0 0
  %5486 = vmatpush1.bf16.msra.mxu0 %v5411
  %5487 = vmatprep.subr.bf16.mxu0 0
  %5488 = vmatpush1.bf16.msra.mxu0 %v5412
  %5489 = vmatprep.subr.bf16.mxu0 0
  %5490 = vmatpush1.bf16.msra.mxu0 %v5413
  %5491 = vmatprep.subr.bf16.mxu0 0
  %5492 = vmatpush1.bf16.msra.mxu0 %v5414
  %5493 = vmatprep.subr.bf16.mxu0 0
  %5494 = vmatpush1.bf16.msra.mxu0 %v5415
  %5495 = vmatprep.subr.bf16.mxu0 0
  %5496 = vmatpush1.bf16.msra.mxu0 %v5416
  %5497 = vmatprep.subr.bf16.mxu0 0
  %5498 = vmatpush1.bf16.msra.mxu0 0
  %5499 = vmatprep.subr.bf16.mxu0 0
  %5500 = vmatpush1.bf16.msra.mxu0 0
  %5501 = vmatprep.subr.bf16.mxu0 0
  %5502 = vmatpush1.bf16.msra.mxu0 0
  %5503 = vmatprep.subr.bf16.mxu0 0
  %5504 = vmatpush1.bf16.msra.mxu0 0
  %5505 = vmatprep.subr.bf16.mxu0 0
  %5506 = vmatpush1.bf16.msra.mxu0 0
  %5507 = vmatprep.subr.bf16.mxu0 0
  %5508 = vmatpush1.bf16.msra.mxu0 0
  %5509 = vmatprep.subr.bf16.mxu0 0
  %5510 = vmatpush1.bf16.msra.mxu0 0
  %5511 = vmatprep.subr.bf16.mxu0 0
  %5512 = vmatpush1.bf16.msra.mxu0 0
  %5513 = vmatprep.mubr.bf16.mxu0 0
  %5514 = vmatmul.mubr.bf16.gmra.mrb[0].mxu0 %v5293
  %v5515 = vpop.f32.mrb[0].mxu0
  %v5516 = vadd.f32 %v5476, %v5515
  %v5517 = vpop.f32.mrb[0].mxu0
  %v5518 = vpop.f32.mrb[0].mxu0
  %v5519 = vpop.f32.mrb[0].mxu0
  %5520 = vdwg.mxu0
  %v5521 = vadd.f32 %v4969, %v5516
  %v5522 = vld [vmem:[%s2562] sm:$0xf]
  %v5523 = vld [vmem:[%s2562 + $0x4] sm:$0xf]
  %v5524 = vld [vmem:[%s2562 + $0x8] sm:$0xf]
  %v5525 = vld [vmem:[%s2562 + $0xc] sm:$0xf]
  %v5526 = vld [vmem:[%s2562 + $0x10] sm:$0xf]
  %v5527 = vld [vmem:[%s2562 + $0x14] sm:$0xf]
  %v5528 = vld [vmem:[%s2562 + $0x18] sm:$0xf]
  %v5529 = vld [vmem:[%s2562 + $0x1c] sm:$0xf]
  %v5530 = vld [vmem:[%s2562 + $0x20] sm:$0xf]
  %v5531 = vld [vmem:[%s2562 + $0x24] sm:$0xf]
  %v5532 = vld [vmem:[%s2562 + $0x28] sm:$0xf]
  %v5533 = vld [vmem:[%s2562 + $0x2c] sm:$0xf]
  %v5534 = vld [vmem:[%s2562 + $0x30] sm:$0xf]
  %v5535 = vld [vmem:[%s2562 + $0x34] sm:$0xf]
  %v5536 = vld [vmem:[%s2562 + $0x38] sm:$0xf]
  %v5537 = vld [vmem:[%s2562 + $0x3c] sm:$0xf]
  %v5538 = vld [vmem:[%s2562 + $0x40] sm:$0xf]
  %v5539 = vld [vmem:[%s2562 + $0x44] sm:$0xf]
  %v5540 = vld [vmem:[%s2562 + $0x48] sm:$0xf]
  %v5541 = vld [vmem:[%s2562 + $0x4c] sm:$0xf]
  %v5542 = vld [vmem:[%s2562 + $0x50] sm:$0xf]
  %v5543 = vld [vmem:[%s2562 + $0x54] sm:$0xf]
  %v5544 = vld [vmem:[%s2562 + $0x58] sm:$0xf]
  %v5545 = vld [vmem:[%s2562 + $0x5c] sm:$0xf]
  %v5546 = vld [vmem:[%s2562 + $0x60] sm:$0xf]
  %v5547 = vld [vmem:[%s2562 + $0x64] sm:$0xf]
  %v5548 = vld [vmem:[%s2562 + $0x68] sm:$0xf]
  %v5549 = vld [vmem:[%s2562 + $0x6c] sm:$0xf]
  %v5550 = vld [vmem:[%s2562 + $0x70] sm:$0xf]
  %v5551 = vld [vmem:[%s2562 + $0x74] sm:$0xf]
  %v5552 = vld [vmem:[%s2562 + $0x78] sm:$0xf]
  %v5553 = vld [vmem:[%s2562 + $0x7c] sm:$0xf]
  %v5554 = vld [vmem:[%s2562 + $0x80] sm:$0xf]
  %v5555 = vld [vmem:[%s2562 + $0x84] sm:$0xf]
  %v5556 = vld [vmem:[%s2562 + $0x88] sm:$0xf]
  %v5557 = vld [vmem:[%s2562 + $0x8c] sm:$0xf]
  %v5558 = vld [vmem:[%s2562 + $0x90] sm:$0xf]
  %v5559 = vld [vmem:[%s2562 + $0x94] sm:$0xf]
  %v5560 = vld [vmem:[%s2562 + $0x98] sm:$0xf]
  %v5561 = vld [vmem:[%s2562 + $0x9c] sm:$0xf]
  %v5562 = vld [vmem:[%s2562 + $0xa0] sm:$0xf]
  %v5563 = vld [vmem:[%s2562 + $0xa4] sm:$0xf]
  %v5564 = vld [vmem:[%s2562 + $0xa8] sm:$0xf]
  %v5565 = vld [vmem:[%s2562 + $0xac] sm:$0xf]
  %v5566 = vld [vmem:[%s2562 + $0xb0] sm:$0xf]
  %v5567 = vld [vmem:[%s2562 + $0xb4] sm:$0xf]
  %v5568 = vld [vmem:[%s2562 + $0xb8] sm:$0xf]
  %v5569 = vld [vmem:[%s2562 + $0xbc] sm:$0xf]
  %v5618 = vunpack.c.l.b16 %v5522
  %v5619 = vunpack.c.l.b16 %v5523
  %v5620 = vunpack.c.l.b16 %v5524
  %v5621 = vunpack.c.l.b16 %v5525
  %v5622 = vunpack.c.l.b16 %v5526
  %v5623 = vunpack.c.l.b16 %v5527
  %v5624 = vunpack.c.l.b16 %v5528
  %v5625 = vunpack.c.l.b16 %v5529
  %v5626 = vunpack.c.l.b16 %v5530
  %v5627 = vunpack.c.l.b16 %v5531
  %v5628 = vunpack.c.l.b16 %v5532
  %v5629 = vunpack.c.l.b16 %v5533
  %v5630 = vunpack.c.l.b16 %v5534
  %v5631 = vunpack.c.l.b16 %v5535
  %v5632 = vunpack.c.l.b16 %v5536
  %v5633 = vunpack.c.l.b16 %v5537
  %v5634 = vunpack.c.l.b16 %v5538
  %v5635 = vunpack.c.l.b16 %v5539
  %v5636 = vunpack.c.l.b16 %v5540
  %v5637 = vunpack.c.l.b16 %v5541
  %v5638 = vunpack.c.l.b16 %v5542
  %v5639 = vunpack.c.l.b16 %v5543
  %v5640 = vunpack.c.l.b16 %v5544
  %v5641 = vunpack.c.l.b16 %v5545
  %v5642 = vunpack.c.l.b16 %v5546
  %v5643 = vunpack.c.l.b16 %v5547
  %v5644 = vunpack.c.l.b16 %v5548
  %v5645 = vunpack.c.l.b16 %v5549
  %v5646 = vunpack.c.l.b16 %v5550
  %v5647 = vunpack.c.l.b16 %v5551
  %v5648 = vunpack.c.l.b16 %v5552
  %v5649 = vunpack.c.l.b16 %v5553
  %v5650 = vunpack.c.l.b16 %v5554
  %v5651 = vunpack.c.l.b16 %v5555
  %v5652 = vunpack.c.l.b16 %v5556
  %v5653 = vunpack.c.l.b16 %v5557
  %v5654 = vunpack.c.l.b16 %v5558
  %v5655 = vunpack.c.l.b16 %v5559
  %v5656 = vunpack.c.l.b16 %v5560
  %v5657 = vunpack.c.l.b16 %v5561
  %v5658 = vunpack.c.l.b16 %v5562
  %v5659 = vunpack.c.l.b16 %v5563
  %v5660 = vunpack.c.l.b16 %v5564
  %v5661 = vunpack.c.l.b16 %v5565
  %v5662 = vunpack.c.l.b16 %v5566
  %v5663 = vunpack.c.l.b16 %v5567
  %v5664 = vunpack.c.l.b16 %v5568
  %v5665 = vunpack.c.l.b16 %v5569
  %v5666 = vpack.c.b16 %v5619, %v5618
  %v5667 = vpack.c.b16 %v5621, %v5620
  %v5668 = vpack.c.b16 %v5623, %v5622
  %v5669 = vpack.c.b16 %v5625, %v5624
  %v5670 = vpack.c.b16 %v5627, %v5626
  %v5671 = vpack.c.b16 %v5629, %v5628
  %v5672 = vpack.c.b16 %v5631, %v5630
  %v5673 = vpack.c.b16 %v5633, %v5632
  %v5674 = vpack.c.b16 %v5635, %v5634
  %v5675 = vpack.c.b16 %v5637, %v5636
  %v5676 = vpack.c.b16 %v5639, %v5638
  %v5677 = vpack.c.b16 %v5641, %v5640
  %v5678 = vpack.c.b16 %v5643, %v5642
  %v5679 = vpack.c.b16 %v5645, %v5644
  %v5680 = vpack.c.b16 %v5647, %v5646
  %v5681 = vpack.c.b16 %v5649, %v5648
  %v5682 = vpack.c.b16 %v5651, %v5650
  %v5683 = vpack.c.b16 %v5653, %v5652
  %v5684 = vpack.c.b16 %v5655, %v5654
  %v5685 = vpack.c.b16 %v5657, %v5656
  %v5686 = vpack.c.b16 %v5659, %v5658
  %v5687 = vpack.c.b16 %v5661, %v5660
  %v5688 = vpack.c.b16 %v5663, %v5662
  %v5689 = vpack.c.b16 %v5665, %v5664
  %5714 = vmatprep.subr.bf16.mxu0 0
  %5715 = vmatpush1.bf16.msra.mxu0 %v5666
  %5716 = vmatprep.subr.bf16.mxu0 0
  %5717 = vmatpush1.bf16.msra.mxu0 %v5667
  %5718 = vmatprep.subr.bf16.mxu0 0
  %5719 = vmatpush1.bf16.msra.mxu0 %v5668
  %5720 = vmatprep.subr.bf16.mxu0 0
  %5721 = vmatpush1.bf16.msra.mxu0 %v5669
  %5722 = vmatprep.subr.bf16.mxu0 0
  %5723 = vmatpush1.bf16.msra.mxu0 %v5670
  %5724 = vmatprep.subr.bf16.mxu0 0
  %5725 = vmatpush1.bf16.msra.mxu0 %v5671
  %5726 = vmatprep.subr.bf16.mxu0 0
  %5727 = vmatpush1.bf16.msra.mxu0 %v5672
  %5728 = vmatprep.subr.bf16.mxu0 0
  %5729 = vmatpush1.bf16.msra.mxu0 %v5673
  %5730 = vmatprep.subr.bf16.mxu0 0
  %5731 = vmatpush1.bf16.msra.mxu0 %v5674
  %5732 = vmatprep.subr.bf16.mxu0 0
  %5733 = vmatpush1.bf16.msra.mxu0 %v5675
  %5734 = vmatprep.subr.bf16.mxu0 0
  %5735 = vmatpush1.bf16.msra.mxu0 %v5676
  %5736 = vmatprep.subr.bf16.mxu0 0
  %5737 = vmatpush1.bf16.msra.mxu0 %v5677
  %5738 = vmatprep.subr.bf16.mxu0 0
  %5739 = vmatpush1.bf16.msra.mxu0 %v5678
  %5740 = vmatprep.subr.bf16.mxu0 0
  %5741 = vmatpush1.bf16.msra.mxu0 %v5679
  %5742 = vmatprep.subr.bf16.mxu0 0
  %5743 = vmatpush1.bf16.msra.mxu0 %v5680
  %5744 = vmatprep.subr.bf16.mxu0 0
  %5745 = vmatpush1.bf16.msra.mxu0 %v5681
  %5746 = vmatprep.mubr.bf16.mxu0 %v5292
  %5747 = vmatmul.mubr.bf16.gmra.mrb[0].mxu0 %v5291
  %v5748 = vpop.f32.mrb[0].mxu0
  %v5749 = vadd.f32 0.0, %v5748
  %v5750 = vpop.f32.mrb[0].mxu0
  %v5751 = vpop.f32.mrb[0].mxu0
  %v5752 = vpop.f32.mrb[0].mxu0
  %5753 = vdwg.mxu0
  %5754 = vmatprep.subr.bf16.mxu0 0
  %5755 = vmatpush1.bf16.msra.mxu0 %v5682
  %5756 = vmatprep.subr.bf16.mxu0 0
  %5757 = vmatpush1.bf16.msra.mxu0 %v5683
  %5758 = vmatprep.subr.bf16.mxu0 0
  %5759 = vmatpush1.bf16.msra.mxu0 %v5684
  %5760 = vmatprep.subr.bf16.mxu0 0
  %5761 = vmatpush1.bf16.msra.mxu0 %v5685
  %5762 = vmatprep.subr.bf16.mxu0 0
  %5763 = vmatpush1.bf16.msra.mxu0 %v5686
  %5764 = vmatprep.subr.bf16.mxu0 0
  %5765 = vmatpush1.bf16.msra.mxu0 %v5687
  %5766 = vmatprep.subr.bf16.mxu0 0
  %5767 = vmatpush1.bf16.msra.mxu0 %v5688
  %5768 = vmatprep.subr.bf16.mxu0 0
  %5769 = vmatpush1.bf16.msra.mxu0 %v5689
  %5770 = vmatprep.subr.bf16.mxu0 0
  %5771 = vmatpush1.bf16.msra.mxu0 0
  %5772 = vmatprep.subr.bf16.mxu0 0
  %5773 = vmatpush1.bf16.msra.mxu0 0
  %5774 = vmatprep.subr.bf16.mxu0 0
  %5775 = vmatpush1.bf16.msra.mxu0 0
  %5776 = vmatprep.subr.bf16.mxu0 0
  %5777 = vmatpush1.bf16.msra.mxu0 0
  %5778 = vmatprep.subr.bf16.mxu0 0
  %5779 = vmatpush1.bf16.msra.mxu0 0
  %5780 = vmatprep.subr.bf16.mxu0 0
  %5781 = vmatpush1.bf16.msra.mxu0 0
  %5782 = vmatprep.subr.bf16.mxu0 0
  %5783 = vmatpush1.bf16.msra.mxu0 0
  %5784 = vmatprep.subr.bf16.mxu0 0
  %5785 = vmatpush1.bf16.msra.mxu0 0
  %5786 = vmatprep.mubr.bf16.mxu0 0
  %5787 = vmatmul.mubr.bf16.gmra.mrb[0].mxu0 %v5293
  %v5788 = vpop.f32.mrb[0].mxu0
  %v5789 = vadd.f32 %v5749, %v5788
  %v5790 = vpop.f32.mrb[0].mxu0
  %v5791 = vpop.f32.mrb[0].mxu0
  %v5792 = vpop.f32.mrb[0].mxu0
  %5793 = vdwg.mxu0
  %v5794 = vadd.f32 %v5242, %v5789
  %v5795 = vadd.f32 %v5521, %v2840
  %v5796 = vmax.f32 %v5795, 0.0
  %v5797 = vadd.f32 %v5794, %v2840
  %v5798 = vmax.f32 %v5797, 0.0
  %v5799 = vmax.f32 %v5796, %v5798
  %5800 = vmatprep.subr.mxu0 0.0
  %5801 = vmatpush1.msra.mxu0 %v5799
  %5802 = vmatprep.subr.mxu0 0.0
  %5803 = vmatpush1.msra.mxu0 0.0
  %5804 = vmatprep.subr.mxu0 0.0
  %5805 = vmatpush1.msra.mxu0 0.0
  %5806 = vmatprep.subr.mxu0 0.0
  %5807 = vmatpush1.msra.mxu0 0.0
  %5808 = vmatprep.subr.mxu0 0.0
  %5809 = vmatpush1.msra.mxu0 0.0
  %5810 = vmatprep.subr.mxu0 0.0
  %5811 = vmatpush1.msra.mxu0 0.0
  %5812 = vmatprep.subr.mxu0 0.0
  %5813 = vmatpush1.msra.mxu0 0.0
  %5814 = vmatprep.subr.mxu0 0.0
  %5815 = vmatpush1.msra.mxu0 0.0
  %5816 = vmatprep.subr.mxu0 0.0
  %5817 = vmatpush1.msra.mxu0 0.0
  %5818 = vmatprep.subr.mxu0 0.0
  %5819 = vmatpush1.msra.mxu0 0.0
  %5820 = vmatprep.subr.mxu0 0.0
  %5821 = vmatpush1.msra.mxu0 0.0
  %5822 = vmatprep.subr.mxu0 0.0
  %5823 = vmatpush1.msra.mxu0 0.0
  %5824 = vmatprep.subr.mxu0 0.0
  %5825 = vmatpush1.msra.mxu0 0.0
  %5826 = vmatprep.subr.mxu0 0.0
  %5827 = vmatpush1.msra.mxu0 0.0
  %5828 = vmatprep.subr.mxu0 0.0
  %5829 = vmatpush1.msra.mxu0 0.0
  %5830 = vmatprep.subr.mxu0 0.0
  %5831 = vmatpush1.msra.mxu0 0.0
  %5832 = vmatprep.subr.mxu0 0.0
  %5833 = vmatpush1.msra.mxu0 0.0
  %5834 = vmatprep.subr.mxu0 0.0
  %5835 = vmatpush1.msra.mxu0 0.0
  %5836 = vmatprep.subr.mxu0 0.0
  %5837 = vmatpush1.msra.mxu0 0.0
  %5838 = vmatprep.subr.mxu0 0.0
  %5839 = vmatpush1.msra.mxu0 0.0
  %5840 = vmatprep.subr.mxu0 0.0
  %5841 = vmatpush1.msra.mxu0 0.0
  %5842 = vmatprep.subr.mxu0 0.0
  %5843 = vmatpush1.msra.mxu0 0.0
  %5844 = vmatprep.subr.mxu0 0.0
  %5845 = vmatpush1.msra.mxu0 0.0
  %5846 = vmatprep.subr.mxu0 0.0
  %5847 = vmatpush1.msra.mxu0 0.0
  %5848 = vmatprep.subr.mxu0 0.0
  %5849 = vmatpush1.msra.mxu0 0.0
  %5850 = vmatprep.subr.mxu0 0.0
  %5851 = vmatpush1.msra.mxu0 0.0
  %5852 = vmatprep.subr.mxu0 0.0
  %5853 = vmatpush1.msra.mxu0 0.0
  %5854 = vmatprep.subr.mxu0 0.0
  %5855 = vmatpush1.msra.mxu0 0.0
  %5856 = vmatprep.subr.mxu0 0.0
  %5857 = vmatpush1.msra.mxu0 0.0
  %5858 = vmatprep.subr.mxu0 0.0
  %5859 = vmatpush1.msra.mxu0 0.0
  %5860 = vmatprep.subr.mxu0 0.0
  %5861 = vmatpush1.msra.mxu0 0.0
  %5862 = vmatprep.subr.mxu0 0.0
  %5863 = vmatpush1.msra.mxu0 0.0
  %5864 = vmatprep.mubr.f32.mxu0 0.0
  %5865 = vmatmul.mubr.f32.gmra.mrb[0].mxu0 %v2849
  %v5866 = vpop.f32.mrb[0].mxu0
  %v5867 = vadd.f32 0.0, %v5866
  %v5868 = vpop.f32.mrb[0].mxu0
  %5869 = vdwg.mxu0
  %5870 = vmatprep.subr.mxu0 0.0
  %5871 = vmatpush1.msra.mxu0 %v5799
  %5872 = vmatprep.subr.mxu0 0.0
  %5873 = vmatpush1.msra.mxu0 0.0
  %5874 = vmatprep.subr.mxu0 0.0
  %5875 = vmatpush1.msra.mxu0 0.0
  %5876 = vmatprep.subr.mxu0 0.0
  %5877 = vmatpush1.msra.mxu0 0.0
  %5878 = vmatprep.subr.mxu0 0.0
  %5879 = vmatpush1.msra.mxu0 0.0
  %5880 = vmatprep.subr.mxu0 0.0
  %5881 = vmatpush1.msra.mxu0 0.0
  %5882 = vmatprep.subr.mxu0 0.0
  %5883 = vmatpush1.msra.mxu0 0.0
  %5884 = vmatprep.subr.mxu0 0.0
  %5885 = vmatpush1.msra.mxu0 0.0
  %5886 = vmatprep.subr.mxu0 0.0
  %5887 = vmatpush1.msra.mxu0 0.0
  %5888 = vmatprep.subr.mxu0 0.0
  %5889 = vmatpush1.msra.mxu0 0.0
  %5890 = vmatprep.subr.mxu0 0.0
  %5891 = vmatpush1.msra.mxu0 0.0
  %5892 = vmatprep.subr.mxu0 0.0
  %5893 = vmatpush1.msra.mxu0 0.0
  %5894 = vmatprep.subr.mxu0 0.0
  %5895 = vmatpush1.msra.mxu0 0.0
  %5896 = vmatprep.subr.mxu0 0.0
  %5897 = vmatpush1.msra.mxu0 0.0
  %5898 = vmatprep.subr.mxu0 0.0
  %5899 = vmatpush1.msra.mxu0 0.0
  %5900 = vmatprep.subr.mxu0 0.0
  %5901 = vmatpush1.msra.mxu0 0.0
  %5902 = vmatprep.subr.mxu0 0.0
  %5903 = vmatpush1.msra.mxu0 0.0
  %5904 = vmatprep.subr.mxu0 0.0
  %5905 = vmatpush1.msra.mxu0 0.0
  %5906 = vmatprep.subr.mxu0 0.0
  %5907 = vmatpush1.msra.mxu0 0.0
  %5908 = vmatprep.subr.mxu0 0.0
  %5909 = vmatpush1.msra.mxu0 0.0
  %5910 = vmatprep.subr.mxu0 0.0
  %5911 = vmatpush1.msra.mxu0 0.0
  %5912 = vmatprep.subr.mxu0 0.0
  %5913 = vmatpush1.msra.mxu0 0.0
  %5914 = vmatprep.subr.mxu0 0.0
  %5915 = vmatpush1.msra.mxu0 0.0
  %5916 = vmatprep.subr.mxu0 0.0
  %5917 = vmatpush1.msra.mxu0 0.0
  %5918 = vmatprep.subr.mxu0 0.0
  %5919 = vmatpush1.msra.mxu0 0.0
  %5920 = vmatprep.subr.mxu0 0.0
  %5921 = vmatpush1.msra.mxu0 0.0
  %5922 = vmatprep.subr.mxu0 0.0
  %5923 = vmatpush1.msra.mxu0 0.0
  %5924 = vmatprep.subr.mxu0 0.0
  %5925 = vmatpush1.msra.mxu0 0.0
  %5926 = vmatprep.subr.mxu0 0.0
  %5927 = vmatpush1.msra.mxu0 0.0
  %5928 = vmatprep.subr.mxu0 0.0
  %5929 = vmatpush1.msra.mxu0 0.0
  %5930 = vmatprep.subr.mxu0 0.0
  %5931 = vmatpush1.msra.mxu0 0.0
  %5932 = vmatprep.subr.mxu0 0.0
  %5933 = vmatpush1.msra.mxu0 0.0
  %5934 = vmatprep.mubr.f32.mxu0 0.0
  %5935 = vmatmul.mubr.f32.gmra.mrb[0].mxu0 %v2922
  %v5936 = vpop.f32.mrb[0].mxu0
  %v5937 = vadd.f32 0.0, %v5936
  %v5938 = vpop.f32.mrb[0].mxu0
  %5939 = vdwg.mxu0
  %v5940 = vmax.f32 %v5867, %v5937
  %v5941 = vpack.c.bf16 %v5940, %v5940
  %s5942 = scalar_lea.vmem %s4, 2
  %5943 = vst [vmem:[%s5942] sm:$0x3] %v5941
  // Predicated region
  $region18: #{forward.5} parent=0 // pred_check
    _
  $region19: #{forward.5} parent=0 // pred_check_branch
    %5945 = sbr.rel (0) target = $region21
  $region20: #{forward.5} parent=0 // pred_region
    _
  $region21: #{forward.5} parent=0 // pred_fallthru
    _
  // Predicated region
  $region22: #{forward.5} parent=0 // pred_check
    _
  $region23: #{forward.5} parent=0 // pred_check_branch
    %5947 = sbr.rel (0) target = $region25
  $region24: #{forward.5} parent=0 // pred_region
    _
  $region25: #{forward.5} parent=0 // pred_fallthru
    _

</llo_original>
